<compile_context>
chip_gen: v6e
topology: v6e:2x2x1
jax: 0.10.0
libtpu: 0.0.40
codegen_flags: <defaults>
</compile_context>

<pallas_src>
import numpy as np
import jax
import jax.numpy as jnp
from jax.experimental import pallas as pl
from jax.experimental.pallas import tpu as pltpu

_BN_EPS = 1e-5
_LRELU_SLOPE = 0.2

CONFIG = {
    "video_feature_sizes": [16, 128],
    "video_kernel_sizes": [3, 3],
    "video_stride": 2,
    "audio_feature_sizes": [1, 32, 64],
    "audio_kernel_sizes": [16, 8],
    "audio_stride": [4, 2],
    "audio_length": 200,
}
IMG_SIZE = (40, 20)  # (H, W)


# ----------------------------------------------------------------------------
# Fused Pallas kernel (everything VMEM-resident)
# ----------------------------------------------------------------------------


def _bn_lrelu(acc, bn_ref):
    # bn_ref rows: 0 = conv bias, 1 = BN gamma, 2 = BN beta.
    # BatchNorm uses training-mode (biased) batch statistics over all rows.
    acc = acc + bn_ref[0:1, :]
    mean = jnp.mean(acc, axis=0, keepdims=True)
    var = jnp.mean(jnp.square(acc - mean), axis=0, keepdims=True)
    y = (acc - mean) * jax.lax.rsqrt(var + _BN_EPS) * bn_ref[1:2, :] + bn_ref[2:3, :]
    return jnp.where(y >= 0.0, y, _LRELU_SLOPE * y)


def _branch(p0_ref, w0_ref, bn0_ref, g_ref, w1_ref, bn1_ref, e_ref, wlin_ref, blin_ref):
    """One encoder branch: conv0(BN,LReLU) -> conv1(BN,LReLU) -> flatten -> Linear."""
    # ---- layer 0: im2col patches @ W0  -> BN -> LeakyReLU          [R0, C0]
    h0 = _bn_lrelu(
        jnp.dot(p0_ref[...], w0_ref[...], preferred_element_type=jnp.float32),
        bn0_ref,
    )

    # ---- layer 1: strided conv as sum over taps of (G_t @ h0) @ W1_t
    taps = w1_ref.shape[0]
    r1 = g_ref.shape[1]
    c1 = w1_ref.shape[2]
    acc = jnp.zeros((r1, c1), jnp.float32)
    for t in range(taps):
        gathered = jnp.dot(g_ref[t], h0, preferred_element_type=jnp.float32)
        acc = acc + jnp.dot(gathered, w1_ref[t], preferred_element_type=jnp.float32)
    y1 = _bn_lrelu(acc, bn1_ref)                                     # [R1, C1]

    # ---- flatten + Linear: emb[n,:] = sum_p (E_p @ y1) @ Wlin[p]  (+ bias)
    npos = e_ref.shape[0]
    nrow = e_ref.shape[1]
    dout = wlin_ref.shape[2]
    emb = jnp.zeros((nrow, dout), jnp.float32)
    for p in range(npos):
        rows = jnp.dot(e_ref[p], y1, preferred_element_type=jnp.float32)
        emb = emb + jnp.dot(rows, wlin_ref[p], preferred_element_type=jnp.float32)
    return emb + blin_ref[...]


def _sync_disc_kernel(
    vp0_ref, wv0_ref, bnv0_ref, gv_ref, wv1_ref, bnv1_ref, ev_ref, wvlin_ref, vlinb_ref,
    ap0_ref, wa0_ref, bna0_ref, ga_ref, wa1_ref, bna1_ref, ea_ref, walin_ref, alinb_ref,
    wd_ref, bd_ref,
    out_ref,
):
    femb = _branch(vp0_ref, wv0_ref, bnv0_ref, gv_ref, wv1_ref, bnv1_ref,
                   ev_ref, wvlin_ref, vlinb_ref)                     # [Nf, 256]
    aemb = _branch(ap0_ref, wa0_ref, bna0_ref, ga_ref, wa1_ref, bna1_ref,
                   ea_ref, walin_ref, alinb_ref)                     # [Na, 256]

    # Static-shape equivalent of SyncDiscriminator.pad (zero-pad the shorter one).
    r_out = out_ref.shape[0]
    emb_dim = femb.shape[1]
    if femb.shape[0] < r_out:
        femb = jnp.concatenate(
            [femb, jnp.zeros((r_out - femb.shape[0], emb_dim), jnp.float32)], axis=0)
    if aemb.shape[0] < r_out:
        aemb = jnp.concatenate(
            [aemb, jnp.zeros((r_out - aemb.shape[0], emb_dim), jnp.float32)], axis=0)

    # sim_score = (frame_emb - audio_emb)^2 ; Linear(256,1) ; Sigmoid
    d = femb - aemb
    sim = d * d
    logit = jnp.sum(sim * wd_ref[...], axis=-1, keepdims=True) + bd_ref[...]
    out_ref[...] = 1.0 / (1.0 + jnp.exp(-logit))


# ----------------------------------------------------------------------------
# Plain-JAX glue: layer-0 im2col (tiny) + static selection-matrix builders
# ----------------------------------------------------------------------------


def im2col2d(x, kh, kw, sh, sw):
    """x: [N, C, H, W] -> ([N*oh*ow, C*kh*kw], oh, ow); column order (C, kh, kw)."""
    n, c, h, w = x.shape
    oh = (h - kh) // sh + 1
    ow = (w - kw) // sw + 1
    cols = []
    for i in range(kh):
        for j in range(kw):
            cols.append(
                x[:, :, i: i + sh * (oh - 1) + 1: sh, j: j + sw * (ow - 1) + 1: sw])
    p = jnp.stack(cols, axis=-1)        # [N, C, oh, ow, kh*kw]
    p = p.transpose(0, 2, 3, 1, 4)      # [N, oh, ow, C, kh*kw]
    return p.reshape(n * oh * ow, c * kh * kw), oh, ow


def im2col1d(x, k, s):
    """x: [N, C, L] -> ([N*ol, C*k], ol); column order (C, k)."""
    n, c, l = x.shape
    ol = (l - k) // s + 1
    cols = [x[:, :, i: i + s * (ol - 1) + 1: s] for i in range(k)]
    p = jnp.stack(cols, axis=-1)        # [N, C, ol, k]
    p = p.transpose(0, 2, 1, 3)         # [N, ol, C, k]
    return p.reshape(n * ol, c * k), ol


def _selection_matrices_2d(n, ih, iw, k, s):
    """G_t [k*k, R1, R0] gathers conv1 input rows; E_p [P, n, R1] extracts per-chunk rows.
    Output row order: r1 = p*n + nn with p = i*ow + j; input rows r0 = (nn, i, j)."""
    oh = (ih - k) // s + 1
    ow = (iw - k) // s + 1
    r0 = n * ih * iw
    npos = oh * ow
    r1 = npos * n
    g = np.zeros((k * k, r1, r0), np.float32)
    e = np.zeros((npos, n, r1), np.float32)
    for i in range(oh):
        for j in range(ow):
            p = i * ow + j
            for nn in range(n):
                row1 = p * n + nn
                e[p, nn, row1] = 1.0
                for di in range(k):
                    for dj in range(k):
                        t = di * k + dj
                        row0 = nn * ih * iw + (s * i + di) * iw + (s * j + dj)
                        g[t, row1, row0] = 1.0
    return jnp.asarray(g), jnp.asarray(e), oh, ow


def _selection_matrices_1d(n, il, k, s):
    """1-D analogue: output rows r1 = l*n + nn, input rows r0 = (nn, l0)."""
    ol = (il - k) // s + 1
    r0 = n * il
    r1 = ol * n
    g = np.zeros((k, r1, r0), np.float32)
    e = np.zeros((ol, n, r1), np.float32)
    for l in range(ol):
        for nn in range(n):
            row1 = l * n + nn
            e[l, nn, row1] = 1.0
            for t in range(k):
                g[t, row1, nn * il + s * l + t] = 1.0
    return jnp.asarray(g), jnp.asarray(e), ol


# ----------------------------------------------------------------------------
# Parameters (PyTorch layout) and kernel-layout preparation
# ----------------------------------------------------------------------------


def init_params(key):
    ks = jax.random.split(key, 8)
    vf = CONFIG["video_feature_sizes"]
    af = CONFIG["audio_feature_sizes"]
    vk = CONFIG["video_kernel_sizes"]
    ak = CONFIG["audio_kernel_sizes"]

    def w(k, shape, scale=0.02):
        return scale * jax.random.normal(k, shape, jnp.float32)

    return {
        # video layer 0: Conv3d(3, vf[0], (5,4,4), stride=(1,2,2)) + BN3d
        "v0_w": w(ks[0], (vf[0], 3, 5, 4, 4)),
        "v0_b": jnp.zeros((vf[0],), jnp.float32),
        "v0_gamma": jnp.ones((vf[0],), jnp.float32),
        "v0_beta": jnp.zeros((vf[0],), jnp.float32),
        # video layer 1: Conv2d(vf[0], vf[1], vk[0], stride=2) + BN2d
        "v1_w": w(ks[1], (vf[1], vf[0], vk[0], vk[0])),
        "v1_b": jnp.zeros((vf[1],), jnp.float32),
        "v1_gamma": jnp.ones((vf[1],), jnp.float32),
        "v1_beta": jnp.zeros((vf[1],), jnp.float32),
        # video_linear: Linear(2048, 256)
        "vlin_w": w(ks[2], (256, 2048)),
        "vlin_b": jnp.zeros((256,), jnp.float32),
        # audio layer 0: Conv1d(1, af[1], ak[0], stride=4) + BN1d
        "a0_w": w(ks[3], (af[1], 1, ak[0])),
        "a0_b": jnp.zeros((af[1],), jnp.float32),
        "a0_gamma": jnp.ones((af[1],), jnp.float32),
        "a0_beta": jnp.zeros((af[1],), jnp.float32),
        # audio layer 1: Conv1d(af[1], af[2], ak[1], stride=2) + BN1d
        "a1_w": w(ks[4], (af[2], af[1], ak[1])),
        "a1_b": jnp.zeros((af[2],), jnp.float32),
        "a1_gamma": jnp.ones((af[2],), jnp.float32),
        "a1_beta": jnp.zeros((af[2],), jnp.float32),
        # audio_linear: Linear(1280, 256)
        "alin_w": w(ks[5], (256, 1280)),
        "alin_b": jnp.zeros((256,), jnp.float32),
        # discriminator: Linear(256, 1)
        "d_w": w(ks[6], (1, 256)),
        "d_b": jnp.zeros((1,), jnp.float32),
    }


def prepare_kernel_params(params):
    """Convert PyTorch-layout params to the kernel's matmul-friendly layouts (done once)."""
    vf = CONFIG["video_feature_sizes"]
    af = CONFIG["audio_feature_sizes"]
    vk = CONFIG["video_kernel_sizes"]
    ak = CONFIG["audio_kernel_sizes"]
    vs = CONFIG["video_stride"]
    asr = CONFIG["audio_stride"]

    h0 = (IMG_SIZE[0] // 2 - 4) // 2 + 1
    w0 = (IMG_SIZE[1] - 4) // 2 + 1
    h1 = (h0 - vk[0]) // vs + 1
    w1 = (w0 - vk[0]) // vs + 1
    l0 = (CONFIG["audio_length"] - ak[0]) // asr[0] + 1
    l1 = (l0 - ak[1]) // asr[1] + 1
    assert h1 * w1 * vf[1] == 2048 and l1 * af[2] == 1280

    kp = {
        "w_v0": params["v0_w"].reshape(vf[0], -1).T,                          # [240, 16]
        "bn_v0": jnp.stack([params["v0_b"], params["v0_gamma"], params["v0_beta"]]),
        "w_v1": params["v1_w"].transpose(2, 3, 1, 0).reshape(vk[0] * vk[0], vf[0], vf[1]),
        "bn_v1": jnp.stack([params["v1_b"], params["v1_gamma"], params["v1_beta"]]),
        "w_vlin": params["vlin_w"].reshape(256, vf[1], h1, w1)
                                   .transpose(2, 3, 1, 0).reshape(h1 * w1, vf[1], 256),
        "vlin_b": params["vlin_b"].reshape(1, 256),
        "w_a0": params["a0_w"].reshape(af[1], -1).T,                          # [16, 32]
        "bn_a0": jnp.stack([params["a0_b"], params["a0_gamma"], params["a0_beta"]]),
        "w_a1": params["a1_w"].transpose(2, 1, 0),                            # [8, 32, 64]
        "bn_a1": jnp.stack([params["a1_b"], params["a1_gamma"], params["a1_beta"]]),
        "w_alin": params["alin_w"].reshape(256, af[2], l1).transpose(2, 1, 0),  # [20, 64, 256]
        "alin_b": params["alin_b"].reshape(1, 256),
        "w_d": params["d_w"].reshape(1, 256),
        "b_d": params["d_b"].reshape(1, 1),
    }
    return {k: jnp.asarray(v, jnp.float32) for k, v in kp.items()}


# ----------------------------------------------------------------------------
# Forward pass: minimal XLA glue + one fused pallas_call
# ----------------------------------------------------------------------------


@jax.jit
def sync_discriminator_forward(kparams, frames, audio):
    """frames: [Num_Chunks, 5, 3, H, W]; audio: [Chunks, 1, audio_length] -> [Chunks, 1]."""
    vk = CONFIG["video_kernel_sizes"]
    vs = CONFIG["video_stride"]
    ak = CONFIG["audio_kernel_sizes"]
    asr = CONFIG["audio_stride"]

    # ---- video glue: bottom half, collapse (C, T), layer-0 im2col ----------
    h = frames.shape[-2]
    frames = frames[:, :, :, h // 2:, :]
    assert IMG_SIZE[0] // 2 == frames.shape[3]
    frames = frames.transpose(0, 2, 1, 3, 4)                     # [N, 3, 5, H/2, W]
    nf = frames.shape[0]
    x = frames.reshape(nf, frames.shape[1] * frames.shape[2],
                       frames.shape[3], frames.shape[4]).astype(jnp.float32)
    vp0, oh0, ow0 = im2col2d(x, 4, 4, 2, 2)                      # [nf*9*9, 240]

    # ---- audio glue: layer-0 im2col ----------------------------------------
    a = audio
    if a.shape[0] == 1:
        a = jnp.squeeze(a, axis=0)                               # mimics audio.squeeze(0)
    a = a.astype(jnp.float32)
    na = a.shape[0]
    ap0, ol0 = im2col1d(a, ak[0], asr[0])                        # [na*47, 16]

    # ---- static 0/1 selection matrices (trace-time constants) --------------
    g_v, e_v, oh1, ow1 = _selection_matrices_2d(nf, oh0, ow0, vk[0], vs)
    g_a, e_a, ol1 = _selection_matrices_1d(na, ol0, ak[1], asr[1])

    r_out = max(nf, na)

    inputs = (
        vp0, kparams["w_v0"], kparams["bn_v0"], g_v, kparams["w_v1"], kparams["bn_v1"],
        e_v, kparams["w_vlin"], kparams["vlin_b"],
        ap0, kparams["w_a0"], kparams["bn_a0"], g_a, kparams["w_a1"], kparams["bn_a1"],
        e_a, kparams["w_alin"], kparams["alin_b"],
        kparams["w_d"], kparams["b_d"],
    )

    # Advisory cost estimate for XLA scheduling around the fused custom call.
    flops = 2 * (
        vp0.shape[0] * vp0.shape[1] * 16
        + vk[0] * vk[0] * (g_v.shape[1] * g_v.shape[2] * 16 + g_v.shape[1] * 16 * 128)
        + oh1 * ow1 * (nf * g_v.shape[1] * 128 + nf * 128 * 256)
        + ap0.shape[0] * ap0.shape[1] * 32
        + ak[1] * (g_a.shape[1] * g_a.shape[2] * 32 + g_a.shape[1] * 32 * 64)
        + ol1 * (na * g_a.shape[1] * 64 + na * 64 * 256)
        + r_out * 256
    )
    bytes_accessed = sum(int(np.prod(t.shape)) * 4 for t in inputs) + r_out * 4

    return pl.pallas_call(
        _sync_disc_kernel,
        out_shape=jax.ShapeDtypeStruct((r_out, 1), jnp.float32),
        in_specs=[pl.BlockSpec(memory_space=pltpu.MemorySpace.VMEM)] * len(inputs),
        out_specs=pl.BlockSpec(memory_space=pltpu.MemorySpace.VMEM),
        compiler_params=pltpu.CompilerParams(vmem_limit_bytes=32 * 1024 * 1024),
        cost_estimate=pl.CostEstimate(
            flops=int(flops), transcendentals=int(r_out),
            bytes_accessed=int(bytes_accessed)),
    )(*inputs)


# TODO(synk): BatchNorm running-statistics updates (a training-time side effect of the
# PyTorch module) are not reproduced; forward normalization uses batch statistics,
# matching the module's default training-mode forward output.
# TODO(synk): the v7x dual-TensorCore split is intentionally not used: BN batch stats
# require full-batch visibility and the whole workload fits one TC with margin.

if __name__ == "__main__":
    key = jax.random.PRNGKey(0)
    kparam_key, kf, ka = jax.random.split(key, 3)

    params = init_params(kparam_key)
    kparams = prepare_kernel_params(params)

    # Frames: [Num_Chunks=2, ChunkLen=5, C=3, H=40, W=20]
    frames = jax.random.normal(kf, (2, 5, 3, IMG_SIZE[0], IMG_SIZE[1]), jnp.float32)
    # Audio:  [Chunks=2, 1, audio_length=200]
    audio = jax.random.normal(ka, (2, 1, CONFIG["audio_length"]), jnp.float32)

    out = sync_discriminator_forward(kparams, frames, audio)
    out = jax.block_until_ready(out)

    assert out.shape == (2, 1), out.shape
    assert bool(jnp.all(jnp.isfinite(out)))
    assert bool(jnp.all((out >= 0.0) & (out <= 1.0)))
    print("KERNEL_OK")
</pallas_src>

<mosaic_0001>
module attributes {stable_mosaic.version = 11 : i64} {
  func.func @_sync_disc_kernel(%arg0: memref<162x240xf32, #tpu.memory_space<vmem>>, %arg1: memref<240x16xf32, #tpu.memory_space<vmem>>, %arg2: memref<3x16xf32, #tpu.memory_space<vmem>>, %arg3: memref<9x32x162xf32, #tpu.memory_space<vmem>>, %arg4: memref<9x16x128xf32, #tpu.memory_space<vmem>>, %arg5: memref<3x128xf32, #tpu.memory_space<vmem>>, %arg6: memref<16x2x32xf32, #tpu.memory_space<vmem>>, %arg7: memref<16x128x256xf32, #tpu.memory_space<vmem>>, %arg8: memref<1x256xf32, #tpu.memory_space<vmem>>, %arg9: memref<94x16xf32, #tpu.memory_space<vmem>>, %arg10: memref<16x32xf32, #tpu.memory_space<vmem>>, %arg11: memref<3x32xf32, #tpu.memory_space<vmem>>, %arg12: memref<8x40x94xf32, #tpu.memory_space<vmem>>, %arg13: memref<8x32x64xf32, #tpu.memory_space<vmem>>, %arg14: memref<3x64xf32, #tpu.memory_space<vmem>>, %arg15: memref<20x2x40xf32, #tpu.memory_space<vmem>>, %arg16: memref<20x64x256xf32, #tpu.memory_space<vmem>>, %arg17: memref<1x256xf32, #tpu.memory_space<vmem>>, %arg18: memref<1x256xf32, #tpu.memory_space<vmem>>, %arg19: memref<1x1xf32, #tpu.memory_space<vmem>>, %arg20: memref<2x1xf32, #tpu.memory_space<vmem>>) attributes {dimension_semantics = [], scalar_prefetch = 0 : i64, scratch_operands = 0 : i64, tpu.core_type = #tpu.core_type<tc>} {
    %c0 = arith.constant 0 : index
    %c0_0 = arith.constant 0 : index
    %0 = vector.load %arg0[%c0, %c0_0] : memref<162x240xf32, #tpu.memory_space<vmem>>, vector<162x240xf32>
    %c0_1 = arith.constant 0 : index
    %c0_2 = arith.constant 0 : index
    %1 = vector.load %arg1[%c0_1, %c0_2] : memref<240x16xf32, #tpu.memory_space<vmem>>, vector<240x16xf32>
    %cst = arith.constant dense<0.000000e+00> : vector<162x16xf32>
    %2 = tpu.matmul %0, %1, %cst {dimension_numbers = #tpu.dot_dimension_numbers<[1], [0], [0], [1], [0, 0, 1, 1], [], []>} : vector<162x240xf32>, vector<240x16xf32>, vector<162x16xf32> -> vector<162x16xf32>
    %c0_3 = arith.constant 0 : index
    %c0_4 = arith.constant 0 : index
    %3 = vector.load %arg2[%c0_3, %c0_4] : memref<3x16xf32, #tpu.memory_space<vmem>>, vector<1x16xf32>
    %4 = vector.broadcast %3 : vector<1x16xf32> to vector<162x16xf32>
    %5 = arith.addf %2, %4 : vector<162x16xf32>
    %cst_5 = arith.constant dense<0.000000e+00> : vector<16xf32>
    %6 = vector.multi_reduction <add>, %5, %cst_5 [0] : vector<162x16xf32> to vector<16xf32>
    %7 = vector.shape_cast %6 : vector<16xf32> to vector<1x16xf32>
    %cst_6 = arith.constant 1.620000e+02 : f32
    %8 = vector.broadcast %cst_6 : f32 to vector<1x16xf32>
    %9 = arith.divf %7, %8 : vector<1x16xf32>
    %10 = vector.broadcast %9 : vector<1x16xf32> to vector<162x16xf32>
    %11 = arith.subf %5, %10 : vector<162x16xf32>
    %12 = arith.mulf %11, %11 : vector<162x16xf32>
    %cst_7 = arith.constant dense<0.000000e+00> : vector<16xf32>
    %13 = vector.multi_reduction <add>, %12, %cst_7 [0] : vector<162x16xf32> to vector<16xf32>
    %14 = vector.shape_cast %13 : vector<16xf32> to vector<1x16xf32>
    %cst_8 = arith.constant 1.620000e+02 : f32
    %15 = vector.broadcast %cst_8 : f32 to vector<1x16xf32>
    %16 = arith.divf %14, %15 : vector<1x16xf32>
    %17 = vector.broadcast %9 : vector<1x16xf32> to vector<162x16xf32>
    %18 = arith.subf %5, %17 : vector<162x16xf32>
    %cst_9 = arith.constant 9.99999974E-6 : f32
    %19 = vector.broadcast %cst_9 : f32 to vector<1x16xf32>
    %20 = arith.addf %16, %19 : vector<1x16xf32>
    %21 = math.rsqrt %20 : vector<1x16xf32>
    %22 = vector.broadcast %21 : vector<1x16xf32> to vector<162x16xf32>
    %23 = arith.mulf %18, %22 : vector<162x16xf32>
    %c1 = arith.constant 1 : index
    %c0_10 = arith.constant 0 : index
    %24 = vector.load %arg2[%c1, %c0_10] : memref<3x16xf32, #tpu.memory_space<vmem>>, vector<1x16xf32>
    %25 = vector.broadcast %24 : vector<1x16xf32> to vector<162x16xf32>
    %26 = arith.mulf %23, %25 : vector<162x16xf32>
    %c2 = arith.constant 2 : index
    %c0_11 = arith.constant 0 : index
    %27 = vector.load %arg2[%c2, %c0_11] : memref<3x16xf32, #tpu.memory_space<vmem>>, vector<1x16xf32>
    %28 = vector.broadcast %27 : vector<1x16xf32> to vector<162x16xf32>
    %29 = arith.addf %26, %28 : vector<162x16xf32>
    %cst_12 = arith.constant 0.000000e+00 : f32
    %30 = vector.broadcast %cst_12 : f32 to vector<162x16xf32>
    %31 = arith.cmpf oge, %29, %30 : vector<162x16xf32>
    %cst_13 = arith.constant 2.000000e-01 : f32
    %32 = vector.broadcast %cst_13 : f32 to vector<162x16xf32>
    %33 = arith.mulf %32, %29 : vector<162x16xf32>
    %34 = arith.select %31, %29, %33 : vector<162x16xi1>, vector<162x16xf32>
    %cst_14 = arith.constant 0.000000e+00 : f32
    %35 = vector.broadcast %cst_14 : f32 to vector<32x128xf32>
    %c0_15 = arith.constant 0 : index
    %c0_16 = arith.constant 0 : index
    %c0_17 = arith.constant 0 : index
    %36 = vector.load %arg3[%c0_15, %c0_16, %c0_17] : memref<9x32x162xf32, #tpu.memory_space<vmem>>, vector<1x32x162xf32>
    %37 = vector.shape_cast %36 : vector<1x32x162xf32> to vector<32x162xf32>
    %cst_18 = arith.constant dense<0.000000e+00> : vector<32x16xf32>
    %38 = tpu.matmul %37, %34, %cst_18 {dimension_numbers = #tpu.dot_dimension_numbers<[1], [0], [0], [1], [0, 0, 1, 1], [], []>} : vector<32x162xf32>, vector<162x16xf32>, vector<32x16xf32> -> vector<32x16xf32>
    %c0_19 = arith.constant 0 : index
    %c0_20 = arith.constant 0 : index
    %c0_21 = arith.constant 0 : index
    %39 = vector.load %arg4[%c0_19, %c0_20, %c0_21] : memref<9x16x128xf32, #tpu.memory_space<vmem>>, vector<1x16x128xf32>
    %40 = vector.shape_cast %39 : vector<1x16x128xf32> to vector<16x128xf32>
    %cst_22 = arith.constant dense<0.000000e+00> : vector<32x128xf32>
    %41 = tpu.matmul %38, %40, %cst_22 {dimension_numbers = #tpu.dot_dimension_numbers<[1], [0], [0], [1], [0, 0, 1, 1], [], []>} : vector<32x16xf32>, vector<16x128xf32>, vector<32x128xf32> -> vector<32x128xf32>
    %42 = arith.addf %35, %41 : vector<32x128xf32>
    %c1_23 = arith.constant 1 : index
    %c0_24 = arith.constant 0 : index
    %c0_25 = arith.constant 0 : index
    %43 = vector.load %arg3[%c1_23, %c0_24, %c0_25] : memref<9x32x162xf32, #tpu.memory_space<vmem>>, vector<1x32x162xf32>
    %44 = vector.shape_cast %43 : vector<1x32x162xf32> to vector<32x162xf32>
    %cst_26 = arith.constant dense<0.000000e+00> : vector<32x16xf32>
    %45 = tpu.matmul %44, %34, %cst_26 {dimension_numbers = #tpu.dot_dimension_numbers<[1], [0], [0], [1], [0, 0, 1, 1], [], []>} : vector<32x162xf32>, vector<162x16xf32>, vector<32x16xf32> -> vector<32x16xf32>
    %c1_27 = arith.constant 1 : index
    %c0_28 = arith.constant 0 : index
    %c0_29 = arith.constant 0 : index
    %46 = vector.load %arg4[%c1_27, %c0_28, %c0_29] : memref<9x16x128xf32, #tpu.memory_space<vmem>>, vector<1x16x128xf32>
    %47 = vector.shape_cast %46 : vector<1x16x128xf32> to vector<16x128xf32>
    %cst_30 = arith.constant dense<0.000000e+00> : vector<32x128xf32>
    %48 = tpu.matmul %45, %47, %cst_30 {dimension_numbers = #tpu.dot_dimension_numbers<[1], [0], [0], [1], [0, 0, 1, 1], [], []>} : vector<32x16xf32>, vector<16x128xf32>, vector<32x128xf32> -> vector<32x128xf32>
    %49 = arith.addf %42, %48 : vector<32x128xf32>
    %c2_31 = arith.constant 2 : index
    %c0_32 = arith.constant 0 : index
    %c0_33 = arith.constant 0 : index
    %50 = vector.load %arg3[%c2_31, %c0_32, %c0_33] : memref<9x32x162xf32, #tpu.memory_space<vmem>>, vector<1x32x162xf32>
    %51 = vector.shape_cast %50 : vector<1x32x162xf32> to vector<32x162xf32>
    %cst_34 = arith.constant dense<0.000000e+00> : vector<32x16xf32>
    %52 = tpu.matmul %51, %34, %cst_34 {dimension_numbers = #tpu.dot_dimension_numbers<[1], [0], [0], [1], [0, 0, 1, 1], [], []>} : vector<32x162xf32>, vector<162x16xf32>, vector<32x16xf32> -> vector<32x16xf32>
    %c2_35 = arith.constant 2 : index
    %c0_36 = arith.constant 0 : index
    %c0_37 = arith.constant 0 : index
    %53 = vector.load %arg4[%c2_35, %c0_36, %c0_37] : memref<9x16x128xf32, #tpu.memory_space<vmem>>, vector<1x16x128xf32>
    %54 = vector.shape_cast %53 : vector<1x16x128xf32> to vector<16x128xf32>
    %cst_38 = arith.constant dense<0.000000e+00> : vector<32x128xf32>
    %55 = tpu.matmul %52, %54, %cst_38 {dimension_numbers = #tpu.dot_dimension_numbers<[1], [0], [0], [1], [0, 0, 1, 1], [], []>} : vector<32x16xf32>, vector<16x128xf32>, vector<32x128xf32> -> vector<32x128xf32>
    %56 = arith.addf %49, %55 : vector<32x128xf32>
    %c3 = arith.constant 3 : index
    %c0_39 = arith.constant 0 : index
    %c0_40 = arith.constant 0 : index
    %57 = vector.load %arg3[%c3, %c0_39, %c0_40] : memref<9x32x162xf32, #tpu.memory_space<vmem>>, vector<1x32x162xf32>
    %58 = vector.shape_cast %57 : vector<1x32x162xf32> to vector<32x162xf32>
    %cst_41 = arith.constant dense<0.000000e+00> : vector<32x16xf32>
    %59 = tpu.matmul %58, %34, %cst_41 {dimension_numbers = #tpu.dot_dimension_numbers<[1], [0], [0], [1], [0, 0, 1, 1], [], []>} : vector<32x162xf32>, vector<162x16xf32>, vector<32x16xf32> -> vector<32x16xf32>
    %c3_42 = arith.constant 3 : index
    %c0_43 = arith.constant 0 : index
    %c0_44 = arith.constant 0 : index
    %60 = vector.load %arg4[%c3_42, %c0_43, %c0_44] : memref<9x16x128xf32, #tpu.memory_space<vmem>>, vector<1x16x128xf32>
    %61 = vector.shape_cast %60 : vector<1x16x128xf32> to vector<16x128xf32>
    %cst_45 = arith.constant dense<0.000000e+00> : vector<32x128xf32>
    %62 = tpu.matmul %59, %61, %cst_45 {dimension_numbers = #tpu.dot_dimension_numbers<[1], [0], [0], [1], [0, 0, 1, 1], [], []>} : vector<32x16xf32>, vector<16x128xf32>, vector<32x128xf32> -> vector<32x128xf32>
    %63 = arith.addf %56, %62 : vector<32x128xf32>
    %c4 = arith.constant 4 : index
    %c0_46 = arith.constant 0 : index
    %c0_47 = arith.constant 0 : index
    %64 = vector.load %arg3[%c4, %c0_46, %c0_47] : memref<9x32x162xf32, #tpu.memory_space<vmem>>, vector<1x32x162xf32>
    %65 = vector.shape_cast %64 : vector<1x32x162xf32> to vector<32x162xf32>
    %cst_48 = arith.constant dense<0.000000e+00> : vector<32x16xf32>
    %66 = tpu.matmul %65, %34, %cst_48 {dimension_numbers = #tpu.dot_dimension_numbers<[1], [0], [0], [1], [0, 0, 1, 1], [], []>} : vector<32x162xf32>, vector<162x16xf32>, vector<32x16xf32> -> vector<32x16xf32>
    %c4_49 = arith.constant 4 : index
    %c0_50 = arith.constant 0 : index
    %c0_51 = arith.constant 0 : index
    %67 = vector.load %arg4[%c4_49, %c0_50, %c0_51] : memref<9x16x128xf32, #tpu.memory_space<vmem>>, vector<1x16x128xf32>
    %68 = vector.shape_cast %67 : vector<1x16x128xf32> to vector<16x128xf32>
    %cst_52 = arith.constant dense<0.000000e+00> : vector<32x128xf32>
    %69 = tpu.matmul %66, %68, %cst_52 {dimension_numbers = #tpu.dot_dimension_numbers<[1], [0], [0], [1], [0, 0, 1, 1], [], []>} : vector<32x16xf32>, vector<16x128xf32>, vector<32x128xf32> -> vector<32x128xf32>
    %70 = arith.addf %63, %69 : vector<32x128xf32>
    %c5 = arith.constant 5 : index
    %c0_53 = arith.constant 0 : index
    %c0_54 = arith.constant 0 : index
    %71 = vector.load %arg3[%c5, %c0_53, %c0_54] : memref<9x32x162xf32, #tpu.memory_space<vmem>>, vector<1x32x162xf32>
    %72 = vector.shape_cast %71 : vector<1x32x162xf32> to vector<32x162xf32>
    %cst_55 = arith.constant dense<0.000000e+00> : vector<32x16xf32>
    %73 = tpu.matmul %72, %34, %cst_55 {dimension_numbers = #tpu.dot_dimension_numbers<[1], [0], [0], [1], [0, 0, 1, 1], [], []>} : vector<32x162xf32>, vector<162x16xf32>, vector<32x16xf32> -> vector<32x16xf32>
    %c5_56 = arith.constant 5 : index
    %c0_57 = arith.constant 0 : index
    %c0_58 = arith.constant 0 : index
    %74 = vector.load %arg4[%c5_56, %c0_57, %c0_58] : memref<9x16x128xf32, #tpu.memory_space<vmem>>, vector<1x16x128xf32>
    %75 = vector.shape_cast %74 : vector<1x16x128xf32> to vector<16x128xf32>
    %cst_59 = arith.constant dense<0.000000e+00> : vector<32x128xf32>
    %76 = tpu.matmul %73, %75, %cst_59 {dimension_numbers = #tpu.dot_dimension_numbers<[1], [0], [0], [1], [0, 0, 1, 1], [], []>} : vector<32x16xf32>, vector<16x128xf32>, vector<32x128xf32> -> vector<32x128xf32>
    %77 = arith.addf %70, %76 : vector<32x128xf32>
    %c6 = arith.constant 6 : index
    %c0_60 = arith.constant 0 : index
    %c0_61 = arith.constant 0 : index
    %78 = vector.load %arg3[%c6, %c0_60, %c0_61] : memref<9x32x162xf32, #tpu.memory_space<vmem>>, vector<1x32x162xf32>
    %79 = vector.shape_cast %78 : vector<1x32x162xf32> to vector<32x162xf32>
    %cst_62 = arith.constant dense<0.000000e+00> : vector<32x16xf32>
    %80 = tpu.matmul %79, %34, %cst_62 {dimension_numbers = #tpu.dot_dimension_numbers<[1], [0], [0], [1], [0, 0, 1, 1], [], []>} : vector<32x162xf32>, vector<162x16xf32>, vector<32x16xf32> -> vector<32x16xf32>
    %c6_63 = arith.constant 6 : index
    %c0_64 = arith.constant 0 : index
    %c0_65 = arith.constant 0 : index
    %81 = vector.load %arg4[%c6_63, %c0_64, %c0_65] : memref<9x16x128xf32, #tpu.memory_space<vmem>>, vector<1x16x128xf32>
    %82 = vector.shape_cast %81 : vector<1x16x128xf32> to vector<16x128xf32>
    %cst_66 = arith.constant dense<0.000000e+00> : vector<32x128xf32>
    %83 = tpu.matmul %80, %82, %cst_66 {dimension_numbers = #tpu.dot_dimension_numbers<[1], [0], [0], [1], [0, 0, 1, 1], [], []>} : vector<32x16xf32>, vector<16x128xf32>, vector<32x128xf32> -> vector<32x128xf32>
    %84 = arith.addf %77, %83 : vector<32x128xf32>
    %c7 = arith.constant 7 : index
    %c0_67 = arith.constant 0 : index
    %c0_68 = arith.constant 0 : index
    %85 = vector.load %arg3[%c7, %c0_67, %c0_68] : memref<9x32x162xf32, #tpu.memory_space<vmem>>, vector<1x32x162xf32>
    %86 = vector.shape_cast %85 : vector<1x32x162xf32> to vector<32x162xf32>
    %cst_69 = arith.constant dense<0.000000e+00> : vector<32x16xf32>
    %87 = tpu.matmul %86, %34, %cst_69 {dimension_numbers = #tpu.dot_dimension_numbers<[1], [0], [0], [1], [0, 0, 1, 1], [], []>} : vector<32x162xf32>, vector<162x16xf32>, vector<32x16xf32> -> vector<32x16xf32>
    %c7_70 = arith.constant 7 : index
    %c0_71 = arith.constant 0 : index
    %c0_72 = arith.constant 0 : index
    %88 = vector.load %arg4[%c7_70, %c0_71, %c0_72] : memref<9x16x128xf32, #tpu.memory_space<vmem>>, vector<1x16x128xf32>
    %89 = vector.shape_cast %88 : vector<1x16x128xf32> to vector<16x128xf32>
    %cst_73 = arith.constant dense<0.000000e+00> : vector<32x128xf32>
    %90 = tpu.matmul %87, %89, %cst_73 {dimension_numbers = #tpu.dot_dimension_numbers<[1], [0], [0], [1], [0, 0, 1, 1], [], []>} : vector<32x16xf32>, vector<16x128xf32>, vector<32x128xf32> -> vector<32x128xf32>
    %91 = arith.addf %84, %90 : vector<32x128xf32>
    %c8 = arith.constant 8 : index
    %c0_74 = arith.constant 0 : index
    %c0_75 = arith.constant 0 : index
    %92 = vector.load %arg3[%c8, %c0_74, %c0_75] : memref<9x32x162xf32, #tpu.memory_space<vmem>>, vector<1x32x162xf32>
    %93 = vector.shape_cast %92 : vector<1x32x162xf32> to vector<32x162xf32>
    %cst_76 = arith.constant dense<0.000000e+00> : vector<32x16xf32>
    %94 = tpu.matmul %93, %34, %cst_76 {dimension_numbers = #tpu.dot_dimension_numbers<[1], [0], [0], [1], [0, 0, 1, 1], [], []>} : vector<32x162xf32>, vector<162x16xf32>, vector<32x16xf32> -> vector<32x16xf32>
    %c8_77 = arith.constant 8 : index
    %c0_78 = arith.constant 0 : index
    %c0_79 = arith.constant 0 : index
    %95 = vector.load %arg4[%c8_77, %c0_78, %c0_79] : memref<9x16x128xf32, #tpu.memory_space<vmem>>, vector<1x16x128xf32>
    %96 = vector.shape_cast %95 : vector<1x16x128xf32> to vector<16x128xf32>
    %cst_80 = arith.constant dense<0.000000e+00> : vector<32x128xf32>
    %97 = tpu.matmul %94, %96, %cst_80 {dimension_numbers = #tpu.dot_dimension_numbers<[1], [0], [0], [1], [0, 0, 1, 1], [], []>} : vector<32x16xf32>, vector<16x128xf32>, vector<32x128xf32> -> vector<32x128xf32>
    %98 = arith.addf %91, %97 : vector<32x128xf32>
    %c0_81 = arith.constant 0 : index
    %c0_82 = arith.constant 0 : index
    %99 = vector.load %arg5[%c0_81, %c0_82] : memref<3x128xf32, #tpu.memory_space<vmem>>, vector<1x128xf32>
    %100 = vector.broadcast %99 : vector<1x128xf32> to vector<32x128xf32>
    %101 = arith.addf %98, %100 : vector<32x128xf32>
    %cst_83 = arith.constant dense<0.000000e+00> : vector<128xf32>
    %102 = vector.multi_reduction <add>, %101, %cst_83 [0] : vector<32x128xf32> to vector<128xf32>
    %103 = vector.shape_cast %102 : vector<128xf32> to vector<1x128xf32>
    %cst_84 = arith.constant 3.200000e+01 : f32
    %104 = vector.broadcast %cst_84 : f32 to vector<1x128xf32>
    %105 = arith.divf %103, %104 : vector<1x128xf32>
    %106 = vector.broadcast %105 : vector<1x128xf32> to vector<32x128xf32>
    %107 = arith.subf %101, %106 : vector<32x128xf32>
    %108 = arith.mulf %107, %107 : vector<32x128xf32>
    %cst_85 = arith.constant dense<0.000000e+00> : vector<128xf32>
    %109 = vector.multi_reduction <add>, %108, %cst_85 [0] : vector<32x128xf32> to vector<128xf32>
    %110 = vector.shape_cast %109 : vector<128xf32> to vector<1x128xf32>
    %cst_86 = arith.constant 3.200000e+01 : f32
    %111 = vector.broadcast %cst_86 : f32 to vector<1x128xf32>
    %112 = arith.divf %110, %111 : vector<1x128xf32>
    %113 = vector.broadcast %105 : vector<1x128xf32> to vector<32x128xf32>
    %114 = arith.subf %101, %113 : vector<32x128xf32>
    %cst_87 = arith.constant 9.99999974E-6 : f32
    %115 = vector.broadcast %cst_87 : f32 to vector<1x128xf32>
    %116 = arith.addf %112, %115 : vector<1x128xf32>
    %117 = math.rsqrt %116 : vector<1x128xf32>
    %118 = vector.broadcast %117 : vector<1x128xf32> to vector<32x128xf32>
    %119 = arith.mulf %114, %118 : vector<32x128xf32>
    %c1_88 = arith.constant 1 : index
    %c0_89 = arith.constant 0 : index
    %120 = vector.load %arg5[%c1_88, %c0_89] : memref<3x128xf32, #tpu.memory_space<vmem>>, vector<1x128xf32>
    %121 = vector.broadcast %120 : vector<1x128xf32> to vector<32x128xf32>
    %122 = arith.mulf %119, %121 : vector<32x128xf32>
    %c2_90 = arith.constant 2 : index
    %c0_91 = arith.constant 0 : index
    %123 = vector.load %arg5[%c2_90, %c0_91] : memref<3x128xf32, #tpu.memory_space<vmem>>, vector<1x128xf32>
    %124 = vector.broadcast %123 : vector<1x128xf32> to vector<32x128xf32>
    %125 = arith.addf %122, %124 : vector<32x128xf32>
    %cst_92 = arith.constant 0.000000e+00 : f32
    %126 = vector.broadcast %cst_92 : f32 to vector<32x128xf32>
    %127 = arith.cmpf oge, %125, %126 : vector<32x128xf32>
    %cst_93 = arith.constant 2.000000e-01 : f32
    %128 = vector.broadcast %cst_93 : f32 to vector<32x128xf32>
    %129 = arith.mulf %128, %125 : vector<32x128xf32>
    %130 = arith.select %127, %125, %129 : vector<32x128xi1>, vector<32x128xf32>
    %cst_94 = arith.constant 0.000000e+00 : f32
    %131 = vector.broadcast %cst_94 : f32 to vector<2x256xf32>
    %c0_95 = arith.constant 0 : index
    %c0_96 = arith.constant 0 : index
    %c0_97 = arith.constant 0 : index
    %132 = vector.load %arg6[%c0_95, %c0_96, %c0_97] : memref<16x2x32xf32, #tpu.memory_space<vmem>>, vector<1x2x32xf32>
    %133 = vector.shape_cast %132 : vector<1x2x32xf32> to vector<2x32xf32>
    %cst_98 = arith.constant dense<0.000000e+00> : vector<2x128xf32>
    %134 = tpu.matmul %133, %130, %cst_98 {dimension_numbers = #tpu.dot_dimension_numbers<[1], [0], [0], [1], [0, 0, 1, 1], [], []>} : vector<2x32xf32>, vector<32x128xf32>, vector<2x128xf32> -> vector<2x128xf32>
    %c0_99 = arith.constant 0 : index
    %c0_100 = arith.constant 0 : index
    %c0_101 = arith.constant 0 : index
    %135 = vector.load %arg7[%c0_99, %c0_100, %c0_101] : memref<16x128x256xf32, #tpu.memory_space<vmem>>, vector<1x128x256xf32>
    %136 = vector.shape_cast %135 : vector<1x128x256xf32> to vector<128x256xf32>
    %cst_102 = arith.constant dense<0.000000e+00> : vector<2x256xf32>
    %137 = tpu.matmul %134, %136, %cst_102 {dimension_numbers = #tpu.dot_dimension_numbers<[1], [0], [0], [1], [0, 0, 1, 1], [], []>} : vector<2x128xf32>, vector<128x256xf32>, vector<2x256xf32> -> vector<2x256xf32>
    %138 = arith.addf %131, %137 : vector<2x256xf32>
    %c1_103 = arith.constant 1 : index
    %c0_104 = arith.constant 0 : index
    %c0_105 = arith.constant 0 : index
    %139 = vector.load %arg6[%c1_103, %c0_104, %c0_105] : memref<16x2x32xf32, #tpu.memory_space<vmem>>, vector<1x2x32xf32>
    %140 = vector.shape_cast %139 : vector<1x2x32xf32> to vector<2x32xf32>
    %cst_106 = arith.constant dense<0.000000e+00> : vector<2x128xf32>
    %141 = tpu.matmul %140, %130, %cst_106 {dimension_numbers = #tpu.dot_dimension_numbers<[1], [0], [0], [1], [0, 0, 1, 1], [], []>} : vector<2x32xf32>, vector<32x128xf32>, vector<2x128xf32> -> vector<2x128xf32>
    %c1_107 = arith.constant 1 : index
    %c0_108 = arith.constant 0 : index
    %c0_109 = arith.constant 0 : index
    %142 = vector.load %arg7[%c1_107, %c0_108, %c0_109] : memref<16x128x256xf32, #tpu.memory_space<vmem>>, vector<1x128x256xf32>
    %143 = vector.shape_cast %142 : vector<1x128x256xf32> to vector<128x256xf32>
    %cst_110 = arith.constant dense<0.000000e+00> : vector<2x256xf32>
    %144 = tpu.matmul %141, %143, %cst_110 {dimension_numbers = #tpu.dot_dimension_numbers<[1], [0], [0], [1], [0, 0, 1, 1], [], []>} : vector<2x128xf32>, vector<128x256xf32>, vector<2x256xf32> -> vector<2x256xf32>
    %145 = arith.addf %138, %144 : vector<2x256xf32>
    %c2_111 = arith.constant 2 : index
    %c0_112 = arith.constant 0 : index
    %c0_113 = arith.constant 0 : index
    %146 = vector.load %arg6[%c2_111, %c0_112, %c0_113] : memref<16x2x32xf32, #tpu.memory_space<vmem>>, vector<1x2x32xf32>
    %147 = vector.shape_cast %146 : vector<1x2x32xf32> to vector<2x32xf32>
    %cst_114 = arith.constant dense<0.000000e+00> : vector<2x128xf32>
    %148 = tpu.matmul %147, %130, %cst_114 {dimension_numbers = #tpu.dot_dimension_numbers<[1], [0], [0], [1], [0, 0, 1, 1], [], []>} : vector<2x32xf32>, vector<32x128xf32>, vector<2x128xf32> -> vector<2x128xf32>
    %c2_115 = arith.constant 2 : index
    %c0_116 = arith.constant 0 : index
    %c0_117 = arith.constant 0 : index
    %149 = vector.load %arg7[%c2_115, %c0_116, %c0_117] : memref<16x128x256xf32, #tpu.memory_space<vmem>>, vector<1x128x256xf32>
    %150 = vector.shape_cast %149 : vector<1x128x256xf32> to vector<128x256xf32>
    %cst_118 = arith.constant dense<0.000000e+00> : vector<2x256xf32>
    %151 = tpu.matmul %148, %150, %cst_118 {dimension_numbers = #tpu.dot_dimension_numbers<[1], [0], [0], [1], [0, 0, 1, 1], [], []>} : vector<2x128xf32>, vector<128x256xf32>, vector<2x256xf32> -> vector<2x256xf32>
    %152 = arith.addf %145, %151 : vector<2x256xf32>
    %c3_119 = arith.constant 3 : index
    %c0_120 = arith.constant 0 : index
    %c0_121 = arith.constant 0 : index
    %153 = vector.load %arg6[%c3_119, %c0_120, %c0_121] : memref<16x2x32xf32, #tpu.memory_space<vmem>>, vector<1x2x32xf32>
    %154 = vector.shape_cast %153 : vector<1x2x32xf32> to vector<2x32xf32>
    %cst_122 = arith.constant dense<0.000000e+00> : vector<2x128xf32>
    %155 = tpu.matmul %154, %130, %cst_122 {dimension_numbers = #tpu.dot_dimension_numbers<[1], [0], [0], [1], [0, 0, 1, 1], [], []>} : vector<2x32xf32>, vector<32x128xf32>, vector<2x128xf32> -> vector<2x128xf32>
    %c3_123 = arith.constant 3 : index
    %c0_124 = arith.constant 0 : index
    %c0_125 = arith.constant 0 : index
    %156 = vector.load %arg7[%c3_123, %c0_124, %c0_125] : memref<16x128x256xf32, #tpu.memory_space<vmem>>, vector<1x128x256xf32>
    %157 = vector.shape_cast %156 : vector<1x128x256xf32> to vector<128x256xf32>
    %cst_126 = arith.constant dense<0.000000e+00> : vector<2x256xf32>
    %158 = tpu.matmul %155, %157, %cst_126 {dimension_numbers = #tpu.dot_dimension_numbers<[1], [0], [0], [1], [0, 0, 1, 1], [], []>} : vector<2x128xf32>, vector<128x256xf32>, vector<2x256xf32> -> vector<2x256xf32>
    %159 = arith.addf %152, %158 : vector<2x256xf32>
    %c4_127 = arith.constant 4 : index
    %c0_128 = arith.constant 0 : index
    %c0_129 = arith.constant 0 : index
    %160 = vector.load %arg6[%c4_127, %c0_128, %c0_129] : memref<16x2x32xf32, #tpu.memory_space<vmem>>, vector<1x2x32xf32>
    %161 = vector.shape_cast %160 : vector<1x2x32xf32> to vector<2x32xf32>
    %cst_130 = arith.constant dense<0.000000e+00> : vector<2x128xf32>
    %162 = tpu.matmul %161, %130, %cst_130 {dimension_numbers = #tpu.dot_dimension_numbers<[1], [0], [0], [1], [0, 0, 1, 1], [], []>} : vector<2x32xf32>, vector<32x128xf32>, vector<2x128xf32> -> vector<2x128xf32>
    %c4_131 = arith.constant 4 : index
    %c0_132 = arith.constant 0 : index
    %c0_133 = arith.constant 0 : index
    %163 = vector.load %arg7[%c4_131, %c0_132, %c0_133] : memref<16x128x256xf32, #tpu.memory_space<vmem>>, vector<1x128x256xf32>
    %164 = vector.shape_cast %163 : vector<1x128x256xf32> to vector<128x256xf32>
    %cst_134 = arith.constant dense<0.000000e+00> : vector<2x256xf32>
    %165 = tpu.matmul %162, %164, %cst_134 {dimension_numbers = #tpu.dot_dimension_numbers<[1], [0], [0], [1], [0, 0, 1, 1], [], []>} : vector<2x128xf32>, vector<128x256xf32>, vector<2x256xf32> -> vector<2x256xf32>
    %166 = arith.addf %159, %165 : vector<2x256xf32>
    %c5_135 = arith.constant 5 : index
    %c0_136 = arith.constant 0 : index
    %c0_137 = arith.constant 0 : index
    %167 = vector.load %arg6[%c5_135, %c0_136, %c0_137] : memref<16x2x32xf32, #tpu.memory_space<vmem>>, vector<1x2x32xf32>
    %168 = vector.shape_cast %167 : vector<1x2x32xf32> to vector<2x32xf32>
    %cst_138 = arith.constant dense<0.000000e+00> : vector<2x128xf32>
    %169 = tpu.matmul %168, %130, %cst_138 {dimension_numbers = #tpu.dot_dimension_numbers<[1], [0], [0], [1], [0, 0, 1, 1], [], []>} : vector<2x32xf32>, vector<32x128xf32>, vector<2x128xf32> -> vector<2x128xf32>
    %c5_139 = arith.constant 5 : index
    %c0_140 = arith.constant 0 : index
    %c0_141 = arith.constant 0 : index
    %170 = vector.load %arg7[%c5_139, %c0_140, %c0_141] : memref<16x128x256xf32, #tpu.memory_space<vmem>>, vector<1x128x256xf32>
    %171 = vector.shape_cast %170 : vector<1x128x256xf32> to vector<128x256xf32>
    %cst_142 = arith.constant dense<0.000000e+00> : vector<2x256xf32>
    %172 = tpu.matmul %169, %171, %cst_142 {dimension_numbers = #tpu.dot_dimension_numbers<[1], [0], [0], [1], [0, 0, 1, 1], [], []>} : vector<2x128xf32>, vector<128x256xf32>, vector<2x256xf32> -> vector<2x256xf32>
    %173 = arith.addf %166, %172 : vector<2x256xf32>
    %c6_143 = arith.constant 6 : index
    %c0_144 = arith.constant 0 : index
    %c0_145 = arith.constant 0 : index
    %174 = vector.load %arg6[%c6_143, %c0_144, %c0_145] : memref<16x2x32xf32, #tpu.memory_space<vmem>>, vector<1x2x32xf32>
    %175 = vector.shape_cast %174 : vector<1x2x32xf32> to vector<2x32xf32>
    %cst_146 = arith.constant dense<0.000000e+00> : vector<2x128xf32>
    %176 = tpu.matmul %175, %130, %cst_146 {dimension_numbers = #tpu.dot_dimension_numbers<[1], [0], [0], [1], [0, 0, 1, 1], [], []>} : vector<2x32xf32>, vector<32x128xf32>, vector<2x128xf32> -> vector<2x128xf32>
    %c6_147 = arith.constant 6 : index
    %c0_148 = arith.constant 0 : index
    %c0_149 = arith.constant 0 : index
    %177 = vector.load %arg7[%c6_147, %c0_148, %c0_149] : memref<16x128x256xf32, #tpu.memory_space<vmem>>, vector<1x128x256xf32>
    %178 = vector.shape_cast %177 : vector<1x128x256xf32> to vector<128x256xf32>
    %cst_150 = arith.constant dense<0.000000e+00> : vector<2x256xf32>
    %179 = tpu.matmul %176, %178, %cst_150 {dimension_numbers = #tpu.dot_dimension_numbers<[1], [0], [0], [1], [0, 0, 1, 1], [], []>} : vector<2x128xf32>, vector<128x256xf32>, vector<2x256xf32> -> vector<2x256xf32>
    %180 = arith.addf %173, %179 : vector<2x256xf32>
    %c7_151 = arith.constant 7 : index
    %c0_152 = arith.constant 0 : index
    %c0_153 = arith.constant 0 : index
    %181 = vector.load %arg6[%c7_151, %c0_152, %c0_153] : memref<16x2x32xf32, #tpu.memory_space<vmem>>, vector<1x2x32xf32>
    %182 = vector.shape_cast %181 : vector<1x2x32xf32> to vector<2x32xf32>
    %cst_154 = arith.constant dense<0.000000e+00> : vector<2x128xf32>
    %183 = tpu.matmul %182, %130, %cst_154 {dimension_numbers = #tpu.dot_dimension_numbers<[1], [0], [0], [1], [0, 0, 1, 1], [], []>} : vector<2x32xf32>, vector<32x128xf32>, vector<2x128xf32> -> vector<2x128xf32>
    %c7_155 = arith.constant 7 : index
    %c0_156 = arith.constant 0 : index
    %c0_157 = arith.constant 0 : index
    %184 = vector.load %arg7[%c7_155, %c0_156, %c0_157] : memref<16x128x256xf32, #tpu.memory_space<vmem>>, vector<1x128x256xf32>
    %185 = vector.shape_cast %184 : vector<1x128x256xf32> to vector<128x256xf32>
    %cst_158 = arith.constant dense<0.000000e+00> : vector<2x256xf32>
    %186 = tpu.matmul %183, %185, %cst_158 {dimension_numbers = #tpu.dot_dimension_numbers<[1], [0], [0], [1], [0, 0, 1, 1], [], []>} : vector<2x128xf32>, vector<128x256xf32>, vector<2x256xf32> -> vector<2x256xf32>
    %187 = arith.addf %180, %186 : vector<2x256xf32>
    %c8_159 = arith.constant 8 : index
    %c0_160 = arith.constant 0 : index
    %c0_161 = arith.constant 0 : index
    %188 = vector.load %arg6[%c8_159, %c0_160, %c0_161] : memref<16x2x32xf32, #tpu.memory_space<vmem>>, vector<1x2x32xf32>
    %189 = vector.shape_cast %188 : vector<1x2x32xf32> to vector<2x32xf32>
    %cst_162 = arith.constant dense<0.000000e+00> : vector<2x128xf32>
    %190 = tpu.matmul %189, %130, %cst_162 {dimension_numbers = #tpu.dot_dimension_numbers<[1], [0], [0], [1], [0, 0, 1, 1], [], []>} : vector<2x32xf32>, vector<32x128xf32>, vector<2x128xf32> -> vector<2x128xf32>
    %c8_163 = arith.constant 8 : index
    %c0_164 = arith.constant 0 : index
    %c0_165 = arith.constant 0 : index
    %191 = vector.load %arg7[%c8_163, %c0_164, %c0_165] : memref<16x128x256xf32, #tpu.memory_space<vmem>>, vector<1x128x256xf32>
    %192 = vector.shape_cast %191 : vector<1x128x256xf32> to vector<128x256xf32>
    %cst_166 = arith.constant dense<0.000000e+00> : vector<2x256xf32>
    %193 = tpu.matmul %190, %192, %cst_166 {dimension_numbers = #tpu.dot_dimension_numbers<[1], [0], [0], [1], [0, 0, 1, 1], [], []>} : vector<2x128xf32>, vector<128x256xf32>, vector<2x256xf32> -> vector<2x256xf32>
    %194 = arith.addf %187, %193 : vector<2x256xf32>
    %c9 = arith.constant 9 : index
    %c0_167 = arith.constant 0 : index
    %c0_168 = arith.constant 0 : index
    %195 = vector.load %arg6[%c9, %c0_167, %c0_168] : memref<16x2x32xf32, #tpu.memory_space<vmem>>, vector<1x2x32xf32>
    %196 = vector.shape_cast %195 : vector<1x2x32xf32> to vector<2x32xf32>
    %cst_169 = arith.constant dense<0.000000e+00> : vector<2x128xf32>
    %197 = tpu.matmul %196, %130, %cst_169 {dimension_numbers = #tpu.dot_dimension_numbers<[1], [0], [0], [1], [0, 0, 1, 1], [], []>} : vector<2x32xf32>, vector<32x128xf32>, vector<2x128xf32> -> vector<2x128xf32>
    %c9_170 = arith.constant 9 : index
    %c0_171 = arith.constant 0 : index
    %c0_172 = arith.constant 0 : index
    %198 = vector.load %arg7[%c9_170, %c0_171, %c0_172] : memref<16x128x256xf32, #tpu.memory_space<vmem>>, vector<1x128x256xf32>
    %199 = vector.shape_cast %198 : vector<1x128x256xf32> to vector<128x256xf32>
    %cst_173 = arith.constant dense<0.000000e+00> : vector<2x256xf32>
    %200 = tpu.matmul %197, %199, %cst_173 {dimension_numbers = #tpu.dot_dimension_numbers<[1], [0], [0], [1], [0, 0, 1, 1], [], []>} : vector<2x128xf32>, vector<128x256xf32>, vector<2x256xf32> -> vector<2x256xf32>
    %201 = arith.addf %194, %200 : vector<2x256xf32>
    %c10 = arith.constant 10 : index
    %c0_174 = arith.constant 0 : index
    %c0_175 = arith.constant 0 : index
    %202 = vector.load %arg6[%c10, %c0_174, %c0_175] : memref<16x2x32xf32, #tpu.memory_space<vmem>>, vector<1x2x32xf32>
    %203 = vector.shape_cast %202 : vector<1x2x32xf32> to vector<2x32xf32>
    %cst_176 = arith.constant dense<0.000000e+00> : vector<2x128xf32>
    %204 = tpu.matmul %203, %130, %cst_176 {dimension_numbers = #tpu.dot_dimension_numbers<[1], [0], [0], [1], [0, 0, 1, 1], [], []>} : vector<2x32xf32>, vector<32x128xf32>, vector<2x128xf32> -> vector<2x128xf32>
    %c10_177 = arith.constant 10 : index
    %c0_178 = arith.constant 0 : index
    %c0_179 = arith.constant 0 : index
    %205 = vector.load %arg7[%c10_177, %c0_178, %c0_179] : memref<16x128x256xf32, #tpu.memory_space<vmem>>, vector<1x128x256xf32>
    %206 = vector.shape_cast %205 : vector<1x128x256xf32> to vector<128x256xf32>
    %cst_180 = arith.constant dense<0.000000e+00> : vector<2x256xf32>
    %207 = tpu.matmul %204, %206, %cst_180 {dimension_numbers = #tpu.dot_dimension_numbers<[1], [0], [0], [1], [0, 0, 1, 1], [], []>} : vector<2x128xf32>, vector<128x256xf32>, vector<2x256xf32> -> vector<2x256xf32>
    %208 = arith.addf %201, %207 : vector<2x256xf32>
    %c11 = arith.constant 11 : index
    %c0_181 = arith.constant 0 : index
    %c0_182 = arith.constant 0 : index
    %209 = vector.load %arg6[%c11, %c0_181, %c0_182] : memref<16x2x32xf32, #tpu.memory_space<vmem>>, vector<1x2x32xf32>
    %210 = vector.shape_cast %209 : vector<1x2x32xf32> to vector<2x32xf32>
    %cst_183 = arith.constant dense<0.000000e+00> : vector<2x128xf32>
    %211 = tpu.matmul %210, %130, %cst_183 {dimension_numbers = #tpu.dot_dimension_numbers<[1], [0], [0], [1], [0, 0, 1, 1], [], []>} : vector<2x32xf32>, vector<32x128xf32>, vector<2x128xf32> -> vector<2x128xf32>
    %c11_184 = arith.constant 11 : index
    %c0_185 = arith.constant 0 : index
    %c0_186 = arith.constant 0 : index
    %212 = vector.load %arg7[%c11_184, %c0_185, %c0_186] : memref<16x128x256xf32, #tpu.memory_space<vmem>>, vector<1x128x256xf32>
    %213 = vector.shape_cast %212 : vector<1x128x256xf32> to vector<128x256xf32>
    %cst_187 = arith.constant dense<0.000000e+00> : vector<2x256xf32>
    %214 = tpu.matmul %211, %213, %cst_187 {dimension_numbers = #tpu.dot_dimension_numbers<[1], [0], [0], [1], [0, 0, 1, 1], [], []>} : vector<2x128xf32>, vector<128x256xf32>, vector<2x256xf32> -> vector<2x256xf32>
    %215 = arith.addf %208, %214 : vector<2x256xf32>
    %c12 = arith.constant 12 : index
    %c0_188 = arith.constant 0 : index
    %c0_189 = arith.constant 0 : index
    %216 = vector.load %arg6[%c12, %c0_188, %c0_189] : memref<16x2x32xf32, #tpu.memory_space<vmem>>, vector<1x2x32xf32>
    %217 = vector.shape_cast %216 : vector<1x2x32xf32> to vector<2x32xf32>
    %cst_190 = arith.constant dense<0.000000e+00> : vector<2x128xf32>
    %218 = tpu.matmul %217, %130, %cst_190 {dimension_numbers = #tpu.dot_dimension_numbers<[1], [0], [0], [1], [0, 0, 1, 1], [], []>} : vector<2x32xf32>, vector<32x128xf32>, vector<2x128xf32> -> vector<2x128xf32>
    %c12_191 = arith.constant 12 : index
    %c0_192 = arith.constant 0 : index
    %c0_193 = arith.constant 0 : index
    %219 = vector.load %arg7[%c12_191, %c0_192, %c0_193] : memref<16x128x256xf32, #tpu.memory_space<vmem>>, vector<1x128x256xf32>
    %220 = vector.shape_cast %219 : vector<1x128x256xf32> to vector<128x256xf32>
    %cst_194 = arith.constant dense<0.000000e+00> : vector<2x256xf32>
    %221 = tpu.matmul %218, %220, %cst_194 {dimension_numbers = #tpu.dot_dimension_numbers<[1], [0], [0], [1], [0, 0, 1, 1], [], []>} : vector<2x128xf32>, vector<128x256xf32>, vector<2x256xf32> -> vector<2x256xf32>
    %222 = arith.addf %215, %221 : vector<2x256xf32>
    %c13 = arith.constant 13 : index
    %c0_195 = arith.constant 0 : index
    %c0_196 = arith.constant 0 : index
    %223 = vector.load %arg6[%c13, %c0_195, %c0_196] : memref<16x2x32xf32, #tpu.memory_space<vmem>>, vector<1x2x32xf32>
    %224 = vector.shape_cast %223 : vector<1x2x32xf32> to vector<2x32xf32>
    %cst_197 = arith.constant dense<0.000000e+00> : vector<2x128xf32>
    %225 = tpu.matmul %224, %130, %cst_197 {dimension_numbers = #tpu.dot_dimension_numbers<[1], [0], [0], [1], [0, 0, 1, 1], [], []>} : vector<2x32xf32>, vector<32x128xf32>, vector<2x128xf32> -> vector<2x128xf32>
    %c13_198 = arith.constant 13 : index
    %c0_199 = arith.constant 0 : index
    %c0_200 = arith.constant 0 : index
    %226 = vector.load %arg7[%c13_198, %c0_199, %c0_200] : memref<16x128x256xf32, #tpu.memory_space<vmem>>, vector<1x128x256xf32>
    %227 = vector.shape_cast %226 : vector<1x128x256xf32> to vector<128x256xf32>
    %cst_201 = arith.constant dense<0.000000e+00> : vector<2x256xf32>
    %228 = tpu.matmul %225, %227, %cst_201 {dimension_numbers = #tpu.dot_dimension_numbers<[1], [0], [0], [1], [0, 0, 1, 1], [], []>} : vector<2x128xf32>, vector<128x256xf32>, vector<2x256xf32> -> vector<2x256xf32>
    %229 = arith.addf %222, %228 : vector<2x256xf32>
    %c14 = arith.constant 14 : index
    %c0_202 = arith.constant 0 : index
    %c0_203 = arith.constant 0 : index
    %230 = vector.load %arg6[%c14, %c0_202, %c0_203] : memref<16x2x32xf32, #tpu.memory_space<vmem>>, vector<1x2x32xf32>
    %231 = vector.shape_cast %230 : vector<1x2x32xf32> to vector<2x32xf32>
    %cst_204 = arith.constant dense<0.000000e+00> : vector<2x128xf32>
    %232 = tpu.matmul %231, %130, %cst_204 {dimension_numbers = #tpu.dot_dimension_numbers<[1], [0], [0], [1], [0, 0, 1, 1], [], []>} : vector<2x32xf32>, vector<32x128xf32>, vector<2x128xf32> -> vector<2x128xf32>
    %c14_205 = arith.constant 14 : index
    %c0_206 = arith.constant 0 : index
    %c0_207 = arith.constant 0 : index
    %233 = vector.load %arg7[%c14_205, %c0_206, %c0_207] : memref<16x128x256xf32, #tpu.memory_space<vmem>>, vector<1x128x256xf32>
    %234 = vector.shape_cast %233 : vector<1x128x256xf32> to vector<128x256xf32>
    %cst_208 = arith.constant dense<0.000000e+00> : vector<2x256xf32>
    %235 = tpu.matmul %232, %234, %cst_208 {dimension_numbers = #tpu.dot_dimension_numbers<[1], [0], [0], [1], [0, 0, 1, 1], [], []>} : vector<2x128xf32>, vector<128x256xf32>, vector<2x256xf32> -> vector<2x256xf32>
    %236 = arith.addf %229, %235 : vector<2x256xf32>
    %c15 = arith.constant 15 : index
    %c0_209 = arith.constant 0 : index
    %c0_210 = arith.constant 0 : index
    %237 = vector.load %arg6[%c15, %c0_209, %c0_210] : memref<16x2x32xf32, #tpu.memory_space<vmem>>, vector<1x2x32xf32>
    %238 = vector.shape_cast %237 : vector<1x2x32xf32> to vector<2x32xf32>
    %cst_211 = arith.constant dense<0.000000e+00> : vector<2x128xf32>
    %239 = tpu.matmul %238, %130, %cst_211 {dimension_numbers = #tpu.dot_dimension_numbers<[1], [0], [0], [1], [0, 0, 1, 1], [], []>} : vector<2x32xf32>, vector<32x128xf32>, vector<2x128xf32> -> vector<2x128xf32>
    %c15_212 = arith.constant 15 : index
    %c0_213 = arith.constant 0 : index
    %c0_214 = arith.constant 0 : index
    %240 = vector.load %arg7[%c15_212, %c0_213, %c0_214] : memref<16x128x256xf32, #tpu.memory_space<vmem>>, vector<1x128x256xf32>
    %241 = vector.shape_cast %240 : vector<1x128x256xf32> to vector<128x256xf32>
    %cst_215 = arith.constant dense<0.000000e+00> : vector<2x256xf32>
    %242 = tpu.matmul %239, %241, %cst_215 {dimension_numbers = #tpu.dot_dimension_numbers<[1], [0], [0], [1], [0, 0, 1, 1], [], []>} : vector<2x128xf32>, vector<128x256xf32>, vector<2x256xf32> -> vector<2x256xf32>
    %243 = arith.addf %236, %242 : vector<2x256xf32>
    %c0_216 = arith.constant 0 : index
    %c0_217 = arith.constant 0 : index
    %244 = vector.load %arg8[%c0_216, %c0_217] : memref<1x256xf32, #tpu.memory_space<vmem>>, vector<1x256xf32>
    %245 = vector.broadcast %244 : vector<1x256xf32> to vector<2x256xf32>
    %246 = arith.addf %243, %245 : vector<2x256xf32>
    %c0_218 = arith.constant 0 : index
    %c0_219 = arith.constant 0 : index
    %247 = vector.load %arg9[%c0_218, %c0_219] : memref<94x16xf32, #tpu.memory_space<vmem>>, vector<94x16xf32>
    %c0_220 = arith.constant 0 : index
    %c0_221 = arith.constant 0 : index
    %248 = vector.load %arg10[%c0_220, %c0_221] : memref<16x32xf32, #tpu.memory_space<vmem>>, vector<16x32xf32>
    %cst_222 = arith.constant dense<0.000000e+00> : vector<94x32xf32>
    %249 = tpu.matmul %247, %248, %cst_222 {dimension_numbers = #tpu.dot_dimension_numbers<[1], [0], [0], [1], [0, 0, 1, 1], [], []>} : vector<94x16xf32>, vector<16x32xf32>, vector<94x32xf32> -> vector<94x32xf32>
    %c0_223 = arith.constant 0 : index
    %c0_224 = arith.constant 0 : index
    %250 = vector.load %arg11[%c0_223, %c0_224] : memref<3x32xf32, #tpu.memory_space<vmem>>, vector<1x32xf32>
    %251 = vector.broadcast %250 : vector<1x32xf32> to vector<94x32xf32>
    %252 = arith.addf %249, %251 : vector<94x32xf32>
    %cst_225 = arith.constant dense<0.000000e+00> : vector<32xf32>
    %253 = vector.multi_reduction <add>, %252, %cst_225 [0] : vector<94x32xf32> to vector<32xf32>
    %254 = vector.shape_cast %253 : vector<32xf32> to vector<1x32xf32>
    %cst_226 = arith.constant 9.400000e+01 : f32
    %255 = vector.broadcast %cst_226 : f32 to vector<1x32xf32>
    %256 = arith.divf %254, %255 : vector<1x32xf32>
    %257 = vector.broadcast %256 : vector<1x32xf32> to vector<94x32xf32>
    %258 = arith.subf %252, %257 : vector<94x32xf32>
    %259 = arith.mulf %258, %258 : vector<94x32xf32>
    %cst_227 = arith.constant dense<0.000000e+00> : vector<32xf32>
    %260 = vector.multi_reduction <add>, %259, %cst_227 [0] : vector<94x32xf32> to vector<32xf32>
    %261 = vector.shape_cast %260 : vector<32xf32> to vector<1x32xf32>
    %cst_228 = arith.constant 9.400000e+01 : f32
    %262 = vector.broadcast %cst_228 : f32 to vector<1x32xf32>
    %263 = arith.divf %261, %262 : vector<1x32xf32>
    %264 = vector.broadcast %256 : vector<1x32xf32> to vector<94x32xf32>
    %265 = arith.subf %252, %264 : vector<94x32xf32>
    %cst_229 = arith.constant 9.99999974E-6 : f32
    %266 = vector.broadcast %cst_229 : f32 to vector<1x32xf32>
    %267 = arith.addf %263, %266 : vector<1x32xf32>
    %268 = math.rsqrt %267 : vector<1x32xf32>
    %269 = vector.broadcast %268 : vector<1x32xf32> to vector<94x32xf32>
    %270 = arith.mulf %265, %269 : vector<94x32xf32>
    %c1_230 = arith.constant 1 : index
    %c0_231 = arith.constant 0 : index
    %271 = vector.load %arg11[%c1_230, %c0_231] : memref<3x32xf32, #tpu.memory_space<vmem>>, vector<1x32xf32>
    %272 = vector.broadcast %271 : vector<1x32xf32> to vector<94x32xf32>
    %273 = arith.mulf %270, %272 : vector<94x32xf32>
    %c2_232 = arith.constant 2 : index
    %c0_233 = arith.constant 0 : index
    %274 = vector.load %arg11[%c2_232, %c0_233] : memref<3x32xf32, #tpu.memory_space<vmem>>, vector<1x32xf32>
    %275 = vector.broadcast %274 : vector<1x32xf32> to vector<94x32xf32>
    %276 = arith.addf %273, %275 : vector<94x32xf32>
    %cst_234 = arith.constant 0.000000e+00 : f32
    %277 = vector.broadcast %cst_234 : f32 to vector<94x32xf32>
    %278 = arith.cmpf oge, %276, %277 : vector<94x32xf32>
    %cst_235 = arith.constant 2.000000e-01 : f32
    %279 = vector.broadcast %cst_235 : f32 to vector<94x32xf32>
    %280 = arith.mulf %279, %276 : vector<94x32xf32>
    %281 = arith.select %278, %276, %280 : vector<94x32xi1>, vector<94x32xf32>
    %cst_236 = arith.constant 0.000000e+00 : f32
    %282 = vector.broadcast %cst_236 : f32 to vector<40x64xf32>
    %c0_237 = arith.constant 0 : index
    %c0_238 = arith.constant 0 : index
    %c0_239 = arith.constant 0 : index
    %283 = vector.load %arg12[%c0_237, %c0_238, %c0_239] : memref<8x40x94xf32, #tpu.memory_space<vmem>>, vector<1x40x94xf32>
    %284 = vector.shape_cast %283 : vector<1x40x94xf32> to vector<40x94xf32>
    %cst_240 = arith.constant dense<0.000000e+00> : vector<40x32xf32>
    %285 = tpu.matmul %284, %281, %cst_240 {dimension_numbers = #tpu.dot_dimension_numbers<[1], [0], [0], [1], [0, 0, 1, 1], [], []>} : vector<40x94xf32>, vector<94x32xf32>, vector<40x32xf32> -> vector<40x32xf32>
    %c0_241 = arith.constant 0 : index
    %c0_242 = arith.constant 0 : index
    %c0_243 = arith.constant 0 : index
    %286 = vector.load %arg13[%c0_241, %c0_242, %c0_243] : memref<8x32x64xf32, #tpu.memory_space<vmem>>, vector<1x32x64xf32>
    %287 = vector.shape_cast %286 : vector<1x32x64xf32> to vector<32x64xf32>
    %cst_244 = arith.constant dense<0.000000e+00> : vector<40x64xf32>
    %288 = tpu.matmul %285, %287, %cst_244 {dimension_numbers = #tpu.dot_dimension_numbers<[1], [0], [0], [1], [0, 0, 1, 1], [], []>} : vector<40x32xf32>, vector<32x64xf32>, vector<40x64xf32> -> vector<40x64xf32>
    %289 = arith.addf %282, %288 : vector<40x64xf32>
    %c1_245 = arith.constant 1 : index
    %c0_246 = arith.constant 0 : index
    %c0_247 = arith.constant 0 : index
    %290 = vector.load %arg12[%c1_245, %c0_246, %c0_247] : memref<8x40x94xf32, #tpu.memory_space<vmem>>, vector<1x40x94xf32>
    %291 = vector.shape_cast %290 : vector<1x40x94xf32> to vector<40x94xf32>
    %cst_248 = arith.constant dense<0.000000e+00> : vector<40x32xf32>
    %292 = tpu.matmul %291, %281, %cst_248 {dimension_numbers = #tpu.dot_dimension_numbers<[1], [0], [0], [1], [0, 0, 1, 1], [], []>} : vector<40x94xf32>, vector<94x32xf32>, vector<40x32xf32> -> vector<40x32xf32>
    %c1_249 = arith.constant 1 : index
    %c0_250 = arith.constant 0 : index
    %c0_251 = arith.constant 0 : index
    %293 = vector.load %arg13[%c1_249, %c0_250, %c0_251] : memref<8x32x64xf32, #tpu.memory_space<vmem>>, vector<1x32x64xf32>
    %294 = vector.shape_cast %293 : vector<1x32x64xf32> to vector<32x64xf32>
    %cst_252 = arith.constant dense<0.000000e+00> : vector<40x64xf32>
    %295 = tpu.matmul %292, %294, %cst_252 {dimension_numbers = #tpu.dot_dimension_numbers<[1], [0], [0], [1], [0, 0, 1, 1], [], []>} : vector<40x32xf32>, vector<32x64xf32>, vector<40x64xf32> -> vector<40x64xf32>
    %296 = arith.addf %289, %295 : vector<40x64xf32>
    %c2_253 = arith.constant 2 : index
    %c0_254 = arith.constant 0 : index
    %c0_255 = arith.constant 0 : index
    %297 = vector.load %arg12[%c2_253, %c0_254, %c0_255] : memref<8x40x94xf32, #tpu.memory_space<vmem>>, vector<1x40x94xf32>
    %298 = vector.shape_cast %297 : vector<1x40x94xf32> to vector<40x94xf32>
    %cst_256 = arith.constant dense<0.000000e+00> : vector<40x32xf32>
    %299 = tpu.matmul %298, %281, %cst_256 {dimension_numbers = #tpu.dot_dimension_numbers<[1], [0], [0], [1], [0, 0, 1, 1], [], []>} : vector<40x94xf32>, vector<94x32xf32>, vector<40x32xf32> -> vector<40x32xf32>
    %c2_257 = arith.constant 2 : index
    %c0_258 = arith.constant 0 : index
    %c0_259 = arith.constant 0 : index
    %300 = vector.load %arg13[%c2_257, %c0_258, %c0_259] : memref<8x32x64xf32, #tpu.memory_space<vmem>>, vector<1x32x64xf32>
    %301 = vector.shape_cast %300 : vector<1x32x64xf32> to vector<32x64xf32>
    %cst_260 = arith.constant dense<0.000000e+00> : vector<40x64xf32>
    %302 = tpu.matmul %299, %301, %cst_260 {dimension_numbers = #tpu.dot_dimension_numbers<[1], [0], [0], [1], [0, 0, 1, 1], [], []>} : vector<40x32xf32>, vector<32x64xf32>, vector<40x64xf32> -> vector<40x64xf32>
    %303 = arith.addf %296, %302 : vector<40x64xf32>
    %c3_261 = arith.constant 3 : index
    %c0_262 = arith.constant 0 : index
    %c0_263 = arith.constant 0 : index
    %304 = vector.load %arg12[%c3_261, %c0_262, %c0_263] : memref<8x40x94xf32, #tpu.memory_space<vmem>>, vector<1x40x94xf32>
    %305 = vector.shape_cast %304 : vector<1x40x94xf32> to vector<40x94xf32>
    %cst_264 = arith.constant dense<0.000000e+00> : vector<40x32xf32>
    %306 = tpu.matmul %305, %281, %cst_264 {dimension_numbers = #tpu.dot_dimension_numbers<[1], [0], [0], [1], [0, 0, 1, 1], [], []>} : vector<40x94xf32>, vector<94x32xf32>, vector<40x32xf32> -> vector<40x32xf32>
    %c3_265 = arith.constant 3 : index
    %c0_266 = arith.constant 0 : index
    %c0_267 = arith.constant 0 : index
    %307 = vector.load %arg13[%c3_265, %c0_266, %c0_267] : memref<8x32x64xf32, #tpu.memory_space<vmem>>, vector<1x32x64xf32>
    %308 = vector.shape_cast %307 : vector<1x32x64xf32> to vector<32x64xf32>
    %cst_268 = arith.constant dense<0.000000e+00> : vector<40x64xf32>
    %309 = tpu.matmul %306, %308, %cst_268 {dimension_numbers = #tpu.dot_dimension_numbers<[1], [0], [0], [1], [0, 0, 1, 1], [], []>} : vector<40x32xf32>, vector<32x64xf32>, vector<40x64xf32> -> vector<40x64xf32>
    %310 = arith.addf %303, %309 : vector<40x64xf32>
    %c4_269 = arith.constant 4 : index
    %c0_270 = arith.constant 0 : index
    %c0_271 = arith.constant 0 : index
    %311 = vector.load %arg12[%c4_269, %c0_270, %c0_271] : memref<8x40x94xf32, #tpu.memory_space<vmem>>, vector<1x40x94xf32>
    %312 = vector.shape_cast %311 : vector<1x40x94xf32> to vector<40x94xf32>
    %cst_272 = arith.constant dense<0.000000e+00> : vector<40x32xf32>
    %313 = tpu.matmul %312, %281, %cst_272 {dimension_numbers = #tpu.dot_dimension_numbers<[1], [0], [0], [1], [0, 0, 1, 1], [], []>} : vector<40x94xf32>, vector<94x32xf32>, vector<40x32xf32> -> vector<40x32xf32>
    %c4_273 = arith.constant 4 : index
    %c0_274 = arith.constant 0 : index
    %c0_275 = arith.constant 0 : index
    %314 = vector.load %arg13[%c4_273, %c0_274, %c0_275] : memref<8x32x64xf32, #tpu.memory_space<vmem>>, vector<1x32x64xf32>
    %315 = vector.shape_cast %314 : vector<1x32x64xf32> to vector<32x64xf32>
    %cst_276 = arith.constant dense<0.000000e+00> : vector<40x64xf32>
    %316 = tpu.matmul %313, %315, %cst_276 {dimension_numbers = #tpu.dot_dimension_numbers<[1], [0], [0], [1], [0, 0, 1, 1], [], []>} : vector<40x32xf32>, vector<32x64xf32>, vector<40x64xf32> -> vector<40x64xf32>
    %317 = arith.addf %310, %316 : vector<40x64xf32>
    %c5_277 = arith.constant 5 : index
    %c0_278 = arith.constant 0 : index
    %c0_279 = arith.constant 0 : index
    %318 = vector.load %arg12[%c5_277, %c0_278, %c0_279] : memref<8x40x94xf32, #tpu.memory_space<vmem>>, vector<1x40x94xf32>
    %319 = vector.shape_cast %318 : vector<1x40x94xf32> to vector<40x94xf32>
    %cst_280 = arith.constant dense<0.000000e+00> : vector<40x32xf32>
    %320 = tpu.matmul %319, %281, %cst_280 {dimension_numbers = #tpu.dot_dimension_numbers<[1], [0], [0], [1], [0, 0, 1, 1], [], []>} : vector<40x94xf32>, vector<94x32xf32>, vector<40x32xf32> -> vector<40x32xf32>
    %c5_281 = arith.constant 5 : index
    %c0_282 = arith.constant 0 : index
    %c0_283 = arith.constant 0 : index
    %321 = vector.load %arg13[%c5_281, %c0_282, %c0_283] : memref<8x32x64xf32, #tpu.memory_space<vmem>>, vector<1x32x64xf32>
    %322 = vector.shape_cast %321 : vector<1x32x64xf32> to vector<32x64xf32>
    %cst_284 = arith.constant dense<0.000000e+00> : vector<40x64xf32>
    %323 = tpu.matmul %320, %322, %cst_284 {dimension_numbers = #tpu.dot_dimension_numbers<[1], [0], [0], [1], [0, 0, 1, 1], [], []>} : vector<40x32xf32>, vector<32x64xf32>, vector<40x64xf32> -> vector<40x64xf32>
    %324 = arith.addf %317, %323 : vector<40x64xf32>
    %c6_285 = arith.constant 6 : index
    %c0_286 = arith.constant 0 : index
    %c0_287 = arith.constant 0 : index
    %325 = vector.load %arg12[%c6_285, %c0_286, %c0_287] : memref<8x40x94xf32, #tpu.memory_space<vmem>>, vector<1x40x94xf32>
    %326 = vector.shape_cast %325 : vector<1x40x94xf32> to vector<40x94xf32>
    %cst_288 = arith.constant dense<0.000000e+00> : vector<40x32xf32>
    %327 = tpu.matmul %326, %281, %cst_288 {dimension_numbers = #tpu.dot_dimension_numbers<[1], [0], [0], [1], [0, 0, 1, 1], [], []>} : vector<40x94xf32>, vector<94x32xf32>, vector<40x32xf32> -> vector<40x32xf32>
    %c6_289 = arith.constant 6 : index
    %c0_290 = arith.constant 0 : index
    %c0_291 = arith.constant 0 : index
    %328 = vector.load %arg13[%c6_289, %c0_290, %c0_291] : memref<8x32x64xf32, #tpu.memory_space<vmem>>, vector<1x32x64xf32>
    %329 = vector.shape_cast %328 : vector<1x32x64xf32> to vector<32x64xf32>
    %cst_292 = arith.constant dense<0.000000e+00> : vector<40x64xf32>
    %330 = tpu.matmul %327, %329, %cst_292 {dimension_numbers = #tpu.dot_dimension_numbers<[1], [0], [0], [1], [0, 0, 1, 1], [], []>} : vector<40x32xf32>, vector<32x64xf32>, vector<40x64xf32> -> vector<40x64xf32>
    %331 = arith.addf %324, %330 : vector<40x64xf32>
    %c7_293 = arith.constant 7 : index
    %c0_294 = arith.constant 0 : index
    %c0_295 = arith.constant 0 : index
    %332 = vector.load %arg12[%c7_293, %c0_294, %c0_295] : memref<8x40x94xf32, #tpu.memory_space<vmem>>, vector<1x40x94xf32>
    %333 = vector.shape_cast %332 : vector<1x40x94xf32> to vector<40x94xf32>
    %cst_296 = arith.constant dense<0.000000e+00> : vector<40x32xf32>
    %334 = tpu.matmul %333, %281, %cst_296 {dimension_numbers = #tpu.dot_dimension_numbers<[1], [0], [0], [1], [0, 0, 1, 1], [], []>} : vector<40x94xf32>, vector<94x32xf32>, vector<40x32xf32> -> vector<40x32xf32>
    %c7_297 = arith.constant 7 : index
    %c0_298 = arith.constant 0 : index
    %c0_299 = arith.constant 0 : index
    %335 = vector.load %arg13[%c7_297, %c0_298, %c0_299] : memref<8x32x64xf32, #tpu.memory_space<vmem>>, vector<1x32x64xf32>
    %336 = vector.shape_cast %335 : vector<1x32x64xf32> to vector<32x64xf32>
    %cst_300 = arith.constant dense<0.000000e+00> : vector<40x64xf32>
    %337 = tpu.matmul %334, %336, %cst_300 {dimension_numbers = #tpu.dot_dimension_numbers<[1], [0], [0], [1], [0, 0, 1, 1], [], []>} : vector<40x32xf32>, vector<32x64xf32>, vector<40x64xf32> -> vector<40x64xf32>
    %338 = arith.addf %331, %337 : vector<40x64xf32>
    %c0_301 = arith.constant 0 : index
    %c0_302 = arith.constant 0 : index
    %339 = vector.load %arg14[%c0_301, %c0_302] : memref<3x64xf32, #tpu.memory_space<vmem>>, vector<1x64xf32>
    %340 = vector.broadcast %339 : vector<1x64xf32> to vector<40x64xf32>
    %341 = arith.addf %338, %340 : vector<40x64xf32>
    %cst_303 = arith.constant dense<0.000000e+00> : vector<64xf32>
    %342 = vector.multi_reduction <add>, %341, %cst_303 [0] : vector<40x64xf32> to vector<64xf32>
    %343 = vector.shape_cast %342 : vector<64xf32> to vector<1x64xf32>
    %cst_304 = arith.constant 4.000000e+01 : f32
    %344 = vector.broadcast %cst_304 : f32 to vector<1x64xf32>
    %345 = arith.divf %343, %344 : vector<1x64xf32>
    %346 = vector.broadcast %345 : vector<1x64xf32> to vector<40x64xf32>
    %347 = arith.subf %341, %346 : vector<40x64xf32>
    %348 = arith.mulf %347, %347 : vector<40x64xf32>
    %cst_305 = arith.constant dense<0.000000e+00> : vector<64xf32>
    %349 = vector.multi_reduction <add>, %348, %cst_305 [0] : vector<40x64xf32> to vector<64xf32>
    %350 = vector.shape_cast %349 : vector<64xf32> to vector<1x64xf32>
    %cst_306 = arith.constant 4.000000e+01 : f32
    %351 = vector.broadcast %cst_306 : f32 to vector<1x64xf32>
    %352 = arith.divf %350, %351 : vector<1x64xf32>
    %353 = vector.broadcast %345 : vector<1x64xf32> to vector<40x64xf32>
    %354 = arith.subf %341, %353 : vector<40x64xf32>
    %cst_307 = arith.constant 9.99999974E-6 : f32
    %355 = vector.broadcast %cst_307 : f32 to vector<1x64xf32>
    %356 = arith.addf %352, %355 : vector<1x64xf32>
    %357 = math.rsqrt %356 : vector<1x64xf32>
    %358 = vector.broadcast %357 : vector<1x64xf32> to vector<40x64xf32>
    %359 = arith.mulf %354, %358 : vector<40x64xf32>
    %c1_308 = arith.constant 1 : index
    %c0_309 = arith.constant 0 : index
    %360 = vector.load %arg14[%c1_308, %c0_309] : memref<3x64xf32, #tpu.memory_space<vmem>>, vector<1x64xf32>
    %361 = vector.broadcast %360 : vector<1x64xf32> to vector<40x64xf32>
    %362 = arith.mulf %359, %361 : vector<40x64xf32>
    %c2_310 = arith.constant 2 : index
    %c0_311 = arith.constant 0 : index
    %363 = vector.load %arg14[%c2_310, %c0_311] : memref<3x64xf32, #tpu.memory_space<vmem>>, vector<1x64xf32>
    %364 = vector.broadcast %363 : vector<1x64xf32> to vector<40x64xf32>
    %365 = arith.addf %362, %364 : vector<40x64xf32>
    %cst_312 = arith.constant 0.000000e+00 : f32
    %366 = vector.broadcast %cst_312 : f32 to vector<40x64xf32>
    %367 = arith.cmpf oge, %365, %366 : vector<40x64xf32>
    %cst_313 = arith.constant 2.000000e-01 : f32
    %368 = vector.broadcast %cst_313 : f32 to vector<40x64xf32>
    %369 = arith.mulf %368, %365 : vector<40x64xf32>
    %370 = arith.select %367, %365, %369 : vector<40x64xi1>, vector<40x64xf32>
    %cst_314 = arith.constant 0.000000e+00 : f32
    %371 = vector.broadcast %cst_314 : f32 to vector<2x256xf32>
    %c0_315 = arith.constant 0 : index
    %c0_316 = arith.constant 0 : index
    %c0_317 = arith.constant 0 : index
    %372 = vector.load %arg15[%c0_315, %c0_316, %c0_317] : memref<20x2x40xf32, #tpu.memory_space<vmem>>, vector<1x2x40xf32>
    %373 = vector.shape_cast %372 : vector<1x2x40xf32> to vector<2x40xf32>
    %cst_318 = arith.constant dense<0.000000e+00> : vector<2x64xf32>
    %374 = tpu.matmul %373, %370, %cst_318 {dimension_numbers = #tpu.dot_dimension_numbers<[1], [0], [0], [1], [0, 0, 1, 1], [], []>} : vector<2x40xf32>, vector<40x64xf32>, vector<2x64xf32> -> vector<2x64xf32>
    %c0_319 = arith.constant 0 : index
    %c0_320 = arith.constant 0 : index
    %c0_321 = arith.constant 0 : index
    %375 = vector.load %arg16[%c0_319, %c0_320, %c0_321] : memref<20x64x256xf32, #tpu.memory_space<vmem>>, vector<1x64x256xf32>
    %376 = vector.shape_cast %375 : vector<1x64x256xf32> to vector<64x256xf32>
    %cst_322 = arith.constant dense<0.000000e+00> : vector<2x256xf32>
    %377 = tpu.matmul %374, %376, %cst_322 {dimension_numbers = #tpu.dot_dimension_numbers<[1], [0], [0], [1], [0, 0, 1, 1], [], []>} : vector<2x64xf32>, vector<64x256xf32>, vector<2x256xf32> -> vector<2x256xf32>
    %378 = arith.addf %371, %377 : vector<2x256xf32>
    %c1_323 = arith.constant 1 : index
    %c0_324 = arith.constant 0 : index
    %c0_325 = arith.constant 0 : index
    %379 = vector.load %arg15[%c1_323, %c0_324, %c0_325] : memref<20x2x40xf32, #tpu.memory_space<vmem>>, vector<1x2x40xf32>
    %380 = vector.shape_cast %379 : vector<1x2x40xf32> to vector<2x40xf32>
    %cst_326 = arith.constant dense<0.000000e+00> : vector<2x64xf32>
    %381 = tpu.matmul %380, %370, %cst_326 {dimension_numbers = #tpu.dot_dimension_numbers<[1], [0], [0], [1], [0, 0, 1, 1], [], []>} : vector<2x40xf32>, vector<40x64xf32>, vector<2x64xf32> -> vector<2x64xf32>
    %c1_327 = arith.constant 1 : index
    %c0_328 = arith.constant 0 : index
    %c0_329 = arith.constant 0 : index
    %382 = vector.load %arg16[%c1_327, %c0_328, %c0_329] : memref<20x64x256xf32, #tpu.memory_space<vmem>>, vector<1x64x256xf32>
    %383 = vector.shape_cast %382 : vector<1x64x256xf32> to vector<64x256xf32>
    %cst_330 = arith.constant dense<0.000000e+00> : vector<2x256xf32>
    %384 = tpu.matmul %381, %383, %cst_330 {dimension_numbers = #tpu.dot_dimension_numbers<[1], [0], [0], [1], [0, 0, 1, 1], [], []>} : vector<2x64xf32>, vector<64x256xf32>, vector<2x256xf32> -> vector<2x256xf32>
    %385 = arith.addf %378, %384 : vector<2x256xf32>
    %c2_331 = arith.constant 2 : index
    %c0_332 = arith.constant 0 : index
    %c0_333 = arith.constant 0 : index
    %386 = vector.load %arg15[%c2_331, %c0_332, %c0_333] : memref<20x2x40xf32, #tpu.memory_space<vmem>>, vector<1x2x40xf32>
    %387 = vector.shape_cast %386 : vector<1x2x40xf32> to vector<2x40xf32>
    %cst_334 = arith.constant dense<0.000000e+00> : vector<2x64xf32>
    %388 = tpu.matmul %387, %370, %cst_334 {dimension_numbers = #tpu.dot_dimension_numbers<[1], [0], [0], [1], [0, 0, 1, 1], [], []>} : vector<2x40xf32>, vector<40x64xf32>, vector<2x64xf32> -> vector<2x64xf32>
    %c2_335 = arith.constant 2 : index
    %c0_336 = arith.constant 0 : index
    %c0_337 = arith.constant 0 : index
    %389 = vector.load %arg16[%c2_335, %c0_336, %c0_337] : memref<20x64x256xf32, #tpu.memory_space<vmem>>, vector<1x64x256xf32>
    %390 = vector.shape_cast %389 : vector<1x64x256xf32> to vector<64x256xf32>
    %cst_338 = arith.constant dense<0.000000e+00> : vector<2x256xf32>
    %391 = tpu.matmul %388, %390, %cst_338 {dimension_numbers = #tpu.dot_dimension_numbers<[1], [0], [0], [1], [0, 0, 1, 1], [], []>} : vector<2x64xf32>, vector<64x256xf32>, vector<2x256xf32> -> vector<2x256xf32>
    %392 = arith.addf %385, %391 : vector<2x256xf32>
    %c3_339 = arith.constant 3 : index
    %c0_340 = arith.constant 0 : index
    %c0_341 = arith.constant 0 : index
    %393 = vector.load %arg15[%c3_339, %c0_340, %c0_341] : memref<20x2x40xf32, #tpu.memory_space<vmem>>, vector<1x2x40xf32>
    %394 = vector.shape_cast %393 : vector<1x2x40xf32> to vector<2x40xf32>
    %cst_342 = arith.constant dense<0.000000e+00> : vector<2x64xf32>
    %395 = tpu.matmul %394, %370, %cst_342 {dimension_numbers = #tpu.dot_dimension_numbers<[1], [0], [0], [1], [0, 0, 1, 1], [], []>} : vector<2x40xf32>, vector<40x64xf32>, vector<2x64xf32> -> vector<2x64xf32>
    %c3_343 = arith.constant 3 : index
    %c0_344 = arith.constant 0 : index
    %c0_345 = arith.constant 0 : index
    %396 = vector.load %arg16[%c3_343, %c0_344, %c0_345] : memref<20x64x256xf32, #tpu.memory_space<vmem>>, vector<1x64x256xf32>
    %397 = vector.shape_cast %396 : vector<1x64x256xf32> to vector<64x256xf32>
    %cst_346 = arith.constant dense<0.000000e+00> : vector<2x256xf32>
    %398 = tpu.matmul %395, %397, %cst_346 {dimension_numbers = #tpu.dot_dimension_numbers<[1], [0], [0], [1], [0, 0, 1, 1], [], []>} : vector<2x64xf32>, vector<64x256xf32>, vector<2x256xf32> -> vector<2x256xf32>
    %399 = arith.addf %392, %398 : vector<2x256xf32>
    %c4_347 = arith.constant 4 : index
    %c0_348 = arith.constant 0 : index
    %c0_349 = arith.constant 0 : index
    %400 = vector.load %arg15[%c4_347, %c0_348, %c0_349] : memref<20x2x40xf32, #tpu.memory_space<vmem>>, vector<1x2x40xf32>
    %401 = vector.shape_cast %400 : vector<1x2x40xf32> to vector<2x40xf32>
    %cst_350 = arith.constant dense<0.000000e+00> : vector<2x64xf32>
    %402 = tpu.matmul %401, %370, %cst_350 {dimension_numbers = #tpu.dot_dimension_numbers<[1], [0], [0], [1], [0, 0, 1, 1], [], []>} : vector<2x40xf32>, vector<40x64xf32>, vector<2x64xf32> -> vector<2x64xf32>
    %c4_351 = arith.constant 4 : index
    %c0_352 = arith.constant 0 : index
    %c0_353 = arith.constant 0 : index
    %403 = vector.load %arg16[%c4_351, %c0_352, %c0_353] : memref<20x64x256xf32, #tpu.memory_space<vmem>>, vector<1x64x256xf32>
    %404 = vector.shape_cast %403 : vector<1x64x256xf32> to vector<64x256xf32>
    %cst_354 = arith.constant dense<0.000000e+00> : vector<2x256xf32>
    %405 = tpu.matmul %402, %404, %cst_354 {dimension_numbers = #tpu.dot_dimension_numbers<[1], [0], [0], [1], [0, 0, 1, 1], [], []>} : vector<2x64xf32>, vector<64x256xf32>, vector<2x256xf32> -> vector<2x256xf32>
    %406 = arith.addf %399, %405 : vector<2x256xf32>
    %c5_355 = arith.constant 5 : index
    %c0_356 = arith.constant 0 : index
    %c0_357 = arith.constant 0 : index
    %407 = vector.load %arg15[%c5_355, %c0_356, %c0_357] : memref<20x2x40xf32, #tpu.memory_space<vmem>>, vector<1x2x40xf32>
    %408 = vector.shape_cast %407 : vector<1x2x40xf32> to vector<2x40xf32>
    %cst_358 = arith.constant dense<0.000000e+00> : vector<2x64xf32>
    %409 = tpu.matmul %408, %370, %cst_358 {dimension_numbers = #tpu.dot_dimension_numbers<[1], [0], [0], [1], [0, 0, 1, 1], [], []>} : vector<2x40xf32>, vector<40x64xf32>, vector<2x64xf32> -> vector<2x64xf32>
    %c5_359 = arith.constant 5 : index
    %c0_360 = arith.constant 0 : index
    %c0_361 = arith.constant 0 : index
    %410 = vector.load %arg16[%c5_359, %c0_360, %c0_361] : memref<20x64x256xf32, #tpu.memory_space<vmem>>, vector<1x64x256xf32>
    %411 = vector.shape_cast %410 : vector<1x64x256xf32> to vector<64x256xf32>
    %cst_362 = arith.constant dense<0.000000e+00> : vector<2x256xf32>
    %412 = tpu.matmul %409, %411, %cst_362 {dimension_numbers = #tpu.dot_dimension_numbers<[1], [0], [0], [1], [0, 0, 1, 1], [], []>} : vector<2x64xf32>, vector<64x256xf32>, vector<2x256xf32> -> vector<2x256xf32>
    %413 = arith.addf %406, %412 : vector<2x256xf32>
    %c6_363 = arith.constant 6 : index
    %c0_364 = arith.constant 0 : index
    %c0_365 = arith.constant 0 : index
    %414 = vector.load %arg15[%c6_363, %c0_364, %c0_365] : memref<20x2x40xf32, #tpu.memory_space<vmem>>, vector<1x2x40xf32>
    %415 = vector.shape_cast %414 : vector<1x2x40xf32> to vector<2x40xf32>
    %cst_366 = arith.constant dense<0.000000e+00> : vector<2x64xf32>
    %416 = tpu.matmul %415, %370, %cst_366 {dimension_numbers = #tpu.dot_dimension_numbers<[1], [0], [0], [1], [0, 0, 1, 1], [], []>} : vector<2x40xf32>, vector<40x64xf32>, vector<2x64xf32> -> vector<2x64xf32>
    %c6_367 = arith.constant 6 : index
    %c0_368 = arith.constant 0 : index
    %c0_369 = arith.constant 0 : index
    %417 = vector.load %arg16[%c6_367, %c0_368, %c0_369] : memref<20x64x256xf32, #tpu.memory_space<vmem>>, vector<1x64x256xf32>
    %418 = vector.shape_cast %417 : vector<1x64x256xf32> to vector<64x256xf32>
    %cst_370 = arith.constant dense<0.000000e+00> : vector<2x256xf32>
    %419 = tpu.matmul %416, %418, %cst_370 {dimension_numbers = #tpu.dot_dimension_numbers<[1], [0], [0], [1], [0, 0, 1, 1], [], []>} : vector<2x64xf32>, vector<64x256xf32>, vector<2x256xf32> -> vector<2x256xf32>
    %420 = arith.addf %413, %419 : vector<2x256xf32>
    %c7_371 = arith.constant 7 : index
    %c0_372 = arith.constant 0 : index
    %c0_373 = arith.constant 0 : index
    %421 = vector.load %arg15[%c7_371, %c0_372, %c0_373] : memref<20x2x40xf32, #tpu.memory_space<vmem>>, vector<1x2x40xf32>
    %422 = vector.shape_cast %421 : vector<1x2x40xf32> to vector<2x40xf32>
    %cst_374 = arith.constant dense<0.000000e+00> : vector<2x64xf32>
    %423 = tpu.matmul %422, %370, %cst_374 {dimension_numbers = #tpu.dot_dimension_numbers<[1], [0], [0], [1], [0, 0, 1, 1], [], []>} : vector<2x40xf32>, vector<40x64xf32>, vector<2x64xf32> -> vector<2x64xf32>
    %c7_375 = arith.constant 7 : index
    %c0_376 = arith.constant 0 : index
    %c0_377 = arith.constant 0 : index
    %424 = vector.load %arg16[%c7_375, %c0_376, %c0_377] : memref<20x64x256xf32, #tpu.memory_space<vmem>>, vector<1x64x256xf32>
    %425 = vector.shape_cast %424 : vector<1x64x256xf32> to vector<64x256xf32>
    %cst_378 = arith.constant dense<0.000000e+00> : vector<2x256xf32>
    %426 = tpu.matmul %423, %425, %cst_378 {dimension_numbers = #tpu.dot_dimension_numbers<[1], [0], [0], [1], [0, 0, 1, 1], [], []>} : vector<2x64xf32>, vector<64x256xf32>, vector<2x256xf32> -> vector<2x256xf32>
    %427 = arith.addf %420, %426 : vector<2x256xf32>
    %c8_379 = arith.constant 8 : index
    %c0_380 = arith.constant 0 : index
    %c0_381 = arith.constant 0 : index
    %428 = vector.load %arg15[%c8_379, %c0_380, %c0_381] : memref<20x2x40xf32, #tpu.memory_space<vmem>>, vector<1x2x40xf32>
    %429 = vector.shape_cast %428 : vector<1x2x40xf32> to vector<2x40xf32>
    %cst_382 = arith.constant dense<0.000000e+00> : vector<2x64xf32>
    %430 = tpu.matmul %429, %370, %cst_382 {dimension_numbers = #tpu.dot_dimension_numbers<[1], [0], [0], [1], [0, 0, 1, 1], [], []>} : vector<2x40xf32>, vector<40x64xf32>, vector<2x64xf32> -> vector<2x64xf32>
    %c8_383 = arith.constant 8 : index
    %c0_384 = arith.constant 0 : index
    %c0_385 = arith.constant 0 : index
    %431 = vector.load %arg16[%c8_383, %c0_384, %c0_385] : memref<20x64x256xf32, #tpu.memory_space<vmem>>, vector<1x64x256xf32>
    %432 = vector.shape_cast %431 : vector<1x64x256xf32> to vector<64x256xf32>
    %cst_386 = arith.constant dense<0.000000e+00> : vector<2x256xf32>
    %433 = tpu.matmul %430, %432, %cst_386 {dimension_numbers = #tpu.dot_dimension_numbers<[1], [0], [0], [1], [0, 0, 1, 1], [], []>} : vector<2x64xf32>, vector<64x256xf32>, vector<2x256xf32> -> vector<2x256xf32>
    %434 = arith.addf %427, %433 : vector<2x256xf32>
    %c9_387 = arith.constant 9 : index
    %c0_388 = arith.constant 0 : index
    %c0_389 = arith.constant 0 : index
    %435 = vector.load %arg15[%c9_387, %c0_388, %c0_389] : memref<20x2x40xf32, #tpu.memory_space<vmem>>, vector<1x2x40xf32>
    %436 = vector.shape_cast %435 : vector<1x2x40xf32> to vector<2x40xf32>
    %cst_390 = arith.constant dense<0.000000e+00> : vector<2x64xf32>
    %437 = tpu.matmul %436, %370, %cst_390 {dimension_numbers = #tpu.dot_dimension_numbers<[1], [0], [0], [1], [0, 0, 1, 1], [], []>} : vector<2x40xf32>, vector<40x64xf32>, vector<2x64xf32> -> vector<2x64xf32>
    %c9_391 = arith.constant 9 : index
    %c0_392 = arith.constant 0 : index
    %c0_393 = arith.constant 0 : index
    %438 = vector.load %arg16[%c9_391, %c0_392, %c0_393] : memref<20x64x256xf32, #tpu.memory_space<vmem>>, vector<1x64x256xf32>
    %439 = vector.shape_cast %438 : vector<1x64x256xf32> to vector<64x256xf32>
    %cst_394 = arith.constant dense<0.000000e+00> : vector<2x256xf32>
    %440 = tpu.matmul %437, %439, %cst_394 {dimension_numbers = #tpu.dot_dimension_numbers<[1], [0], [0], [1], [0, 0, 1, 1], [], []>} : vector<2x64xf32>, vector<64x256xf32>, vector<2x256xf32> -> vector<2x256xf32>
    %441 = arith.addf %434, %440 : vector<2x256xf32>
    %c10_395 = arith.constant 10 : index
    %c0_396 = arith.constant 0 : index
    %c0_397 = arith.constant 0 : index
    %442 = vector.load %arg15[%c10_395, %c0_396, %c0_397] : memref<20x2x40xf32, #tpu.memory_space<vmem>>, vector<1x2x40xf32>
    %443 = vector.shape_cast %442 : vector<1x2x40xf32> to vector<2x40xf32>
    %cst_398 = arith.constant dense<0.000000e+00> : vector<2x64xf32>
    %444 = tpu.matmul %443, %370, %cst_398 {dimension_numbers = #tpu.dot_dimension_numbers<[1], [0], [0], [1], [0, 0, 1, 1], [], []>} : vector<2x40xf32>, vector<40x64xf32>, vector<2x64xf32> -> vector<2x64xf32>
    %c10_399 = arith.constant 10 : index
    %c0_400 = arith.constant 0 : index
    %c0_401 = arith.constant 0 : index
    %445 = vector.load %arg16[%c10_399, %c0_400, %c0_401] : memref<20x64x256xf32, #tpu.memory_space<vmem>>, vector<1x64x256xf32>
    %446 = vector.shape_cast %445 : vector<1x64x256xf32> to vector<64x256xf32>
    %cst_402 = arith.constant dense<0.000000e+00> : vector<2x256xf32>
    %447 = tpu.matmul %444, %446, %cst_402 {dimension_numbers = #tpu.dot_dimension_numbers<[1], [0], [0], [1], [0, 0, 1, 1], [], []>} : vector<2x64xf32>, vector<64x256xf32>, vector<2x256xf32> -> vector<2x256xf32>
    %448 = arith.addf %441, %447 : vector<2x256xf32>
    %c11_403 = arith.constant 11 : index
    %c0_404 = arith.constant 0 : index
    %c0_405 = arith.constant 0 : index
    %449 = vector.load %arg15[%c11_403, %c0_404, %c0_405] : memref<20x2x40xf32, #tpu.memory_space<vmem>>, vector<1x2x40xf32>
    %450 = vector.shape_cast %449 : vector<1x2x40xf32> to vector<2x40xf32>
    %cst_406 = arith.constant dense<0.000000e+00> : vector<2x64xf32>
    %451 = tpu.matmul %450, %370, %cst_406 {dimension_numbers = #tpu.dot_dimension_numbers<[1], [0], [0], [1], [0, 0, 1, 1], [], []>} : vector<2x40xf32>, vector<40x64xf32>, vector<2x64xf32> -> vector<2x64xf32>
    %c11_407 = arith.constant 11 : index
    %c0_408 = arith.constant 0 : index
    %c0_409 = arith.constant 0 : index
    %452 = vector.load %arg16[%c11_407, %c0_408, %c0_409] : memref<20x64x256xf32, #tpu.memory_space<vmem>>, vector<1x64x256xf32>
    %453 = vector.shape_cast %452 : vector<1x64x256xf32> to vector<64x256xf32>
    %cst_410 = arith.constant dense<0.000000e+00> : vector<2x256xf32>
    %454 = tpu.matmul %451, %453, %cst_410 {dimension_numbers = #tpu.dot_dimension_numbers<[1], [0], [0], [1], [0, 0, 1, 1], [], []>} : vector<2x64xf32>, vector<64x256xf32>, vector<2x256xf32> -> vector<2x256xf32>
    %455 = arith.addf %448, %454 : vector<2x256xf32>
    %c12_411 = arith.constant 12 : index
    %c0_412 = arith.constant 0 : index
    %c0_413 = arith.constant 0 : index
    %456 = vector.load %arg15[%c12_411, %c0_412, %c0_413] : memref<20x2x40xf32, #tpu.memory_space<vmem>>, vector<1x2x40xf32>
    %457 = vector.shape_cast %456 : vector<1x2x40xf32> to vector<2x40xf32>
    %cst_414 = arith.constant dense<0.000000e+00> : vector<2x64xf32>
    %458 = tpu.matmul %457, %370, %cst_414 {dimension_numbers = #tpu.dot_dimension_numbers<[1], [0], [0], [1], [0, 0, 1, 1], [], []>} : vector<2x40xf32>, vector<40x64xf32>, vector<2x64xf32> -> vector<2x64xf32>
    %c12_415 = arith.constant 12 : index
    %c0_416 = arith.constant 0 : index
    %c0_417 = arith.constant 0 : index
    %459 = vector.load %arg16[%c12_415, %c0_416, %c0_417] : memref<20x64x256xf32, #tpu.memory_space<vmem>>, vector<1x64x256xf32>
    %460 = vector.shape_cast %459 : vector<1x64x256xf32> to vector<64x256xf32>
    %cst_418 = arith.constant dense<0.000000e+00> : vector<2x256xf32>
    %461 = tpu.matmul %458, %460, %cst_418 {dimension_numbers = #tpu.dot_dimension_numbers<[1], [0], [0], [1], [0, 0, 1, 1], [], []>} : vector<2x64xf32>, vector<64x256xf32>, vector<2x256xf32> -> vector<2x256xf32>
    %462 = arith.addf %455, %461 : vector<2x256xf32>
    %c13_419 = arith.constant 13 : index
    %c0_420 = arith.constant 0 : index
    %c0_421 = arith.constant 0 : index
    %463 = vector.load %arg15[%c13_419, %c0_420, %c0_421] : memref<20x2x40xf32, #tpu.memory_space<vmem>>, vector<1x2x40xf32>
    %464 = vector.shape_cast %463 : vector<1x2x40xf32> to vector<2x40xf32>
    %cst_422 = arith.constant dense<0.000000e+00> : vector<2x64xf32>
    %465 = tpu.matmul %464, %370, %cst_422 {dimension_numbers = #tpu.dot_dimension_numbers<[1], [0], [0], [1], [0, 0, 1, 1], [], []>} : vector<2x40xf32>, vector<40x64xf32>, vector<2x64xf32> -> vector<2x64xf32>
    %c13_423 = arith.constant 13 : index
    %c0_424 = arith.constant 0 : index
    %c0_425 = arith.constant 0 : index
    %466 = vector.load %arg16[%c13_423, %c0_424, %c0_425] : memref<20x64x256xf32, #tpu.memory_space<vmem>>, vector<1x64x256xf32>
    %467 = vector.shape_cast %466 : vector<1x64x256xf32> to vector<64x256xf32>
    %cst_426 = arith.constant dense<0.000000e+00> : vector<2x256xf32>
    %468 = tpu.matmul %465, %467, %cst_426 {dimension_numbers = #tpu.dot_dimension_numbers<[1], [0], [0], [1], [0, 0, 1, 1], [], []>} : vector<2x64xf32>, vector<64x256xf32>, vector<2x256xf32> -> vector<2x256xf32>
    %469 = arith.addf %462, %468 : vector<2x256xf32>
    %c14_427 = arith.constant 14 : index
    %c0_428 = arith.constant 0 : index
    %c0_429 = arith.constant 0 : index
    %470 = vector.load %arg15[%c14_427, %c0_428, %c0_429] : memref<20x2x40xf32, #tpu.memory_space<vmem>>, vector<1x2x40xf32>
    %471 = vector.shape_cast %470 : vector<1x2x40xf32> to vector<2x40xf32>
    %cst_430 = arith.constant dense<0.000000e+00> : vector<2x64xf32>
    %472 = tpu.matmul %471, %370, %cst_430 {dimension_numbers = #tpu.dot_dimension_numbers<[1], [0], [0], [1], [0, 0, 1, 1], [], []>} : vector<2x40xf32>, vector<40x64xf32>, vector<2x64xf32> -> vector<2x64xf32>
    %c14_431 = arith.constant 14 : index
    %c0_432 = arith.constant 0 : index
    %c0_433 = arith.constant 0 : index
    %473 = vector.load %arg16[%c14_431, %c0_432, %c0_433] : memref<20x64x256xf32, #tpu.memory_space<vmem>>, vector<1x64x256xf32>
    %474 = vector.shape_cast %473 : vector<1x64x256xf32> to vector<64x256xf32>
    %cst_434 = arith.constant dense<0.000000e+00> : vector<2x256xf32>
    %475 = tpu.matmul %472, %474, %cst_434 {dimension_numbers = #tpu.dot_dimension_numbers<[1], [0], [0], [1], [0, 0, 1, 1], [], []>} : vector<2x64xf32>, vector<64x256xf32>, vector<2x256xf32> -> vector<2x256xf32>
    %476 = arith.addf %469, %475 : vector<2x256xf32>
    %c15_435 = arith.constant 15 : index
    %c0_436 = arith.constant 0 : index
    %c0_437 = arith.constant 0 : index
    %477 = vector.load %arg15[%c15_435, %c0_436, %c0_437] : memref<20x2x40xf32, #tpu.memory_space<vmem>>, vector<1x2x40xf32>
    %478 = vector.shape_cast %477 : vector<1x2x40xf32> to vector<2x40xf32>
    %cst_438 = arith.constant dense<0.000000e+00> : vector<2x64xf32>
    %479 = tpu.matmul %478, %370, %cst_438 {dimension_numbers = #tpu.dot_dimension_numbers<[1], [0], [0], [1], [0, 0, 1, 1], [], []>} : vector<2x40xf32>, vector<40x64xf32>, vector<2x64xf32> -> vector<2x64xf32>
    %c15_439 = arith.constant 15 : index
    %c0_440 = arith.constant 0 : index
    %c0_441 = arith.constant 0 : index
    %480 = vector.load %arg16[%c15_439, %c0_440, %c0_441] : memref<20x64x256xf32, #tpu.memory_space<vmem>>, vector<1x64x256xf32>
    %481 = vector.shape_cast %480 : vector<1x64x256xf32> to vector<64x256xf32>
    %cst_442 = arith.constant dense<0.000000e+00> : vector<2x256xf32>
    %482 = tpu.matmul %479, %481, %cst_442 {dimension_numbers = #tpu.dot_dimension_numbers<[1], [0], [0], [1], [0, 0, 1, 1], [], []>} : vector<2x64xf32>, vector<64x256xf32>, vector<2x256xf32> -> vector<2x256xf32>
    %483 = arith.addf %476, %482 : vector<2x256xf32>
    %c16 = arith.constant 16 : index
    %c0_443 = arith.constant 0 : index
    %c0_444 = arith.constant 0 : index
    %484 = vector.load %arg15[%c16, %c0_443, %c0_444] : memref<20x2x40xf32, #tpu.memory_space<vmem>>, vector<1x2x40xf32>
    %485 = vector.shape_cast %484 : vector<1x2x40xf32> to vector<2x40xf32>
    %cst_445 = arith.constant dense<0.000000e+00> : vector<2x64xf32>
    %486 = tpu.matmul %485, %370, %cst_445 {dimension_numbers = #tpu.dot_dimension_numbers<[1], [0], [0], [1], [0, 0, 1, 1], [], []>} : vector<2x40xf32>, vector<40x64xf32>, vector<2x64xf32> -> vector<2x64xf32>
    %c16_446 = arith.constant 16 : index
    %c0_447 = arith.constant 0 : index
    %c0_448 = arith.constant 0 : index
    %487 = vector.load %arg16[%c16_446, %c0_447, %c0_448] : memref<20x64x256xf32, #tpu.memory_space<vmem>>, vector<1x64x256xf32>
    %488 = vector.shape_cast %487 : vector<1x64x256xf32> to vector<64x256xf32>
    %cst_449 = arith.constant dense<0.000000e+00> : vector<2x256xf32>
    %489 = tpu.matmul %486, %488, %cst_449 {dimension_numbers = #tpu.dot_dimension_numbers<[1], [0], [0], [1], [0, 0, 1, 1], [], []>} : vector<2x64xf32>, vector<64x256xf32>, vector<2x256xf32> -> vector<2x256xf32>
    %490 = arith.addf %483, %489 : vector<2x256xf32>
    %c17 = arith.constant 17 : index
    %c0_450 = arith.constant 0 : index
    %c0_451 = arith.constant 0 : index
    %491 = vector.load %arg15[%c17, %c0_450, %c0_451] : memref<20x2x40xf32, #tpu.memory_space<vmem>>, vector<1x2x40xf32>
    %492 = vector.shape_cast %491 : vector<1x2x40xf32> to vector<2x40xf32>
    %cst_452 = arith.constant dense<0.000000e+00> : vector<2x64xf32>
    %493 = tpu.matmul %492, %370, %cst_452 {dimension_numbers = #tpu.dot_dimension_numbers<[1], [0], [0], [1], [0, 0, 1, 1], [], []>} : vector<2x40xf32>, vector<40x64xf32>, vector<2x64xf32> -> vector<2x64xf32>
    %c17_453 = arith.constant 17 : index
    %c0_454 = arith.constant 0 : index
    %c0_455 = arith.constant 0 : index
    %494 = vector.load %arg16[%c17_453, %c0_454, %c0_455] : memref<20x64x256xf32, #tpu.memory_space<vmem>>, vector<1x64x256xf32>
    %495 = vector.shape_cast %494 : vector<1x64x256xf32> to vector<64x256xf32>
    %cst_456 = arith.constant dense<0.000000e+00> : vector<2x256xf32>
    %496 = tpu.matmul %493, %495, %cst_456 {dimension_numbers = #tpu.dot_dimension_numbers<[1], [0], [0], [1], [0, 0, 1, 1], [], []>} : vector<2x64xf32>, vector<64x256xf32>, vector<2x256xf32> -> vector<2x256xf32>
    %497 = arith.addf %490, %496 : vector<2x256xf32>
    %c18 = arith.constant 18 : index
    %c0_457 = arith.constant 0 : index
    %c0_458 = arith.constant 0 : index
    %498 = vector.load %arg15[%c18, %c0_457, %c0_458] : memref<20x2x40xf32, #tpu.memory_space<vmem>>, vector<1x2x40xf32>
    %499 = vector.shape_cast %498 : vector<1x2x40xf32> to vector<2x40xf32>
    %cst_459 = arith.constant dense<0.000000e+00> : vector<2x64xf32>
    %500 = tpu.matmul %499, %370, %cst_459 {dimension_numbers = #tpu.dot_dimension_numbers<[1], [0], [0], [1], [0, 0, 1, 1], [], []>} : vector<2x40xf32>, vector<40x64xf32>, vector<2x64xf32> -> vector<2x64xf32>
    %c18_460 = arith.constant 18 : index
    %c0_461 = arith.constant 0 : index
    %c0_462 = arith.constant 0 : index
    %501 = vector.load %arg16[%c18_460, %c0_461, %c0_462] : memref<20x64x256xf32, #tpu.memory_space<vmem>>, vector<1x64x256xf32>
    %502 = vector.shape_cast %501 : vector<1x64x256xf32> to vector<64x256xf32>
    %cst_463 = arith.constant dense<0.000000e+00> : vector<2x256xf32>
    %503 = tpu.matmul %500, %502, %cst_463 {dimension_numbers = #tpu.dot_dimension_numbers<[1], [0], [0], [1], [0, 0, 1, 1], [], []>} : vector<2x64xf32>, vector<64x256xf32>, vector<2x256xf32> -> vector<2x256xf32>
    %504 = arith.addf %497, %503 : vector<2x256xf32>
    %c19 = arith.constant 19 : index
    %c0_464 = arith.constant 0 : index
    %c0_465 = arith.constant 0 : index
    %505 = vector.load %arg15[%c19, %c0_464, %c0_465] : memref<20x2x40xf32, #tpu.memory_space<vmem>>, vector<1x2x40xf32>
    %506 = vector.shape_cast %505 : vector<1x2x40xf32> to vector<2x40xf32>
    %cst_466 = arith.constant dense<0.000000e+00> : vector<2x64xf32>
    %507 = tpu.matmul %506, %370, %cst_466 {dimension_numbers = #tpu.dot_dimension_numbers<[1], [0], [0], [1], [0, 0, 1, 1], [], []>} : vector<2x40xf32>, vector<40x64xf32>, vector<2x64xf32> -> vector<2x64xf32>
    %c19_467 = arith.constant 19 : index
    %c0_468 = arith.constant 0 : index
    %c0_469 = arith.constant 0 : index
    %508 = vector.load %arg16[%c19_467, %c0_468, %c0_469] : memref<20x64x256xf32, #tpu.memory_space<vmem>>, vector<1x64x256xf32>
    %509 = vector.shape_cast %508 : vector<1x64x256xf32> to vector<64x256xf32>
    %cst_470 = arith.constant dense<0.000000e+00> : vector<2x256xf32>
    %510 = tpu.matmul %507, %509, %cst_470 {dimension_numbers = #tpu.dot_dimension_numbers<[1], [0], [0], [1], [0, 0, 1, 1], [], []>} : vector<2x64xf32>, vector<64x256xf32>, vector<2x256xf32> -> vector<2x256xf32>
    %511 = arith.addf %504, %510 : vector<2x256xf32>
    %c0_471 = arith.constant 0 : index
    %c0_472 = arith.constant 0 : index
    %512 = vector.load %arg17[%c0_471, %c0_472] : memref<1x256xf32, #tpu.memory_space<vmem>>, vector<1x256xf32>
    %513 = vector.broadcast %512 : vector<1x256xf32> to vector<2x256xf32>
    %514 = arith.addf %511, %513 : vector<2x256xf32>
    %515 = arith.subf %246, %514 : vector<2x256xf32>
    %516 = arith.mulf %515, %515 : vector<2x256xf32>
    %c0_473 = arith.constant 0 : index
    %c0_474 = arith.constant 0 : index
    %517 = vector.load %arg18[%c0_473, %c0_474] : memref<1x256xf32, #tpu.memory_space<vmem>>, vector<1x256xf32>
    %518 = vector.broadcast %517 : vector<1x256xf32> to vector<2x256xf32>
    %519 = arith.mulf %516, %518 : vector<2x256xf32>
    %cst_475 = arith.constant dense<0.000000e+00> : vector<2xf32>
    %520 = vector.multi_reduction <add>, %519, %cst_475 [1] : vector<2x256xf32> to vector<2xf32>
    %521 = vector.shape_cast %520 : vector<2xf32> to vector<2x1xf32>
    %c0_476 = arith.constant 0 : index
    %c0_477 = arith.constant 0 : index
    %522 = vector.load %arg19[%c0_476, %c0_477] : memref<1x1xf32, #tpu.memory_space<vmem>>, vector<1x1xf32>
    %523 = vector.broadcast %522 : vector<1x1xf32> to vector<2x1xf32>
    %524 = arith.addf %521, %523 : vector<2x1xf32>
    %cst_478 = arith.constant 0.000000e+00 : f32
    %525 = vector.broadcast %cst_478 : f32 to vector<2x1xf32>
    %526 = arith.subf %525, %524 : vector<2x1xf32>
    %527 = math.exp %526 : vector<2x1xf32>
    %cst_479 = arith.constant 1.000000e+00 : f32
    %528 = vector.broadcast %cst_479 : f32 to vector<2x1xf32>
    %529 = arith.addf %528, %527 : vector<2x1xf32>
    %cst_480 = arith.constant 1.000000e+00 : f32
    %530 = vector.broadcast %cst_480 : f32 to vector<2x1xf32>
    %531 = arith.divf %530, %529 : vector<2x1xf32>
    %c0_481 = arith.constant 0 : index
    %c0_482 = arith.constant 0 : index
    %532 = vector.load %arg20[%c0_481, %c0_482] : memref<2x1xf32, #tpu.memory_space<vmem>>, vector<2x1xf32>
    tpu.vector_store %arg20[%c0_481, %c0_482], %531 {strides = array<i32>} : memref<2x1xf32, #tpu.memory_space<vmem>>, vector<2x1xf32>,
    return
  }
}

</mosaic_0001>

<llo_original>
// kernel: sync_discriminator_forward.1
$region0: #{sync_discriminator_forward.1}
  #allocation0 [shape = 'u32[]', space=smem, size = 0x4, offset = 0x4, fixed_abs, tag = 'smem constant byte address 0x4 - core index']
  #allocation1 [shape = 'u32[144,128]{1,0:T(1,128)}', space=vmem, size = 0x12000, scoped, tag = 'internal scratch']
  #allocation2 [shape = 'f32[1,1]{1,0:T(1,128)S(1)}', space=vmem, size = 0x200, scoped, tag = 'scoped memory for sync_discriminator_forward.1']
  %s0 = inlined_call_operand.vmem [shape: f32[162,240], index: 0, kind: input, shape index: {}]
  %s1 = inlined_call_operand.vmem [shape: f32[240,16], index: 1, kind: input, shape index: {}]
  %s2 = inlined_call_operand.vmem [shape: f32[3,16], index: 2, kind: input, shape index: {}]
  %s3 = inlined_call_operand.vmem [shape: f32[9,32,162], index: 3, kind: input, shape index: {}]
  %s4 = inlined_call_operand.vmem [shape: f32[9,16,128], index: 4, kind: input, shape index: {}]
  %s5 = inlined_call_operand.vmem [shape: f32[3,128], index: 5, kind: input, shape index: {}]
  %s6 = inlined_call_operand.vmem [shape: f32[16,2,32], index: 6, kind: input, shape index: {}]
  %s7 = inlined_call_operand.vmem [shape: f32[16,128,256], index: 7, kind: input, shape index: {}]
  %s8 = inlined_call_operand.vmem [shape: f32[1,256], index: 8, kind: input, shape index: {}]
  %s9 = inlined_call_operand.vmem [shape: f32[94,16], index: 9, kind: input, shape index: {}]
  %s10 = inlined_call_operand.vmem [shape: f32[16,32], index: 10, kind: input, shape index: {}]
  %s11 = inlined_call_operand.vmem [shape: f32[3,32], index: 11, kind: input, shape index: {}]
  %s12 = inlined_call_operand.vmem [shape: f32[8,40,94], index: 12, kind: input, shape index: {}]
  %s13 = inlined_call_operand.vmem [shape: f32[8,32,64], index: 13, kind: input, shape index: {}]
  %s14 = inlined_call_operand.vmem [shape: f32[3,64], index: 14, kind: input, shape index: {}]
  %s15 = inlined_call_operand.vmem [shape: f32[20,2,40], index: 15, kind: input, shape index: {}]
  %s16 = inlined_call_operand.vmem [shape: f32[20,64,256], index: 16, kind: input, shape index: {}]
  %s17 = inlined_call_operand.vmem [shape: f32[1,256], index: 17, kind: input, shape index: {}]
  %s18 = inlined_call_operand.vmem [shape: f32[1,256], index: 18, kind: input, shape index: {}]
  %s19 = inlined_call_operand.<no memory space> [shape: f32[1,1], index: 19, kind: input, shape index: {}]
  %s20 = inlined_call_operand.vmem [shape: f32[2,1], index: 20, kind: output, shape index: {}]
  %s21 = sld [smem:[#allocation0]]
  $region90: #{sync_discriminator_forward.1} parent=0
    _
  %s23 = ssub.s32 1, %s21
  %s24 = scalar_select 0, %s23, %s21
  %v25 = vstv %s19
  %26 = vst [vmem:[#allocation2] sm:$0x1] %v25
  // Predicated region
  $region2: #{sync_discriminator_forward.1} parent=0 // pred_check
    _
  $region3: #{sync_discriminator_forward.1} parent=0 // pred_check_branch
    %28 = sbr.rel (0) target = $region5
  $region4: #{sync_discriminator_forward.1} parent=0 // pred_region
    _
  $region5: #{sync_discriminator_forward.1} parent=0 // pred_fallthru
    _
  // Predicated region
  $region6: #{sync_discriminator_forward.1} parent=0 // pred_check
    _
  $region7: #{sync_discriminator_forward.1} parent=0 // pred_check_branch
    %30 = sbr.rel (0) target = $region9
  $region8: #{sync_discriminator_forward.1} parent=0 // pred_region
    _
  $region9: #{sync_discriminator_forward.1} parent=0 // pred_fallthru
    _
  // Predicated region
  $region10: #{sync_discriminator_forward.1} parent=0 // pred_check
    _
  $region11: #{sync_discriminator_forward.1} parent=0 // pred_check_branch
    %32 = sbr.rel (0) target = $region13
  $region12: #{sync_discriminator_forward.1} parent=0 // pred_region
    _
  $region13: #{sync_discriminator_forward.1} parent=0 // pred_fallthru
    _
  // Predicated region
  $region14: #{sync_discriminator_forward.1} parent=0 // pred_check
    _
  $region15: #{sync_discriminator_forward.1} parent=0 // pred_check_branch
    %34 = sbr.rel (0) target = $region17
  $region16: #{sync_discriminator_forward.1} parent=0 // pred_region
    _
  $region17: #{sync_discriminator_forward.1} parent=0 // pred_fallthru
    _
  // Predicated region
  $region18: #{sync_discriminator_forward.1} parent=0 // pred_check
    _
  $region19: #{sync_discriminator_forward.1} parent=0 // pred_check_branch
    %36 = sbr.rel (0) target = $region21
  $region20: #{sync_discriminator_forward.1} parent=0 // pred_region
    _
  $region21: #{sync_discriminator_forward.1} parent=0 // pred_fallthru
    _
  // Predicated region
  $region22: #{sync_discriminator_forward.1} parent=0 // pred_check
    _
  $region23: #{sync_discriminator_forward.1} parent=0 // pred_check_branch
    %38 = sbr.rel (0) target = $region25
  $region24: #{sync_discriminator_forward.1} parent=0 // pred_region
    _
  $region25: #{sync_discriminator_forward.1} parent=0 // pred_fallthru
    _
  // Predicated region
  $region26: #{sync_discriminator_forward.1} parent=0 // pred_check
    _
  $region27: #{sync_discriminator_forward.1} parent=0 // pred_check_branch
    %40 = sbr.rel (0) target = $region29
  $region28: #{sync_discriminator_forward.1} parent=0 // pred_region
    _
  $region29: #{sync_discriminator_forward.1} parent=0 // pred_fallthru
    _
  // Predicated region
  $region30: #{sync_discriminator_forward.1} parent=0 // pred_check
    _
  $region31: #{sync_discriminator_forward.1} parent=0 // pred_check_branch
    %42 = sbr.rel (0) target = $region33
  $region32: #{sync_discriminator_forward.1} parent=0 // pred_region
    _
  $region33: #{sync_discriminator_forward.1} parent=0 // pred_fallthru
    _
  // Predicated region
  $region34: #{sync_discriminator_forward.1} parent=0 // pred_check
    _
  $region35: #{sync_discriminator_forward.1} parent=0 // pred_check_branch
    %44 = sbr.rel (0) target = $region37
  $region36: #{sync_discriminator_forward.1} parent=0 // pred_region
    _
  $region37: #{sync_discriminator_forward.1} parent=0 // pred_fallthru
    _
  // Predicated region
  $region38: #{sync_discriminator_forward.1} parent=0 // pred_check
    _
  $region39: #{sync_discriminator_forward.1} parent=0 // pred_check_branch
    %46 = sbr.rel (0) target = $region41
  $region40: #{sync_discriminator_forward.1} parent=0 // pred_region
    _
  $region41: #{sync_discriminator_forward.1} parent=0 // pred_fallthru
    _
  // Predicated region
  $region42: #{sync_discriminator_forward.1} parent=0 // pred_check
    _
  $region43: #{sync_discriminator_forward.1} parent=0 // pred_check_branch
    %48 = sbr.rel (0) target = $region45
  $region44: #{sync_discriminator_forward.1} parent=0 // pred_region
    _
  $region45: #{sync_discriminator_forward.1} parent=0 // pred_fallthru
    _
  // Predicated region
  $region46: #{sync_discriminator_forward.1} parent=0 // pred_check
    _
  $region47: #{sync_discriminator_forward.1} parent=0 // pred_check_branch
    %50 = sbr.rel (0) target = $region49
  $region48: #{sync_discriminator_forward.1} parent=0 // pred_region
    _
  $region49: #{sync_discriminator_forward.1} parent=0 // pred_fallthru
    _
  // Predicated region
  $region50: #{sync_discriminator_forward.1} parent=0 // pred_check
    _
  $region51: #{sync_discriminator_forward.1} parent=0 // pred_check_branch
    %52 = sbr.rel (0) target = $region53
  $region52: #{sync_discriminator_forward.1} parent=0 // pred_region
    _
  $region53: #{sync_discriminator_forward.1} parent=0 // pred_fallthru
    _
  // Predicated region
  $region54: #{sync_discriminator_forward.1} parent=0 // pred_check
    _
  $region55: #{sync_discriminator_forward.1} parent=0 // pred_check_branch
    %54 = sbr.rel (0) target = $region57
  $region56: #{sync_discriminator_forward.1} parent=0 // pred_region
    _
  $region57: #{sync_discriminator_forward.1} parent=0 // pred_fallthru
    _
  // Predicated region
  $region58: #{sync_discriminator_forward.1} parent=0 // pred_check
    _
  $region59: #{sync_discriminator_forward.1} parent=0 // pred_check_branch
    %56 = sbr.rel (0) target = $region61
  $region60: #{sync_discriminator_forward.1} parent=0 // pred_region
    _
  $region61: #{sync_discriminator_forward.1} parent=0 // pred_fallthru
    _
  // Predicated region
  $region62: #{sync_discriminator_forward.1} parent=0 // pred_check
    _
  $region63: #{sync_discriminator_forward.1} parent=0 // pred_check_branch
    %58 = sbr.rel (0) target = $region65
  $region64: #{sync_discriminator_forward.1} parent=0 // pred_region
    _
  $region65: #{sync_discriminator_forward.1} parent=0 // pred_fallthru
    _
  // Predicated region
  $region66: #{sync_discriminator_forward.1} parent=0 // pred_check
    _
  $region67: #{sync_discriminator_forward.1} parent=0 // pred_check_branch
    %60 = sbr.rel (0) target = $region69
  $region68: #{sync_discriminator_forward.1} parent=0 // pred_region
    _
  $region69: #{sync_discriminator_forward.1} parent=0 // pred_fallthru
    _
  // Predicated region
  $region70: #{sync_discriminator_forward.1} parent=0 // pred_check
    _
  $region71: #{sync_discriminator_forward.1} parent=0 // pred_check_branch
    %62 = sbr.rel (0) target = $region73
  $region72: #{sync_discriminator_forward.1} parent=0 // pred_region
    _
  $region73: #{sync_discriminator_forward.1} parent=0 // pred_fallthru
    _
  // Predicated region
  $region74: #{sync_discriminator_forward.1} parent=0 // pred_check
    _
  $region75: #{sync_discriminator_forward.1} parent=0 // pred_check_branch
    %64 = sbr.rel (0) target = $region77
  $region76: #{sync_discriminator_forward.1} parent=0 // pred_region
    _
  $region77: #{sync_discriminator_forward.1} parent=0 // pred_fallthru
    _
  // Predicated region
  $region78: #{sync_discriminator_forward.1} parent=0 // pred_check
    _
  $region79: #{sync_discriminator_forward.1} parent=0 // pred_check_branch
    %66 = sbr.rel (0) target = $region81
  $region80: #{sync_discriminator_forward.1} parent=0 // pred_region
    _
  $region81: #{sync_discriminator_forward.1} parent=0 // pred_fallthru
    _
  %v67 = vld [vmem:[%s0] sm:$0xff]
  %v68 = vld [vmem:[%s0 + $0x8] sm:$0xff]
  %v69 = vld [vmem:[%s0 + $0x10] sm:$0xff]
  %v70 = vld [vmem:[%s0 + $0x18] sm:$0xff]
  %v71 = vld [vmem:[%s0 + $0x20] sm:$0xff]
  %v72 = vld [vmem:[%s0 + $0x28] sm:$0xff]
  %v73 = vld [vmem:[%s0 + $0x30] sm:$0xff]
  %v74 = vld [vmem:[%s0 + $0x38] sm:$0xff]
  %v75 = vld [vmem:[%s0 + $0x40] sm:$0xff]
  %v76 = vld [vmem:[%s0 + $0x48] sm:$0xff]
  %v77 = vld [vmem:[%s0 + $0x50] sm:$0xff]
  %v78 = vld [vmem:[%s0 + $0x58] sm:$0xff]
  %v79 = vld [vmem:[%s0 + $0x60] sm:$0xff]
  %v80 = vld [vmem:[%s0 + $0x68] sm:$0xff]
  %v81 = vld [vmem:[%s0 + $0x70] sm:$0xff]
  %v82 = vld [vmem:[%s0 + $0x78] sm:$0xff]
  %v83 = vld [vmem:[%s0 + $0x80] sm:$0xff]
  %v84 = vld [vmem:[%s0 + $0x88] sm:$0xff]
  %v85 = vld [vmem:[%s0 + $0x90] sm:$0xff]
  %v86 = vld [vmem:[%s0 + $0x98] sm:$0xff]
  %v87 = vld [vmem:[%s0 + $0xa0] sm:$0xff]
  %v88 = vld [vmem:[%s0 + $0xa8] sm:$0xff]
  %v89 = vld [vmem:[%s0 + $0xb0] sm:$0xff]
  %v90 = vld [vmem:[%s0 + $0xb8] sm:$0xff]
  %v91 = vld [vmem:[%s0 + $0xc0] sm:$0xff]
  %v92 = vld [vmem:[%s0 + $0xc8] sm:$0xff]
  %v93 = vld [vmem:[%s0 + $0xd0] sm:$0xff]
  %v94 = vld [vmem:[%s0 + $0xd8] sm:$0xff]
  %v95 = vld [vmem:[%s0 + $0xe0] sm:$0xff]
  %v96 = vld [vmem:[%s0 + $0xe8] sm:$0xff]
  %v97 = vld [vmem:[%s0 + $0xf0] sm:$0xff]
  %v98 = vld [vmem:[%s0 + $0xf8] sm:$0xff]
  %v99 = vld [vmem:[%s0 + $0x100] sm:$0xff]
  %v100 = vld [vmem:[%s0 + $0x108] sm:$0xff]
  %v101 = vld [vmem:[%s0 + $0x110] sm:$0xff]
  %v102 = vld [vmem:[%s0 + $0x118] sm:$0xff]
  %v103 = vld [vmem:[%s0 + $0x120] sm:$0xff]
  %v104 = vld [vmem:[%s0 + $0x128] sm:$0xff]
  %v105 = vld [vmem:[%s0 + $0x130] sm:$0xff]
  %v106 = vld [vmem:[%s0 + $0x138] sm:$0xff]
  %v107 = vld [vmem:[%s0 + $0x140] sm:$0x3]
  %v108 = vld [vmem:[%s0 + $0x148] sm:$0x3]
  %v109 = vld [vmem:[%s1] sm:$0xff]
  %v110 = vld [vmem:[%s1 + $0x8] sm:$0xff]
  %v111 = vld [vmem:[%s1 + $0x10] sm:$0xff]
  %v112 = vld [vmem:[%s1 + $0x18] sm:$0xff]
  %v113 = vld [vmem:[%s1 + $0x20] sm:$0xff]
  %v114 = vld [vmem:[%s1 + $0x28] sm:$0xff]
  %v115 = vld [vmem:[%s1 + $0x30] sm:$0xff]
  %v116 = vld [vmem:[%s1 + $0x38] sm:$0xff]
  %v117 = vld [vmem:[%s1 + $0x40] sm:$0xff]
  %v118 = vld [vmem:[%s1 + $0x48] sm:$0xff]
  %v119 = vld [vmem:[%s1 + $0x50] sm:$0xff]
  %v120 = vld [vmem:[%s1 + $0x58] sm:$0xff]
  %v121 = vld [vmem:[%s1 + $0x60] sm:$0xff]
  %v122 = vld [vmem:[%s1 + $0x68] sm:$0xff]
  %v123 = vld [vmem:[%s1 + $0x70] sm:$0xff]
  %v124 = vld [vmem:[%s1 + $0x78] sm:$0xff]
  %v125 = vld [vmem:[%s1 + $0x80] sm:$0xff]
  %v126 = vld [vmem:[%s1 + $0x88] sm:$0xff]
  %v127 = vld [vmem:[%s1 + $0x90] sm:$0xff]
  %v128 = vld [vmem:[%s1 + $0x98] sm:$0xff]
  %v129 = vld [vmem:[%s1 + $0xa0] sm:$0xff]
  %v130 = vld [vmem:[%s1 + $0xa8] sm:$0xff]
  %v131 = vld [vmem:[%s1 + $0xb0] sm:$0xff]
  %v132 = vld [vmem:[%s1 + $0xb8] sm:$0xff]
  %v133 = vld [vmem:[%s1 + $0xc0] sm:$0xff]
  %v134 = vld [vmem:[%s1 + $0xc8] sm:$0xff]
  %v135 = vld [vmem:[%s1 + $0xd0] sm:$0xff]
  %v136 = vld [vmem:[%s1 + $0xd8] sm:$0xff]
  %v137 = vld [vmem:[%s1 + $0xe0] sm:$0xff]
  %v138 = vld [vmem:[%s1 + $0xe8] sm:$0xff]
  %v139 = vld [vmem:[%s2] sm:$0x1]
  %v140 = vlaneseq
  %v141 = vshrl.u32 %v140, 7
  %v142 = vsub.s32 0, %v141
  %v143 = vrot.slane %v139, %v142
  %vm144 = vcmask 916480
  %v146 = vsel %vm144, %v68, 0
  %v149 = vsel %vm144, %v70, 0
  %v152 = vsel %vm144, %v72, 0
  %v155 = vsel %vm144, %v74, 0
  %v158 = vsel %vm144, %v76, 0
  %v161 = vsel %vm144, %v78, 0
  %v164 = vsel %vm144, %v80, 0
  %v167 = vsel %vm144, %v82, 0
  %v170 = vsel %vm144, %v84, 0
  %v173 = vsel %vm144, %v86, 0
  %v176 = vsel %vm144, %v88, 0
  %v179 = vsel %vm144, %v90, 0
  %v182 = vsel %vm144, %v92, 0
  %v185 = vsel %vm144, %v94, 0
  %v188 = vsel %vm144, %v96, 0
  %v191 = vsel %vm144, %v98, 0
  %v194 = vsel %vm144, %v100, 0
  %v197 = vsel %vm144, %v102, 0
  %v200 = vsel %vm144, %v104, 0
  %v203 = vsel %vm144, %v106, 0
  %v206 = vsel %vm144, %v108, 0
  %208 = vmatprep.subr.mxu0 0.0
  %209 = vmatpush1.msra.mxu0 %v124
  %210 = vmatprep.subr.mxu0 0.0
  %211 = vmatpush1.msra.mxu0 %v123
  %212 = vmatprep.subr.mxu0 0.0
  %213 = vmatpush1.msra.mxu0 %v122
  %214 = vmatprep.subr.mxu0 0.0
  %215 = vmatpush1.msra.mxu0 %v121
  %216 = vmatprep.subr.mxu0 0.0
  %217 = vmatpush1.msra.mxu0 %v120
  %218 = vmatprep.subr.mxu0 0.0
  %219 = vmatpush1.msra.mxu0 %v119
  %220 = vmatprep.subr.mxu0 0.0
  %221 = vmatpush1.msra.mxu0 %v118
  %222 = vmatprep.subr.mxu0 0.0
  %223 = vmatpush1.msra.mxu0 %v117
  %224 = vmatprep.subr.mxu0 0.0
  %225 = vmatpush1.msra.mxu0 %v116
  %226 = vmatprep.subr.mxu0 0.0
  %227 = vmatpush1.msra.mxu0 %v115
  %228 = vmatprep.subr.mxu0 0.0
  %229 = vmatpush1.msra.mxu0 %v114
  %230 = vmatprep.subr.mxu0 0.0
  %231 = vmatpush1.msra.mxu0 %v113
  %232 = vmatprep.subr.mxu0 0.0
  %233 = vmatpush1.msra.mxu0 %v112
  %234 = vmatprep.subr.mxu0 0.0
  %235 = vmatpush1.msra.mxu0 %v111
  %236 = vmatprep.subr.mxu0 0.0
  %237 = vmatpush1.msra.mxu0 %v110
  %238 = vmatprep.subr.mxu0 0.0
  %239 = vmatpush1.msra.mxu0 %v109
  %240 = vmatprep.subr.mxu0 0.0
  %241 = vmatpush2.msra.mxu0 0.0
  %242 = vmatprep.subr.mxu0 0.0
  %243 = vmatpush2.msra.mxu0 0.0
  %244 = vmatprep.subr.mxu0 0.0
  %245 = vmatpush2.msra.mxu0 %v138
  %246 = vmatprep.subr.mxu0 0.0
  %247 = vmatpush2.msra.mxu0 %v137
  %248 = vmatprep.subr.mxu0 0.0
  %249 = vmatpush2.msra.mxu0 %v136
  %250 = vmatprep.subr.mxu0 0.0
  %251 = vmatpush2.msra.mxu0 %v135
  %252 = vmatprep.subr.mxu0 0.0
  %253 = vmatpush2.msra.mxu0 %v134
  %254 = vmatprep.subr.mxu0 0.0
  %255 = vmatpush2.msra.mxu0 %v133
  %256 = vmatprep.subr.mxu0 0.0
  %257 = vmatpush2.msra.mxu0 %v132
  %258 = vmatprep.subr.mxu0 0.0
  %259 = vmatpush2.msra.mxu0 %v131
  %260 = vmatprep.subr.mxu0 0.0
  %261 = vmatpush2.msra.mxu0 %v130
  %262 = vmatprep.subr.mxu0 0.0
  %263 = vmatpush2.msra.mxu0 %v129
  %264 = vmatprep.subr.mxu0 0.0
  %265 = vmatpush2.msra.mxu0 %v128
  %266 = vmatprep.subr.mxu0 0.0
  %267 = vmatpush2.msra.mxu0 %v127
  %268 = vmatprep.subr.mxu0 0.0
  %269 = vmatpush2.msra.mxu0 %v126
  %270 = vmatprep.subr.mxu0 0.0
  %271 = vmatpush2.msra.mxu0 %v125
  %272 = vmatprep.mubr.f32.mxu0 %v146
  %273 = vmatmul.mubr.f32.gmra.mxu0 %v67
  %v274 = vpop.f32.mrf.mxu0
  %v275 = vadd.f32 %v143, %v274
  %v276 = vpop.f32.mrf.mxu0
  %277 = vmatprep.mubr.f32.mxu0 %v149
  %278 = vmatmul.mubr.f32.gmra.mxu0 %v69
  %v279 = vpop.f32.mrf.mxu0
  %v280 = vadd.f32 %v143, %v279
  %v281 = vpop.f32.mrf.mxu0
  %282 = vmatprep.mubr.f32.mxu0 %v152
  %283 = vmatmul.mubr.f32.gmra.mxu0 %v71
  %v284 = vpop.f32.mrf.mxu0
  %v285 = vadd.f32 %v143, %v284
  %v286 = vpop.f32.mrf.mxu0
  %287 = vmatprep.mubr.f32.mxu0 %v155
  %288 = vmatmul.mubr.f32.gmra.mxu0 %v73
  %v289 = vpop.f32.mrf.mxu0
  %v290 = vadd.f32 %v143, %v289
  %v291 = vpop.f32.mrf.mxu0
  %292 = vmatprep.mubr.f32.mxu0 %v158
  %293 = vmatmul.mubr.f32.gmra.mxu0 %v75
  %v294 = vpop.f32.mrf.mxu0
  %v295 = vadd.f32 %v143, %v294
  %v296 = vpop.f32.mrf.mxu0
  %297 = vmatprep.mubr.f32.mxu0 %v161
  %298 = vmatmul.mubr.f32.gmra.mxu0 %v77
  %v299 = vpop.f32.mrf.mxu0
  %v300 = vadd.f32 %v143, %v299
  %v301 = vpop.f32.mrf.mxu0
  %302 = vmatprep.mubr.f32.mxu0 %v164
  %303 = vmatmul.mubr.f32.gmra.mxu0 %v79
  %v304 = vpop.f32.mrf.mxu0
  %v305 = vadd.f32 %v143, %v304
  %v306 = vpop.f32.mrf.mxu0
  %307 = vmatprep.mubr.f32.mxu0 %v167
  %308 = vmatmul.mubr.f32.gmra.mxu0 %v81
  %v309 = vpop.f32.mrf.mxu0
  %v310 = vadd.f32 %v143, %v309
  %v311 = vpop.f32.mrf.mxu0
  %312 = vmatprep.mubr.f32.mxu0 %v170
  %313 = vmatmul.mubr.f32.gmra.mxu0 %v83
  %v314 = vpop.f32.mrf.mxu0
  %v315 = vadd.f32 %v143, %v314
  %v316 = vpop.f32.mrf.mxu0
  %317 = vmatprep.mubr.f32.mxu0 %v173
  %318 = vmatmul.mubr.f32.gmra.mxu0 %v85
  %v319 = vpop.f32.mrf.mxu0
  %v320 = vadd.f32 %v143, %v319
  %v321 = vpop.f32.mrf.mxu0
  %322 = vmatprep.mubr.f32.mxu0 %v176
  %323 = vmatmul.mubr.f32.gmra.mxu0 %v87
  %v324 = vpop.f32.mrf.mxu0
  %v325 = vadd.f32 %v143, %v324
  %v326 = vpop.f32.mrf.mxu0
  %327 = vmatprep.mubr.f32.mxu0 %v179
  %328 = vmatmul.mubr.f32.gmra.mxu0 %v89
  %v329 = vpop.f32.mrf.mxu0
  %v330 = vadd.f32 %v143, %v329
  %v331 = vpop.f32.mrf.mxu0
  %332 = vmatprep.mubr.f32.mxu0 %v182
  %333 = vmatmul.mubr.f32.gmra.mxu0 %v91
  %v334 = vpop.f32.mrf.mxu0
  %v335 = vadd.f32 %v143, %v334
  %v336 = vpop.f32.mrf.mxu0
  %337 = vmatprep.mubr.f32.mxu0 %v185
  %338 = vmatmul.mubr.f32.gmra.mxu0 %v93
  %v339 = vpop.f32.mrf.mxu0
  %v340 = vadd.f32 %v143, %v339
  %v341 = vpop.f32.mrf.mxu0
  %342 = vmatprep.mubr.f32.mxu0 %v188
  %343 = vmatmul.mubr.f32.gmra.mxu0 %v95
  %v344 = vpop.f32.mrf.mxu0
  %v345 = vadd.f32 %v143, %v344
  %v346 = vpop.f32.mrf.mxu0
  %347 = vmatprep.mubr.f32.mxu0 %v191
  %348 = vmatmul.mubr.f32.gmra.mxu0 %v97
  %v349 = vpop.f32.mrf.mxu0
  %v350 = vadd.f32 %v143, %v349
  %v351 = vpop.f32.mrf.mxu0
  %352 = vmatprep.mubr.f32.mxu0 %v194
  %353 = vmatmul.mubr.f32.gmra.mxu0 %v99
  %v354 = vpop.f32.mrf.mxu0
  %v355 = vadd.f32 %v143, %v354
  %v356 = vpop.f32.mrf.mxu0
  %357 = vmatprep.mubr.f32.mxu0 %v197
  %358 = vmatmul.mubr.f32.gmra.mxu0 %v101
  %v359 = vpop.f32.mrf.mxu0
  %v360 = vadd.f32 %v143, %v359
  %v361 = vpop.f32.mrf.mxu0
  %362 = vmatprep.mubr.f32.mxu0 %v200
  %363 = vmatmul.mubr.f32.gmra.mxu0 %v103
  %v364 = vpop.f32.mrf.mxu0
  %v365 = vadd.f32 %v143, %v364
  %v366 = vpop.f32.mrf.mxu0
  %367 = vmatprep.mubr.f32.mxu0 %v203
  %368 = vmatmul.mubr.f32.gmra.mxu0 %v105
  %v369 = vpop.f32.mrf.mxu0
  %v370 = vadd.f32 %v143, %v369
  %v371 = vpop.f32.mrf.mxu0
  %372 = vmatprep.mubr.f32.mxu0 %v206
  %373 = vmatmul.mubr.f32.gmra.mxu0 %v107
  %v374 = vpop.f32.mrf.mxu0
  %v375 = vadd.f32 %v143, %v374
  %v376 = vpop.f32.mrf.mxu0
  %377 = vdwg.mxu0
  %vm378 = vcmask 130048
  %v379 = vsel %vm378, %v275, 0.0
  %v380 = vsel %vm378, %v280, 0.0
  %v381 = vadd.f32 %v379, %v380
  %v382 = vsel %vm378, %v285, 0.0
  %v383 = vadd.f32 %v381, %v382
  %v384 = vsel %vm378, %v290, 0.0
  %v385 = vadd.f32 %v383, %v384
  %v386 = vsel %vm378, %v295, 0.0
  %v387 = vadd.f32 %v385, %v386
  %v388 = vsel %vm378, %v300, 0.0
  %v389 = vadd.f32 %v387, %v388
  %v390 = vsel %vm378, %v305, 0.0
  %v391 = vadd.f32 %v389, %v390
  %v392 = vsel %vm378, %v310, 0.0
  %v393 = vadd.f32 %v391, %v392
  %v394 = vsel %vm378, %v315, 0.0
  %v395 = vadd.f32 %v393, %v394
  %v396 = vsel %vm378, %v320, 0.0
  %v397 = vadd.f32 %v395, %v396
  %v398 = vsel %vm378, %v325, 0.0
  %v399 = vadd.f32 %v397, %v398
  %v400 = vsel %vm378, %v330, 0.0
  %v401 = vadd.f32 %v399, %v400
  %v402 = vsel %vm378, %v335, 0.0
  %v403 = vadd.f32 %v401, %v402
  %v404 = vsel %vm378, %v340, 0.0
  %v405 = vadd.f32 %v403, %v404
  %v406 = vsel %vm378, %v345, 0.0
  %v407 = vadd.f32 %v405, %v406
  %v408 = vsel %vm378, %v350, 0.0
  %v409 = vadd.f32 %v407, %v408
  %v410 = vsel %vm378, %v355, 0.0
  %v411 = vadd.f32 %v409, %v410
  %v412 = vsel %vm378, %v360, 0.0
  %v413 = vadd.f32 %v411, %v412
  %v414 = vsel %vm378, %v365, 0.0
  %v415 = vadd.f32 %v413, %v414
  %v416 = vsel %vm378, %v370, 0.0
  %v417 = vadd.f32 %v415, %v416
  %vm418 = vcmask 123904
  %v419 = vsel %vm418, %v375, 0.0
  %v420 = vadd.f32 %v417, %v419
  %v421 = vrot.slane %v420, 4
  %v422 = vadd.f32 %v420, %v421
  %v423 = vrot.slane %v422, 2
  %v424 = vadd.f32 %v422, %v423
  %v425 = vrot.slane %v424, 1
  %v426 = vadd.f32 %v424, %v425
  %v427 = vrcp.pop 162.0
  %v428 = vmul.f32 %v426, %v427
  %v429 = vsub.f32 %v275, %v428
  %v430 = vsub.f32 %v280, %v428
  %v431 = vsub.f32 %v285, %v428
  %v432 = vsub.f32 %v290, %v428
  %v433 = vsub.f32 %v295, %v428
  %v434 = vsub.f32 %v300, %v428
  %v435 = vsub.f32 %v305, %v428
  %v436 = vsub.f32 %v310, %v428
  %v437 = vsub.f32 %v315, %v428
  %v438 = vsub.f32 %v320, %v428
  %v439 = vsub.f32 %v325, %v428
  %v440 = vsub.f32 %v330, %v428
  %v441 = vsub.f32 %v335, %v428
  %v442 = vsub.f32 %v340, %v428
  %v443 = vsub.f32 %v345, %v428
  %v444 = vsub.f32 %v350, %v428
  %v445 = vsub.f32 %v355, %v428
  %v446 = vsub.f32 %v360, %v428
  %v447 = vsub.f32 %v365, %v428
  %v448 = vsub.f32 %v370, %v428
  %v449 = vsub.f32 %v375, %v428
  %v450 = vmul.f32 %v429, %v429
  %v451 = vmul.f32 %v430, %v430
  %v452 = vmul.f32 %v431, %v431
  %v453 = vmul.f32 %v432, %v432
  %v454 = vmul.f32 %v433, %v433
  %v455 = vmul.f32 %v434, %v434
  %v456 = vmul.f32 %v435, %v435
  %v457 = vmul.f32 %v436, %v436
  %v458 = vmul.f32 %v437, %v437
  %v459 = vmul.f32 %v438, %v438
  %v460 = vmul.f32 %v439, %v439
  %v461 = vmul.f32 %v440, %v440
  %v462 = vmul.f32 %v441, %v441
  %v463 = vmul.f32 %v442, %v442
  %v464 = vmul.f32 %v443, %v443
  %v465 = vmul.f32 %v444, %v444
  %v466 = vmul.f32 %v445, %v445
  %v467 = vmul.f32 %v446, %v446
  %v468 = vmul.f32 %v447, %v447
  %v469 = vmul.f32 %v448, %v448
  %v470 = vmul.f32 %v449, %v449
  %v471 = vsel %vm378, %v450, 0.0
  %v472 = vsel %vm378, %v451, 0.0
  %v473 = vadd.f32 %v471, %v472
  %v474 = vsel %vm378, %v452, 0.0
  %v475 = vadd.f32 %v473, %v474
  %v476 = vsel %vm378, %v453, 0.0
  %v477 = vadd.f32 %v475, %v476
  %v478 = vsel %vm378, %v454, 0.0
  %v479 = vadd.f32 %v477, %v478
  %v480 = vsel %vm378, %v455, 0.0
  %v481 = vadd.f32 %v479, %v480
  %v482 = vsel %vm378, %v456, 0.0
  %v483 = vadd.f32 %v481, %v482
  %v484 = vsel %vm378, %v457, 0.0
  %v485 = vadd.f32 %v483, %v484
  %v486 = vsel %vm378, %v458, 0.0
  %v487 = vadd.f32 %v485, %v486
  %v488 = vsel %vm378, %v459, 0.0
  %v489 = vadd.f32 %v487, %v488
  %v490 = vsel %vm378, %v460, 0.0
  %v491 = vadd.f32 %v489, %v490
  %v492 = vsel %vm378, %v461, 0.0
  %v493 = vadd.f32 %v491, %v492
  %v494 = vsel %vm378, %v462, 0.0
  %v495 = vadd.f32 %v493, %v494
  %v496 = vsel %vm378, %v463, 0.0
  %v497 = vadd.f32 %v495, %v496
  %v498 = vsel %vm378, %v464, 0.0
  %v499 = vadd.f32 %v497, %v498
  %v500 = vsel %vm378, %v465, 0.0
  %v501 = vadd.f32 %v499, %v500
  %v502 = vsel %vm378, %v466, 0.0
  %v503 = vadd.f32 %v501, %v502
  %v504 = vsel %vm378, %v467, 0.0
  %v505 = vadd.f32 %v503, %v504
  %v506 = vsel %vm378, %v468, 0.0
  %v507 = vadd.f32 %v505, %v506
  %v508 = vsel %vm378, %v469, 0.0
  %v509 = vadd.f32 %v507, %v508
  %v510 = vsel %vm418, %v470, 0.0
  %v511 = vadd.f32 %v509, %v510
  %v512 = vrot.slane %v511, 4
  %v513 = vadd.f32 %v511, %v512
  %v514 = vrot.slane %v513, 2
  %v515 = vadd.f32 %v513, %v514
  %v516 = vrot.slane %v515, 1
  %v517 = vadd.f32 %v515, %v516
  %v518 = vmul.f32 %v517, %v427
  %v519 = vadd.f32 %v518, 1e-05
  %v520 = vrsqrt.pop %v519
  %v521 = vmul.f32 %v429, %v520
  %v522 = vmul.f32 %v430, %v520
  %v523 = vmul.f32 %v431, %v520
  %v524 = vmul.f32 %v432, %v520
  %v525 = vmul.f32 %v433, %v520
  %v526 = vmul.f32 %v434, %v520
  %v527 = vmul.f32 %v435, %v520
  %v528 = vmul.f32 %v436, %v520
  %v529 = vmul.f32 %v437, %v520
  %v530 = vmul.f32 %v438, %v520
  %v531 = vmul.f32 %v439, %v520
  %v532 = vmul.f32 %v440, %v520
  %v533 = vmul.f32 %v441, %v520
  %v534 = vmul.f32 %v442, %v520
  %v535 = vmul.f32 %v443, %v520
  %v536 = vmul.f32 %v444, %v520
  %v537 = vmul.f32 %v445, %v520
  %v538 = vmul.f32 %v446, %v520
  %v539 = vmul.f32 %v447, %v520
  %v540 = vmul.f32 %v448, %v520
  %v541 = vmul.f32 %v449, %v520
  %v542 = vld [vmem:[%s2 + $0x1] sm:$0x1]
  %v543 = vlaneseq
  %v544 = vshrl.u32 %v543, 7
  %v545 = vsub.s32 0, %v544
  %v546 = vrot.slane %v542, %v545
  %v547 = vmul.f32 %v521, %v546
  %v548 = vmul.f32 %v522, %v546
  %v549 = vmul.f32 %v523, %v546
  %v550 = vmul.f32 %v524, %v546
  %v551 = vmul.f32 %v525, %v546
  %v552 = vmul.f32 %v526, %v546
  %v553 = vmul.f32 %v527, %v546
  %v554 = vmul.f32 %v528, %v546
  %v555 = vmul.f32 %v529, %v546
  %v556 = vmul.f32 %v530, %v546
  %v557 = vmul.f32 %v531, %v546
  %v558 = vmul.f32 %v532, %v546
  %v559 = vmul.f32 %v533, %v546
  %v560 = vmul.f32 %v534, %v546
  %v561 = vmul.f32 %v535, %v546
  %v562 = vmul.f32 %v536, %v546
  %v563 = vmul.f32 %v537, %v546
  %v564 = vmul.f32 %v538, %v546
  %v565 = vmul.f32 %v539, %v546
  %v566 = vmul.f32 %v540, %v546
  %v567 = vmul.f32 %v541, %v546
  %v568 = vld [vmem:[%s2 + $0x2] sm:$0x1]
  %v569 = vlaneseq
  %v570 = vshrl.u32 %v569, 7
  %v571 = vsub.s32 0, %v570
  %v572 = vrot.slane %v568, %v571
  %v573 = vadd.f32 %v547, %v572
  %v574 = vadd.f32 %v548, %v572
  %v575 = vadd.f32 %v549, %v572
  %v576 = vadd.f32 %v550, %v572
  %v577 = vadd.f32 %v551, %v572
  %v578 = vadd.f32 %v552, %v572
  %v579 = vadd.f32 %v553, %v572
  %v580 = vadd.f32 %v554, %v572
  %v581 = vadd.f32 %v555, %v572
  %v582 = vadd.f32 %v556, %v572
  %v583 = vadd.f32 %v557, %v572
  %v584 = vadd.f32 %v558, %v572
  %v585 = vadd.f32 %v559, %v572
  %v586 = vadd.f32 %v560, %v572
  %v587 = vadd.f32 %v561, %v572
  %v588 = vadd.f32 %v562, %v572
  %v589 = vadd.f32 %v563, %v572
  %v590 = vadd.f32 %v564, %v572
  %v591 = vadd.f32 %v565, %v572
  %v592 = vadd.f32 %v566, %v572
  %v593 = vadd.f32 %v567, %v572
  %vm594 = vcmp.ge.f32.partialorder %v573, 0.0
  %vm595 = vcmp.ge.f32.partialorder %v574, 0.0
  %vm596 = vcmp.ge.f32.partialorder %v575, 0.0
  %vm597 = vcmp.ge.f32.partialorder %v576, 0.0
  %vm598 = vcmp.ge.f32.partialorder %v577, 0.0
  %vm599 = vcmp.ge.f32.partialorder %v578, 0.0
  %vm600 = vcmp.ge.f32.partialorder %v579, 0.0
  %vm601 = vcmp.ge.f32.partialorder %v580, 0.0
  %vm602 = vcmp.ge.f32.partialorder %v581, 0.0
  %vm603 = vcmp.ge.f32.partialorder %v582, 0.0
  %vm604 = vcmp.ge.f32.partialorder %v583, 0.0
  %vm605 = vcmp.ge.f32.partialorder %v584, 0.0
  %vm606 = vcmp.ge.f32.partialorder %v585, 0.0
  %vm607 = vcmp.ge.f32.partialorder %v586, 0.0
  %vm608 = vcmp.ge.f32.partialorder %v587, 0.0
  %vm609 = vcmp.ge.f32.partialorder %v588, 0.0
  %vm610 = vcmp.ge.f32.partialorder %v589, 0.0
  %vm611 = vcmp.ge.f32.partialorder %v590, 0.0
  %vm612 = vcmp.ge.f32.partialorder %v591, 0.0
  %vm613 = vcmp.ge.f32.partialorder %v592, 0.0
  %vm614 = vcmp.ge.f32.partialorder %v593, 0.0
  %v615 = vmul.f32 %v573, 0.2
  %v616 = vmul.f32 %v574, 0.2
  %v617 = vmul.f32 %v575, 0.2
  %v618 = vmul.f32 %v576, 0.2
  %v619 = vmul.f32 %v577, 0.2
  %v620 = vmul.f32 %v578, 0.2
  %v621 = vmul.f32 %v579, 0.2
  %v622 = vmul.f32 %v580, 0.2
  %v623 = vmul.f32 %v581, 0.2
  %v624 = vmul.f32 %v582, 0.2
  %v625 = vmul.f32 %v583, 0.2
  %v626 = vmul.f32 %v584, 0.2
  %v627 = vmul.f32 %v585, 0.2
  %v628 = vmul.f32 %v586, 0.2
  %v629 = vmul.f32 %v587, 0.2
  %v630 = vmul.f32 %v588, 0.2
  %v631 = vmul.f32 %v589, 0.2
  %v632 = vmul.f32 %v590, 0.2
  %v633 = vmul.f32 %v591, 0.2
  %v634 = vmul.f32 %v592, 0.2
  %v635 = vmul.f32 %v593, 0.2
  %v636 = vsel %vm594, %v573, %v615
  %v637 = vsel %vm595, %v574, %v616
  %v638 = vsel %vm596, %v575, %v617
  %v639 = vsel %vm597, %v576, %v618
  %v640 = vsel %vm598, %v577, %v619
  %v641 = vsel %vm599, %v578, %v620
  %v642 = vsel %vm600, %v579, %v621
  %v643 = vsel %vm601, %v580, %v622
  %v644 = vsel %vm602, %v581, %v623
  %v645 = vsel %vm603, %v582, %v624
  %v646 = vsel %vm604, %v583, %v625
  %v647 = vsel %vm605, %v584, %v626
  %v648 = vsel %vm606, %v585, %v627
  %v649 = vsel %vm607, %v586, %v628
  %v650 = vsel %vm608, %v587, %v629
  %v651 = vsel %vm609, %v588, %v630
  %v652 = vsel %vm610, %v589, %v631
  %v653 = vsel %vm611, %v590, %v632
  %v654 = vsel %vm612, %v591, %v633
  %v655 = vsel %vm613, %v592, %v634
  %v656 = vsel %vm614, %v593, %v635
  %v657 = vld [vmem:[%s3] sm:$0xff]
  %v658 = vld [vmem:[%s3 + $0x8] sm:$0xff]
  %v659 = vld [vmem:[%s3 + $0x10] sm:$0xff]
  %v660 = vld [vmem:[%s3 + $0x18] sm:$0xff]
  %v661 = vld [vmem:[%s3 + $0x20] sm:$0xff]
  %v662 = vld [vmem:[%s3 + $0x28] sm:$0xff]
  %v663 = vld [vmem:[%s3 + $0x30] sm:$0xff]
  %v664 = vld [vmem:[%s3 + $0x38] sm:$0xff]
  %vm665 = vcmask 277504
  %v667 = vsel %vm665, %v658, 0
  %v670 = vsel %vm665, %v660, 0
  %v673 = vsel %vm665, %v662, 0
  %v676 = vsel %vm665, %v664, 0
  %vm678 = vcmask 1041408
  %v680 = vsel %vm678, %v656, 0
  %682 = vmatprep.subr.mxu0 0.0
  %683 = vmatpush1.msra.mxu0 %v651
  %684 = vmatprep.subr.mxu0 0.0
  %685 = vmatpush1.msra.mxu0 %v650
  %686 = vmatprep.subr.mxu0 0.0
  %687 = vmatpush1.msra.mxu0 %v649
  %688 = vmatprep.subr.mxu0 0.0
  %689 = vmatpush1.msra.mxu0 %v648
  %690 = vmatprep.subr.mxu0 0.0
  %691 = vmatpush1.msra.mxu0 %v647
  %692 = vmatprep.subr.mxu0 0.0
  %693 = vmatpush1.msra.mxu0 %v646
  %694 = vmatprep.subr.mxu0 0.0
  %695 = vmatpush1.msra.mxu0 %v645
  %696 = vmatprep.subr.mxu0 0.0
  %697 = vmatpush1.msra.mxu0 %v644
  %698 = vmatprep.subr.mxu0 0.0
  %699 = vmatpush1.msra.mxu0 %v643
  %700 = vmatprep.subr.mxu0 0.0
  %701 = vmatpush1.msra.mxu0 %v642
  %702 = vmatprep.subr.mxu0 0.0
  %703 = vmatpush1.msra.mxu0 %v641
  %704 = vmatprep.subr.mxu0 0.0
  %705 = vmatpush1.msra.mxu0 %v640
  %706 = vmatprep.subr.mxu0 0.0
  %707 = vmatpush1.msra.mxu0 %v639
  %708 = vmatprep.subr.mxu0 0.0
  %709 = vmatpush1.msra.mxu0 %v638
  %710 = vmatprep.subr.mxu0 0.0
  %711 = vmatpush1.msra.mxu0 %v637
  %712 = vmatprep.subr.mxu0 0.0
  %713 = vmatpush1.msra.mxu0 %v636
  %714 = vmatprep.subr.mxu0 0.0
  %715 = vmatpush2.msra.mxu0 0.0
  %716 = vmatprep.subr.mxu0 0.0
  %717 = vmatpush2.msra.mxu0 0.0
  %718 = vmatprep.subr.mxu0 0.0
  %719 = vmatpush2.msra.mxu0 0.0
  %720 = vmatprep.subr.mxu0 0.0
  %721 = vmatpush2.msra.mxu0 0.0
  %722 = vmatprep.subr.mxu0 0.0
  %723 = vmatpush2.msra.mxu0 0.0
  %724 = vmatprep.subr.mxu0 0.0
  %725 = vmatpush2.msra.mxu0 0.0
  %726 = vmatprep.subr.mxu0 0.0
  %727 = vmatpush2.msra.mxu0 0.0
  %728 = vmatprep.subr.mxu0 0.0
  %729 = vmatpush2.msra.mxu0 0.0
  %730 = vmatprep.subr.mxu0 0.0
  %731 = vmatpush2.msra.mxu0 0.0
  %732 = vmatprep.subr.mxu0 0.0
  %733 = vmatpush2.msra.mxu0 0.0
  %734 = vmatprep.subr.mxu0 0.0
  %735 = vmatpush2.msra.mxu0 0.0
  %736 = vmatprep.subr.mxu0 0.0
  %737 = vmatpush2.msra.mxu0 %v680
  %738 = vmatprep.subr.mxu0 0.0
  %739 = vmatpush2.msra.mxu0 %v655
  %740 = vmatprep.subr.mxu0 0.0
  %741 = vmatpush2.msra.mxu0 %v654
  %742 = vmatprep.subr.mxu0 0.0
  %743 = vmatpush2.msra.mxu0 %v653
  %744 = vmatprep.subr.mxu0 0.0
  %745 = vmatpush2.msra.mxu0 %v652
  %746 = vmatprep.mubr.f32.mxu0 %v667
  %747 = vmatmul.mubr.f32.gmra.mxu0 %v657
  %v748 = vpop.f32.mrf.mxu0
  %v749 = vadd.f32 0.0, %v748
  %v750 = vpop.f32.mrf.mxu0
  %751 = vmatprep.mubr.f32.mxu0 %v670
  %752 = vmatmul.mubr.f32.gmra.mxu0 %v659
  %v753 = vpop.f32.mrf.mxu0
  %v754 = vadd.f32 0.0, %v753
  %v755 = vpop.f32.mrf.mxu0
  %756 = vmatprep.mubr.f32.mxu0 %v673
  %757 = vmatmul.mubr.f32.gmra.mxu0 %v661
  %v758 = vpop.f32.mrf.mxu0
  %v759 = vadd.f32 0.0, %v758
  %v760 = vpop.f32.mrf.mxu0
  %761 = vmatprep.mubr.f32.mxu0 %v676
  %762 = vmatmul.mubr.f32.gmra.mxu0 %v663
  %v763 = vpop.f32.mrf.mxu0
  %v764 = vadd.f32 0.0, %v763
  %v765 = vpop.f32.mrf.mxu0
  %766 = vdwg.mxu0
  %v767 = vld [vmem:[%s4] sm:$0xff]
  %v768 = vld [vmem:[%s4 + $0x8] sm:$0xff]
  %s769 = scalar_lea.vmem %s3, 64
  %v770 = vld [vmem:[%s769] sm:$0xff]
  %v771 = vld [vmem:[%s769 + $0x8] sm:$0xff]
  %v772 = vld [vmem:[%s769 + $0x10] sm:$0xff]
  %v773 = vld [vmem:[%s769 + $0x18] sm:$0xff]
  %v774 = vld [vmem:[%s769 + $0x20] sm:$0xff]
  %v775 = vld [vmem:[%s769 + $0x28] sm:$0xff]
  %v776 = vld [vmem:[%s769 + $0x30] sm:$0xff]
  %v777 = vld [vmem:[%s769 + $0x38] sm:$0xff]
  %v779 = vsel %vm665, %v771, 0
  %v782 = vsel %vm665, %v773, 0
  %v785 = vsel %vm665, %v775, 0
  %v788 = vsel %vm665, %v777, 0
  %790 = vmatprep.subr.mxu0 0.0
  %791 = vmatpush1.msra.mxu0 %v651
  %792 = vmatprep.subr.mxu0 0.0
  %793 = vmatpush1.msra.mxu0 %v650
  %794 = vmatprep.subr.mxu0 0.0
  %795 = vmatpush1.msra.mxu0 %v649
  %796 = vmatprep.subr.mxu0 0.0
  %797 = vmatpush1.msra.mxu0 %v648
  %798 = vmatprep.subr.mxu0 0.0
  %799 = vmatpush1.msra.mxu0 %v647
  %800 = vmatprep.subr.mxu0 0.0
  %801 = vmatpush1.msra.mxu0 %v646
  %802 = vmatprep.subr.mxu0 0.0
  %803 = vmatpush1.msra.mxu0 %v645
  %804 = vmatprep.subr.mxu0 0.0
  %805 = vmatpush1.msra.mxu0 %v644
  %806 = vmatprep.subr.mxu0 0.0
  %807 = vmatpush1.msra.mxu0 %v643
  %808 = vmatprep.subr.mxu0 0.0
  %809 = vmatpush1.msra.mxu0 %v642
  %810 = vmatprep.subr.mxu0 0.0
  %811 = vmatpush1.msra.mxu0 %v641
  %812 = vmatprep.subr.mxu0 0.0
  %813 = vmatpush1.msra.mxu0 %v640
  %814 = vmatprep.subr.mxu0 0.0
  %815 = vmatpush1.msra.mxu0 %v639
  %816 = vmatprep.subr.mxu0 0.0
  %817 = vmatpush1.msra.mxu0 %v638
  %818 = vmatprep.subr.mxu0 0.0
  %819 = vmatpush1.msra.mxu0 %v637
  %820 = vmatprep.subr.mxu0 0.0
  %821 = vmatpush1.msra.mxu0 %v636
  %822 = vmatprep.subr.mxu0 0.0
  %823 = vmatpush2.msra.mxu0 0.0
  %824 = vmatprep.subr.mxu0 0.0
  %825 = vmatpush2.msra.mxu0 0.0
  %826 = vmatprep.subr.mxu0 0.0
  %827 = vmatpush2.msra.mxu0 0.0
  %828 = vmatprep.subr.mxu0 0.0
  %829 = vmatpush2.msra.mxu0 0.0
  %830 = vmatprep.subr.mxu0 0.0
  %831 = vmatpush2.msra.mxu0 0.0
  %832 = vmatprep.subr.mxu0 0.0
  %833 = vmatpush2.msra.mxu0 0.0
  %834 = vmatprep.subr.mxu0 0.0
  %835 = vmatpush2.msra.mxu0 0.0
  %836 = vmatprep.subr.mxu0 0.0
  %837 = vmatpush2.msra.mxu0 0.0
  %838 = vmatprep.subr.mxu0 0.0
  %839 = vmatpush2.msra.mxu0 0.0
  %840 = vmatprep.subr.mxu0 0.0
  %841 = vmatpush2.msra.mxu0 0.0
  %842 = vmatprep.subr.mxu0 0.0
  %843 = vmatpush2.msra.mxu0 0.0
  %844 = vmatprep.subr.mxu0 0.0
  %845 = vmatpush2.msra.mxu0 %v680
  %846 = vmatprep.subr.mxu0 0.0
  %847 = vmatpush2.msra.mxu0 %v655
  %848 = vmatprep.subr.mxu0 0.0
  %849 = vmatpush2.msra.mxu0 %v654
  %850 = vmatprep.subr.mxu0 0.0
  %851 = vmatpush2.msra.mxu0 %v653
  %852 = vmatprep.subr.mxu0 0.0
  %853 = vmatpush2.msra.mxu0 %v652
  %854 = vmatprep.mubr.f32.mxu0 %v779
  %855 = vmatmul.mubr.f32.gmra.mxu0 %v770
  %v856 = vpop.f32.mrf.mxu0
  %v857 = vadd.f32 0.0, %v856
  %v858 = vpop.f32.mrf.mxu0
  %859 = vmatprep.mubr.f32.mxu0 %v782
  %860 = vmatmul.mubr.f32.gmra.mxu0 %v772
  %v861 = vpop.f32.mrf.mxu0
  %v862 = vadd.f32 0.0, %v861
  %v863 = vpop.f32.mrf.mxu0
  %864 = vmatprep.mubr.f32.mxu0 %v785
  %865 = vmatmul.mubr.f32.gmra.mxu0 %v774
  %v866 = vpop.f32.mrf.mxu0
  %v867 = vadd.f32 0.0, %v866
  %v868 = vpop.f32.mrf.mxu0
  %869 = vmatprep.mubr.f32.mxu0 %v788
  %870 = vmatmul.mubr.f32.gmra.mxu0 %v776
  %v871 = vpop.f32.mrf.mxu0
  %v872 = vadd.f32 0.0, %v871
  %v873 = vpop.f32.mrf.mxu0
  %874 = vdwg.mxu0
  %s875 = scalar_lea.vmem %s4, 16
  %v876 = vld [vmem:[%s875] sm:$0xff]
  %v877 = vld [vmem:[%s875 + $0x8] sm:$0xff]
  %v879 = vsel %vm378, %v857, 0
  %v882 = vsel %vm378, %v862, 0
  %v885 = vsel %vm378, %v867, 0
  %v888 = vsel %vm378, %v872, 0
  %890 = vmatprep.subr.mxu0 0.0
  %891 = vmatpush1.msra.mxu0 0.0
  %892 = vmatprep.subr.mxu0 0.0
  %893 = vmatpush1.msra.mxu0 0.0
  %894 = vmatprep.subr.mxu0 0.0
  %895 = vmatpush1.msra.mxu0 0.0
  %896 = vmatprep.subr.mxu0 0.0
  %897 = vmatpush1.msra.mxu0 0.0
  %898 = vmatprep.subr.mxu0 0.0
  %899 = vmatpush1.msra.mxu0 0.0
  %900 = vmatprep.subr.mxu0 0.0
  %901 = vmatpush1.msra.mxu0 0.0
  %902 = vmatprep.subr.mxu0 0.0
  %903 = vmatpush1.msra.mxu0 0.0
  %904 = vmatprep.subr.mxu0 0.0
  %905 = vmatpush1.msra.mxu0 0.0
  %906 = vmatprep.subr.mxu0 0.0
  %907 = vmatpush1.msra.mxu0 0.0
  %908 = vmatprep.subr.mxu0 0.0
  %909 = vmatpush1.msra.mxu0 0.0
  %910 = vmatprep.subr.mxu0 0.0
  %911 = vmatpush1.msra.mxu0 0.0
  %912 = vmatprep.subr.mxu0 0.0
  %913 = vmatpush1.msra.mxu0 0.0
  %914 = vmatprep.subr.mxu0 0.0
  %915 = vmatpush1.msra.mxu0 0.0
  %916 = vmatprep.subr.mxu0 0.0
  %917 = vmatpush1.msra.mxu0 0.0
  %918 = vmatprep.subr.mxu0 0.0
  %919 = vmatpush1.msra.mxu0 %v877
  %920 = vmatprep.subr.mxu0 0.0
  %921 = vmatpush1.msra.mxu0 %v876
  %922 = vmatprep.subr.mxu0 0.0
  %923 = vmatpush2.msra.mxu0 0.0
  %924 = vmatprep.subr.mxu0 0.0
  %925 = vmatpush2.msra.mxu0 0.0
  %926 = vmatprep.subr.mxu0 0.0
  %927 = vmatpush2.msra.mxu0 0.0
  %928 = vmatprep.subr.mxu0 0.0
  %929 = vmatpush2.msra.mxu0 0.0
  %930 = vmatprep.subr.mxu0 0.0
  %931 = vmatpush2.msra.mxu0 0.0
  %932 = vmatprep.subr.mxu0 0.0
  %933 = vmatpush2.msra.mxu0 0.0
  %934 = vmatprep.subr.mxu0 0.0
  %935 = vmatpush2.msra.mxu0 0.0
  %936 = vmatprep.subr.mxu0 0.0
  %937 = vmatpush2.msra.mxu0 0.0
  %938 = vmatprep.subr.mxu0 0.0
  %939 = vmatpush2.msra.mxu0 0.0
  %940 = vmatprep.subr.mxu0 0.0
  %941 = vmatpush2.msra.mxu0 0.0
  %942 = vmatprep.subr.mxu0 0.0
  %943 = vmatpush2.msra.mxu0 0.0
  %944 = vmatprep.subr.mxu0 0.0
  %945 = vmatpush2.msra.mxu0 0.0
  %946 = vmatprep.subr.mxu0 0.0
  %947 = vmatpush2.msra.mxu0 0.0
  %948 = vmatprep.subr.mxu0 0.0
  %949 = vmatpush2.msra.mxu0 0.0
  %950 = vmatprep.subr.mxu0 0.0
  %951 = vmatpush2.msra.mxu0 0.0
  %952 = vmatprep.subr.mxu0 0.0
  %953 = vmatpush2.msra.mxu0 0.0
  %954 = vmatprep.mubr.f32.mxu0 0.0
  %955 = vmatmul.mubr.f32.gmra.mxu0 %v879
  %v956 = vpop.f32.mrf.mxu0
  %v957 = vadd.f32 0.0, %v956
  %v958 = vpop.f32.mrf.mxu0
  %959 = vmatprep.mubr.f32.mxu0 0.0
  %960 = vmatmul.mubr.f32.gmra.mxu0 %v882
  %v961 = vpop.f32.mrf.mxu0
  %v962 = vadd.f32 0.0, %v961
  %v963 = vpop.f32.mrf.mxu0
  %964 = vmatprep.mubr.f32.mxu0 0.0
  %965 = vmatmul.mubr.f32.gmra.mxu0 %v885
  %v966 = vpop.f32.mrf.mxu0
  %v967 = vadd.f32 0.0, %v966
  %v968 = vpop.f32.mrf.mxu0
  %969 = vmatprep.mubr.f32.mxu0 0.0
  %970 = vmatmul.mubr.f32.gmra.mxu0 %v888
  %v971 = vpop.f32.mrf.mxu0
  %v972 = vadd.f32 0.0, %v971
  %v973 = vpop.f32.mrf.mxu0
  %974 = vdwg.mxu0
  %v976 = vsel %vm378, %v749, 0
  %v979 = vsel %vm378, %v754, 0
  %v982 = vsel %vm378, %v759, 0
  %v985 = vsel %vm378, %v764, 0
  %987 = vmatprep.subr.mxu0 0.0
  %988 = vmatpush1.msra.mxu0 0.0
  %989 = vmatprep.subr.mxu0 0.0
  %990 = vmatpush1.msra.mxu0 0.0
  %991 = vmatprep.subr.mxu0 0.0
  %992 = vmatpush1.msra.mxu0 0.0
  %993 = vmatprep.subr.mxu0 0.0
  %994 = vmatpush1.msra.mxu0 0.0
  %995 = vmatprep.subr.mxu0 0.0
  %996 = vmatpush1.msra.mxu0 0.0
  %997 = vmatprep.subr.mxu0 0.0
  %998 = vmatpush1.msra.mxu0 0.0
  %999 = vmatprep.subr.mxu0 0.0
  %1000 = vmatpush1.msra.mxu0 0.0
  %1001 = vmatprep.subr.mxu0 0.0
  %1002 = vmatpush1.msra.mxu0 0.0
  %1003 = vmatprep.subr.mxu0 0.0
  %1004 = vmatpush1.msra.mxu0 0.0
  %1005 = vmatprep.subr.mxu0 0.0
  %1006 = vmatpush1.msra.mxu0 0.0
  %1007 = vmatprep.subr.mxu0 0.0
  %1008 = vmatpush1.msra.mxu0 0.0
  %1009 = vmatprep.subr.mxu0 0.0
  %1010 = vmatpush1.msra.mxu0 0.0
  %1011 = vmatprep.subr.mxu0 0.0
  %1012 = vmatpush1.msra.mxu0 0.0
  %1013 = vmatprep.subr.mxu0 0.0
  %1014 = vmatpush1.msra.mxu0 0.0
  %1015 = vmatprep.subr.mxu0 0.0
  %1016 = vmatpush1.msra.mxu0 %v768
  %1017 = vmatprep.subr.mxu0 0.0
  %1018 = vmatpush1.msra.mxu0 %v767
  %1019 = vmatprep.subr.mxu0 0.0
  %1020 = vmatpush2.msra.mxu0 0.0
  %1021 = vmatprep.subr.mxu0 0.0
  %1022 = vmatpush2.msra.mxu0 0.0
  %1023 = vmatprep.subr.mxu0 0.0
  %1024 = vmatpush2.msra.mxu0 0.0
  %1025 = vmatprep.subr.mxu0 0.0
  %1026 = vmatpush2.msra.mxu0 0.0
  %1027 = vmatprep.subr.mxu0 0.0
  %1028 = vmatpush2.msra.mxu0 0.0
  %1029 = vmatprep.subr.mxu0 0.0
  %1030 = vmatpush2.msra.mxu0 0.0
  %1031 = vmatprep.subr.mxu0 0.0
  %1032 = vmatpush2.msra.mxu0 0.0
  %1033 = vmatprep.subr.mxu0 0.0
  %1034 = vmatpush2.msra.mxu0 0.0
  %1035 = vmatprep.subr.mxu0 0.0
  %1036 = vmatpush2.msra.mxu0 0.0
  %1037 = vmatprep.subr.mxu0 0.0
  %1038 = vmatpush2.msra.mxu0 0.0
  %1039 = vmatprep.subr.mxu0 0.0
  %1040 = vmatpush2.msra.mxu0 0.0
  %1041 = vmatprep.subr.mxu0 0.0
  %1042 = vmatpush2.msra.mxu0 0.0
  %1043 = vmatprep.subr.mxu0 0.0
  %1044 = vmatpush2.msra.mxu0 0.0
  %1045 = vmatprep.subr.mxu0 0.0
  %1046 = vmatpush2.msra.mxu0 0.0
  %1047 = vmatprep.subr.mxu0 0.0
  %1048 = vmatpush2.msra.mxu0 0.0
  %1049 = vmatprep.subr.mxu0 0.0
  %1050 = vmatpush2.msra.mxu0 0.0
  %1051 = vmatprep.mubr.f32.mxu0 0.0
  %1052 = vmatmul.mubr.f32.gmra.mxu0 %v976
  %v1053 = vpop.f32.mrf.mxu0
  %v1054 = vadd.f32 %v957, %v1053
  %v1055 = vpop.f32.mrf.mxu0
  %1056 = vmatprep.mubr.f32.mxu0 0.0
  %1057 = vmatmul.mubr.f32.gmra.mxu0 %v979
  %v1058 = vpop.f32.mrf.mxu0
  %v1059 = vadd.f32 %v962, %v1058
  %v1060 = vpop.f32.mrf.mxu0
  %1061 = vmatprep.mubr.f32.mxu0 0.0
  %1062 = vmatmul.mubr.f32.gmra.mxu0 %v982
  %v1063 = vpop.f32.mrf.mxu0
  %v1064 = vadd.f32 %v967, %v1063
  %v1065 = vpop.f32.mrf.mxu0
  %1066 = vmatprep.mubr.f32.mxu0 0.0
  %1067 = vmatmul.mubr.f32.gmra.mxu0 %v985
  %v1068 = vpop.f32.mrf.mxu0
  %v1069 = vadd.f32 %v972, %v1068
  %v1070 = vpop.f32.mrf.mxu0
  %1071 = vdwg.mxu0
  %s1072 = scalar_lea.vmem %s3, 128
  %v1073 = vld [vmem:[%s1072] sm:$0xff]
  %v1074 = vld [vmem:[%s1072 + $0x8] sm:$0xff]
  %v1075 = vld [vmem:[%s1072 + $0x10] sm:$0xff]
  %v1076 = vld [vmem:[%s1072 + $0x18] sm:$0xff]
  %v1077 = vld [vmem:[%s1072 + $0x20] sm:$0xff]
  %v1078 = vld [vmem:[%s1072 + $0x28] sm:$0xff]
  %v1079 = vld [vmem:[%s1072 + $0x30] sm:$0xff]
  %v1080 = vld [vmem:[%s1072 + $0x38] sm:$0xff]
  %v1082 = vsel %vm665, %v1074, 0
  %v1085 = vsel %vm665, %v1076, 0
  %v1088 = vsel %vm665, %v1078, 0
  %v1091 = vsel %vm665, %v1080, 0
  %1093 = vmatprep.subr.mxu0 0.0
  %1094 = vmatpush1.msra.mxu0 %v651
  %1095 = vmatprep.subr.mxu0 0.0
  %1096 = vmatpush1.msra.mxu0 %v650
  %1097 = vmatprep.subr.mxu0 0.0
  %1098 = vmatpush1.msra.mxu0 %v649
  %1099 = vmatprep.subr.mxu0 0.0
  %1100 = vmatpush1.msra.mxu0 %v648
  %1101 = vmatprep.subr.mxu0 0.0
  %1102 = vmatpush1.msra.mxu0 %v647
  %1103 = vmatprep.subr.mxu0 0.0
  %1104 = vmatpush1.msra.mxu0 %v646
  %1105 = vmatprep.subr.mxu0 0.0
  %1106 = vmatpush1.msra.mxu0 %v645
  %1107 = vmatprep.subr.mxu0 0.0
  %1108 = vmatpush1.msra.mxu0 %v644
  %1109 = vmatprep.subr.mxu0 0.0
  %1110 = vmatpush1.msra.mxu0 %v643
  %1111 = vmatprep.subr.mxu0 0.0
  %1112 = vmatpush1.msra.mxu0 %v642
  %1113 = vmatprep.subr.mxu0 0.0
  %1114 = vmatpush1.msra.mxu0 %v641
  %1115 = vmatprep.subr.mxu0 0.0
  %1116 = vmatpush1.msra.mxu0 %v640
  %1117 = vmatprep.subr.mxu0 0.0
  %1118 = vmatpush1.msra.mxu0 %v639
  %1119 = vmatprep.subr.mxu0 0.0
  %1120 = vmatpush1.msra.mxu0 %v638
  %1121 = vmatprep.subr.mxu0 0.0
  %1122 = vmatpush1.msra.mxu0 %v637
  %1123 = vmatprep.subr.mxu0 0.0
  %1124 = vmatpush1.msra.mxu0 %v636
  %1125 = vmatprep.subr.mxu0 0.0
  %1126 = vmatpush2.msra.mxu0 0.0
  %1127 = vmatprep.subr.mxu0 0.0
  %1128 = vmatpush2.msra.mxu0 0.0
  %1129 = vmatprep.subr.mxu0 0.0
  %1130 = vmatpush2.msra.mxu0 0.0
  %1131 = vmatprep.subr.mxu0 0.0
  %1132 = vmatpush2.msra.mxu0 0.0
  %1133 = vmatprep.subr.mxu0 0.0
  %1134 = vmatpush2.msra.mxu0 0.0
  %1135 = vmatprep.subr.mxu0 0.0
  %1136 = vmatpush2.msra.mxu0 0.0
  %1137 = vmatprep.subr.mxu0 0.0
  %1138 = vmatpush2.msra.mxu0 0.0
  %1139 = vmatprep.subr.mxu0 0.0
  %1140 = vmatpush2.msra.mxu0 0.0
  %1141 = vmatprep.subr.mxu0 0.0
  %1142 = vmatpush2.msra.mxu0 0.0
  %1143 = vmatprep.subr.mxu0 0.0
  %1144 = vmatpush2.msra.mxu0 0.0
  %1145 = vmatprep.subr.mxu0 0.0
  %1146 = vmatpush2.msra.mxu0 0.0
  %1147 = vmatprep.subr.mxu0 0.0
  %1148 = vmatpush2.msra.mxu0 %v680
  %1149 = vmatprep.subr.mxu0 0.0
  %1150 = vmatpush2.msra.mxu0 %v655
  %1151 = vmatprep.subr.mxu0 0.0
  %1152 = vmatpush2.msra.mxu0 %v654
  %1153 = vmatprep.subr.mxu0 0.0
  %1154 = vmatpush2.msra.mxu0 %v653
  %1155 = vmatprep.subr.mxu0 0.0
  %1156 = vmatpush2.msra.mxu0 %v652
  %1157 = vmatprep.mubr.f32.mxu0 %v1082
  %1158 = vmatmul.mubr.f32.gmra.mxu0 %v1073
  %v1159 = vpop.f32.mrf.mxu0
  %v1160 = vadd.f32 0.0, %v1159
  %v1161 = vpop.f32.mrf.mxu0
  %1162 = vmatprep.mubr.f32.mxu0 %v1085
  %1163 = vmatmul.mubr.f32.gmra.mxu0 %v1075
  %v1164 = vpop.f32.mrf.mxu0
  %v1165 = vadd.f32 0.0, %v1164
  %v1166 = vpop.f32.mrf.mxu0
  %1167 = vmatprep.mubr.f32.mxu0 %v1088
  %1168 = vmatmul.mubr.f32.gmra.mxu0 %v1077
  %v1169 = vpop.f32.mrf.mxu0
  %v1170 = vadd.f32 0.0, %v1169
  %v1171 = vpop.f32.mrf.mxu0
  %1172 = vmatprep.mubr.f32.mxu0 %v1091
  %1173 = vmatmul.mubr.f32.gmra.mxu0 %v1079
  %v1174 = vpop.f32.mrf.mxu0
  %v1175 = vadd.f32 0.0, %v1174
  %v1176 = vpop.f32.mrf.mxu0
  %1177 = vdwg.mxu0
  %s1178 = scalar_lea.vmem %s4, 32
  %v1179 = vld [vmem:[%s1178] sm:$0xff]
  %v1180 = vld [vmem:[%s1178 + $0x8] sm:$0xff]
  %v1182 = vsel %vm378, %v1160, 0
  %v1185 = vsel %vm378, %v1165, 0
  %v1188 = vsel %vm378, %v1170, 0
  %v1191 = vsel %vm378, %v1175, 0
  %1193 = vmatprep.subr.mxu0 0.0
  %1194 = vmatpush1.msra.mxu0 0.0
  %1195 = vmatprep.subr.mxu0 0.0
  %1196 = vmatpush1.msra.mxu0 0.0
  %1197 = vmatprep.subr.mxu0 0.0
  %1198 = vmatpush1.msra.mxu0 0.0
  %1199 = vmatprep.subr.mxu0 0.0
  %1200 = vmatpush1.msra.mxu0 0.0
  %1201 = vmatprep.subr.mxu0 0.0
  %1202 = vmatpush1.msra.mxu0 0.0
  %1203 = vmatprep.subr.mxu0 0.0
  %1204 = vmatpush1.msra.mxu0 0.0
  %1205 = vmatprep.subr.mxu0 0.0
  %1206 = vmatpush1.msra.mxu0 0.0
  %1207 = vmatprep.subr.mxu0 0.0
  %1208 = vmatpush1.msra.mxu0 0.0
  %1209 = vmatprep.subr.mxu0 0.0
  %1210 = vmatpush1.msra.mxu0 0.0
  %1211 = vmatprep.subr.mxu0 0.0
  %1212 = vmatpush1.msra.mxu0 0.0
  %1213 = vmatprep.subr.mxu0 0.0
  %1214 = vmatpush1.msra.mxu0 0.0
  %1215 = vmatprep.subr.mxu0 0.0
  %1216 = vmatpush1.msra.mxu0 0.0
  %1217 = vmatprep.subr.mxu0 0.0
  %1218 = vmatpush1.msra.mxu0 0.0
  %1219 = vmatprep.subr.mxu0 0.0
  %1220 = vmatpush1.msra.mxu0 0.0
  %1221 = vmatprep.subr.mxu0 0.0
  %1222 = vmatpush1.msra.mxu0 %v1180
  %1223 = vmatprep.subr.mxu0 0.0
  %1224 = vmatpush1.msra.mxu0 %v1179
  %1225 = vmatprep.subr.mxu0 0.0
  %1226 = vmatpush2.msra.mxu0 0.0
  %1227 = vmatprep.subr.mxu0 0.0
  %1228 = vmatpush2.msra.mxu0 0.0
  %1229 = vmatprep.subr.mxu0 0.0
  %1230 = vmatpush2.msra.mxu0 0.0
  %1231 = vmatprep.subr.mxu0 0.0
  %1232 = vmatpush2.msra.mxu0 0.0
  %1233 = vmatprep.subr.mxu0 0.0
  %1234 = vmatpush2.msra.mxu0 0.0
  %1235 = vmatprep.subr.mxu0 0.0
  %1236 = vmatpush2.msra.mxu0 0.0
  %1237 = vmatprep.subr.mxu0 0.0
  %1238 = vmatpush2.msra.mxu0 0.0
  %1239 = vmatprep.subr.mxu0 0.0
  %1240 = vmatpush2.msra.mxu0 0.0
  %1241 = vmatprep.subr.mxu0 0.0
  %1242 = vmatpush2.msra.mxu0 0.0
  %1243 = vmatprep.subr.mxu0 0.0
  %1244 = vmatpush2.msra.mxu0 0.0
  %1245 = vmatprep.subr.mxu0 0.0
  %1246 = vmatpush2.msra.mxu0 0.0
  %1247 = vmatprep.subr.mxu0 0.0
  %1248 = vmatpush2.msra.mxu0 0.0
  %1249 = vmatprep.subr.mxu0 0.0
  %1250 = vmatpush2.msra.mxu0 0.0
  %1251 = vmatprep.subr.mxu0 0.0
  %1252 = vmatpush2.msra.mxu0 0.0
  %1253 = vmatprep.subr.mxu0 0.0
  %1254 = vmatpush2.msra.mxu0 0.0
  %1255 = vmatprep.subr.mxu0 0.0
  %1256 = vmatpush2.msra.mxu0 0.0
  %1257 = vmatprep.mubr.f32.mxu0 0.0
  %1258 = vmatmul.mubr.f32.gmra.mxu0 %v1182
  %v1259 = vpop.f32.mrf.mxu0
  %v1260 = vadd.f32 0.0, %v1259
  %v1261 = vpop.f32.mrf.mxu0
  %1262 = vmatprep.mubr.f32.mxu0 0.0
  %1263 = vmatmul.mubr.f32.gmra.mxu0 %v1185
  %v1264 = vpop.f32.mrf.mxu0
  %v1265 = vadd.f32 0.0, %v1264
  %v1266 = vpop.f32.mrf.mxu0
  %1267 = vmatprep.mubr.f32.mxu0 0.0
  %1268 = vmatmul.mubr.f32.gmra.mxu0 %v1188
  %v1269 = vpop.f32.mrf.mxu0
  %v1270 = vadd.f32 0.0, %v1269
  %v1271 = vpop.f32.mrf.mxu0
  %1272 = vmatprep.mubr.f32.mxu0 0.0
  %1273 = vmatmul.mubr.f32.gmra.mxu0 %v1191
  %v1274 = vpop.f32.mrf.mxu0
  %v1275 = vadd.f32 0.0, %v1274
  %v1276 = vpop.f32.mrf.mxu0
  %1277 = vdwg.mxu0
  %v1278 = vadd.f32 %v1054, %v1260
  %v1279 = vadd.f32 %v1059, %v1265
  %v1280 = vadd.f32 %v1064, %v1270
  %v1281 = vadd.f32 %v1069, %v1275
  %s1282 = scalar_lea.vmem %s3, 192
  %v1283 = vld [vmem:[%s1282] sm:$0xff]
  %v1284 = vld [vmem:[%s1282 + $0x8] sm:$0xff]
  %v1285 = vld [vmem:[%s1282 + $0x10] sm:$0xff]
  %v1286 = vld [vmem:[%s1282 + $0x18] sm:$0xff]
  %v1287 = vld [vmem:[%s1282 + $0x20] sm:$0xff]
  %v1288 = vld [vmem:[%s1282 + $0x28] sm:$0xff]
  %v1289 = vld [vmem:[%s1282 + $0x30] sm:$0xff]
  %v1290 = vld [vmem:[%s1282 + $0x38] sm:$0xff]
  %v1292 = vsel %vm665, %v1284, 0
  %v1295 = vsel %vm665, %v1286, 0
  %v1298 = vsel %vm665, %v1288, 0
  %v1301 = vsel %vm665, %v1290, 0
  %1303 = vmatprep.subr.mxu0 0.0
  %1304 = vmatpush1.msra.mxu0 %v651
  %1305 = vmatprep.subr.mxu0 0.0
  %1306 = vmatpush1.msra.mxu0 %v650
  %1307 = vmatprep.subr.mxu0 0.0
  %1308 = vmatpush1.msra.mxu0 %v649
  %1309 = vmatprep.subr.mxu0 0.0
  %1310 = vmatpush1.msra.mxu0 %v648
  %1311 = vmatprep.subr.mxu0 0.0
  %1312 = vmatpush1.msra.mxu0 %v647
  %1313 = vmatprep.subr.mxu0 0.0
  %1314 = vmatpush1.msra.mxu0 %v646
  %1315 = vmatprep.subr.mxu0 0.0
  %1316 = vmatpush1.msra.mxu0 %v645
  %1317 = vmatprep.subr.mxu0 0.0
  %1318 = vmatpush1.msra.mxu0 %v644
  %1319 = vmatprep.subr.mxu0 0.0
  %1320 = vmatpush1.msra.mxu0 %v643
  %1321 = vmatprep.subr.mxu0 0.0
  %1322 = vmatpush1.msra.mxu0 %v642
  %1323 = vmatprep.subr.mxu0 0.0
  %1324 = vmatpush1.msra.mxu0 %v641
  %1325 = vmatprep.subr.mxu0 0.0
  %1326 = vmatpush1.msra.mxu0 %v640
  %1327 = vmatprep.subr.mxu0 0.0
  %1328 = vmatpush1.msra.mxu0 %v639
  %1329 = vmatprep.subr.mxu0 0.0
  %1330 = vmatpush1.msra.mxu0 %v638
  %1331 = vmatprep.subr.mxu0 0.0
  %1332 = vmatpush1.msra.mxu0 %v637
  %1333 = vmatprep.subr.mxu0 0.0
  %1334 = vmatpush1.msra.mxu0 %v636
  %1335 = vmatprep.subr.mxu0 0.0
  %1336 = vmatpush2.msra.mxu0 0.0
  %1337 = vmatprep.subr.mxu0 0.0
  %1338 = vmatpush2.msra.mxu0 0.0
  %1339 = vmatprep.subr.mxu0 0.0
  %1340 = vmatpush2.msra.mxu0 0.0
  %1341 = vmatprep.subr.mxu0 0.0
  %1342 = vmatpush2.msra.mxu0 0.0
  %1343 = vmatprep.subr.mxu0 0.0
  %1344 = vmatpush2.msra.mxu0 0.0
  %1345 = vmatprep.subr.mxu0 0.0
  %1346 = vmatpush2.msra.mxu0 0.0
  %1347 = vmatprep.subr.mxu0 0.0
  %1348 = vmatpush2.msra.mxu0 0.0
  %1349 = vmatprep.subr.mxu0 0.0
  %1350 = vmatpush2.msra.mxu0 0.0
  %1351 = vmatprep.subr.mxu0 0.0
  %1352 = vmatpush2.msra.mxu0 0.0
  %1353 = vmatprep.subr.mxu0 0.0
  %1354 = vmatpush2.msra.mxu0 0.0
  %1355 = vmatprep.subr.mxu0 0.0
  %1356 = vmatpush2.msra.mxu0 0.0
  %1357 = vmatprep.subr.mxu0 0.0
  %1358 = vmatpush2.msra.mxu0 %v680
  %1359 = vmatprep.subr.mxu0 0.0
  %1360 = vmatpush2.msra.mxu0 %v655
  %1361 = vmatprep.subr.mxu0 0.0
  %1362 = vmatpush2.msra.mxu0 %v654
  %1363 = vmatprep.subr.mxu0 0.0
  %1364 = vmatpush2.msra.mxu0 %v653
  %1365 = vmatprep.subr.mxu0 0.0
  %1366 = vmatpush2.msra.mxu0 %v652
  %1367 = vmatprep.mubr.f32.mxu0 %v1292
  %1368 = vmatmul.mubr.f32.gmra.mxu0 %v1283
  %v1369 = vpop.f32.mrf.mxu0
  %v1370 = vadd.f32 0.0, %v1369
  %v1371 = vpop.f32.mrf.mxu0
  %1372 = vmatprep.mubr.f32.mxu0 %v1295
  %1373 = vmatmul.mubr.f32.gmra.mxu0 %v1285
  %v1374 = vpop.f32.mrf.mxu0
  %v1375 = vadd.f32 0.0, %v1374
  %v1376 = vpop.f32.mrf.mxu0
  %1377 = vmatprep.mubr.f32.mxu0 %v1298
  %1378 = vmatmul.mubr.f32.gmra.mxu0 %v1287
  %v1379 = vpop.f32.mrf.mxu0
  %v1380 = vadd.f32 0.0, %v1379
  %v1381 = vpop.f32.mrf.mxu0
  %1382 = vmatprep.mubr.f32.mxu0 %v1301
  %1383 = vmatmul.mubr.f32.gmra.mxu0 %v1289
  %v1384 = vpop.f32.mrf.mxu0
  %v1385 = vadd.f32 0.0, %v1384
  %v1386 = vpop.f32.mrf.mxu0
  %1387 = vdwg.mxu0
  %s1388 = scalar_lea.vmem %s4, 48
  %v1389 = vld [vmem:[%s1388] sm:$0xff]
  %v1390 = vld [vmem:[%s1388 + $0x8] sm:$0xff]
  %v1392 = vsel %vm378, %v1370, 0
  %v1395 = vsel %vm378, %v1375, 0
  %v1398 = vsel %vm378, %v1380, 0
  %v1401 = vsel %vm378, %v1385, 0
  %1403 = vmatprep.subr.mxu0 0.0
  %1404 = vmatpush1.msra.mxu0 0.0
  %1405 = vmatprep.subr.mxu0 0.0
  %1406 = vmatpush1.msra.mxu0 0.0
  %1407 = vmatprep.subr.mxu0 0.0
  %1408 = vmatpush1.msra.mxu0 0.0
  %1409 = vmatprep.subr.mxu0 0.0
  %1410 = vmatpush1.msra.mxu0 0.0
  %1411 = vmatprep.subr.mxu0 0.0
  %1412 = vmatpush1.msra.mxu0 0.0
  %1413 = vmatprep.subr.mxu0 0.0
  %1414 = vmatpush1.msra.mxu0 0.0
  %1415 = vmatprep.subr.mxu0 0.0
  %1416 = vmatpush1.msra.mxu0 0.0
  %1417 = vmatprep.subr.mxu0 0.0
  %1418 = vmatpush1.msra.mxu0 0.0
  %1419 = vmatprep.subr.mxu0 0.0
  %1420 = vmatpush1.msra.mxu0 0.0
  %1421 = vmatprep.subr.mxu0 0.0
  %1422 = vmatpush1.msra.mxu0 0.0
  %1423 = vmatprep.subr.mxu0 0.0
  %1424 = vmatpush1.msra.mxu0 0.0
  %1425 = vmatprep.subr.mxu0 0.0
  %1426 = vmatpush1.msra.mxu0 0.0
  %1427 = vmatprep.subr.mxu0 0.0
  %1428 = vmatpush1.msra.mxu0 0.0
  %1429 = vmatprep.subr.mxu0 0.0
  %1430 = vmatpush1.msra.mxu0 0.0
  %1431 = vmatprep.subr.mxu0 0.0
  %1432 = vmatpush1.msra.mxu0 %v1390
  %1433 = vmatprep.subr.mxu0 0.0
  %1434 = vmatpush1.msra.mxu0 %v1389
  %1435 = vmatprep.subr.mxu0 0.0
  %1436 = vmatpush2.msra.mxu0 0.0
  %1437 = vmatprep.subr.mxu0 0.0
  %1438 = vmatpush2.msra.mxu0 0.0
  %1439 = vmatprep.subr.mxu0 0.0
  %1440 = vmatpush2.msra.mxu0 0.0
  %1441 = vmatprep.subr.mxu0 0.0
  %1442 = vmatpush2.msra.mxu0 0.0
  %1443 = vmatprep.subr.mxu0 0.0
  %1444 = vmatpush2.msra.mxu0 0.0
  %1445 = vmatprep.subr.mxu0 0.0
  %1446 = vmatpush2.msra.mxu0 0.0
  %1447 = vmatprep.subr.mxu0 0.0
  %1448 = vmatpush2.msra.mxu0 0.0
  %1449 = vmatprep.subr.mxu0 0.0
  %1450 = vmatpush2.msra.mxu0 0.0
  %1451 = vmatprep.subr.mxu0 0.0
  %1452 = vmatpush2.msra.mxu0 0.0
  %1453 = vmatprep.subr.mxu0 0.0
  %1454 = vmatpush2.msra.mxu0 0.0
  %1455 = vmatprep.subr.mxu0 0.0
  %1456 = vmatpush2.msra.mxu0 0.0
  %1457 = vmatprep.subr.mxu0 0.0
  %1458 = vmatpush2.msra.mxu0 0.0
  %1459 = vmatprep.subr.mxu0 0.0
  %1460 = vmatpush2.msra.mxu0 0.0
  %1461 = vmatprep.subr.mxu0 0.0
  %1462 = vmatpush2.msra.mxu0 0.0
  %1463 = vmatprep.subr.mxu0 0.0
  %1464 = vmatpush2.msra.mxu0 0.0
  %1465 = vmatprep.subr.mxu0 0.0
  %1466 = vmatpush2.msra.mxu0 0.0
  %1467 = vmatprep.mubr.f32.mxu0 0.0
  %1468 = vmatmul.mubr.f32.gmra.mxu0 %v1392
  %v1469 = vpop.f32.mrf.mxu0
  %v1470 = vadd.f32 0.0, %v1469
  %v1471 = vpop.f32.mrf.mxu0
  %1472 = vmatprep.mubr.f32.mxu0 0.0
  %1473 = vmatmul.mubr.f32.gmra.mxu0 %v1395
  %v1474 = vpop.f32.mrf.mxu0
  %v1475 = vadd.f32 0.0, %v1474
  %v1476 = vpop.f32.mrf.mxu0
  %1477 = vmatprep.mubr.f32.mxu0 0.0
  %1478 = vmatmul.mubr.f32.gmra.mxu0 %v1398
  %v1479 = vpop.f32.mrf.mxu0
  %v1480 = vadd.f32 0.0, %v1479
  %v1481 = vpop.f32.mrf.mxu0
  %1482 = vmatprep.mubr.f32.mxu0 0.0
  %1483 = vmatmul.mubr.f32.gmra.mxu0 %v1401
  %v1484 = vpop.f32.mrf.mxu0
  %v1485 = vadd.f32 0.0, %v1484
  %v1486 = vpop.f32.mrf.mxu0
  %1487 = vdwg.mxu0
  %v1488 = vadd.f32 %v1278, %v1470
  %v1489 = vadd.f32 %v1279, %v1475
  %v1490 = vadd.f32 %v1280, %v1480
  %v1491 = vadd.f32 %v1281, %v1485
  %s1492 = scalar_lea.vmem %s3, 256
  %v1493 = vld [vmem:[%s1492] sm:$0xff]
  %v1494 = vld [vmem:[%s1492 + $0x8] sm:$0xff]
  %v1495 = vld [vmem:[%s1492 + $0x10] sm:$0xff]
  %v1496 = vld [vmem:[%s1492 + $0x18] sm:$0xff]
  %v1497 = vld [vmem:[%s1492 + $0x20] sm:$0xff]
  %v1498 = vld [vmem:[%s1492 + $0x28] sm:$0xff]
  %v1499 = vld [vmem:[%s1492 + $0x30] sm:$0xff]
  %v1500 = vld [vmem:[%s1492 + $0x38] sm:$0xff]
  %v1502 = vsel %vm665, %v1494, 0
  %v1505 = vsel %vm665, %v1496, 0
  %v1508 = vsel %vm665, %v1498, 0
  %v1511 = vsel %vm665, %v1500, 0
  %1513 = vmatprep.subr.mxu0 0.0
  %1514 = vmatpush1.msra.mxu0 %v651
  %1515 = vmatprep.subr.mxu0 0.0
  %1516 = vmatpush1.msra.mxu0 %v650
  %1517 = vmatprep.subr.mxu0 0.0
  %1518 = vmatpush1.msra.mxu0 %v649
  %1519 = vmatprep.subr.mxu0 0.0
  %1520 = vmatpush1.msra.mxu0 %v648
  %1521 = vmatprep.subr.mxu0 0.0
  %1522 = vmatpush1.msra.mxu0 %v647
  %1523 = vmatprep.subr.mxu0 0.0
  %1524 = vmatpush1.msra.mxu0 %v646
  %1525 = vmatprep.subr.mxu0 0.0
  %1526 = vmatpush1.msra.mxu0 %v645
  %1527 = vmatprep.subr.mxu0 0.0
  %1528 = vmatpush1.msra.mxu0 %v644
  %1529 = vmatprep.subr.mxu0 0.0
  %1530 = vmatpush1.msra.mxu0 %v643
  %1531 = vmatprep.subr.mxu0 0.0
  %1532 = vmatpush1.msra.mxu0 %v642
  %1533 = vmatprep.subr.mxu0 0.0
  %1534 = vmatpush1.msra.mxu0 %v641
  %1535 = vmatprep.subr.mxu0 0.0
  %1536 = vmatpush1.msra.mxu0 %v640
  %1537 = vmatprep.subr.mxu0 0.0
  %1538 = vmatpush1.msra.mxu0 %v639
  %1539 = vmatprep.subr.mxu0 0.0
  %1540 = vmatpush1.msra.mxu0 %v638
  %1541 = vmatprep.subr.mxu0 0.0
  %1542 = vmatpush1.msra.mxu0 %v637
  %1543 = vmatprep.subr.mxu0 0.0
  %1544 = vmatpush1.msra.mxu0 %v636
  %1545 = vmatprep.subr.mxu0 0.0
  %1546 = vmatpush2.msra.mxu0 0.0
  %1547 = vmatprep.subr.mxu0 0.0
  %1548 = vmatpush2.msra.mxu0 0.0
  %1549 = vmatprep.subr.mxu0 0.0
  %1550 = vmatpush2.msra.mxu0 0.0
  %1551 = vmatprep.subr.mxu0 0.0
  %1552 = vmatpush2.msra.mxu0 0.0
  %1553 = vmatprep.subr.mxu0 0.0
  %1554 = vmatpush2.msra.mxu0 0.0
  %1555 = vmatprep.subr.mxu0 0.0
  %1556 = vmatpush2.msra.mxu0 0.0
  %1557 = vmatprep.subr.mxu0 0.0
  %1558 = vmatpush2.msra.mxu0 0.0
  %1559 = vmatprep.subr.mxu0 0.0
  %1560 = vmatpush2.msra.mxu0 0.0
  %1561 = vmatprep.subr.mxu0 0.0
  %1562 = vmatpush2.msra.mxu0 0.0
  %1563 = vmatprep.subr.mxu0 0.0
  %1564 = vmatpush2.msra.mxu0 0.0
  %1565 = vmatprep.subr.mxu0 0.0
  %1566 = vmatpush2.msra.mxu0 0.0
  %1567 = vmatprep.subr.mxu0 0.0
  %1568 = vmatpush2.msra.mxu0 %v680
  %1569 = vmatprep.subr.mxu0 0.0
  %1570 = vmatpush2.msra.mxu0 %v655
  %1571 = vmatprep.subr.mxu0 0.0
  %1572 = vmatpush2.msra.mxu0 %v654
  %1573 = vmatprep.subr.mxu0 0.0
  %1574 = vmatpush2.msra.mxu0 %v653
  %1575 = vmatprep.subr.mxu0 0.0
  %1576 = vmatpush2.msra.mxu0 %v652
  %1577 = vmatprep.mubr.f32.mxu0 %v1502
  %1578 = vmatmul.mubr.f32.gmra.mxu0 %v1493
  %v1579 = vpop.f32.mrf.mxu0
  %v1580 = vadd.f32 0.0, %v1579
  %v1581 = vpop.f32.mrf.mxu0
  %1582 = vmatprep.mubr.f32.mxu0 %v1505
  %1583 = vmatmul.mubr.f32.gmra.mxu0 %v1495
  %v1584 = vpop.f32.mrf.mxu0
  %v1585 = vadd.f32 0.0, %v1584
  %v1586 = vpop.f32.mrf.mxu0
  %1587 = vmatprep.mubr.f32.mxu0 %v1508
  %1588 = vmatmul.mubr.f32.gmra.mxu0 %v1497
  %v1589 = vpop.f32.mrf.mxu0
  %v1590 = vadd.f32 0.0, %v1589
  %v1591 = vpop.f32.mrf.mxu0
  %1592 = vmatprep.mubr.f32.mxu0 %v1511
  %1593 = vmatmul.mubr.f32.gmra.mxu0 %v1499
  %v1594 = vpop.f32.mrf.mxu0
  %v1595 = vadd.f32 0.0, %v1594
  %v1596 = vpop.f32.mrf.mxu0
  %1597 = vdwg.mxu0
  %s1598 = scalar_lea.vmem %s4, 64
  %v1599 = vld [vmem:[%s1598] sm:$0xff]
  %v1600 = vld [vmem:[%s1598 + $0x8] sm:$0xff]
  %v1602 = vsel %vm378, %v1580, 0
  %v1605 = vsel %vm378, %v1585, 0
  %v1608 = vsel %vm378, %v1590, 0
  %v1611 = vsel %vm378, %v1595, 0
  %1613 = vmatprep.subr.mxu0 0.0
  %1614 = vmatpush1.msra.mxu0 0.0
  %1615 = vmatprep.subr.mxu0 0.0
  %1616 = vmatpush1.msra.mxu0 0.0
  %1617 = vmatprep.subr.mxu0 0.0
  %1618 = vmatpush1.msra.mxu0 0.0
  %1619 = vmatprep.subr.mxu0 0.0
  %1620 = vmatpush1.msra.mxu0 0.0
  %1621 = vmatprep.subr.mxu0 0.0
  %1622 = vmatpush1.msra.mxu0 0.0
  %1623 = vmatprep.subr.mxu0 0.0
  %1624 = vmatpush1.msra.mxu0 0.0
  %1625 = vmatprep.subr.mxu0 0.0
  %1626 = vmatpush1.msra.mxu0 0.0
  %1627 = vmatprep.subr.mxu0 0.0
  %1628 = vmatpush1.msra.mxu0 0.0
  %1629 = vmatprep.subr.mxu0 0.0
  %1630 = vmatpush1.msra.mxu0 0.0
  %1631 = vmatprep.subr.mxu0 0.0
  %1632 = vmatpush1.msra.mxu0 0.0
  %1633 = vmatprep.subr.mxu0 0.0
  %1634 = vmatpush1.msra.mxu0 0.0
  %1635 = vmatprep.subr.mxu0 0.0
  %1636 = vmatpush1.msra.mxu0 0.0
  %1637 = vmatprep.subr.mxu0 0.0
  %1638 = vmatpush1.msra.mxu0 0.0
  %1639 = vmatprep.subr.mxu0 0.0
  %1640 = vmatpush1.msra.mxu0 0.0
  %1641 = vmatprep.subr.mxu0 0.0
  %1642 = vmatpush1.msra.mxu0 %v1600
  %1643 = vmatprep.subr.mxu0 0.0
  %1644 = vmatpush1.msra.mxu0 %v1599
  %1645 = vmatprep.subr.mxu0 0.0
  %1646 = vmatpush2.msra.mxu0 0.0
  %1647 = vmatprep.subr.mxu0 0.0
  %1648 = vmatpush2.msra.mxu0 0.0
  %1649 = vmatprep.subr.mxu0 0.0
  %1650 = vmatpush2.msra.mxu0 0.0
  %1651 = vmatprep.subr.mxu0 0.0
  %1652 = vmatpush2.msra.mxu0 0.0
  %1653 = vmatprep.subr.mxu0 0.0
  %1654 = vmatpush2.msra.mxu0 0.0
  %1655 = vmatprep.subr.mxu0 0.0
  %1656 = vmatpush2.msra.mxu0 0.0
  %1657 = vmatprep.subr.mxu0 0.0
  %1658 = vmatpush2.msra.mxu0 0.0
  %1659 = vmatprep.subr.mxu0 0.0
  %1660 = vmatpush2.msra.mxu0 0.0
  %1661 = vmatprep.subr.mxu0 0.0
  %1662 = vmatpush2.msra.mxu0 0.0
  %1663 = vmatprep.subr.mxu0 0.0
  %1664 = vmatpush2.msra.mxu0 0.0
  %1665 = vmatprep.subr.mxu0 0.0
  %1666 = vmatpush2.msra.mxu0 0.0
  %1667 = vmatprep.subr.mxu0 0.0
  %1668 = vmatpush2.msra.mxu0 0.0
  %1669 = vmatprep.subr.mxu0 0.0
  %1670 = vmatpush2.msra.mxu0 0.0
  %1671 = vmatprep.subr.mxu0 0.0
  %1672 = vmatpush2.msra.mxu0 0.0
  %1673 = vmatprep.subr.mxu0 0.0
  %1674 = vmatpush2.msra.mxu0 0.0
  %1675 = vmatprep.subr.mxu0 0.0
  %1676 = vmatpush2.msra.mxu0 0.0
  %1677 = vmatprep.mubr.f32.mxu0 0.0
  %1678 = vmatmul.mubr.f32.gmra.mxu0 %v1602
  %v1679 = vpop.f32.mrf.mxu0
  %v1680 = vadd.f32 0.0, %v1679
  %v1681 = vpop.f32.mrf.mxu0
  %1682 = vmatprep.mubr.f32.mxu0 0.0
  %1683 = vmatmul.mubr.f32.gmra.mxu0 %v1605
  %v1684 = vpop.f32.mrf.mxu0
  %v1685 = vadd.f32 0.0, %v1684
  %v1686 = vpop.f32.mrf.mxu0
  %1687 = vmatprep.mubr.f32.mxu0 0.0
  %1688 = vmatmul.mubr.f32.gmra.mxu0 %v1608
  %v1689 = vpop.f32.mrf.mxu0
  %v1690 = vadd.f32 0.0, %v1689
  %v1691 = vpop.f32.mrf.mxu0
  %1692 = vmatprep.mubr.f32.mxu0 0.0
  %1693 = vmatmul.mubr.f32.gmra.mxu0 %v1611
  %v1694 = vpop.f32.mrf.mxu0
  %v1695 = vadd.f32 0.0, %v1694
  %v1696 = vpop.f32.mrf.mxu0
  %1697 = vdwg.mxu0
  %v1698 = vadd.f32 %v1488, %v1680
  %v1699 = vadd.f32 %v1489, %v1685
  %v1700 = vadd.f32 %v1490, %v1690
  %v1701 = vadd.f32 %v1491, %v1695
  %s1702 = scalar_lea.vmem %s3, 320
  %v1703 = vld [vmem:[%s1702] sm:$0xff]
  %v1704 = vld [vmem:[%s1702 + $0x8] sm:$0xff]
  %v1705 = vld [vmem:[%s1702 + $0x10] sm:$0xff]
  %v1706 = vld [vmem:[%s1702 + $0x18] sm:$0xff]
  %v1707 = vld [vmem:[%s1702 + $0x20] sm:$0xff]
  %v1708 = vld [vmem:[%s1702 + $0x28] sm:$0xff]
  %v1709 = vld [vmem:[%s1702 + $0x30] sm:$0xff]
  %v1710 = vld [vmem:[%s1702 + $0x38] sm:$0xff]
  %v1712 = vsel %vm665, %v1704, 0
  %v1715 = vsel %vm665, %v1706, 0
  %v1718 = vsel %vm665, %v1708, 0
  %v1721 = vsel %vm665, %v1710, 0
  %1723 = vmatprep.subr.mxu0 0.0
  %1724 = vmatpush1.msra.mxu0 %v651
  %1725 = vmatprep.subr.mxu0 0.0
  %1726 = vmatpush1.msra.mxu0 %v650
  %1727 = vmatprep.subr.mxu0 0.0
  %1728 = vmatpush1.msra.mxu0 %v649
  %1729 = vmatprep.subr.mxu0 0.0
  %1730 = vmatpush1.msra.mxu0 %v648
  %1731 = vmatprep.subr.mxu0 0.0
  %1732 = vmatpush1.msra.mxu0 %v647
  %1733 = vmatprep.subr.mxu0 0.0
  %1734 = vmatpush1.msra.mxu0 %v646
  %1735 = vmatprep.subr.mxu0 0.0
  %1736 = vmatpush1.msra.mxu0 %v645
  %1737 = vmatprep.subr.mxu0 0.0
  %1738 = vmatpush1.msra.mxu0 %v644
  %1739 = vmatprep.subr.mxu0 0.0
  %1740 = vmatpush1.msra.mxu0 %v643
  %1741 = vmatprep.subr.mxu0 0.0
  %1742 = vmatpush1.msra.mxu0 %v642
  %1743 = vmatprep.subr.mxu0 0.0
  %1744 = vmatpush1.msra.mxu0 %v641
  %1745 = vmatprep.subr.mxu0 0.0
  %1746 = vmatpush1.msra.mxu0 %v640
  %1747 = vmatprep.subr.mxu0 0.0
  %1748 = vmatpush1.msra.mxu0 %v639
  %1749 = vmatprep.subr.mxu0 0.0
  %1750 = vmatpush1.msra.mxu0 %v638
  %1751 = vmatprep.subr.mxu0 0.0
  %1752 = vmatpush1.msra.mxu0 %v637
  %1753 = vmatprep.subr.mxu0 0.0
  %1754 = vmatpush1.msra.mxu0 %v636
  %1755 = vmatprep.subr.mxu0 0.0
  %1756 = vmatpush2.msra.mxu0 0.0
  %1757 = vmatprep.subr.mxu0 0.0
  %1758 = vmatpush2.msra.mxu0 0.0
  %1759 = vmatprep.subr.mxu0 0.0
  %1760 = vmatpush2.msra.mxu0 0.0
  %1761 = vmatprep.subr.mxu0 0.0
  %1762 = vmatpush2.msra.mxu0 0.0
  %1763 = vmatprep.subr.mxu0 0.0
  %1764 = vmatpush2.msra.mxu0 0.0
  %1765 = vmatprep.subr.mxu0 0.0
  %1766 = vmatpush2.msra.mxu0 0.0
  %1767 = vmatprep.subr.mxu0 0.0
  %1768 = vmatpush2.msra.mxu0 0.0
  %1769 = vmatprep.subr.mxu0 0.0
  %1770 = vmatpush2.msra.mxu0 0.0
  %1771 = vmatprep.subr.mxu0 0.0
  %1772 = vmatpush2.msra.mxu0 0.0
  %1773 = vmatprep.subr.mxu0 0.0
  %1774 = vmatpush2.msra.mxu0 0.0
  %1775 = vmatprep.subr.mxu0 0.0
  %1776 = vmatpush2.msra.mxu0 0.0
  %1777 = vmatprep.subr.mxu0 0.0
  %1778 = vmatpush2.msra.mxu0 %v680
  %1779 = vmatprep.subr.mxu0 0.0
  %1780 = vmatpush2.msra.mxu0 %v655
  %1781 = vmatprep.subr.mxu0 0.0
  %1782 = vmatpush2.msra.mxu0 %v654
  %1783 = vmatprep.subr.mxu0 0.0
  %1784 = vmatpush2.msra.mxu0 %v653
  %1785 = vmatprep.subr.mxu0 0.0
  %1786 = vmatpush2.msra.mxu0 %v652
  %1787 = vmatprep.mubr.f32.mxu0 %v1712
  %1788 = vmatmul.mubr.f32.gmra.mxu0 %v1703
  %v1789 = vpop.f32.mrf.mxu0
  %v1790 = vadd.f32 0.0, %v1789
  %v1791 = vpop.f32.mrf.mxu0
  %1792 = vmatprep.mubr.f32.mxu0 %v1715
  %1793 = vmatmul.mubr.f32.gmra.mxu0 %v1705
  %v1794 = vpop.f32.mrf.mxu0
  %v1795 = vadd.f32 0.0, %v1794
  %v1796 = vpop.f32.mrf.mxu0
  %1797 = vmatprep.mubr.f32.mxu0 %v1718
  %1798 = vmatmul.mubr.f32.gmra.mxu0 %v1707
  %v1799 = vpop.f32.mrf.mxu0
  %v1800 = vadd.f32 0.0, %v1799
  %v1801 = vpop.f32.mrf.mxu0
  %1802 = vmatprep.mubr.f32.mxu0 %v1721
  %1803 = vmatmul.mubr.f32.gmra.mxu0 %v1709
  %v1804 = vpop.f32.mrf.mxu0
  %v1805 = vadd.f32 0.0, %v1804
  %v1806 = vpop.f32.mrf.mxu0
  %1807 = vdwg.mxu0
  %s1808 = scalar_lea.vmem %s4, 80
  %v1809 = vld [vmem:[%s1808] sm:$0xff]
  %v1810 = vld [vmem:[%s1808 + $0x8] sm:$0xff]
  %v1812 = vsel %vm378, %v1790, 0
  %v1815 = vsel %vm378, %v1795, 0
  %v1818 = vsel %vm378, %v1800, 0
  %v1821 = vsel %vm378, %v1805, 0
  %1823 = vmatprep.subr.mxu0 0.0
  %1824 = vmatpush1.msra.mxu0 0.0
  %1825 = vmatprep.subr.mxu0 0.0
  %1826 = vmatpush1.msra.mxu0 0.0
  %1827 = vmatprep.subr.mxu0 0.0
  %1828 = vmatpush1.msra.mxu0 0.0
  %1829 = vmatprep.subr.mxu0 0.0
  %1830 = vmatpush1.msra.mxu0 0.0
  %1831 = vmatprep.subr.mxu0 0.0
  %1832 = vmatpush1.msra.mxu0 0.0
  %1833 = vmatprep.subr.mxu0 0.0
  %1834 = vmatpush1.msra.mxu0 0.0
  %1835 = vmatprep.subr.mxu0 0.0
  %1836 = vmatpush1.msra.mxu0 0.0
  %1837 = vmatprep.subr.mxu0 0.0
  %1838 = vmatpush1.msra.mxu0 0.0
  %1839 = vmatprep.subr.mxu0 0.0
  %1840 = vmatpush1.msra.mxu0 0.0
  %1841 = vmatprep.subr.mxu0 0.0
  %1842 = vmatpush1.msra.mxu0 0.0
  %1843 = vmatprep.subr.mxu0 0.0
  %1844 = vmatpush1.msra.mxu0 0.0
  %1845 = vmatprep.subr.mxu0 0.0
  %1846 = vmatpush1.msra.mxu0 0.0
  %1847 = vmatprep.subr.mxu0 0.0
  %1848 = vmatpush1.msra.mxu0 0.0
  %1849 = vmatprep.subr.mxu0 0.0
  %1850 = vmatpush1.msra.mxu0 0.0
  %1851 = vmatprep.subr.mxu0 0.0
  %1852 = vmatpush1.msra.mxu0 %v1810
  %1853 = vmatprep.subr.mxu0 0.0
  %1854 = vmatpush1.msra.mxu0 %v1809
  %1855 = vmatprep.subr.mxu0 0.0
  %1856 = vmatpush2.msra.mxu0 0.0
  %1857 = vmatprep.subr.mxu0 0.0
  %1858 = vmatpush2.msra.mxu0 0.0
  %1859 = vmatprep.subr.mxu0 0.0
  %1860 = vmatpush2.msra.mxu0 0.0
  %1861 = vmatprep.subr.mxu0 0.0
  %1862 = vmatpush2.msra.mxu0 0.0
  %1863 = vmatprep.subr.mxu0 0.0
  %1864 = vmatpush2.msra.mxu0 0.0
  %1865 = vmatprep.subr.mxu0 0.0
  %1866 = vmatpush2.msra.mxu0 0.0
  %1867 = vmatprep.subr.mxu0 0.0
  %1868 = vmatpush2.msra.mxu0 0.0
  %1869 = vmatprep.subr.mxu0 0.0
  %1870 = vmatpush2.msra.mxu0 0.0
  %1871 = vmatprep.subr.mxu0 0.0
  %1872 = vmatpush2.msra.mxu0 0.0
  %1873 = vmatprep.subr.mxu0 0.0
  %1874 = vmatpush2.msra.mxu0 0.0
  %1875 = vmatprep.subr.mxu0 0.0
  %1876 = vmatpush2.msra.mxu0 0.0
  %1877 = vmatprep.subr.mxu0 0.0
  %1878 = vmatpush2.msra.mxu0 0.0
  %1879 = vmatprep.subr.mxu0 0.0
  %1880 = vmatpush2.msra.mxu0 0.0
  %1881 = vmatprep.subr.mxu0 0.0
  %1882 = vmatpush2.msra.mxu0 0.0
  %1883 = vmatprep.subr.mxu0 0.0
  %1884 = vmatpush2.msra.mxu0 0.0
  %1885 = vmatprep.subr.mxu0 0.0
  %1886 = vmatpush2.msra.mxu0 0.0
  %1887 = vmatprep.mubr.f32.mxu0 0.0
  %1888 = vmatmul.mubr.f32.gmra.mxu0 %v1812
  %v1889 = vpop.f32.mrf.mxu0
  %v1890 = vadd.f32 0.0, %v1889
  %v1891 = vpop.f32.mrf.mxu0
  %1892 = vmatprep.mubr.f32.mxu0 0.0
  %1893 = vmatmul.mubr.f32.gmra.mxu0 %v1815
  %v1894 = vpop.f32.mrf.mxu0
  %v1895 = vadd.f32 0.0, %v1894
  %v1896 = vpop.f32.mrf.mxu0
  %1897 = vmatprep.mubr.f32.mxu0 0.0
  %1898 = vmatmul.mubr.f32.gmra.mxu0 %v1818
  %v1899 = vpop.f32.mrf.mxu0
  %v1900 = vadd.f32 0.0, %v1899
  %v1901 = vpop.f32.mrf.mxu0
  %1902 = vmatprep.mubr.f32.mxu0 0.0
  %1903 = vmatmul.mubr.f32.gmra.mxu0 %v1821
  %v1904 = vpop.f32.mrf.mxu0
  %v1905 = vadd.f32 0.0, %v1904
  %v1906 = vpop.f32.mrf.mxu0
  %1907 = vdwg.mxu0
  %v1908 = vadd.f32 %v1698, %v1890
  %v1909 = vadd.f32 %v1699, %v1895
  %v1910 = vadd.f32 %v1700, %v1900
  %v1911 = vadd.f32 %v1701, %v1905
  %s1912 = scalar_lea.vmem %s3, 384
  %v1913 = vld [vmem:[%s1912] sm:$0xff]
  %v1914 = vld [vmem:[%s1912 + $0x8] sm:$0xff]
  %v1915 = vld [vmem:[%s1912 + $0x10] sm:$0xff]
  %v1916 = vld [vmem:[%s1912 + $0x18] sm:$0xff]
  %v1917 = vld [vmem:[%s1912 + $0x20] sm:$0xff]
  %v1918 = vld [vmem:[%s1912 + $0x28] sm:$0xff]
  %v1919 = vld [vmem:[%s1912 + $0x30] sm:$0xff]
  %v1920 = vld [vmem:[%s1912 + $0x38] sm:$0xff]
  %v1922 = vsel %vm665, %v1914, 0
  %v1925 = vsel %vm665, %v1916, 0
  %v1928 = vsel %vm665, %v1918, 0
  %v1931 = vsel %vm665, %v1920, 0
  %1933 = vmatprep.subr.mxu0 0.0
  %1934 = vmatpush1.msra.mxu0 %v651
  %1935 = vmatprep.subr.mxu0 0.0
  %1936 = vmatpush1.msra.mxu0 %v650
  %1937 = vmatprep.subr.mxu0 0.0
  %1938 = vmatpush1.msra.mxu0 %v649
  %1939 = vmatprep.subr.mxu0 0.0
  %1940 = vmatpush1.msra.mxu0 %v648
  %1941 = vmatprep.subr.mxu0 0.0
  %1942 = vmatpush1.msra.mxu0 %v647
  %1943 = vmatprep.subr.mxu0 0.0
  %1944 = vmatpush1.msra.mxu0 %v646
  %1945 = vmatprep.subr.mxu0 0.0
  %1946 = vmatpush1.msra.mxu0 %v645
  %1947 = vmatprep.subr.mxu0 0.0
  %1948 = vmatpush1.msra.mxu0 %v644
  %1949 = vmatprep.subr.mxu0 0.0
  %1950 = vmatpush1.msra.mxu0 %v643
  %1951 = vmatprep.subr.mxu0 0.0
  %1952 = vmatpush1.msra.mxu0 %v642
  %1953 = vmatprep.subr.mxu0 0.0
  %1954 = vmatpush1.msra.mxu0 %v641
  %1955 = vmatprep.subr.mxu0 0.0
  %1956 = vmatpush1.msra.mxu0 %v640
  %1957 = vmatprep.subr.mxu0 0.0
  %1958 = vmatpush1.msra.mxu0 %v639
  %1959 = vmatprep.subr.mxu0 0.0
  %1960 = vmatpush1.msra.mxu0 %v638
  %1961 = vmatprep.subr.mxu0 0.0
  %1962 = vmatpush1.msra.mxu0 %v637
  %1963 = vmatprep.subr.mxu0 0.0
  %1964 = vmatpush1.msra.mxu0 %v636
  %1965 = vmatprep.subr.mxu0 0.0
  %1966 = vmatpush2.msra.mxu0 0.0
  %1967 = vmatprep.subr.mxu0 0.0
  %1968 = vmatpush2.msra.mxu0 0.0
  %1969 = vmatprep.subr.mxu0 0.0
  %1970 = vmatpush2.msra.mxu0 0.0
  %1971 = vmatprep.subr.mxu0 0.0
  %1972 = vmatpush2.msra.mxu0 0.0
  %1973 = vmatprep.subr.mxu0 0.0
  %1974 = vmatpush2.msra.mxu0 0.0
  %1975 = vmatprep.subr.mxu0 0.0
  %1976 = vmatpush2.msra.mxu0 0.0
  %1977 = vmatprep.subr.mxu0 0.0
  %1978 = vmatpush2.msra.mxu0 0.0
  %1979 = vmatprep.subr.mxu0 0.0
  %1980 = vmatpush2.msra.mxu0 0.0
  %1981 = vmatprep.subr.mxu0 0.0
  %1982 = vmatpush2.msra.mxu0 0.0
  %1983 = vmatprep.subr.mxu0 0.0
  %1984 = vmatpush2.msra.mxu0 0.0
  %1985 = vmatprep.subr.mxu0 0.0
  %1986 = vmatpush2.msra.mxu0 0.0
  %1987 = vmatprep.subr.mxu0 0.0
  %1988 = vmatpush2.msra.mxu0 %v680
  %1989 = vmatprep.subr.mxu0 0.0
  %1990 = vmatpush2.msra.mxu0 %v655
  %1991 = vmatprep.subr.mxu0 0.0
  %1992 = vmatpush2.msra.mxu0 %v654
  %1993 = vmatprep.subr.mxu0 0.0
  %1994 = vmatpush2.msra.mxu0 %v653
  %1995 = vmatprep.subr.mxu0 0.0
  %1996 = vmatpush2.msra.mxu0 %v652
  %1997 = vmatprep.mubr.f32.mxu0 %v1922
  %1998 = vmatmul.mubr.f32.gmra.mxu0 %v1913
  %v1999 = vpop.f32.mrf.mxu0
  %v2000 = vadd.f32 0.0, %v1999
  %v2001 = vpop.f32.mrf.mxu0
  %2002 = vmatprep.mubr.f32.mxu0 %v1925
  %2003 = vmatmul.mubr.f32.gmra.mxu0 %v1915
  %v2004 = vpop.f32.mrf.mxu0
  %v2005 = vadd.f32 0.0, %v2004
  %v2006 = vpop.f32.mrf.mxu0
  %2007 = vmatprep.mubr.f32.mxu0 %v1928
  %2008 = vmatmul.mubr.f32.gmra.mxu0 %v1917
  %v2009 = vpop.f32.mrf.mxu0
  %v2010 = vadd.f32 0.0, %v2009
  %v2011 = vpop.f32.mrf.mxu0
  %2012 = vmatprep.mubr.f32.mxu0 %v1931
  %2013 = vmatmul.mubr.f32.gmra.mxu0 %v1919
  %v2014 = vpop.f32.mrf.mxu0
  %v2015 = vadd.f32 0.0, %v2014
  %v2016 = vpop.f32.mrf.mxu0
  %2017 = vdwg.mxu0
  %s2018 = scalar_lea.vmem %s4, 96
  %v2019 = vld [vmem:[%s2018] sm:$0xff]
  %v2020 = vld [vmem:[%s2018 + $0x8] sm:$0xff]
  %v2022 = vsel %vm378, %v2000, 0
  %v2025 = vsel %vm378, %v2005, 0
  %v2028 = vsel %vm378, %v2010, 0
  %v2031 = vsel %vm378, %v2015, 0
  %2033 = vmatprep.subr.mxu0 0.0
  %2034 = vmatpush1.msra.mxu0 0.0
  %2035 = vmatprep.subr.mxu0 0.0
  %2036 = vmatpush1.msra.mxu0 0.0
  %2037 = vmatprep.subr.mxu0 0.0
  %2038 = vmatpush1.msra.mxu0 0.0
  %2039 = vmatprep.subr.mxu0 0.0
  %2040 = vmatpush1.msra.mxu0 0.0
  %2041 = vmatprep.subr.mxu0 0.0
  %2042 = vmatpush1.msra.mxu0 0.0
  %2043 = vmatprep.subr.mxu0 0.0
  %2044 = vmatpush1.msra.mxu0 0.0
  %2045 = vmatprep.subr.mxu0 0.0
  %2046 = vmatpush1.msra.mxu0 0.0
  %2047 = vmatprep.subr.mxu0 0.0
  %2048 = vmatpush1.msra.mxu0 0.0
  %2049 = vmatprep.subr.mxu0 0.0
  %2050 = vmatpush1.msra.mxu0 0.0
  %2051 = vmatprep.subr.mxu0 0.0
  %2052 = vmatpush1.msra.mxu0 0.0
  %2053 = vmatprep.subr.mxu0 0.0
  %2054 = vmatpush1.msra.mxu0 0.0
  %2055 = vmatprep.subr.mxu0 0.0
  %2056 = vmatpush1.msra.mxu0 0.0
  %2057 = vmatprep.subr.mxu0 0.0
  %2058 = vmatpush1.msra.mxu0 0.0
  %2059 = vmatprep.subr.mxu0 0.0
  %2060 = vmatpush1.msra.mxu0 0.0
  %2061 = vmatprep.subr.mxu0 0.0
  %2062 = vmatpush1.msra.mxu0 %v2020
  %2063 = vmatprep.subr.mxu0 0.0
  %2064 = vmatpush1.msra.mxu0 %v2019
  %2065 = vmatprep.subr.mxu0 0.0
  %2066 = vmatpush2.msra.mxu0 0.0
  %2067 = vmatprep.subr.mxu0 0.0
  %2068 = vmatpush2.msra.mxu0 0.0
  %2069 = vmatprep.subr.mxu0 0.0
  %2070 = vmatpush2.msra.mxu0 0.0
  %2071 = vmatprep.subr.mxu0 0.0
  %2072 = vmatpush2.msra.mxu0 0.0
  %2073 = vmatprep.subr.mxu0 0.0
  %2074 = vmatpush2.msra.mxu0 0.0
  %2075 = vmatprep.subr.mxu0 0.0
  %2076 = vmatpush2.msra.mxu0 0.0
  %2077 = vmatprep.subr.mxu0 0.0
  %2078 = vmatpush2.msra.mxu0 0.0
  %2079 = vmatprep.subr.mxu0 0.0
  %2080 = vmatpush2.msra.mxu0 0.0
  %2081 = vmatprep.subr.mxu0 0.0
  %2082 = vmatpush2.msra.mxu0 0.0
  %2083 = vmatprep.subr.mxu0 0.0
  %2084 = vmatpush2.msra.mxu0 0.0
  %2085 = vmatprep.subr.mxu0 0.0
  %2086 = vmatpush2.msra.mxu0 0.0
  %2087 = vmatprep.subr.mxu0 0.0
  %2088 = vmatpush2.msra.mxu0 0.0
  %2089 = vmatprep.subr.mxu0 0.0
  %2090 = vmatpush2.msra.mxu0 0.0
  %2091 = vmatprep.subr.mxu0 0.0
  %2092 = vmatpush2.msra.mxu0 0.0
  %2093 = vmatprep.subr.mxu0 0.0
  %2094 = vmatpush2.msra.mxu0 0.0
  %2095 = vmatprep.subr.mxu0 0.0
  %2096 = vmatpush2.msra.mxu0 0.0
  %2097 = vmatprep.mubr.f32.mxu0 0.0
  %2098 = vmatmul.mubr.f32.gmra.mxu0 %v2022
  %v2099 = vpop.f32.mrf.mxu0
  %v2100 = vadd.f32 0.0, %v2099
  %v2101 = vpop.f32.mrf.mxu0
  %2102 = vmatprep.mubr.f32.mxu0 0.0
  %2103 = vmatmul.mubr.f32.gmra.mxu0 %v2025
  %v2104 = vpop.f32.mrf.mxu0
  %v2105 = vadd.f32 0.0, %v2104
  %v2106 = vpop.f32.mrf.mxu0
  %2107 = vmatprep.mubr.f32.mxu0 0.0
  %2108 = vmatmul.mubr.f32.gmra.mxu0 %v2028
  %v2109 = vpop.f32.mrf.mxu0
  %v2110 = vadd.f32 0.0, %v2109
  %v2111 = vpop.f32.mrf.mxu0
  %2112 = vmatprep.mubr.f32.mxu0 0.0
  %2113 = vmatmul.mubr.f32.gmra.mxu0 %v2031
  %v2114 = vpop.f32.mrf.mxu0
  %v2115 = vadd.f32 0.0, %v2114
  %v2116 = vpop.f32.mrf.mxu0
  %2117 = vdwg.mxu0
  %v2118 = vadd.f32 %v1908, %v2100
  %v2119 = vadd.f32 %v1909, %v2105
  %v2120 = vadd.f32 %v1910, %v2110
  %v2121 = vadd.f32 %v1911, %v2115
  %s2122 = scalar_lea.vmem %s3, 448
  %v2123 = vld [vmem:[%s2122] sm:$0xff]
  %v2124 = vld [vmem:[%s2122 + $0x8] sm:$0xff]
  %v2125 = vld [vmem:[%s2122 + $0x10] sm:$0xff]
  %v2126 = vld [vmem:[%s2122 + $0x18] sm:$0xff]
  %v2127 = vld [vmem:[%s2122 + $0x20] sm:$0xff]
  %v2128 = vld [vmem:[%s2122 + $0x28] sm:$0xff]
  %v2129 = vld [vmem:[%s2122 + $0x30] sm:$0xff]
  %v2130 = vld [vmem:[%s2122 + $0x38] sm:$0xff]
  %v2132 = vsel %vm665, %v2124, 0
  %v2135 = vsel %vm665, %v2126, 0
  %v2138 = vsel %vm665, %v2128, 0
  %v2141 = vsel %vm665, %v2130, 0
  %2143 = vmatprep.subr.mxu0 0.0
  %2144 = vmatpush1.msra.mxu0 %v651
  %2145 = vmatprep.subr.mxu0 0.0
  %2146 = vmatpush1.msra.mxu0 %v650
  %2147 = vmatprep.subr.mxu0 0.0
  %2148 = vmatpush1.msra.mxu0 %v649
  %2149 = vmatprep.subr.mxu0 0.0
  %2150 = vmatpush1.msra.mxu0 %v648
  %2151 = vmatprep.subr.mxu0 0.0
  %2152 = vmatpush1.msra.mxu0 %v647
  %2153 = vmatprep.subr.mxu0 0.0
  %2154 = vmatpush1.msra.mxu0 %v646
  %2155 = vmatprep.subr.mxu0 0.0
  %2156 = vmatpush1.msra.mxu0 %v645
  %2157 = vmatprep.subr.mxu0 0.0
  %2158 = vmatpush1.msra.mxu0 %v644
  %2159 = vmatprep.subr.mxu0 0.0
  %2160 = vmatpush1.msra.mxu0 %v643
  %2161 = vmatprep.subr.mxu0 0.0
  %2162 = vmatpush1.msra.mxu0 %v642
  %2163 = vmatprep.subr.mxu0 0.0
  %2164 = vmatpush1.msra.mxu0 %v641
  %2165 = vmatprep.subr.mxu0 0.0
  %2166 = vmatpush1.msra.mxu0 %v640
  %2167 = vmatprep.subr.mxu0 0.0
  %2168 = vmatpush1.msra.mxu0 %v639
  %2169 = vmatprep.subr.mxu0 0.0
  %2170 = vmatpush1.msra.mxu0 %v638
  %2171 = vmatprep.subr.mxu0 0.0
  %2172 = vmatpush1.msra.mxu0 %v637
  %2173 = vmatprep.subr.mxu0 0.0
  %2174 = vmatpush1.msra.mxu0 %v636
  %2175 = vmatprep.subr.mxu0 0.0
  %2176 = vmatpush2.msra.mxu0 0.0
  %2177 = vmatprep.subr.mxu0 0.0
  %2178 = vmatpush2.msra.mxu0 0.0
  %2179 = vmatprep.subr.mxu0 0.0
  %2180 = vmatpush2.msra.mxu0 0.0
  %2181 = vmatprep.subr.mxu0 0.0
  %2182 = vmatpush2.msra.mxu0 0.0
  %2183 = vmatprep.subr.mxu0 0.0
  %2184 = vmatpush2.msra.mxu0 0.0
  %2185 = vmatprep.subr.mxu0 0.0
  %2186 = vmatpush2.msra.mxu0 0.0
  %2187 = vmatprep.subr.mxu0 0.0
  %2188 = vmatpush2.msra.mxu0 0.0
  %2189 = vmatprep.subr.mxu0 0.0
  %2190 = vmatpush2.msra.mxu0 0.0
  %2191 = vmatprep.subr.mxu0 0.0
  %2192 = vmatpush2.msra.mxu0 0.0
  %2193 = vmatprep.subr.mxu0 0.0
  %2194 = vmatpush2.msra.mxu0 0.0
  %2195 = vmatprep.subr.mxu0 0.0
  %2196 = vmatpush2.msra.mxu0 0.0
  %2197 = vmatprep.subr.mxu0 0.0
  %2198 = vmatpush2.msra.mxu0 %v680
  %2199 = vmatprep.subr.mxu0 0.0
  %2200 = vmatpush2.msra.mxu0 %v655
  %2201 = vmatprep.subr.mxu0 0.0
  %2202 = vmatpush2.msra.mxu0 %v654
  %2203 = vmatprep.subr.mxu0 0.0
  %2204 = vmatpush2.msra.mxu0 %v653
  %2205 = vmatprep.subr.mxu0 0.0
  %2206 = vmatpush2.msra.mxu0 %v652
  %2207 = vmatprep.mubr.f32.mxu0 %v2132
  %2208 = vmatmul.mubr.f32.gmra.mxu0 %v2123
  %v2209 = vpop.f32.mrf.mxu0
  %v2210 = vadd.f32 0.0, %v2209
  %v2211 = vpop.f32.mrf.mxu0
  %2212 = vmatprep.mubr.f32.mxu0 %v2135
  %2213 = vmatmul.mubr.f32.gmra.mxu0 %v2125
  %v2214 = vpop.f32.mrf.mxu0
  %v2215 = vadd.f32 0.0, %v2214
  %v2216 = vpop.f32.mrf.mxu0
  %2217 = vmatprep.mubr.f32.mxu0 %v2138
  %2218 = vmatmul.mubr.f32.gmra.mxu0 %v2127
  %v2219 = vpop.f32.mrf.mxu0
  %v2220 = vadd.f32 0.0, %v2219
  %v2221 = vpop.f32.mrf.mxu0
  %2222 = vmatprep.mubr.f32.mxu0 %v2141
  %2223 = vmatmul.mubr.f32.gmra.mxu0 %v2129
  %v2224 = vpop.f32.mrf.mxu0
  %v2225 = vadd.f32 0.0, %v2224
  %v2226 = vpop.f32.mrf.mxu0
  %2227 = vdwg.mxu0
  %s2228 = scalar_lea.vmem %s4, 112
  %v2229 = vld [vmem:[%s2228] sm:$0xff]
  %v2230 = vld [vmem:[%s2228 + $0x8] sm:$0xff]
  %v2232 = vsel %vm378, %v2210, 0
  %v2235 = vsel %vm378, %v2215, 0
  %v2238 = vsel %vm378, %v2220, 0
  %v2241 = vsel %vm378, %v2225, 0
  %2243 = vmatprep.subr.mxu0 0.0
  %2244 = vmatpush1.msra.mxu0 0.0
  %2245 = vmatprep.subr.mxu0 0.0
  %2246 = vmatpush1.msra.mxu0 0.0
  %2247 = vmatprep.subr.mxu0 0.0
  %2248 = vmatpush1.msra.mxu0 0.0
  %2249 = vmatprep.subr.mxu0 0.0
  %2250 = vmatpush1.msra.mxu0 0.0
  %2251 = vmatprep.subr.mxu0 0.0
  %2252 = vmatpush1.msra.mxu0 0.0
  %2253 = vmatprep.subr.mxu0 0.0
  %2254 = vmatpush1.msra.mxu0 0.0
  %2255 = vmatprep.subr.mxu0 0.0
  %2256 = vmatpush1.msra.mxu0 0.0
  %2257 = vmatprep.subr.mxu0 0.0
  %2258 = vmatpush1.msra.mxu0 0.0
  %2259 = vmatprep.subr.mxu0 0.0
  %2260 = vmatpush1.msra.mxu0 0.0
  %2261 = vmatprep.subr.mxu0 0.0
  %2262 = vmatpush1.msra.mxu0 0.0
  %2263 = vmatprep.subr.mxu0 0.0
  %2264 = vmatpush1.msra.mxu0 0.0
  %2265 = vmatprep.subr.mxu0 0.0
  %2266 = vmatpush1.msra.mxu0 0.0
  %2267 = vmatprep.subr.mxu0 0.0
  %2268 = vmatpush1.msra.mxu0 0.0
  %2269 = vmatprep.subr.mxu0 0.0
  %2270 = vmatpush1.msra.mxu0 0.0
  %2271 = vmatprep.subr.mxu0 0.0
  %2272 = vmatpush1.msra.mxu0 %v2230
  %2273 = vmatprep.subr.mxu0 0.0
  %2274 = vmatpush1.msra.mxu0 %v2229
  %2275 = vmatprep.subr.mxu0 0.0
  %2276 = vmatpush2.msra.mxu0 0.0
  %2277 = vmatprep.subr.mxu0 0.0
  %2278 = vmatpush2.msra.mxu0 0.0
  %2279 = vmatprep.subr.mxu0 0.0
  %2280 = vmatpush2.msra.mxu0 0.0
  %2281 = vmatprep.subr.mxu0 0.0
  %2282 = vmatpush2.msra.mxu0 0.0
  %2283 = vmatprep.subr.mxu0 0.0
  %2284 = vmatpush2.msra.mxu0 0.0
  %2285 = vmatprep.subr.mxu0 0.0
  %2286 = vmatpush2.msra.mxu0 0.0
  %2287 = vmatprep.subr.mxu0 0.0
  %2288 = vmatpush2.msra.mxu0 0.0
  %2289 = vmatprep.subr.mxu0 0.0
  %2290 = vmatpush2.msra.mxu0 0.0
  %2291 = vmatprep.subr.mxu0 0.0
  %2292 = vmatpush2.msra.mxu0 0.0
  %2293 = vmatprep.subr.mxu0 0.0
  %2294 = vmatpush2.msra.mxu0 0.0
  %2295 = vmatprep.subr.mxu0 0.0
  %2296 = vmatpush2.msra.mxu0 0.0
  %2297 = vmatprep.subr.mxu0 0.0
  %2298 = vmatpush2.msra.mxu0 0.0
  %2299 = vmatprep.subr.mxu0 0.0
  %2300 = vmatpush2.msra.mxu0 0.0
  %2301 = vmatprep.subr.mxu0 0.0
  %2302 = vmatpush2.msra.mxu0 0.0
  %2303 = vmatprep.subr.mxu0 0.0
  %2304 = vmatpush2.msra.mxu0 0.0
  %2305 = vmatprep.subr.mxu0 0.0
  %2306 = vmatpush2.msra.mxu0 0.0
  %2307 = vmatprep.mubr.f32.mxu0 0.0
  %2308 = vmatmul.mubr.f32.gmra.mxu0 %v2232
  %v2309 = vpop.f32.mrf.mxu0
  %v2310 = vadd.f32 0.0, %v2309
  %v2311 = vpop.f32.mrf.mxu0
  %2312 = vmatprep.mubr.f32.mxu0 0.0
  %2313 = vmatmul.mubr.f32.gmra.mxu0 %v2235
  %v2314 = vpop.f32.mrf.mxu0
  %v2315 = vadd.f32 0.0, %v2314
  %v2316 = vpop.f32.mrf.mxu0
  %2317 = vmatprep.mubr.f32.mxu0 0.0
  %2318 = vmatmul.mubr.f32.gmra.mxu0 %v2238
  %v2319 = vpop.f32.mrf.mxu0
  %v2320 = vadd.f32 0.0, %v2319
  %v2321 = vpop.f32.mrf.mxu0
  %2322 = vmatprep.mubr.f32.mxu0 0.0
  %2323 = vmatmul.mubr.f32.gmra.mxu0 %v2241
  %v2324 = vpop.f32.mrf.mxu0
  %v2325 = vadd.f32 0.0, %v2324
  %v2326 = vpop.f32.mrf.mxu0
  %2327 = vdwg.mxu0
  %v2328 = vadd.f32 %v2118, %v2310
  %v2329 = vadd.f32 %v2119, %v2315
  %v2330 = vadd.f32 %v2120, %v2320
  %v2331 = vadd.f32 %v2121, %v2325
  %s2332 = scalar_lea.vmem %s3, 512
  %v2333 = vld [vmem:[%s2332] sm:$0xff]
  %v2334 = vld [vmem:[%s2332 + $0x8] sm:$0xff]
  %v2335 = vld [vmem:[%s2332 + $0x10] sm:$0xff]
  %v2336 = vld [vmem:[%s2332 + $0x18] sm:$0xff]
  %v2337 = vld [vmem:[%s2332 + $0x20] sm:$0xff]
  %v2338 = vld [vmem:[%s2332 + $0x28] sm:$0xff]
  %v2339 = vld [vmem:[%s2332 + $0x30] sm:$0xff]
  %v2340 = vld [vmem:[%s2332 + $0x38] sm:$0xff]
  %v2342 = vsel %vm665, %v2334, 0
  %v2345 = vsel %vm665, %v2336, 0
  %v2348 = vsel %vm665, %v2338, 0
  %v2351 = vsel %vm665, %v2340, 0
  %2353 = vmatprep.subr.mxu0 0.0
  %2354 = vmatpush1.msra.mxu0 %v651
  %2355 = vmatprep.subr.mxu0 0.0
  %2356 = vmatpush1.msra.mxu0 %v650
  %2357 = vmatprep.subr.mxu0 0.0
  %2358 = vmatpush1.msra.mxu0 %v649
  %2359 = vmatprep.subr.mxu0 0.0
  %2360 = vmatpush1.msra.mxu0 %v648
  %2361 = vmatprep.subr.mxu0 0.0
  %2362 = vmatpush1.msra.mxu0 %v647
  %2363 = vmatprep.subr.mxu0 0.0
  %2364 = vmatpush1.msra.mxu0 %v646
  %2365 = vmatprep.subr.mxu0 0.0
  %2366 = vmatpush1.msra.mxu0 %v645
  %2367 = vmatprep.subr.mxu0 0.0
  %2368 = vmatpush1.msra.mxu0 %v644
  %2369 = vmatprep.subr.mxu0 0.0
  %2370 = vmatpush1.msra.mxu0 %v643
  %2371 = vmatprep.subr.mxu0 0.0
  %2372 = vmatpush1.msra.mxu0 %v642
  %2373 = vmatprep.subr.mxu0 0.0
  %2374 = vmatpush1.msra.mxu0 %v641
  %2375 = vmatprep.subr.mxu0 0.0
  %2376 = vmatpush1.msra.mxu0 %v640
  %2377 = vmatprep.subr.mxu0 0.0
  %2378 = vmatpush1.msra.mxu0 %v639
  %2379 = vmatprep.subr.mxu0 0.0
  %2380 = vmatpush1.msra.mxu0 %v638
  %2381 = vmatprep.subr.mxu0 0.0
  %2382 = vmatpush1.msra.mxu0 %v637
  %2383 = vmatprep.subr.mxu0 0.0
  %2384 = vmatpush1.msra.mxu0 %v636
  %2385 = vmatprep.subr.mxu0 0.0
  %2386 = vmatpush2.msra.mxu0 0.0
  %2387 = vmatprep.subr.mxu0 0.0
  %2388 = vmatpush2.msra.mxu0 0.0
  %2389 = vmatprep.subr.mxu0 0.0
  %2390 = vmatpush2.msra.mxu0 0.0
  %2391 = vmatprep.subr.mxu0 0.0
  %2392 = vmatpush2.msra.mxu0 0.0
  %2393 = vmatprep.subr.mxu0 0.0
  %2394 = vmatpush2.msra.mxu0 0.0
  %2395 = vmatprep.subr.mxu0 0.0
  %2396 = vmatpush2.msra.mxu0 0.0
  %2397 = vmatprep.subr.mxu0 0.0
  %2398 = vmatpush2.msra.mxu0 0.0
  %2399 = vmatprep.subr.mxu0 0.0
  %2400 = vmatpush2.msra.mxu0 0.0
  %2401 = vmatprep.subr.mxu0 0.0
  %2402 = vmatpush2.msra.mxu0 0.0
  %2403 = vmatprep.subr.mxu0 0.0
  %2404 = vmatpush2.msra.mxu0 0.0
  %2405 = vmatprep.subr.mxu0 0.0
  %2406 = vmatpush2.msra.mxu0 0.0
  %2407 = vmatprep.subr.mxu0 0.0
  %2408 = vmatpush2.msra.mxu0 %v680
  %2409 = vmatprep.subr.mxu0 0.0
  %2410 = vmatpush2.msra.mxu0 %v655
  %2411 = vmatprep.subr.mxu0 0.0
  %2412 = vmatpush2.msra.mxu0 %v654
  %2413 = vmatprep.subr.mxu0 0.0
  %2414 = vmatpush2.msra.mxu0 %v653
  %2415 = vmatprep.subr.mxu0 0.0
  %2416 = vmatpush2.msra.mxu0 %v652
  %2417 = vmatprep.mubr.f32.mxu0 %v2342
  %2418 = vmatmul.mubr.f32.gmra.mxu0 %v2333
  %v2419 = vpop.f32.mrf.mxu0
  %v2420 = vadd.f32 0.0, %v2419
  %v2421 = vpop.f32.mrf.mxu0
  %2422 = vmatprep.mubr.f32.mxu0 %v2345
  %2423 = vmatmul.mubr.f32.gmra.mxu0 %v2335
  %v2424 = vpop.f32.mrf.mxu0
  %v2425 = vadd.f32 0.0, %v2424
  %v2426 = vpop.f32.mrf.mxu0
  %2427 = vmatprep.mubr.f32.mxu0 %v2348
  %2428 = vmatmul.mubr.f32.gmra.mxu0 %v2337
  %v2429 = vpop.f32.mrf.mxu0
  %v2430 = vadd.f32 0.0, %v2429
  %v2431 = vpop.f32.mrf.mxu0
  %2432 = vmatprep.mubr.f32.mxu0 %v2351
  %2433 = vmatmul.mubr.f32.gmra.mxu0 %v2339
  %v2434 = vpop.f32.mrf.mxu0
  %v2435 = vadd.f32 0.0, %v2434
  %v2436 = vpop.f32.mrf.mxu0
  %2437 = vdwg.mxu0
  %s2438 = scalar_lea.vmem %s4, 128
  %v2439 = vld [vmem:[%s2438] sm:$0xff]
  %v2440 = vld [vmem:[%s2438 + $0x8] sm:$0xff]
  %v2442 = vsel %vm378, %v2420, 0
  %v2445 = vsel %vm378, %v2425, 0
  %v2448 = vsel %vm378, %v2430, 0
  %v2451 = vsel %vm378, %v2435, 0
  %2453 = vmatprep.subr.mxu0 0.0
  %2454 = vmatpush1.msra.mxu0 0.0
  %2455 = vmatprep.subr.mxu0 0.0
  %2456 = vmatpush1.msra.mxu0 0.0
  %2457 = vmatprep.subr.mxu0 0.0
  %2458 = vmatpush1.msra.mxu0 0.0
  %2459 = vmatprep.subr.mxu0 0.0
  %2460 = vmatpush1.msra.mxu0 0.0
  %2461 = vmatprep.subr.mxu0 0.0
  %2462 = vmatpush1.msra.mxu0 0.0
  %2463 = vmatprep.subr.mxu0 0.0
  %2464 = vmatpush1.msra.mxu0 0.0
  %2465 = vmatprep.subr.mxu0 0.0
  %2466 = vmatpush1.msra.mxu0 0.0
  %2467 = vmatprep.subr.mxu0 0.0
  %2468 = vmatpush1.msra.mxu0 0.0
  %2469 = vmatprep.subr.mxu0 0.0
  %2470 = vmatpush1.msra.mxu0 0.0
  %2471 = vmatprep.subr.mxu0 0.0
  %2472 = vmatpush1.msra.mxu0 0.0
  %2473 = vmatprep.subr.mxu0 0.0
  %2474 = vmatpush1.msra.mxu0 0.0
  %2475 = vmatprep.subr.mxu0 0.0
  %2476 = vmatpush1.msra.mxu0 0.0
  %2477 = vmatprep.subr.mxu0 0.0
  %2478 = vmatpush1.msra.mxu0 0.0
  %2479 = vmatprep.subr.mxu0 0.0
  %2480 = vmatpush1.msra.mxu0 0.0
  %2481 = vmatprep.subr.mxu0 0.0
  %2482 = vmatpush1.msra.mxu0 %v2440
  %2483 = vmatprep.subr.mxu0 0.0
  %2484 = vmatpush1.msra.mxu0 %v2439
  %2485 = vmatprep.subr.mxu0 0.0
  %2486 = vmatpush2.msra.mxu0 0.0
  %2487 = vmatprep.subr.mxu0 0.0
  %2488 = vmatpush2.msra.mxu0 0.0
  %2489 = vmatprep.subr.mxu0 0.0
  %2490 = vmatpush2.msra.mxu0 0.0
  %2491 = vmatprep.subr.mxu0 0.0
  %2492 = vmatpush2.msra.mxu0 0.0
  %2493 = vmatprep.subr.mxu0 0.0
  %2494 = vmatpush2.msra.mxu0 0.0
  %2495 = vmatprep.subr.mxu0 0.0
  %2496 = vmatpush2.msra.mxu0 0.0
  %2497 = vmatprep.subr.mxu0 0.0
  %2498 = vmatpush2.msra.mxu0 0.0
  %2499 = vmatprep.subr.mxu0 0.0
  %2500 = vmatpush2.msra.mxu0 0.0
  %2501 = vmatprep.subr.mxu0 0.0
  %2502 = vmatpush2.msra.mxu0 0.0
  %2503 = vmatprep.subr.mxu0 0.0
  %2504 = vmatpush2.msra.mxu0 0.0
  %2505 = vmatprep.subr.mxu0 0.0
  %2506 = vmatpush2.msra.mxu0 0.0
  %2507 = vmatprep.subr.mxu0 0.0
  %2508 = vmatpush2.msra.mxu0 0.0
  %2509 = vmatprep.subr.mxu0 0.0
  %2510 = vmatpush2.msra.mxu0 0.0
  %2511 = vmatprep.subr.mxu0 0.0
  %2512 = vmatpush2.msra.mxu0 0.0
  %2513 = vmatprep.subr.mxu0 0.0
  %2514 = vmatpush2.msra.mxu0 0.0
  %2515 = vmatprep.subr.mxu0 0.0
  %2516 = vmatpush2.msra.mxu0 0.0
  %2517 = vmatprep.mubr.f32.mxu0 0.0
  %2518 = vmatmul.mubr.f32.gmra.mxu0 %v2442
  %v2519 = vpop.f32.mrf.mxu0
  %v2520 = vadd.f32 0.0, %v2519
  %v2521 = vpop.f32.mrf.mxu0
  %2522 = vmatprep.mubr.f32.mxu0 0.0
  %2523 = vmatmul.mubr.f32.gmra.mxu0 %v2445
  %v2524 = vpop.f32.mrf.mxu0
  %v2525 = vadd.f32 0.0, %v2524
  %v2526 = vpop.f32.mrf.mxu0
  %2527 = vmatprep.mubr.f32.mxu0 0.0
  %2528 = vmatmul.mubr.f32.gmra.mxu0 %v2448
  %v2529 = vpop.f32.mrf.mxu0
  %v2530 = vadd.f32 0.0, %v2529
  %v2531 = vpop.f32.mrf.mxu0
  %2532 = vmatprep.mubr.f32.mxu0 0.0
  %2533 = vmatmul.mubr.f32.gmra.mxu0 %v2451
  %v2534 = vpop.f32.mrf.mxu0
  %v2535 = vadd.f32 0.0, %v2534
  %v2536 = vpop.f32.mrf.mxu0
  %2537 = vdwg.mxu0
  %v2538 = vadd.f32 %v2328, %v2520
  %v2539 = vadd.f32 %v2329, %v2525
  %v2540 = vadd.f32 %v2330, %v2530
  %v2541 = vadd.f32 %v2331, %v2535
  %v2542 = vld [vmem:[%s5] sm:$0x1]
  %v2543 = vlaneseq
  %v2544 = vshrl.u32 %v2543, 7
  %v2545 = vsub.s32 0, %v2544
  %v2546 = vrot.slane %v2542, %v2545
  %v2547 = vadd.f32 %v2538, %v2546
  %v2548 = vadd.f32 %v2539, %v2546
  %v2549 = vadd.f32 %v2540, %v2546
  %v2550 = vadd.f32 %v2541, %v2546
  %v2551 = vadd.f32 %v2547, %v2548
  %v2552 = vadd.f32 %v2551, %v2549
  %v2553 = vadd.f32 %v2552, %v2550
  %v2554 = vrot.slane %v2553, 4
  %v2555 = vadd.f32 %v2553, %v2554
  %v2556 = vrot.slane %v2555, 2
  %v2557 = vadd.f32 %v2555, %v2556
  %v2558 = vrot.slane %v2557, 1
  %v2559 = vadd.f32 %v2557, %v2558
  %v2560 = vrcp.pop 32.0
  %v2561 = vmul.f32 %v2559, %v2560
  %v2562 = vsub.f32 %v2547, %v2561
  %v2563 = vsub.f32 %v2548, %v2561
  %v2564 = vsub.f32 %v2549, %v2561
  %v2565 = vsub.f32 %v2550, %v2561
  %v2566 = vmul.f32 %v2562, %v2562
  %v2567 = vmul.f32 %v2563, %v2563
  %v2568 = vmul.f32 %v2564, %v2564
  %v2569 = vmul.f32 %v2565, %v2565
  %v2570 = vadd.f32 %v2566, %v2567
  %v2571 = vadd.f32 %v2570, %v2568
  %v2572 = vadd.f32 %v2571, %v2569
  %v2573 = vrot.slane %v2572, 4
  %v2574 = vadd.f32 %v2572, %v2573
  %v2575 = vrot.slane %v2574, 2
  %v2576 = vadd.f32 %v2574, %v2575
  %v2577 = vrot.slane %v2576, 1
  %v2578 = vadd.f32 %v2576, %v2577
  %v2579 = vmul.f32 %v2578, %v2560
  %v2580 = vadd.f32 %v2579, 1e-05
  %v2581 = vrsqrt.pop %v2580
  %v2582 = vmul.f32 %v2562, %v2581
  %v2583 = vmul.f32 %v2563, %v2581
  %v2584 = vmul.f32 %v2564, %v2581
  %v2585 = vmul.f32 %v2565, %v2581
  %v2586 = vld [vmem:[%s5 + $0x1] sm:$0x1]
  %v2587 = vlaneseq
  %v2588 = vshrl.u32 %v2587, 7
  %v2589 = vsub.s32 0, %v2588
  %v2590 = vrot.slane %v2586, %v2589
  %v2591 = vmul.f32 %v2582, %v2590
  %v2592 = vmul.f32 %v2583, %v2590
  %v2593 = vmul.f32 %v2584, %v2590
  %v2594 = vmul.f32 %v2585, %v2590
  %v2595 = vld [vmem:[%s5 + $0x2] sm:$0x1]
  %v2596 = vlaneseq
  %v2597 = vshrl.u32 %v2596, 7
  %v2598 = vsub.s32 0, %v2597
  %v2599 = vrot.slane %v2595, %v2598
  %v2600 = vadd.f32 %v2591, %v2599
  %v2601 = vadd.f32 %v2592, %v2599
  %v2602 = vadd.f32 %v2593, %v2599
  %v2603 = vadd.f32 %v2594, %v2599
  %vm2604 = vcmp.ge.f32.partialorder %v2600, 0.0
  %vm2605 = vcmp.ge.f32.partialorder %v2601, 0.0
  %vm2606 = vcmp.ge.f32.partialorder %v2602, 0.0
  %vm2607 = vcmp.ge.f32.partialorder %v2603, 0.0
  %v2608 = vmul.f32 %v2600, 0.2
  %v2609 = vmul.f32 %v2601, 0.2
  %v2610 = vmul.f32 %v2602, 0.2
  %v2611 = vmul.f32 %v2603, 0.2
  %v2612 = vsel %vm2604, %v2600, %v2608
  %v2613 = vsel %vm2605, %v2601, %v2609
  %v2614 = vsel %vm2606, %v2602, %v2610
  %v2615 = vsel %vm2607, %v2603, %v2611
  %v2616 = vld [vmem:[%s6] sm:$0x3]
  %vm2617 = vcmask 261120
  %v2619 = vsel %vm2617, %v2616, 0
  %2621 = vmatprep.subr.mxu0 0.0
  %2622 = vmatpush1.msra.mxu0 0.0
  %2623 = vmatprep.subr.mxu0 0.0
  %2624 = vmatpush1.msra.mxu0 0.0
  %2625 = vmatprep.subr.mxu0 0.0
  %2626 = vmatpush1.msra.mxu0 0.0
  %2627 = vmatprep.subr.mxu0 0.0
  %2628 = vmatpush1.msra.mxu0 0.0
  %2629 = vmatprep.subr.mxu0 0.0
  %2630 = vmatpush1.msra.mxu0 0.0
  %2631 = vmatprep.subr.mxu0 0.0
  %2632 = vmatpush1.msra.mxu0 0.0
  %2633 = vmatprep.subr.mxu0 0.0
  %2634 = vmatpush1.msra.mxu0 0.0
  %2635 = vmatprep.subr.mxu0 0.0
  %2636 = vmatpush1.msra.mxu0 0.0
  %2637 = vmatprep.subr.mxu0 0.0
  %2638 = vmatpush1.msra.mxu0 0.0
  %2639 = vmatprep.subr.mxu0 0.0
  %2640 = vmatpush1.msra.mxu0 0.0
  %2641 = vmatprep.subr.mxu0 0.0
  %2642 = vmatpush1.msra.mxu0 0.0
  %2643 = vmatprep.subr.mxu0 0.0
  %2644 = vmatpush1.msra.mxu0 0.0
  %2645 = vmatprep.subr.mxu0 0.0
  %2646 = vmatpush1.msra.mxu0 %v2615
  %2647 = vmatprep.subr.mxu0 0.0
  %2648 = vmatpush1.msra.mxu0 %v2614
  %2649 = vmatprep.subr.mxu0 0.0
  %2650 = vmatpush1.msra.mxu0 %v2613
  %2651 = vmatprep.subr.mxu0 0.0
  %2652 = vmatpush1.msra.mxu0 %v2612
  %2653 = vmatprep.subr.mxu0 0.0
  %2654 = vmatpush2.msra.mxu0 0.0
  %2655 = vmatprep.subr.mxu0 0.0
  %2656 = vmatpush2.msra.mxu0 0.0
  %2657 = vmatprep.subr.mxu0 0.0
  %2658 = vmatpush2.msra.mxu0 0.0
  %2659 = vmatprep.subr.mxu0 0.0
  %2660 = vmatpush2.msra.mxu0 0.0
  %2661 = vmatprep.subr.mxu0 0.0
  %2662 = vmatpush2.msra.mxu0 0.0
  %2663 = vmatprep.subr.mxu0 0.0
  %2664 = vmatpush2.msra.mxu0 0.0
  %2665 = vmatprep.subr.mxu0 0.0
  %2666 = vmatpush2.msra.mxu0 0.0
  %2667 = vmatprep.subr.mxu0 0.0
  %2668 = vmatpush2.msra.mxu0 0.0
  %2669 = vmatprep.subr.mxu0 0.0
  %2670 = vmatpush2.msra.mxu0 0.0
  %2671 = vmatprep.subr.mxu0 0.0
  %2672 = vmatpush2.msra.mxu0 0.0
  %2673 = vmatprep.subr.mxu0 0.0
  %2674 = vmatpush2.msra.mxu0 0.0
  %2675 = vmatprep.subr.mxu0 0.0
  %2676 = vmatpush2.msra.mxu0 0.0
  %2677 = vmatprep.subr.mxu0 0.0
  %2678 = vmatpush2.msra.mxu0 0.0
  %2679 = vmatprep.subr.mxu0 0.0
  %2680 = vmatpush2.msra.mxu0 0.0
  %2681 = vmatprep.subr.mxu0 0.0
  %2682 = vmatpush2.msra.mxu0 0.0
  %2683 = vmatprep.subr.mxu0 0.0
  %2684 = vmatpush2.msra.mxu0 0.0
  %2685 = vmatprep.mubr.f32.mxu0 0.0
  %2686 = vmatmul.mubr.f32.gmra.mxu0 %v2619
  %v2687 = vpop.f32.mrf.mxu0
  %v2688 = vadd.f32 0.0, %v2687
  %v2689 = vpop.f32.mrf.mxu0
  %2690 = vdwg.mxu0
  %v2691 = vld [vmem:[%s7] sm:$0xff]
  %v2692 = vld [vmem:[%s7 + $0x8] sm:$0xff]
  %v2693 = vld [vmem:[%s7 + $0x10] sm:$0xff]
  %v2694 = vld [vmem:[%s7 + $0x18] sm:$0xff]
  %v2695 = vld [vmem:[%s7 + $0x20] sm:$0xff]
  %v2696 = vld [vmem:[%s7 + $0x28] sm:$0xff]
  %v2697 = vld [vmem:[%s7 + $0x30] sm:$0xff]
  %v2698 = vld [vmem:[%s7 + $0x38] sm:$0xff]
  %v2699 = vld [vmem:[%s7 + $0x40] sm:$0xff]
  %v2700 = vld [vmem:[%s7 + $0x48] sm:$0xff]
  %v2701 = vld [vmem:[%s7 + $0x50] sm:$0xff]
  %v2702 = vld [vmem:[%s7 + $0x58] sm:$0xff]
  %v2703 = vld [vmem:[%s7 + $0x60] sm:$0xff]
  %v2704 = vld [vmem:[%s7 + $0x68] sm:$0xff]
  %v2705 = vld [vmem:[%s7 + $0x70] sm:$0xff]
  %v2706 = vld [vmem:[%s7 + $0x78] sm:$0xff]
  %v2707 = vld [vmem:[%s7 + $0x80] sm:$0xff]
  %v2708 = vld [vmem:[%s7 + $0x88] sm:$0xff]
  %v2709 = vld [vmem:[%s7 + $0x90] sm:$0xff]
  %v2710 = vld [vmem:[%s7 + $0x98] sm:$0xff]
  %v2711 = vld [vmem:[%s7 + $0xa0] sm:$0xff]
  %v2712 = vld [vmem:[%s7 + $0xa8] sm:$0xff]
  %v2713 = vld [vmem:[%s7 + $0xb0] sm:$0xff]
  %v2714 = vld [vmem:[%s7 + $0xb8] sm:$0xff]
  %v2715 = vld [vmem:[%s7 + $0xc0] sm:$0xff]
  %v2716 = vld [vmem:[%s7 + $0xc8] sm:$0xff]
  %v2717 = vld [vmem:[%s7 + $0xd0] sm:$0xff]
  %v2718 = vld [vmem:[%s7 + $0xd8] sm:$0xff]
  %v2719 = vld [vmem:[%s7 + $0xe0] sm:$0xff]
  %v2720 = vld [vmem:[%s7 + $0xe8] sm:$0xff]
  %v2721 = vld [vmem:[%s7 + $0xf0] sm:$0xff]
  %v2722 = vld [vmem:[%s7 + $0xf8] sm:$0xff]
  %s2723 = scalar_lea.vmem %s6, 2
  %v2724 = vld [vmem:[%s2723] sm:$0x3]
  %v2726 = vsel %vm2617, %v2724, 0
  %2728 = vmatprep.subr.mxu0 0.0
  %2729 = vmatpush1.msra.mxu0 0.0
  %2730 = vmatprep.subr.mxu0 0.0
  %2731 = vmatpush1.msra.mxu0 0.0
  %2732 = vmatprep.subr.mxu0 0.0
  %2733 = vmatpush1.msra.mxu0 0.0
  %2734 = vmatprep.subr.mxu0 0.0
  %2735 = vmatpush1.msra.mxu0 0.0
  %2736 = vmatprep.subr.mxu0 0.0
  %2737 = vmatpush1.msra.mxu0 0.0
  %2738 = vmatprep.subr.mxu0 0.0
  %2739 = vmatpush1.msra.mxu0 0.0
  %2740 = vmatprep.subr.mxu0 0.0
  %2741 = vmatpush1.msra.mxu0 0.0
  %2742 = vmatprep.subr.mxu0 0.0
  %2743 = vmatpush1.msra.mxu0 0.0
  %2744 = vmatprep.subr.mxu0 0.0
  %2745 = vmatpush1.msra.mxu0 0.0
  %2746 = vmatprep.subr.mxu0 0.0
  %2747 = vmatpush1.msra.mxu0 0.0
  %2748 = vmatprep.subr.mxu0 0.0
  %2749 = vmatpush1.msra.mxu0 0.0
  %2750 = vmatprep.subr.mxu0 0.0
  %2751 = vmatpush1.msra.mxu0 0.0
  %2752 = vmatprep.subr.mxu0 0.0
  %2753 = vmatpush1.msra.mxu0 %v2615
  %2754 = vmatprep.subr.mxu0 0.0
  %2755 = vmatpush1.msra.mxu0 %v2614
  %2756 = vmatprep.subr.mxu0 0.0
  %2757 = vmatpush1.msra.mxu0 %v2613
  %2758 = vmatprep.subr.mxu0 0.0
  %2759 = vmatpush1.msra.mxu0 %v2612
  %2760 = vmatprep.subr.mxu0 0.0
  %2761 = vmatpush2.msra.mxu0 0.0
  %2762 = vmatprep.subr.mxu0 0.0
  %2763 = vmatpush2.msra.mxu0 0.0
  %2764 = vmatprep.subr.mxu0 0.0
  %2765 = vmatpush2.msra.mxu0 0.0
  %2766 = vmatprep.subr.mxu0 0.0
  %2767 = vmatpush2.msra.mxu0 0.0
  %2768 = vmatprep.subr.mxu0 0.0
  %2769 = vmatpush2.msra.mxu0 0.0
  %2770 = vmatprep.subr.mxu0 0.0
  %2771 = vmatpush2.msra.mxu0 0.0
  %2772 = vmatprep.subr.mxu0 0.0
  %2773 = vmatpush2.msra.mxu0 0.0
  %2774 = vmatprep.subr.mxu0 0.0
  %2775 = vmatpush2.msra.mxu0 0.0
  %2776 = vmatprep.subr.mxu0 0.0
  %2777 = vmatpush2.msra.mxu0 0.0
  %2778 = vmatprep.subr.mxu0 0.0
  %2779 = vmatpush2.msra.mxu0 0.0
  %2780 = vmatprep.subr.mxu0 0.0
  %2781 = vmatpush2.msra.mxu0 0.0
  %2782 = vmatprep.subr.mxu0 0.0
  %2783 = vmatpush2.msra.mxu0 0.0
  %2784 = vmatprep.subr.mxu0 0.0
  %2785 = vmatpush2.msra.mxu0 0.0
  %2786 = vmatprep.subr.mxu0 0.0
  %2787 = vmatpush2.msra.mxu0 0.0
  %2788 = vmatprep.subr.mxu0 0.0
  %2789 = vmatpush2.msra.mxu0 0.0
  %2790 = vmatprep.subr.mxu0 0.0
  %2791 = vmatpush2.msra.mxu0 0.0
  %2792 = vmatprep.mubr.f32.mxu0 0.0
  %2793 = vmatmul.mubr.f32.gmra.mxu0 %v2726
  %v2794 = vpop.f32.mrf.mxu0
  %v2795 = vadd.f32 0.0, %v2794
  %v2796 = vpop.f32.mrf.mxu0
  %2797 = vdwg.mxu0
  %s2798 = scalar_lea.vmem %s7, 256
  %v2799 = vld [vmem:[%s2798] sm:$0xff]
  %v2800 = vld [vmem:[%s2798 + $0x8] sm:$0xff]
  %v2801 = vld [vmem:[%s2798 + $0x10] sm:$0xff]
  %v2802 = vld [vmem:[%s2798 + $0x18] sm:$0xff]
  %v2803 = vld [vmem:[%s2798 + $0x20] sm:$0xff]
  %v2804 = vld [vmem:[%s2798 + $0x28] sm:$0xff]
  %v2805 = vld [vmem:[%s2798 + $0x30] sm:$0xff]
  %v2806 = vld [vmem:[%s2798 + $0x38] sm:$0xff]
  %v2807 = vld [vmem:[%s2798 + $0x40] sm:$0xff]
  %v2808 = vld [vmem:[%s2798 + $0x48] sm:$0xff]
  %v2809 = vld [vmem:[%s2798 + $0x50] sm:$0xff]
  %v2810 = vld [vmem:[%s2798 + $0x58] sm:$0xff]
  %v2811 = vld [vmem:[%s2798 + $0x60] sm:$0xff]
  %v2812 = vld [vmem:[%s2798 + $0x68] sm:$0xff]
  %v2813 = vld [vmem:[%s2798 + $0x70] sm:$0xff]
  %v2814 = vld [vmem:[%s2798 + $0x78] sm:$0xff]
  %v2815 = vld [vmem:[%s2798 + $0x80] sm:$0xff]
  %v2816 = vld [vmem:[%s2798 + $0x88] sm:$0xff]
  %v2817 = vld [vmem:[%s2798 + $0x90] sm:$0xff]
  %v2818 = vld [vmem:[%s2798 + $0x98] sm:$0xff]
  %v2819 = vld [vmem:[%s2798 + $0xa0] sm:$0xff]
  %v2820 = vld [vmem:[%s2798 + $0xa8] sm:$0xff]
  %v2821 = vld [vmem:[%s2798 + $0xb0] sm:$0xff]
  %v2822 = vld [vmem:[%s2798 + $0xb8] sm:$0xff]
  %v2823 = vld [vmem:[%s2798 + $0xc0] sm:$0xff]
  %v2824 = vld [vmem:[%s2798 + $0xc8] sm:$0xff]
  %v2825 = vld [vmem:[%s2798 + $0xd0] sm:$0xff]
  %v2826 = vld [vmem:[%s2798 + $0xd8] sm:$0xff]
  %v2827 = vld [vmem:[%s2798 + $0xe0] sm:$0xff]
  %v2828 = vld [vmem:[%s2798 + $0xe8] sm:$0xff]
  %v2829 = vld [vmem:[%s2798 + $0xf0] sm:$0xff]
  %v2830 = vld [vmem:[%s2798 + $0xf8] sm:$0xff]
  %2831 = vmatprep.subr.mxu0 %v2830
  %2832 = vmatpush1.msra.mxu0 %v2829
  %2833 = vmatprep.subr.mxu0 %v2828
  %2834 = vmatpush1.msra.mxu0 %v2827
  %2835 = vmatprep.subr.mxu0 %v2826
  %2836 = vmatpush1.msra.mxu0 %v2825
  %2837 = vmatprep.subr.mxu0 %v2824
  %2838 = vmatpush1.msra.mxu0 %v2823
  %2839 = vmatprep.subr.mxu0 %v2822
  %2840 = vmatpush1.msra.mxu0 %v2821
  %2841 = vmatprep.subr.mxu0 %v2820
  %2842 = vmatpush1.msra.mxu0 %v2819
  %2843 = vmatprep.subr.mxu0 %v2818
  %2844 = vmatpush1.msra.mxu0 %v2817
  %2845 = vmatprep.subr.mxu0 %v2816
  %2846 = vmatpush1.msra.mxu0 %v2815
  %2847 = vmatprep.subr.mxu0 %v2814
  %2848 = vmatpush1.msra.mxu0 %v2813
  %2849 = vmatprep.subr.mxu0 %v2812
  %2850 = vmatpush1.msra.mxu0 %v2811
  %2851 = vmatprep.subr.mxu0 %v2810
  %2852 = vmatpush1.msra.mxu0 %v2809
  %2853 = vmatprep.subr.mxu0 %v2808
  %2854 = vmatpush1.msra.mxu0 %v2807
  %2855 = vmatprep.subr.mxu0 %v2806
  %2856 = vmatpush1.msra.mxu0 %v2805
  %2857 = vmatprep.subr.mxu0 %v2804
  %2858 = vmatpush1.msra.mxu0 %v2803
  %2859 = vmatprep.subr.mxu0 %v2802
  %2860 = vmatpush1.msra.mxu0 %v2801
  %2861 = vmatprep.subr.mxu0 %v2800
  %2862 = vmatpush1.msra.mxu0 %v2799
  %2863 = vmatprep.subr.mxu0 0.0
  %2864 = vmatpush2.msra.mxu0 0.0
  %2865 = vmatprep.subr.mxu0 0.0
  %2866 = vmatpush2.msra.mxu0 0.0
  %2867 = vmatprep.subr.mxu0 0.0
  %2868 = vmatpush2.msra.mxu0 0.0
  %2869 = vmatprep.subr.mxu0 0.0
  %2870 = vmatpush2.msra.mxu0 0.0
  %2871 = vmatprep.subr.mxu0 0.0
  %2872 = vmatpush2.msra.mxu0 0.0
  %2873 = vmatprep.subr.mxu0 0.0
  %2874 = vmatpush2.msra.mxu0 0.0
  %2875 = vmatprep.subr.mxu0 0.0
  %2876 = vmatpush2.msra.mxu0 0.0
  %2877 = vmatprep.subr.mxu0 0.0
  %2878 = vmatpush2.msra.mxu0 0.0
  %2879 = vmatprep.subr.mxu0 0.0
  %2880 = vmatpush2.msra.mxu0 0.0
  %2881 = vmatprep.subr.mxu0 0.0
  %2882 = vmatpush2.msra.mxu0 0.0
  %2883 = vmatprep.subr.mxu0 0.0
  %2884 = vmatpush2.msra.mxu0 0.0
  %2885 = vmatprep.subr.mxu0 0.0
  %2886 = vmatpush2.msra.mxu0 0.0
  %2887 = vmatprep.subr.mxu0 0.0
  %2888 = vmatpush2.msra.mxu0 0.0
  %2889 = vmatprep.subr.mxu0 0.0
  %2890 = vmatpush2.msra.mxu0 0.0
  %2891 = vmatprep.subr.mxu0 0.0
  %2892 = vmatpush2.msra.mxu0 0.0
  %2893 = vmatprep.subr.mxu0 0.0
  %2894 = vmatpush2.msra.mxu0 0.0
  %2895 = vmatprep.mubr.f32.mxu0 0.0
  %2896 = vmatmul.mubr.f32.gmra.mxu0 %v2795
  %v2897 = vpop.f32.mrf.mxu0
  %v2898 = vadd.f32 0.0, %v2897
  %v2899 = vpop.f32.mrf.mxu0
  %v2900 = vadd.f32 0.0, %v2899
  %2901 = vdwg.mxu0
  %2902 = vmatprep.subr.mxu0 %v2722
  %2903 = vmatpush1.msra.mxu0 %v2721
  %2904 = vmatprep.subr.mxu0 %v2720
  %2905 = vmatpush1.msra.mxu0 %v2719
  %2906 = vmatprep.subr.mxu0 %v2718
  %2907 = vmatpush1.msra.mxu0 %v2717
  %2908 = vmatprep.subr.mxu0 %v2716
  %2909 = vmatpush1.msra.mxu0 %v2715
  %2910 = vmatprep.subr.mxu0 %v2714
  %2911 = vmatpush1.msra.mxu0 %v2713
  %2912 = vmatprep.subr.mxu0 %v2712
  %2913 = vmatpush1.msra.mxu0 %v2711
  %2914 = vmatprep.subr.mxu0 %v2710
  %2915 = vmatpush1.msra.mxu0 %v2709
  %2916 = vmatprep.subr.mxu0 %v2708
  %2917 = vmatpush1.msra.mxu0 %v2707
  %2918 = vmatprep.subr.mxu0 %v2706
  %2919 = vmatpush1.msra.mxu0 %v2705
  %2920 = vmatprep.subr.mxu0 %v2704
  %2921 = vmatpush1.msra.mxu0 %v2703
  %2922 = vmatprep.subr.mxu0 %v2702
  %2923 = vmatpush1.msra.mxu0 %v2701
  %2924 = vmatprep.subr.mxu0 %v2700
  %2925 = vmatpush1.msra.mxu0 %v2699
  %2926 = vmatprep.subr.mxu0 %v2698
  %2927 = vmatpush1.msra.mxu0 %v2697
  %2928 = vmatprep.subr.mxu0 %v2696
  %2929 = vmatpush1.msra.mxu0 %v2695
  %2930 = vmatprep.subr.mxu0 %v2694
  %2931 = vmatpush1.msra.mxu0 %v2693
  %2932 = vmatprep.subr.mxu0 %v2692
  %2933 = vmatpush1.msra.mxu0 %v2691
  %2934 = vmatprep.subr.mxu0 0.0
  %2935 = vmatpush2.msra.mxu0 0.0
  %2936 = vmatprep.subr.mxu0 0.0
  %2937 = vmatpush2.msra.mxu0 0.0
  %2938 = vmatprep.subr.mxu0 0.0
  %2939 = vmatpush2.msra.mxu0 0.0
  %2940 = vmatprep.subr.mxu0 0.0
  %2941 = vmatpush2.msra.mxu0 0.0
  %2942 = vmatprep.subr.mxu0 0.0
  %2943 = vmatpush2.msra.mxu0 0.0
  %2944 = vmatprep.subr.mxu0 0.0
  %2945 = vmatpush2.msra.mxu0 0.0
  %2946 = vmatprep.subr.mxu0 0.0
  %2947 = vmatpush2.msra.mxu0 0.0
  %2948 = vmatprep.subr.mxu0 0.0
  %2949 = vmatpush2.msra.mxu0 0.0
  %2950 = vmatprep.subr.mxu0 0.0
  %2951 = vmatpush2.msra.mxu0 0.0
  %2952 = vmatprep.subr.mxu0 0.0
  %2953 = vmatpush2.msra.mxu0 0.0
  %2954 = vmatprep.subr.mxu0 0.0
  %2955 = vmatpush2.msra.mxu0 0.0
  %2956 = vmatprep.subr.mxu0 0.0
  %2957 = vmatpush2.msra.mxu0 0.0
  %2958 = vmatprep.subr.mxu0 0.0
  %2959 = vmatpush2.msra.mxu0 0.0
  %2960 = vmatprep.subr.mxu0 0.0
  %2961 = vmatpush2.msra.mxu0 0.0
  %2962 = vmatprep.subr.mxu0 0.0
  %2963 = vmatpush2.msra.mxu0 0.0
  %2964 = vmatprep.subr.mxu0 0.0
  %2965 = vmatpush2.msra.mxu0 0.0
  %2966 = vmatprep.mubr.f32.mxu0 0.0
  %2967 = vmatmul.mubr.f32.gmra.mxu0 %v2688
  %v2968 = vpop.f32.mrf.mxu0
  %v2969 = vadd.f32 %v2898, %v2968
  %v2970 = vpop.f32.mrf.mxu0
  %v2971 = vadd.f32 %v2900, %v2970
  %2972 = vdwg.mxu0
  %s2973 = scalar_lea.vmem %s6, 4
  %v2974 = vld [vmem:[%s2973] sm:$0x3]
  %v2976 = vsel %vm2617, %v2974, 0
  %2978 = vmatprep.subr.mxu0 0.0
  %2979 = vmatpush1.msra.mxu0 0.0
  %2980 = vmatprep.subr.mxu0 0.0
  %2981 = vmatpush1.msra.mxu0 0.0
  %2982 = vmatprep.subr.mxu0 0.0
  %2983 = vmatpush1.msra.mxu0 0.0
  %2984 = vmatprep.subr.mxu0 0.0
  %2985 = vmatpush1.msra.mxu0 0.0
  %2986 = vmatprep.subr.mxu0 0.0
  %2987 = vmatpush1.msra.mxu0 0.0
  %2988 = vmatprep.subr.mxu0 0.0
  %2989 = vmatpush1.msra.mxu0 0.0
  %2990 = vmatprep.subr.mxu0 0.0
  %2991 = vmatpush1.msra.mxu0 0.0
  %2992 = vmatprep.subr.mxu0 0.0
  %2993 = vmatpush1.msra.mxu0 0.0
  %2994 = vmatprep.subr.mxu0 0.0
  %2995 = vmatpush1.msra.mxu0 0.0
  %2996 = vmatprep.subr.mxu0 0.0
  %2997 = vmatpush1.msra.mxu0 0.0
  %2998 = vmatprep.subr.mxu0 0.0
  %2999 = vmatpush1.msra.mxu0 0.0
  %3000 = vmatprep.subr.mxu0 0.0
  %3001 = vmatpush1.msra.mxu0 0.0
  %3002 = vmatprep.subr.mxu0 0.0
  %3003 = vmatpush1.msra.mxu0 %v2615
  %3004 = vmatprep.subr.mxu0 0.0
  %3005 = vmatpush1.msra.mxu0 %v2614
  %3006 = vmatprep.subr.mxu0 0.0
  %3007 = vmatpush1.msra.mxu0 %v2613
  %3008 = vmatprep.subr.mxu0 0.0
  %3009 = vmatpush1.msra.mxu0 %v2612
  %3010 = vmatprep.subr.mxu0 0.0
  %3011 = vmatpush2.msra.mxu0 0.0
  %3012 = vmatprep.subr.mxu0 0.0
  %3013 = vmatpush2.msra.mxu0 0.0
  %3014 = vmatprep.subr.mxu0 0.0
  %3015 = vmatpush2.msra.mxu0 0.0
  %3016 = vmatprep.subr.mxu0 0.0
  %3017 = vmatpush2.msra.mxu0 0.0
  %3018 = vmatprep.subr.mxu0 0.0
  %3019 = vmatpush2.msra.mxu0 0.0
  %3020 = vmatprep.subr.mxu0 0.0
  %3021 = vmatpush2.msra.mxu0 0.0
  %3022 = vmatprep.subr.mxu0 0.0
  %3023 = vmatpush2.msra.mxu0 0.0
  %3024 = vmatprep.subr.mxu0 0.0
  %3025 = vmatpush2.msra.mxu0 0.0
  %3026 = vmatprep.subr.mxu0 0.0
  %3027 = vmatpush2.msra.mxu0 0.0
  %3028 = vmatprep.subr.mxu0 0.0
  %3029 = vmatpush2.msra.mxu0 0.0
  %3030 = vmatprep.subr.mxu0 0.0
  %3031 = vmatpush2.msra.mxu0 0.0
  %3032 = vmatprep.subr.mxu0 0.0
  %3033 = vmatpush2.msra.mxu0 0.0
  %3034 = vmatprep.subr.mxu0 0.0
  %3035 = vmatpush2.msra.mxu0 0.0
  %3036 = vmatprep.subr.mxu0 0.0
  %3037 = vmatpush2.msra.mxu0 0.0
  %3038 = vmatprep.subr.mxu0 0.0
  %3039 = vmatpush2.msra.mxu0 0.0
  %3040 = vmatprep.subr.mxu0 0.0
  %3041 = vmatpush2.msra.mxu0 0.0
  %3042 = vmatprep.mubr.f32.mxu0 0.0
  %3043 = vmatmul.mubr.f32.gmra.mxu0 %v2976
  %v3044 = vpop.f32.mrf.mxu0
  %v3045 = vadd.f32 0.0, %v3044
  %v3046 = vpop.f32.mrf.mxu0
  %3047 = vdwg.mxu0
  %s3048 = scalar_lea.vmem %s7, 512
  %v3049 = vld [vmem:[%s3048] sm:$0xff]
  %v3050 = vld [vmem:[%s3048 + $0x8] sm:$0xff]
  %v3051 = vld [vmem:[%s3048 + $0x10] sm:$0xff]
  %v3052 = vld [vmem:[%s3048 + $0x18] sm:$0xff]
  %v3053 = vld [vmem:[%s3048 + $0x20] sm:$0xff]
  %v3054 = vld [vmem:[%s3048 + $0x28] sm:$0xff]
  %v3055 = vld [vmem:[%s3048 + $0x30] sm:$0xff]
  %v3056 = vld [vmem:[%s3048 + $0x38] sm:$0xff]
  %v3057 = vld [vmem:[%s3048 + $0x40] sm:$0xff]
  %v3058 = vld [vmem:[%s3048 + $0x48] sm:$0xff]
  %v3059 = vld [vmem:[%s3048 + $0x50] sm:$0xff]
  %v3060 = vld [vmem:[%s3048 + $0x58] sm:$0xff]
  %v3061 = vld [vmem:[%s3048 + $0x60] sm:$0xff]
  %v3062 = vld [vmem:[%s3048 + $0x68] sm:$0xff]
  %v3063 = vld [vmem:[%s3048 + $0x70] sm:$0xff]
  %v3064 = vld [vmem:[%s3048 + $0x78] sm:$0xff]
  %v3065 = vld [vmem:[%s3048 + $0x80] sm:$0xff]
  %v3066 = vld [vmem:[%s3048 + $0x88] sm:$0xff]
  %v3067 = vld [vmem:[%s3048 + $0x90] sm:$0xff]
  %v3068 = vld [vmem:[%s3048 + $0x98] sm:$0xff]
  %v3069 = vld [vmem:[%s3048 + $0xa0] sm:$0xff]
  %v3070 = vld [vmem:[%s3048 + $0xa8] sm:$0xff]
  %v3071 = vld [vmem:[%s3048 + $0xb0] sm:$0xff]
  %v3072 = vld [vmem:[%s3048 + $0xb8] sm:$0xff]
  %v3073 = vld [vmem:[%s3048 + $0xc0] sm:$0xff]
  %v3074 = vld [vmem:[%s3048 + $0xc8] sm:$0xff]
  %v3075 = vld [vmem:[%s3048 + $0xd0] sm:$0xff]
  %v3076 = vld [vmem:[%s3048 + $0xd8] sm:$0xff]
  %v3077 = vld [vmem:[%s3048 + $0xe0] sm:$0xff]
  %v3078 = vld [vmem:[%s3048 + $0xe8] sm:$0xff]
  %v3079 = vld [vmem:[%s3048 + $0xf0] sm:$0xff]
  %v3080 = vld [vmem:[%s3048 + $0xf8] sm:$0xff]
  %3081 = vmatprep.subr.mxu0 %v3080
  %3082 = vmatpush1.msra.mxu0 %v3079
  %3083 = vmatprep.subr.mxu0 %v3078
  %3084 = vmatpush1.msra.mxu0 %v3077
  %3085 = vmatprep.subr.mxu0 %v3076
  %3086 = vmatpush1.msra.mxu0 %v3075
  %3087 = vmatprep.subr.mxu0 %v3074
  %3088 = vmatpush1.msra.mxu0 %v3073
  %3089 = vmatprep.subr.mxu0 %v3072
  %3090 = vmatpush1.msra.mxu0 %v3071
  %3091 = vmatprep.subr.mxu0 %v3070
  %3092 = vmatpush1.msra.mxu0 %v3069
  %3093 = vmatprep.subr.mxu0 %v3068
  %3094 = vmatpush1.msra.mxu0 %v3067
  %3095 = vmatprep.subr.mxu0 %v3066
  %3096 = vmatpush1.msra.mxu0 %v3065
  %3097 = vmatprep.subr.mxu0 %v3064
  %3098 = vmatpush1.msra.mxu0 %v3063
  %3099 = vmatprep.subr.mxu0 %v3062
  %3100 = vmatpush1.msra.mxu0 %v3061
  %3101 = vmatprep.subr.mxu0 %v3060
  %3102 = vmatpush1.msra.mxu0 %v3059
  %3103 = vmatprep.subr.mxu0 %v3058
  %3104 = vmatpush1.msra.mxu0 %v3057
  %3105 = vmatprep.subr.mxu0 %v3056
  %3106 = vmatpush1.msra.mxu0 %v3055
  %3107 = vmatprep.subr.mxu0 %v3054
  %3108 = vmatpush1.msra.mxu0 %v3053
  %3109 = vmatprep.subr.mxu0 %v3052
  %3110 = vmatpush1.msra.mxu0 %v3051
  %3111 = vmatprep.subr.mxu0 %v3050
  %3112 = vmatpush1.msra.mxu0 %v3049
  %3113 = vmatprep.subr.mxu0 0.0
  %3114 = vmatpush2.msra.mxu0 0.0
  %3115 = vmatprep.subr.mxu0 0.0
  %3116 = vmatpush2.msra.mxu0 0.0
  %3117 = vmatprep.subr.mxu0 0.0
  %3118 = vmatpush2.msra.mxu0 0.0
  %3119 = vmatprep.subr.mxu0 0.0
  %3120 = vmatpush2.msra.mxu0 0.0
  %3121 = vmatprep.subr.mxu0 0.0
  %3122 = vmatpush2.msra.mxu0 0.0
  %3123 = vmatprep.subr.mxu0 0.0
  %3124 = vmatpush2.msra.mxu0 0.0
  %3125 = vmatprep.subr.mxu0 0.0
  %3126 = vmatpush2.msra.mxu0 0.0
  %3127 = vmatprep.subr.mxu0 0.0
  %3128 = vmatpush2.msra.mxu0 0.0
  %3129 = vmatprep.subr.mxu0 0.0
  %3130 = vmatpush2.msra.mxu0 0.0
  %3131 = vmatprep.subr.mxu0 0.0
  %3132 = vmatpush2.msra.mxu0 0.0
  %3133 = vmatprep.subr.mxu0 0.0
  %3134 = vmatpush2.msra.mxu0 0.0
  %3135 = vmatprep.subr.mxu0 0.0
  %3136 = vmatpush2.msra.mxu0 0.0
  %3137 = vmatprep.subr.mxu0 0.0
  %3138 = vmatpush2.msra.mxu0 0.0
  %3139 = vmatprep.subr.mxu0 0.0
  %3140 = vmatpush2.msra.mxu0 0.0
  %3141 = vmatprep.subr.mxu0 0.0
  %3142 = vmatpush2.msra.mxu0 0.0
  %3143 = vmatprep.subr.mxu0 0.0
  %3144 = vmatpush2.msra.mxu0 0.0
  %3145 = vmatprep.mubr.f32.mxu0 0.0
  %3146 = vmatmul.mubr.f32.gmra.mxu0 %v3045
  %v3147 = vpop.f32.mrf.mxu0
  %v3148 = vadd.f32 0.0, %v3147
  %v3149 = vpop.f32.mrf.mxu0
  %v3150 = vadd.f32 0.0, %v3149
  %3151 = vdwg.mxu0
  %v3152 = vadd.f32 %v2969, %v3148
  %v3153 = vadd.f32 %v2971, %v3150
  %s3154 = scalar_lea.vmem %s6, 6
  %v3155 = vld [vmem:[%s3154] sm:$0x3]
  %v3157 = vsel %vm2617, %v3155, 0
  %3159 = vmatprep.subr.mxu0 0.0
  %3160 = vmatpush1.msra.mxu0 0.0
  %3161 = vmatprep.subr.mxu0 0.0
  %3162 = vmatpush1.msra.mxu0 0.0
  %3163 = vmatprep.subr.mxu0 0.0
  %3164 = vmatpush1.msra.mxu0 0.0
  %3165 = vmatprep.subr.mxu0 0.0
  %3166 = vmatpush1.msra.mxu0 0.0
  %3167 = vmatprep.subr.mxu0 0.0
  %3168 = vmatpush1.msra.mxu0 0.0
  %3169 = vmatprep.subr.mxu0 0.0
  %3170 = vmatpush1.msra.mxu0 0.0
  %3171 = vmatprep.subr.mxu0 0.0
  %3172 = vmatpush1.msra.mxu0 0.0
  %3173 = vmatprep.subr.mxu0 0.0
  %3174 = vmatpush1.msra.mxu0 0.0
  %3175 = vmatprep.subr.mxu0 0.0
  %3176 = vmatpush1.msra.mxu0 0.0
  %3177 = vmatprep.subr.mxu0 0.0
  %3178 = vmatpush1.msra.mxu0 0.0
  %3179 = vmatprep.subr.mxu0 0.0
  %3180 = vmatpush1.msra.mxu0 0.0
  %3181 = vmatprep.subr.mxu0 0.0
  %3182 = vmatpush1.msra.mxu0 0.0
  %3183 = vmatprep.subr.mxu0 0.0
  %3184 = vmatpush1.msra.mxu0 %v2615
  %3185 = vmatprep.subr.mxu0 0.0
  %3186 = vmatpush1.msra.mxu0 %v2614
  %3187 = vmatprep.subr.mxu0 0.0
  %3188 = vmatpush1.msra.mxu0 %v2613
  %3189 = vmatprep.subr.mxu0 0.0
  %3190 = vmatpush1.msra.mxu0 %v2612
  %3191 = vmatprep.subr.mxu0 0.0
  %3192 = vmatpush2.msra.mxu0 0.0
  %3193 = vmatprep.subr.mxu0 0.0
  %3194 = vmatpush2.msra.mxu0 0.0
  %3195 = vmatprep.subr.mxu0 0.0
  %3196 = vmatpush2.msra.mxu0 0.0
  %3197 = vmatprep.subr.mxu0 0.0
  %3198 = vmatpush2.msra.mxu0 0.0
  %3199 = vmatprep.subr.mxu0 0.0
  %3200 = vmatpush2.msra.mxu0 0.0
  %3201 = vmatprep.subr.mxu0 0.0
  %3202 = vmatpush2.msra.mxu0 0.0
  %3203 = vmatprep.subr.mxu0 0.0
  %3204 = vmatpush2.msra.mxu0 0.0
  %3205 = vmatprep.subr.mxu0 0.0
  %3206 = vmatpush2.msra.mxu0 0.0
  %3207 = vmatprep.subr.mxu0 0.0
  %3208 = vmatpush2.msra.mxu0 0.0
  %3209 = vmatprep.subr.mxu0 0.0
  %3210 = vmatpush2.msra.mxu0 0.0
  %3211 = vmatprep.subr.mxu0 0.0
  %3212 = vmatpush2.msra.mxu0 0.0
  %3213 = vmatprep.subr.mxu0 0.0
  %3214 = vmatpush2.msra.mxu0 0.0
  %3215 = vmatprep.subr.mxu0 0.0
  %3216 = vmatpush2.msra.mxu0 0.0
  %3217 = vmatprep.subr.mxu0 0.0
  %3218 = vmatpush2.msra.mxu0 0.0
  %3219 = vmatprep.subr.mxu0 0.0
  %3220 = vmatpush2.msra.mxu0 0.0
  %3221 = vmatprep.subr.mxu0 0.0
  %3222 = vmatpush2.msra.mxu0 0.0
  %3223 = vmatprep.mubr.f32.mxu0 0.0
  %3224 = vmatmul.mubr.f32.gmra.mxu0 %v3157
  %v3225 = vpop.f32.mrf.mxu0
  %v3226 = vadd.f32 0.0, %v3225
  %v3227 = vpop.f32.mrf.mxu0
  %3228 = vdwg.mxu0
  %s3229 = scalar_lea.vmem %s7, 768
  %v3230 = vld [vmem:[%s3229] sm:$0xff]
  %v3231 = vld [vmem:[%s3229 + $0x8] sm:$0xff]
  %v3232 = vld [vmem:[%s3229 + $0x10] sm:$0xff]
  %v3233 = vld [vmem:[%s3229 + $0x18] sm:$0xff]
  %v3234 = vld [vmem:[%s3229 + $0x20] sm:$0xff]
  %v3235 = vld [vmem:[%s3229 + $0x28] sm:$0xff]
  %v3236 = vld [vmem:[%s3229 + $0x30] sm:$0xff]
  %v3237 = vld [vmem:[%s3229 + $0x38] sm:$0xff]
  %v3238 = vld [vmem:[%s3229 + $0x40] sm:$0xff]
  %v3239 = vld [vmem:[%s3229 + $0x48] sm:$0xff]
  %v3240 = vld [vmem:[%s3229 + $0x50] sm:$0xff]
  %v3241 = vld [vmem:[%s3229 + $0x58] sm:$0xff]
  %v3242 = vld [vmem:[%s3229 + $0x60] sm:$0xff]
  %v3243 = vld [vmem:[%s3229 + $0x68] sm:$0xff]
  %v3244 = vld [vmem:[%s3229 + $0x70] sm:$0xff]
  %v3245 = vld [vmem:[%s3229 + $0x78] sm:$0xff]
  %v3246 = vld [vmem:[%s3229 + $0x80] sm:$0xff]
  %v3247 = vld [vmem:[%s3229 + $0x88] sm:$0xff]
  %v3248 = vld [vmem:[%s3229 + $0x90] sm:$0xff]
  %v3249 = vld [vmem:[%s3229 + $0x98] sm:$0xff]
  %v3250 = vld [vmem:[%s3229 + $0xa0] sm:$0xff]
  %v3251 = vld [vmem:[%s3229 + $0xa8] sm:$0xff]
  %v3252 = vld [vmem:[%s3229 + $0xb0] sm:$0xff]
  %v3253 = vld [vmem:[%s3229 + $0xb8] sm:$0xff]
  %v3254 = vld [vmem:[%s3229 + $0xc0] sm:$0xff]
  %v3255 = vld [vmem:[%s3229 + $0xc8] sm:$0xff]
  %v3256 = vld [vmem:[%s3229 + $0xd0] sm:$0xff]
  %v3257 = vld [vmem:[%s3229 + $0xd8] sm:$0xff]
  %v3258 = vld [vmem:[%s3229 + $0xe0] sm:$0xff]
  %v3259 = vld [vmem:[%s3229 + $0xe8] sm:$0xff]
  %v3260 = vld [vmem:[%s3229 + $0xf0] sm:$0xff]
  %v3261 = vld [vmem:[%s3229 + $0xf8] sm:$0xff]
  %3262 = vmatprep.subr.mxu0 %v3261
  %3263 = vmatpush1.msra.mxu0 %v3260
  %3264 = vmatprep.subr.mxu0 %v3259
  %3265 = vmatpush1.msra.mxu0 %v3258
  %3266 = vmatprep.subr.mxu0 %v3257
  %3267 = vmatpush1.msra.mxu0 %v3256
  %3268 = vmatprep.subr.mxu0 %v3255
  %3269 = vmatpush1.msra.mxu0 %v3254
  %3270 = vmatprep.subr.mxu0 %v3253
  %3271 = vmatpush1.msra.mxu0 %v3252
  %3272 = vmatprep.subr.mxu0 %v3251
  %3273 = vmatpush1.msra.mxu0 %v3250
  %3274 = vmatprep.subr.mxu0 %v3249
  %3275 = vmatpush1.msra.mxu0 %v3248
  %3276 = vmatprep.subr.mxu0 %v3247
  %3277 = vmatpush1.msra.mxu0 %v3246
  %3278 = vmatprep.subr.mxu0 %v3245
  %3279 = vmatpush1.msra.mxu0 %v3244
  %3280 = vmatprep.subr.mxu0 %v3243
  %3281 = vmatpush1.msra.mxu0 %v3242
  %3282 = vmatprep.subr.mxu0 %v3241
  %3283 = vmatpush1.msra.mxu0 %v3240
  %3284 = vmatprep.subr.mxu0 %v3239
  %3285 = vmatpush1.msra.mxu0 %v3238
  %3286 = vmatprep.subr.mxu0 %v3237
  %3287 = vmatpush1.msra.mxu0 %v3236
  %3288 = vmatprep.subr.mxu0 %v3235
  %3289 = vmatpush1.msra.mxu0 %v3234
  %3290 = vmatprep.subr.mxu0 %v3233
  %3291 = vmatpush1.msra.mxu0 %v3232
  %3292 = vmatprep.subr.mxu0 %v3231
  %3293 = vmatpush1.msra.mxu0 %v3230
  %3294 = vmatprep.subr.mxu0 0.0
  %3295 = vmatpush2.msra.mxu0 0.0
  %3296 = vmatprep.subr.mxu0 0.0
  %3297 = vmatpush2.msra.mxu0 0.0
  %3298 = vmatprep.subr.mxu0 0.0
  %3299 = vmatpush2.msra.mxu0 0.0
  %3300 = vmatprep.subr.mxu0 0.0
  %3301 = vmatpush2.msra.mxu0 0.0
  %3302 = vmatprep.subr.mxu0 0.0
  %3303 = vmatpush2.msra.mxu0 0.0
  %3304 = vmatprep.subr.mxu0 0.0
  %3305 = vmatpush2.msra.mxu0 0.0
  %3306 = vmatprep.subr.mxu0 0.0
  %3307 = vmatpush2.msra.mxu0 0.0
  %3308 = vmatprep.subr.mxu0 0.0
  %3309 = vmatpush2.msra.mxu0 0.0
  %3310 = vmatprep.subr.mxu0 0.0
  %3311 = vmatpush2.msra.mxu0 0.0
  %3312 = vmatprep.subr.mxu0 0.0
  %3313 = vmatpush2.msra.mxu0 0.0
  %3314 = vmatprep.subr.mxu0 0.0
  %3315 = vmatpush2.msra.mxu0 0.0
  %3316 = vmatprep.subr.mxu0 0.0
  %3317 = vmatpush2.msra.mxu0 0.0
  %3318 = vmatprep.subr.mxu0 0.0
  %3319 = vmatpush2.msra.mxu0 0.0
  %3320 = vmatprep.subr.mxu0 0.0
  %3321 = vmatpush2.msra.mxu0 0.0
  %3322 = vmatprep.subr.mxu0 0.0
  %3323 = vmatpush2.msra.mxu0 0.0
  %3324 = vmatprep.subr.mxu0 0.0
  %3325 = vmatpush2.msra.mxu0 0.0
  %3326 = vmatprep.mubr.f32.mxu0 0.0
  %3327 = vmatmul.mubr.f32.gmra.mxu0 %v3226
  %v3328 = vpop.f32.mrf.mxu0
  %v3329 = vadd.f32 0.0, %v3328
  %v3330 = vpop.f32.mrf.mxu0
  %v3331 = vadd.f32 0.0, %v3330
  %3332 = vdwg.mxu0
  %v3333 = vadd.f32 %v3152, %v3329
  %v3334 = vadd.f32 %v3153, %v3331
  %s3335 = scalar_lea.vmem %s6, 8
  %v3336 = vld [vmem:[%s3335] sm:$0x3]
  %v3338 = vsel %vm2617, %v3336, 0
  %3340 = vmatprep.subr.mxu0 0.0
  %3341 = vmatpush1.msra.mxu0 0.0
  %3342 = vmatprep.subr.mxu0 0.0
  %3343 = vmatpush1.msra.mxu0 0.0
  %3344 = vmatprep.subr.mxu0 0.0
  %3345 = vmatpush1.msra.mxu0 0.0
  %3346 = vmatprep.subr.mxu0 0.0
  %3347 = vmatpush1.msra.mxu0 0.0
  %3348 = vmatprep.subr.mxu0 0.0
  %3349 = vmatpush1.msra.mxu0 0.0
  %3350 = vmatprep.subr.mxu0 0.0
  %3351 = vmatpush1.msra.mxu0 0.0
  %3352 = vmatprep.subr.mxu0 0.0
  %3353 = vmatpush1.msra.mxu0 0.0
  %3354 = vmatprep.subr.mxu0 0.0
  %3355 = vmatpush1.msra.mxu0 0.0
  %3356 = vmatprep.subr.mxu0 0.0
  %3357 = vmatpush1.msra.mxu0 0.0
  %3358 = vmatprep.subr.mxu0 0.0
  %3359 = vmatpush1.msra.mxu0 0.0
  %3360 = vmatprep.subr.mxu0 0.0
  %3361 = vmatpush1.msra.mxu0 0.0
  %3362 = vmatprep.subr.mxu0 0.0
  %3363 = vmatpush1.msra.mxu0 0.0
  %3364 = vmatprep.subr.mxu0 0.0
  %3365 = vmatpush1.msra.mxu0 %v2615
  %3366 = vmatprep.subr.mxu0 0.0
  %3367 = vmatpush1.msra.mxu0 %v2614
  %3368 = vmatprep.subr.mxu0 0.0
  %3369 = vmatpush1.msra.mxu0 %v2613
  %3370 = vmatprep.subr.mxu0 0.0
  %3371 = vmatpush1.msra.mxu0 %v2612
  %3372 = vmatprep.subr.mxu0 0.0
  %3373 = vmatpush2.msra.mxu0 0.0
  %3374 = vmatprep.subr.mxu0 0.0
  %3375 = vmatpush2.msra.mxu0 0.0
  %3376 = vmatprep.subr.mxu0 0.0
  %3377 = vmatpush2.msra.mxu0 0.0
  %3378 = vmatprep.subr.mxu0 0.0
  %3379 = vmatpush2.msra.mxu0 0.0
  %3380 = vmatprep.subr.mxu0 0.0
  %3381 = vmatpush2.msra.mxu0 0.0
  %3382 = vmatprep.subr.mxu0 0.0
  %3383 = vmatpush2.msra.mxu0 0.0
  %3384 = vmatprep.subr.mxu0 0.0
  %3385 = vmatpush2.msra.mxu0 0.0
  %3386 = vmatprep.subr.mxu0 0.0
  %3387 = vmatpush2.msra.mxu0 0.0
  %3388 = vmatprep.subr.mxu0 0.0
  %3389 = vmatpush2.msra.mxu0 0.0
  %3390 = vmatprep.subr.mxu0 0.0
  %3391 = vmatpush2.msra.mxu0 0.0
  %3392 = vmatprep.subr.mxu0 0.0
  %3393 = vmatpush2.msra.mxu0 0.0
  %3394 = vmatprep.subr.mxu0 0.0
  %3395 = vmatpush2.msra.mxu0 0.0
  %3396 = vmatprep.subr.mxu0 0.0
  %3397 = vmatpush2.msra.mxu0 0.0
  %3398 = vmatprep.subr.mxu0 0.0
  %3399 = vmatpush2.msra.mxu0 0.0
  %3400 = vmatprep.subr.mxu0 0.0
  %3401 = vmatpush2.msra.mxu0 0.0
  %3402 = vmatprep.subr.mxu0 0.0
  %3403 = vmatpush2.msra.mxu0 0.0
  %3404 = vmatprep.mubr.f32.mxu0 0.0
  %3405 = vmatmul.mubr.f32.gmra.mxu0 %v3338
  %v3406 = vpop.f32.mrf.mxu0
  %v3407 = vadd.f32 0.0, %v3406
  %v3408 = vpop.f32.mrf.mxu0
  %3409 = vdwg.mxu0
  %s3410 = scalar_lea.vmem %s7, 1024
  %v3411 = vld [vmem:[%s3410] sm:$0xff]
  %v3412 = vld [vmem:[%s3410 + $0x8] sm:$0xff]
  %v3413 = vld [vmem:[%s3410 + $0x10] sm:$0xff]
  %v3414 = vld [vmem:[%s3410 + $0x18] sm:$0xff]
  %v3415 = vld [vmem:[%s3410 + $0x20] sm:$0xff]
  %v3416 = vld [vmem:[%s3410 + $0x28] sm:$0xff]
  %v3417 = vld [vmem:[%s3410 + $0x30] sm:$0xff]
  %v3418 = vld [vmem:[%s3410 + $0x38] sm:$0xff]
  %v3419 = vld [vmem:[%s3410 + $0x40] sm:$0xff]
  %v3420 = vld [vmem:[%s3410 + $0x48] sm:$0xff]
  %v3421 = vld [vmem:[%s3410 + $0x50] sm:$0xff]
  %v3422 = vld [vmem:[%s3410 + $0x58] sm:$0xff]
  %v3423 = vld [vmem:[%s3410 + $0x60] sm:$0xff]
  %v3424 = vld [vmem:[%s3410 + $0x68] sm:$0xff]
  %v3425 = vld [vmem:[%s3410 + $0x70] sm:$0xff]
  %v3426 = vld [vmem:[%s3410 + $0x78] sm:$0xff]
  %v3427 = vld [vmem:[%s3410 + $0x80] sm:$0xff]
  %v3428 = vld [vmem:[%s3410 + $0x88] sm:$0xff]
  %v3429 = vld [vmem:[%s3410 + $0x90] sm:$0xff]
  %v3430 = vld [vmem:[%s3410 + $0x98] sm:$0xff]
  %v3431 = vld [vmem:[%s3410 + $0xa0] sm:$0xff]
  %v3432 = vld [vmem:[%s3410 + $0xa8] sm:$0xff]
  %v3433 = vld [vmem:[%s3410 + $0xb0] sm:$0xff]
  %v3434 = vld [vmem:[%s3410 + $0xb8] sm:$0xff]
  %v3435 = vld [vmem:[%s3410 + $0xc0] sm:$0xff]
  %v3436 = vld [vmem:[%s3410 + $0xc8] sm:$0xff]
  %v3437 = vld [vmem:[%s3410 + $0xd0] sm:$0xff]
  %v3438 = vld [vmem:[%s3410 + $0xd8] sm:$0xff]
  %v3439 = vld [vmem:[%s3410 + $0xe0] sm:$0xff]
  %v3440 = vld [vmem:[%s3410 + $0xe8] sm:$0xff]
  %v3441 = vld [vmem:[%s3410 + $0xf0] sm:$0xff]
  %v3442 = vld [vmem:[%s3410 + $0xf8] sm:$0xff]
  %3443 = vmatprep.subr.mxu0 %v3442
  %3444 = vmatpush1.msra.mxu0 %v3441
  %3445 = vmatprep.subr.mxu0 %v3440
  %3446 = vmatpush1.msra.mxu0 %v3439
  %3447 = vmatprep.subr.mxu0 %v3438
  %3448 = vmatpush1.msra.mxu0 %v3437
  %3449 = vmatprep.subr.mxu0 %v3436
  %3450 = vmatpush1.msra.mxu0 %v3435
  %3451 = vmatprep.subr.mxu0 %v3434
  %3452 = vmatpush1.msra.mxu0 %v3433
  %3453 = vmatprep.subr.mxu0 %v3432
  %3454 = vmatpush1.msra.mxu0 %v3431
  %3455 = vmatprep.subr.mxu0 %v3430
  %3456 = vmatpush1.msra.mxu0 %v3429
  %3457 = vmatprep.subr.mxu0 %v3428
  %3458 = vmatpush1.msra.mxu0 %v3427
  %3459 = vmatprep.subr.mxu0 %v3426
  %3460 = vmatpush1.msra.mxu0 %v3425
  %3461 = vmatprep.subr.mxu0 %v3424
  %3462 = vmatpush1.msra.mxu0 %v3423
  %3463 = vmatprep.subr.mxu0 %v3422
  %3464 = vmatpush1.msra.mxu0 %v3421
  %3465 = vmatprep.subr.mxu0 %v3420
  %3466 = vmatpush1.msra.mxu0 %v3419
  %3467 = vmatprep.subr.mxu0 %v3418
  %3468 = vmatpush1.msra.mxu0 %v3417
  %3469 = vmatprep.subr.mxu0 %v3416
  %3470 = vmatpush1.msra.mxu0 %v3415
  %3471 = vmatprep.subr.mxu0 %v3414
  %3472 = vmatpush1.msra.mxu0 %v3413
  %3473 = vmatprep.subr.mxu0 %v3412
  %3474 = vmatpush1.msra.mxu0 %v3411
  %3475 = vmatprep.subr.mxu0 0.0
  %3476 = vmatpush2.msra.mxu0 0.0
  %3477 = vmatprep.subr.mxu0 0.0
  %3478 = vmatpush2.msra.mxu0 0.0
  %3479 = vmatprep.subr.mxu0 0.0
  %3480 = vmatpush2.msra.mxu0 0.0
  %3481 = vmatprep.subr.mxu0 0.0
  %3482 = vmatpush2.msra.mxu0 0.0
  %3483 = vmatprep.subr.mxu0 0.0
  %3484 = vmatpush2.msra.mxu0 0.0
  %3485 = vmatprep.subr.mxu0 0.0
  %3486 = vmatpush2.msra.mxu0 0.0
  %3487 = vmatprep.subr.mxu0 0.0
  %3488 = vmatpush2.msra.mxu0 0.0
  %3489 = vmatprep.subr.mxu0 0.0
  %3490 = vmatpush2.msra.mxu0 0.0
  %3491 = vmatprep.subr.mxu0 0.0
  %3492 = vmatpush2.msra.mxu0 0.0
  %3493 = vmatprep.subr.mxu0 0.0
  %3494 = vmatpush2.msra.mxu0 0.0
  %3495 = vmatprep.subr.mxu0 0.0
  %3496 = vmatpush2.msra.mxu0 0.0
  %3497 = vmatprep.subr.mxu0 0.0
  %3498 = vmatpush2.msra.mxu0 0.0
  %3499 = vmatprep.subr.mxu0 0.0
  %3500 = vmatpush2.msra.mxu0 0.0
  %3501 = vmatprep.subr.mxu0 0.0
  %3502 = vmatpush2.msra.mxu0 0.0
  %3503 = vmatprep.subr.mxu0 0.0
  %3504 = vmatpush2.msra.mxu0 0.0
  %3505 = vmatprep.subr.mxu0 0.0
  %3506 = vmatpush2.msra.mxu0 0.0
  %3507 = vmatprep.mubr.f32.mxu0 0.0
  %3508 = vmatmul.mubr.f32.gmra.mxu0 %v3407
  %v3509 = vpop.f32.mrf.mxu0
  %v3510 = vadd.f32 0.0, %v3509
  %v3511 = vpop.f32.mrf.mxu0
  %v3512 = vadd.f32 0.0, %v3511
  %3513 = vdwg.mxu0
  %v3514 = vadd.f32 %v3333, %v3510
  %v3515 = vadd.f32 %v3334, %v3512
  %s3516 = scalar_lea.vmem %s6, 10
  %v3517 = vld [vmem:[%s3516] sm:$0x3]
  %v3519 = vsel %vm2617, %v3517, 0
  %3521 = vmatprep.subr.mxu0 0.0
  %3522 = vmatpush1.msra.mxu0 0.0
  %3523 = vmatprep.subr.mxu0 0.0
  %3524 = vmatpush1.msra.mxu0 0.0
  %3525 = vmatprep.subr.mxu0 0.0
  %3526 = vmatpush1.msra.mxu0 0.0
  %3527 = vmatprep.subr.mxu0 0.0
  %3528 = vmatpush1.msra.mxu0 0.0
  %3529 = vmatprep.subr.mxu0 0.0
  %3530 = vmatpush1.msra.mxu0 0.0
  %3531 = vmatprep.subr.mxu0 0.0
  %3532 = vmatpush1.msra.mxu0 0.0
  %3533 = vmatprep.subr.mxu0 0.0
  %3534 = vmatpush1.msra.mxu0 0.0
  %3535 = vmatprep.subr.mxu0 0.0
  %3536 = vmatpush1.msra.mxu0 0.0
  %3537 = vmatprep.subr.mxu0 0.0
  %3538 = vmatpush1.msra.mxu0 0.0
  %3539 = vmatprep.subr.mxu0 0.0
  %3540 = vmatpush1.msra.mxu0 0.0
  %3541 = vmatprep.subr.mxu0 0.0
  %3542 = vmatpush1.msra.mxu0 0.0
  %3543 = vmatprep.subr.mxu0 0.0
  %3544 = vmatpush1.msra.mxu0 0.0
  %3545 = vmatprep.subr.mxu0 0.0
  %3546 = vmatpush1.msra.mxu0 %v2615
  %3547 = vmatprep.subr.mxu0 0.0
  %3548 = vmatpush1.msra.mxu0 %v2614
  %3549 = vmatprep.subr.mxu0 0.0
  %3550 = vmatpush1.msra.mxu0 %v2613
  %3551 = vmatprep.subr.mxu0 0.0
  %3552 = vmatpush1.msra.mxu0 %v2612
  %3553 = vmatprep.subr.mxu0 0.0
  %3554 = vmatpush2.msra.mxu0 0.0
  %3555 = vmatprep.subr.mxu0 0.0
  %3556 = vmatpush2.msra.mxu0 0.0
  %3557 = vmatprep.subr.mxu0 0.0
  %3558 = vmatpush2.msra.mxu0 0.0
  %3559 = vmatprep.subr.mxu0 0.0
  %3560 = vmatpush2.msra.mxu0 0.0
  %3561 = vmatprep.subr.mxu0 0.0
  %3562 = vmatpush2.msra.mxu0 0.0
  %3563 = vmatprep.subr.mxu0 0.0
  %3564 = vmatpush2.msra.mxu0 0.0
  %3565 = vmatprep.subr.mxu0 0.0
  %3566 = vmatpush2.msra.mxu0 0.0
  %3567 = vmatprep.subr.mxu0 0.0
  %3568 = vmatpush2.msra.mxu0 0.0
  %3569 = vmatprep.subr.mxu0 0.0
  %3570 = vmatpush2.msra.mxu0 0.0
  %3571 = vmatprep.subr.mxu0 0.0
  %3572 = vmatpush2.msra.mxu0 0.0
  %3573 = vmatprep.subr.mxu0 0.0
  %3574 = vmatpush2.msra.mxu0 0.0
  %3575 = vmatprep.subr.mxu0 0.0
  %3576 = vmatpush2.msra.mxu0 0.0
  %3577 = vmatprep.subr.mxu0 0.0
  %3578 = vmatpush2.msra.mxu0 0.0
  %3579 = vmatprep.subr.mxu0 0.0
  %3580 = vmatpush2.msra.mxu0 0.0
  %3581 = vmatprep.subr.mxu0 0.0
  %3582 = vmatpush2.msra.mxu0 0.0
  %3583 = vmatprep.subr.mxu0 0.0
  %3584 = vmatpush2.msra.mxu0 0.0
  %3585 = vmatprep.mubr.f32.mxu0 0.0
  %3586 = vmatmul.mubr.f32.gmra.mxu0 %v3519
  %v3587 = vpop.f32.mrf.mxu0
  %v3588 = vadd.f32 0.0, %v3587
  %v3589 = vpop.f32.mrf.mxu0
  %3590 = vdwg.mxu0
  %s3591 = scalar_lea.vmem %s7, 1280
  %v3592 = vld [vmem:[%s3591] sm:$0xff]
  %v3593 = vld [vmem:[%s3591 + $0x8] sm:$0xff]
  %v3594 = vld [vmem:[%s3591 + $0x10] sm:$0xff]
  %v3595 = vld [vmem:[%s3591 + $0x18] sm:$0xff]
  %v3596 = vld [vmem:[%s3591 + $0x20] sm:$0xff]
  %v3597 = vld [vmem:[%s3591 + $0x28] sm:$0xff]
  %v3598 = vld [vmem:[%s3591 + $0x30] sm:$0xff]
  %v3599 = vld [vmem:[%s3591 + $0x38] sm:$0xff]
  %v3600 = vld [vmem:[%s3591 + $0x40] sm:$0xff]
  %v3601 = vld [vmem:[%s3591 + $0x48] sm:$0xff]
  %v3602 = vld [vmem:[%s3591 + $0x50] sm:$0xff]
  %v3603 = vld [vmem:[%s3591 + $0x58] sm:$0xff]
  %v3604 = vld [vmem:[%s3591 + $0x60] sm:$0xff]
  %v3605 = vld [vmem:[%s3591 + $0x68] sm:$0xff]
  %v3606 = vld [vmem:[%s3591 + $0x70] sm:$0xff]
  %v3607 = vld [vmem:[%s3591 + $0x78] sm:$0xff]
  %v3608 = vld [vmem:[%s3591 + $0x80] sm:$0xff]
  %v3609 = vld [vmem:[%s3591 + $0x88] sm:$0xff]
  %v3610 = vld [vmem:[%s3591 + $0x90] sm:$0xff]
  %v3611 = vld [vmem:[%s3591 + $0x98] sm:$0xff]
  %v3612 = vld [vmem:[%s3591 + $0xa0] sm:$0xff]
  %v3613 = vld [vmem:[%s3591 + $0xa8] sm:$0xff]
  %v3614 = vld [vmem:[%s3591 + $0xb0] sm:$0xff]
  %v3615 = vld [vmem:[%s3591 + $0xb8] sm:$0xff]
  %v3616 = vld [vmem:[%s3591 + $0xc0] sm:$0xff]
  %v3617 = vld [vmem:[%s3591 + $0xc8] sm:$0xff]
  %v3618 = vld [vmem:[%s3591 + $0xd0] sm:$0xff]
  %v3619 = vld [vmem:[%s3591 + $0xd8] sm:$0xff]
  %v3620 = vld [vmem:[%s3591 + $0xe0] sm:$0xff]
  %v3621 = vld [vmem:[%s3591 + $0xe8] sm:$0xff]
  %v3622 = vld [vmem:[%s3591 + $0xf0] sm:$0xff]
  %v3623 = vld [vmem:[%s3591 + $0xf8] sm:$0xff]
  %3624 = vmatprep.subr.mxu0 %v3623
  %3625 = vmatpush1.msra.mxu0 %v3622
  %3626 = vmatprep.subr.mxu0 %v3621
  %3627 = vmatpush1.msra.mxu0 %v3620
  %3628 = vmatprep.subr.mxu0 %v3619
  %3629 = vmatpush1.msra.mxu0 %v3618
  %3630 = vmatprep.subr.mxu0 %v3617
  %3631 = vmatpush1.msra.mxu0 %v3616
  %3632 = vmatprep.subr.mxu0 %v3615
  %3633 = vmatpush1.msra.mxu0 %v3614
  %3634 = vmatprep.subr.mxu0 %v3613
  %3635 = vmatpush1.msra.mxu0 %v3612
  %3636 = vmatprep.subr.mxu0 %v3611
  %3637 = vmatpush1.msra.mxu0 %v3610
  %3638 = vmatprep.subr.mxu0 %v3609
  %3639 = vmatpush1.msra.mxu0 %v3608
  %3640 = vmatprep.subr.mxu0 %v3607
  %3641 = vmatpush1.msra.mxu0 %v3606
  %3642 = vmatprep.subr.mxu0 %v3605
  %3643 = vmatpush1.msra.mxu0 %v3604
  %3644 = vmatprep.subr.mxu0 %v3603
  %3645 = vmatpush1.msra.mxu0 %v3602
  %3646 = vmatprep.subr.mxu0 %v3601
  %3647 = vmatpush1.msra.mxu0 %v3600
  %3648 = vmatprep.subr.mxu0 %v3599
  %3649 = vmatpush1.msra.mxu0 %v3598
  %3650 = vmatprep.subr.mxu0 %v3597
  %3651 = vmatpush1.msra.mxu0 %v3596
  %3652 = vmatprep.subr.mxu0 %v3595
  %3653 = vmatpush1.msra.mxu0 %v3594
  %3654 = vmatprep.subr.mxu0 %v3593
  %3655 = vmatpush1.msra.mxu0 %v3592
  %3656 = vmatprep.subr.mxu0 0.0
  %3657 = vmatpush2.msra.mxu0 0.0
  %3658 = vmatprep.subr.mxu0 0.0
  %3659 = vmatpush2.msra.mxu0 0.0
  %3660 = vmatprep.subr.mxu0 0.0
  %3661 = vmatpush2.msra.mxu0 0.0
  %3662 = vmatprep.subr.mxu0 0.0
  %3663 = vmatpush2.msra.mxu0 0.0
  %3664 = vmatprep.subr.mxu0 0.0
  %3665 = vmatpush2.msra.mxu0 0.0
  %3666 = vmatprep.subr.mxu0 0.0
  %3667 = vmatpush2.msra.mxu0 0.0
  %3668 = vmatprep.subr.mxu0 0.0
  %3669 = vmatpush2.msra.mxu0 0.0
  %3670 = vmatprep.subr.mxu0 0.0
  %3671 = vmatpush2.msra.mxu0 0.0
  %3672 = vmatprep.subr.mxu0 0.0
  %3673 = vmatpush2.msra.mxu0 0.0
  %3674 = vmatprep.subr.mxu0 0.0
  %3675 = vmatpush2.msra.mxu0 0.0
  %3676 = vmatprep.subr.mxu0 0.0
  %3677 = vmatpush2.msra.mxu0 0.0
  %3678 = vmatprep.subr.mxu0 0.0
  %3679 = vmatpush2.msra.mxu0 0.0
  %3680 = vmatprep.subr.mxu0 0.0
  %3681 = vmatpush2.msra.mxu0 0.0
  %3682 = vmatprep.subr.mxu0 0.0
  %3683 = vmatpush2.msra.mxu0 0.0
  %3684 = vmatprep.subr.mxu0 0.0
  %3685 = vmatpush2.msra.mxu0 0.0
  %3686 = vmatprep.subr.mxu0 0.0
  %3687 = vmatpush2.msra.mxu0 0.0
  %3688 = vmatprep.mubr.f32.mxu0 0.0
  %3689 = vmatmul.mubr.f32.gmra.mxu0 %v3588
  %v3690 = vpop.f32.mrf.mxu0
  %v3691 = vadd.f32 0.0, %v3690
  %v3692 = vpop.f32.mrf.mxu0
  %v3693 = vadd.f32 0.0, %v3692
  %3694 = vdwg.mxu0
  %v3695 = vadd.f32 %v3514, %v3691
  %v3696 = vadd.f32 %v3515, %v3693
  %s3697 = scalar_lea.vmem %s6, 12
  %v3698 = vld [vmem:[%s3697] sm:$0x3]
  %v3700 = vsel %vm2617, %v3698, 0
  %3702 = vmatprep.subr.mxu0 0.0
  %3703 = vmatpush1.msra.mxu0 0.0
  %3704 = vmatprep.subr.mxu0 0.0
  %3705 = vmatpush1.msra.mxu0 0.0
  %3706 = vmatprep.subr.mxu0 0.0
  %3707 = vmatpush1.msra.mxu0 0.0
  %3708 = vmatprep.subr.mxu0 0.0
  %3709 = vmatpush1.msra.mxu0 0.0
  %3710 = vmatprep.subr.mxu0 0.0
  %3711 = vmatpush1.msra.mxu0 0.0
  %3712 = vmatprep.subr.mxu0 0.0
  %3713 = vmatpush1.msra.mxu0 0.0
  %3714 = vmatprep.subr.mxu0 0.0
  %3715 = vmatpush1.msra.mxu0 0.0
  %3716 = vmatprep.subr.mxu0 0.0
  %3717 = vmatpush1.msra.mxu0 0.0
  %3718 = vmatprep.subr.mxu0 0.0
  %3719 = vmatpush1.msra.mxu0 0.0
  %3720 = vmatprep.subr.mxu0 0.0
  %3721 = vmatpush1.msra.mxu0 0.0
  %3722 = vmatprep.subr.mxu0 0.0
  %3723 = vmatpush1.msra.mxu0 0.0
  %3724 = vmatprep.subr.mxu0 0.0
  %3725 = vmatpush1.msra.mxu0 0.0
  %3726 = vmatprep.subr.mxu0 0.0
  %3727 = vmatpush1.msra.mxu0 %v2615
  %3728 = vmatprep.subr.mxu0 0.0
  %3729 = vmatpush1.msra.mxu0 %v2614
  %3730 = vmatprep.subr.mxu0 0.0
  %3731 = vmatpush1.msra.mxu0 %v2613
  %3732 = vmatprep.subr.mxu0 0.0
  %3733 = vmatpush1.msra.mxu0 %v2612
  %3734 = vmatprep.subr.mxu0 0.0
  %3735 = vmatpush2.msra.mxu0 0.0
  %3736 = vmatprep.subr.mxu0 0.0
  %3737 = vmatpush2.msra.mxu0 0.0
  %3738 = vmatprep.subr.mxu0 0.0
  %3739 = vmatpush2.msra.mxu0 0.0
  %3740 = vmatprep.subr.mxu0 0.0
  %3741 = vmatpush2.msra.mxu0 0.0
  %3742 = vmatprep.subr.mxu0 0.0
  %3743 = vmatpush2.msra.mxu0 0.0
  %3744 = vmatprep.subr.mxu0 0.0
  %3745 = vmatpush2.msra.mxu0 0.0
  %3746 = vmatprep.subr.mxu0 0.0
  %3747 = vmatpush2.msra.mxu0 0.0
  %3748 = vmatprep.subr.mxu0 0.0
  %3749 = vmatpush2.msra.mxu0 0.0
  %3750 = vmatprep.subr.mxu0 0.0
  %3751 = vmatpush2.msra.mxu0 0.0
  %3752 = vmatprep.subr.mxu0 0.0
  %3753 = vmatpush2.msra.mxu0 0.0
  %3754 = vmatprep.subr.mxu0 0.0
  %3755 = vmatpush2.msra.mxu0 0.0
  %3756 = vmatprep.subr.mxu0 0.0
  %3757 = vmatpush2.msra.mxu0 0.0
  %3758 = vmatprep.subr.mxu0 0.0
  %3759 = vmatpush2.msra.mxu0 0.0
  %3760 = vmatprep.subr.mxu0 0.0
  %3761 = vmatpush2.msra.mxu0 0.0
  %3762 = vmatprep.subr.mxu0 0.0
  %3763 = vmatpush2.msra.mxu0 0.0
  %3764 = vmatprep.subr.mxu0 0.0
  %3765 = vmatpush2.msra.mxu0 0.0
  %3766 = vmatprep.mubr.f32.mxu0 0.0
  %3767 = vmatmul.mubr.f32.gmra.mxu0 %v3700
  %v3768 = vpop.f32.mrf.mxu0
  %v3769 = vadd.f32 0.0, %v3768
  %v3770 = vpop.f32.mrf.mxu0
  %3771 = vdwg.mxu0
  %s3772 = scalar_lea.vmem %s7, 1536
  %v3773 = vld [vmem:[%s3772] sm:$0xff]
  %v3774 = vld [vmem:[%s3772 + $0x8] sm:$0xff]
  %v3775 = vld [vmem:[%s3772 + $0x10] sm:$0xff]
  %v3776 = vld [vmem:[%s3772 + $0x18] sm:$0xff]
  %v3777 = vld [vmem:[%s3772 + $0x20] sm:$0xff]
  %v3778 = vld [vmem:[%s3772 + $0x28] sm:$0xff]
  %v3779 = vld [vmem:[%s3772 + $0x30] sm:$0xff]
  %v3780 = vld [vmem:[%s3772 + $0x38] sm:$0xff]
  %v3781 = vld [vmem:[%s3772 + $0x40] sm:$0xff]
  %v3782 = vld [vmem:[%s3772 + $0x48] sm:$0xff]
  %v3783 = vld [vmem:[%s3772 + $0x50] sm:$0xff]
  %v3784 = vld [vmem:[%s3772 + $0x58] sm:$0xff]
  %v3785 = vld [vmem:[%s3772 + $0x60] sm:$0xff]
  %v3786 = vld [vmem:[%s3772 + $0x68] sm:$0xff]
  %v3787 = vld [vmem:[%s3772 + $0x70] sm:$0xff]
  %v3788 = vld [vmem:[%s3772 + $0x78] sm:$0xff]
  %v3789 = vld [vmem:[%s3772 + $0x80] sm:$0xff]
  %v3790 = vld [vmem:[%s3772 + $0x88] sm:$0xff]
  %v3791 = vld [vmem:[%s3772 + $0x90] sm:$0xff]
  %v3792 = vld [vmem:[%s3772 + $0x98] sm:$0xff]
  %v3793 = vld [vmem:[%s3772 + $0xa0] sm:$0xff]
  %v3794 = vld [vmem:[%s3772 + $0xa8] sm:$0xff]
  %v3795 = vld [vmem:[%s3772 + $0xb0] sm:$0xff]
  %v3796 = vld [vmem:[%s3772 + $0xb8] sm:$0xff]
  %v3797 = vld [vmem:[%s3772 + $0xc0] sm:$0xff]
  %v3798 = vld [vmem:[%s3772 + $0xc8] sm:$0xff]
  %v3799 = vld [vmem:[%s3772 + $0xd0] sm:$0xff]
  %v3800 = vld [vmem:[%s3772 + $0xd8] sm:$0xff]
  %v3801 = vld [vmem:[%s3772 + $0xe0] sm:$0xff]
  %v3802 = vld [vmem:[%s3772 + $0xe8] sm:$0xff]
  %v3803 = vld [vmem:[%s3772 + $0xf0] sm:$0xff]
  %v3804 = vld [vmem:[%s3772 + $0xf8] sm:$0xff]
  %3805 = vmatprep.subr.mxu0 %v3804
  %3806 = vmatpush1.msra.mxu0 %v3803
  %3807 = vmatprep.subr.mxu0 %v3802
  %3808 = vmatpush1.msra.mxu0 %v3801
  %3809 = vmatprep.subr.mxu0 %v3800
  %3810 = vmatpush1.msra.mxu0 %v3799
  %3811 = vmatprep.subr.mxu0 %v3798
  %3812 = vmatpush1.msra.mxu0 %v3797
  %3813 = vmatprep.subr.mxu0 %v3796
  %3814 = vmatpush1.msra.mxu0 %v3795
  %3815 = vmatprep.subr.mxu0 %v3794
  %3816 = vmatpush1.msra.mxu0 %v3793
  %3817 = vmatprep.subr.mxu0 %v3792
  %3818 = vmatpush1.msra.mxu0 %v3791
  %3819 = vmatprep.subr.mxu0 %v3790
  %3820 = vmatpush1.msra.mxu0 %v3789
  %3821 = vmatprep.subr.mxu0 %v3788
  %3822 = vmatpush1.msra.mxu0 %v3787
  %3823 = vmatprep.subr.mxu0 %v3786
  %3824 = vmatpush1.msra.mxu0 %v3785
  %3825 = vmatprep.subr.mxu0 %v3784
  %3826 = vmatpush1.msra.mxu0 %v3783
  %3827 = vmatprep.subr.mxu0 %v3782
  %3828 = vmatpush1.msra.mxu0 %v3781
  %3829 = vmatprep.subr.mxu0 %v3780
  %3830 = vmatpush1.msra.mxu0 %v3779
  %3831 = vmatprep.subr.mxu0 %v3778
  %3832 = vmatpush1.msra.mxu0 %v3777
  %3833 = vmatprep.subr.mxu0 %v3776
  %3834 = vmatpush1.msra.mxu0 %v3775
  %3835 = vmatprep.subr.mxu0 %v3774
  %3836 = vmatpush1.msra.mxu0 %v3773
  %3837 = vmatprep.subr.mxu0 0.0
  %3838 = vmatpush2.msra.mxu0 0.0
  %3839 = vmatprep.subr.mxu0 0.0
  %3840 = vmatpush2.msra.mxu0 0.0
  %3841 = vmatprep.subr.mxu0 0.0
  %3842 = vmatpush2.msra.mxu0 0.0
  %3843 = vmatprep.subr.mxu0 0.0
  %3844 = vmatpush2.msra.mxu0 0.0
  %3845 = vmatprep.subr.mxu0 0.0
  %3846 = vmatpush2.msra.mxu0 0.0
  %3847 = vmatprep.subr.mxu0 0.0
  %3848 = vmatpush2.msra.mxu0 0.0
  %3849 = vmatprep.subr.mxu0 0.0
  %3850 = vmatpush2.msra.mxu0 0.0
  %3851 = vmatprep.subr.mxu0 0.0
  %3852 = vmatpush2.msra.mxu0 0.0
  %3853 = vmatprep.subr.mxu0 0.0
  %3854 = vmatpush2.msra.mxu0 0.0
  %3855 = vmatprep.subr.mxu0 0.0
  %3856 = vmatpush2.msra.mxu0 0.0
  %3857 = vmatprep.subr.mxu0 0.0
  %3858 = vmatpush2.msra.mxu0 0.0
  %3859 = vmatprep.subr.mxu0 0.0
  %3860 = vmatpush2.msra.mxu0 0.0
  %3861 = vmatprep.subr.mxu0 0.0
  %3862 = vmatpush2.msra.mxu0 0.0
  %3863 = vmatprep.subr.mxu0 0.0
  %3864 = vmatpush2.msra.mxu0 0.0
  %3865 = vmatprep.subr.mxu0 0.0
  %3866 = vmatpush2.msra.mxu0 0.0
  %3867 = vmatprep.subr.mxu0 0.0
  %3868 = vmatpush2.msra.mxu0 0.0
  %3869 = vmatprep.mubr.f32.mxu0 0.0
  %3870 = vmatmul.mubr.f32.gmra.mxu0 %v3769
  %v3871 = vpop.f32.mrf.mxu0
  %v3872 = vadd.f32 0.0, %v3871
  %v3873 = vpop.f32.mrf.mxu0
  %v3874 = vadd.f32 0.0, %v3873
  %3875 = vdwg.mxu0
  %v3876 = vadd.f32 %v3695, %v3872
  %v3877 = vadd.f32 %v3696, %v3874
  %s3878 = scalar_lea.vmem %s6, 14
  %v3879 = vld [vmem:[%s3878] sm:$0x3]
  %v3881 = vsel %vm2617, %v3879, 0
  %3883 = vmatprep.subr.mxu0 0.0
  %3884 = vmatpush1.msra.mxu0 0.0
  %3885 = vmatprep.subr.mxu0 0.0
  %3886 = vmatpush1.msra.mxu0 0.0
  %3887 = vmatprep.subr.mxu0 0.0
  %3888 = vmatpush1.msra.mxu0 0.0
  %3889 = vmatprep.subr.mxu0 0.0
  %3890 = vmatpush1.msra.mxu0 0.0
  %3891 = vmatprep.subr.mxu0 0.0
  %3892 = vmatpush1.msra.mxu0 0.0
  %3893 = vmatprep.subr.mxu0 0.0
  %3894 = vmatpush1.msra.mxu0 0.0
  %3895 = vmatprep.subr.mxu0 0.0
  %3896 = vmatpush1.msra.mxu0 0.0
  %3897 = vmatprep.subr.mxu0 0.0
  %3898 = vmatpush1.msra.mxu0 0.0
  %3899 = vmatprep.subr.mxu0 0.0
  %3900 = vmatpush1.msra.mxu0 0.0
  %3901 = vmatprep.subr.mxu0 0.0
  %3902 = vmatpush1.msra.mxu0 0.0
  %3903 = vmatprep.subr.mxu0 0.0
  %3904 = vmatpush1.msra.mxu0 0.0
  %3905 = vmatprep.subr.mxu0 0.0
  %3906 = vmatpush1.msra.mxu0 0.0
  %3907 = vmatprep.subr.mxu0 0.0
  %3908 = vmatpush1.msra.mxu0 %v2615
  %3909 = vmatprep.subr.mxu0 0.0
  %3910 = vmatpush1.msra.mxu0 %v2614
  %3911 = vmatprep.subr.mxu0 0.0
  %3912 = vmatpush1.msra.mxu0 %v2613
  %3913 = vmatprep.subr.mxu0 0.0
  %3914 = vmatpush1.msra.mxu0 %v2612
  %3915 = vmatprep.subr.mxu0 0.0
  %3916 = vmatpush2.msra.mxu0 0.0
  %3917 = vmatprep.subr.mxu0 0.0
  %3918 = vmatpush2.msra.mxu0 0.0
  %3919 = vmatprep.subr.mxu0 0.0
  %3920 = vmatpush2.msra.mxu0 0.0
  %3921 = vmatprep.subr.mxu0 0.0
  %3922 = vmatpush2.msra.mxu0 0.0
  %3923 = vmatprep.subr.mxu0 0.0
  %3924 = vmatpush2.msra.mxu0 0.0
  %3925 = vmatprep.subr.mxu0 0.0
  %3926 = vmatpush2.msra.mxu0 0.0
  %3927 = vmatprep.subr.mxu0 0.0
  %3928 = vmatpush2.msra.mxu0 0.0
  %3929 = vmatprep.subr.mxu0 0.0
  %3930 = vmatpush2.msra.mxu0 0.0
  %3931 = vmatprep.subr.mxu0 0.0
  %3932 = vmatpush2.msra.mxu0 0.0
  %3933 = vmatprep.subr.mxu0 0.0
  %3934 = vmatpush2.msra.mxu0 0.0
  %3935 = vmatprep.subr.mxu0 0.0
  %3936 = vmatpush2.msra.mxu0 0.0
  %3937 = vmatprep.subr.mxu0 0.0
  %3938 = vmatpush2.msra.mxu0 0.0
  %3939 = vmatprep.subr.mxu0 0.0
  %3940 = vmatpush2.msra.mxu0 0.0
  %3941 = vmatprep.subr.mxu0 0.0
  %3942 = vmatpush2.msra.mxu0 0.0
  %3943 = vmatprep.subr.mxu0 0.0
  %3944 = vmatpush2.msra.mxu0 0.0
  %3945 = vmatprep.subr.mxu0 0.0
  %3946 = vmatpush2.msra.mxu0 0.0
  %3947 = vmatprep.mubr.f32.mxu0 0.0
  %3948 = vmatmul.mubr.f32.gmra.mxu0 %v3881
  %v3949 = vpop.f32.mrf.mxu0
  %v3950 = vadd.f32 0.0, %v3949
  %v3951 = vpop.f32.mrf.mxu0
  %3952 = vdwg.mxu0
  %s3953 = scalar_lea.vmem %s7, 1792
  %v3954 = vld [vmem:[%s3953] sm:$0xff]
  %v3955 = vld [vmem:[%s3953 + $0x8] sm:$0xff]
  %v3956 = vld [vmem:[%s3953 + $0x10] sm:$0xff]
  %v3957 = vld [vmem:[%s3953 + $0x18] sm:$0xff]
  %v3958 = vld [vmem:[%s3953 + $0x20] sm:$0xff]
  %v3959 = vld [vmem:[%s3953 + $0x28] sm:$0xff]
  %v3960 = vld [vmem:[%s3953 + $0x30] sm:$0xff]
  %v3961 = vld [vmem:[%s3953 + $0x38] sm:$0xff]
  %v3962 = vld [vmem:[%s3953 + $0x40] sm:$0xff]
  %v3963 = vld [vmem:[%s3953 + $0x48] sm:$0xff]
  %v3964 = vld [vmem:[%s3953 + $0x50] sm:$0xff]
  %v3965 = vld [vmem:[%s3953 + $0x58] sm:$0xff]
  %v3966 = vld [vmem:[%s3953 + $0x60] sm:$0xff]
  %v3967 = vld [vmem:[%s3953 + $0x68] sm:$0xff]
  %v3968 = vld [vmem:[%s3953 + $0x70] sm:$0xff]
  %v3969 = vld [vmem:[%s3953 + $0x78] sm:$0xff]
  %v3970 = vld [vmem:[%s3953 + $0x80] sm:$0xff]
  %v3971 = vld [vmem:[%s3953 + $0x88] sm:$0xff]
  %v3972 = vld [vmem:[%s3953 + $0x90] sm:$0xff]
  %v3973 = vld [vmem:[%s3953 + $0x98] sm:$0xff]
  %v3974 = vld [vmem:[%s3953 + $0xa0] sm:$0xff]
  %v3975 = vld [vmem:[%s3953 + $0xa8] sm:$0xff]
  %v3976 = vld [vmem:[%s3953 + $0xb0] sm:$0xff]
  %v3977 = vld [vmem:[%s3953 + $0xb8] sm:$0xff]
  %v3978 = vld [vmem:[%s3953 + $0xc0] sm:$0xff]
  %v3979 = vld [vmem:[%s3953 + $0xc8] sm:$0xff]
  %v3980 = vld [vmem:[%s3953 + $0xd0] sm:$0xff]
  %v3981 = vld [vmem:[%s3953 + $0xd8] sm:$0xff]
  %v3982 = vld [vmem:[%s3953 + $0xe0] sm:$0xff]
  %v3983 = vld [vmem:[%s3953 + $0xe8] sm:$0xff]
  %v3984 = vld [vmem:[%s3953 + $0xf0] sm:$0xff]
  %v3985 = vld [vmem:[%s3953 + $0xf8] sm:$0xff]
  %3986 = vmatprep.subr.mxu0 %v3985
  %3987 = vmatpush1.msra.mxu0 %v3984
  %3988 = vmatprep.subr.mxu0 %v3983
  %3989 = vmatpush1.msra.mxu0 %v3982
  %3990 = vmatprep.subr.mxu0 %v3981
  %3991 = vmatpush1.msra.mxu0 %v3980
  %3992 = vmatprep.subr.mxu0 %v3979
  %3993 = vmatpush1.msra.mxu0 %v3978
  %3994 = vmatprep.subr.mxu0 %v3977
  %3995 = vmatpush1.msra.mxu0 %v3976
  %3996 = vmatprep.subr.mxu0 %v3975
  %3997 = vmatpush1.msra.mxu0 %v3974
  %3998 = vmatprep.subr.mxu0 %v3973
  %3999 = vmatpush1.msra.mxu0 %v3972
  %4000 = vmatprep.subr.mxu0 %v3971
  %4001 = vmatpush1.msra.mxu0 %v3970
  %4002 = vmatprep.subr.mxu0 %v3969
  %4003 = vmatpush1.msra.mxu0 %v3968
  %4004 = vmatprep.subr.mxu0 %v3967
  %4005 = vmatpush1.msra.mxu0 %v3966
  %4006 = vmatprep.subr.mxu0 %v3965
  %4007 = vmatpush1.msra.mxu0 %v3964
  %4008 = vmatprep.subr.mxu0 %v3963
  %4009 = vmatpush1.msra.mxu0 %v3962
  %4010 = vmatprep.subr.mxu0 %v3961
  %4011 = vmatpush1.msra.mxu0 %v3960
  %4012 = vmatprep.subr.mxu0 %v3959
  %4013 = vmatpush1.msra.mxu0 %v3958
  %4014 = vmatprep.subr.mxu0 %v3957
  %4015 = vmatpush1.msra.mxu0 %v3956
  %4016 = vmatprep.subr.mxu0 %v3955
  %4017 = vmatpush1.msra.mxu0 %v3954
  %4018 = vmatprep.subr.mxu0 0.0
  %4019 = vmatpush2.msra.mxu0 0.0
  %4020 = vmatprep.subr.mxu0 0.0
  %4021 = vmatpush2.msra.mxu0 0.0
  %4022 = vmatprep.subr.mxu0 0.0
  %4023 = vmatpush2.msra.mxu0 0.0
  %4024 = vmatprep.subr.mxu0 0.0
  %4025 = vmatpush2.msra.mxu0 0.0
  %4026 = vmatprep.subr.mxu0 0.0
  %4027 = vmatpush2.msra.mxu0 0.0
  %4028 = vmatprep.subr.mxu0 0.0
  %4029 = vmatpush2.msra.mxu0 0.0
  %4030 = vmatprep.subr.mxu0 0.0
  %4031 = vmatpush2.msra.mxu0 0.0
  %4032 = vmatprep.subr.mxu0 0.0
  %4033 = vmatpush2.msra.mxu0 0.0
  %4034 = vmatprep.subr.mxu0 0.0
  %4035 = vmatpush2.msra.mxu0 0.0
  %4036 = vmatprep.subr.mxu0 0.0
  %4037 = vmatpush2.msra.mxu0 0.0
  %4038 = vmatprep.subr.mxu0 0.0
  %4039 = vmatpush2.msra.mxu0 0.0
  %4040 = vmatprep.subr.mxu0 0.0
  %4041 = vmatpush2.msra.mxu0 0.0
  %4042 = vmatprep.subr.mxu0 0.0
  %4043 = vmatpush2.msra.mxu0 0.0
  %4044 = vmatprep.subr.mxu0 0.0
  %4045 = vmatpush2.msra.mxu0 0.0
  %4046 = vmatprep.subr.mxu0 0.0
  %4047 = vmatpush2.msra.mxu0 0.0
  %4048 = vmatprep.subr.mxu0 0.0
  %4049 = vmatpush2.msra.mxu0 0.0
  %4050 = vmatprep.mubr.f32.mxu0 0.0
  %4051 = vmatmul.mubr.f32.gmra.mxu0 %v3950
  %v4052 = vpop.f32.mrf.mxu0
  %v4053 = vadd.f32 0.0, %v4052
  %v4054 = vpop.f32.mrf.mxu0
  %v4055 = vadd.f32 0.0, %v4054
  %4056 = vdwg.mxu0
  %v4057 = vadd.f32 %v3876, %v4053
  %v4058 = vadd.f32 %v3877, %v4055
  %s4059 = scalar_lea.vmem %s6, 16
  %v4060 = vld [vmem:[%s4059] sm:$0x3]
  %v4062 = vsel %vm2617, %v4060, 0
  %4064 = vmatprep.subr.mxu0 0.0
  %4065 = vmatpush1.msra.mxu0 0.0
  %4066 = vmatprep.subr.mxu0 0.0
  %4067 = vmatpush1.msra.mxu0 0.0
  %4068 = vmatprep.subr.mxu0 0.0
  %4069 = vmatpush1.msra.mxu0 0.0
  %4070 = vmatprep.subr.mxu0 0.0
  %4071 = vmatpush1.msra.mxu0 0.0
  %4072 = vmatprep.subr.mxu0 0.0
  %4073 = vmatpush1.msra.mxu0 0.0
  %4074 = vmatprep.subr.mxu0 0.0
  %4075 = vmatpush1.msra.mxu0 0.0
  %4076 = vmatprep.subr.mxu0 0.0
  %4077 = vmatpush1.msra.mxu0 0.0
  %4078 = vmatprep.subr.mxu0 0.0
  %4079 = vmatpush1.msra.mxu0 0.0
  %4080 = vmatprep.subr.mxu0 0.0
  %4081 = vmatpush1.msra.mxu0 0.0
  %4082 = vmatprep.subr.mxu0 0.0
  %4083 = vmatpush1.msra.mxu0 0.0
  %4084 = vmatprep.subr.mxu0 0.0
  %4085 = vmatpush1.msra.mxu0 0.0
  %4086 = vmatprep.subr.mxu0 0.0
  %4087 = vmatpush1.msra.mxu0 0.0
  %4088 = vmatprep.subr.mxu0 0.0
  %4089 = vmatpush1.msra.mxu0 %v2615
  %4090 = vmatprep.subr.mxu0 0.0
  %4091 = vmatpush1.msra.mxu0 %v2614
  %4092 = vmatprep.subr.mxu0 0.0
  %4093 = vmatpush1.msra.mxu0 %v2613
  %4094 = vmatprep.subr.mxu0 0.0
  %4095 = vmatpush1.msra.mxu0 %v2612
  %4096 = vmatprep.subr.mxu0 0.0
  %4097 = vmatpush2.msra.mxu0 0.0
  %4098 = vmatprep.subr.mxu0 0.0
  %4099 = vmatpush2.msra.mxu0 0.0
  %4100 = vmatprep.subr.mxu0 0.0
  %4101 = vmatpush2.msra.mxu0 0.0
  %4102 = vmatprep.subr.mxu0 0.0
  %4103 = vmatpush2.msra.mxu0 0.0
  %4104 = vmatprep.subr.mxu0 0.0
  %4105 = vmatpush2.msra.mxu0 0.0
  %4106 = vmatprep.subr.mxu0 0.0
  %4107 = vmatpush2.msra.mxu0 0.0
  %4108 = vmatprep.subr.mxu0 0.0
  %4109 = vmatpush2.msra.mxu0 0.0
  %4110 = vmatprep.subr.mxu0 0.0
  %4111 = vmatpush2.msra.mxu0 0.0
  %4112 = vmatprep.subr.mxu0 0.0
  %4113 = vmatpush2.msra.mxu0 0.0
  %4114 = vmatprep.subr.mxu0 0.0
  %4115 = vmatpush2.msra.mxu0 0.0
  %4116 = vmatprep.subr.mxu0 0.0
  %4117 = vmatpush2.msra.mxu0 0.0
  %4118 = vmatprep.subr.mxu0 0.0
  %4119 = vmatpush2.msra.mxu0 0.0
  %4120 = vmatprep.subr.mxu0 0.0
  %4121 = vmatpush2.msra.mxu0 0.0
  %4122 = vmatprep.subr.mxu0 0.0
  %4123 = vmatpush2.msra.mxu0 0.0
  %4124 = vmatprep.subr.mxu0 0.0
  %4125 = vmatpush2.msra.mxu0 0.0
  %4126 = vmatprep.subr.mxu0 0.0
  %4127 = vmatpush2.msra.mxu0 0.0
  %4128 = vmatprep.mubr.f32.mxu0 0.0
  %4129 = vmatmul.mubr.f32.gmra.mxu0 %v4062
  %v4130 = vpop.f32.mrf.mxu0
  %v4131 = vadd.f32 0.0, %v4130
  %v4132 = vpop.f32.mrf.mxu0
  %4133 = vdwg.mxu0
  %s4134 = scalar_lea.vmem %s7, 2048
  %v4135 = vld [vmem:[%s4134] sm:$0xff]
  %v4136 = vld [vmem:[%s4134 + $0x8] sm:$0xff]
  %v4137 = vld [vmem:[%s4134 + $0x10] sm:$0xff]
  %v4138 = vld [vmem:[%s4134 + $0x18] sm:$0xff]
  %v4139 = vld [vmem:[%s4134 + $0x20] sm:$0xff]
  %v4140 = vld [vmem:[%s4134 + $0x28] sm:$0xff]
  %v4141 = vld [vmem:[%s4134 + $0x30] sm:$0xff]
  %v4142 = vld [vmem:[%s4134 + $0x38] sm:$0xff]
  %v4143 = vld [vmem:[%s4134 + $0x40] sm:$0xff]
  %v4144 = vld [vmem:[%s4134 + $0x48] sm:$0xff]
  %v4145 = vld [vmem:[%s4134 + $0x50] sm:$0xff]
  %v4146 = vld [vmem:[%s4134 + $0x58] sm:$0xff]
  %v4147 = vld [vmem:[%s4134 + $0x60] sm:$0xff]
  %v4148 = vld [vmem:[%s4134 + $0x68] sm:$0xff]
  %v4149 = vld [vmem:[%s4134 + $0x70] sm:$0xff]
  %v4150 = vld [vmem:[%s4134 + $0x78] sm:$0xff]
  %v4151 = vld [vmem:[%s4134 + $0x80] sm:$0xff]
  %v4152 = vld [vmem:[%s4134 + $0x88] sm:$0xff]
  %v4153 = vld [vmem:[%s4134 + $0x90] sm:$0xff]
  %v4154 = vld [vmem:[%s4134 + $0x98] sm:$0xff]
  %v4155 = vld [vmem:[%s4134 + $0xa0] sm:$0xff]
  %v4156 = vld [vmem:[%s4134 + $0xa8] sm:$0xff]
  %v4157 = vld [vmem:[%s4134 + $0xb0] sm:$0xff]
  %v4158 = vld [vmem:[%s4134 + $0xb8] sm:$0xff]
  %v4159 = vld [vmem:[%s4134 + $0xc0] sm:$0xff]
  %v4160 = vld [vmem:[%s4134 + $0xc8] sm:$0xff]
  %v4161 = vld [vmem:[%s4134 + $0xd0] sm:$0xff]
  %v4162 = vld [vmem:[%s4134 + $0xd8] sm:$0xff]
  %v4163 = vld [vmem:[%s4134 + $0xe0] sm:$0xff]
  %v4164 = vld [vmem:[%s4134 + $0xe8] sm:$0xff]
  %v4165 = vld [vmem:[%s4134 + $0xf0] sm:$0xff]
  %v4166 = vld [vmem:[%s4134 + $0xf8] sm:$0xff]
  %4167 = vmatprep.subr.mxu0 %v4166
  %4168 = vmatpush1.msra.mxu0 %v4165
  %4169 = vmatprep.subr.mxu0 %v4164
  %4170 = vmatpush1.msra.mxu0 %v4163
  %4171 = vmatprep.subr.mxu0 %v4162
  %4172 = vmatpush1.msra.mxu0 %v4161
  %4173 = vmatprep.subr.mxu0 %v4160
  %4174 = vmatpush1.msra.mxu0 %v4159
  %4175 = vmatprep.subr.mxu0 %v4158
  %4176 = vmatpush1.msra.mxu0 %v4157
  %4177 = vmatprep.subr.mxu0 %v4156
  %4178 = vmatpush1.msra.mxu0 %v4155
  %4179 = vmatprep.subr.mxu0 %v4154
  %4180 = vmatpush1.msra.mxu0 %v4153
  %4181 = vmatprep.subr.mxu0 %v4152
  %4182 = vmatpush1.msra.mxu0 %v4151
  %4183 = vmatprep.subr.mxu0 %v4150
  %4184 = vmatpush1.msra.mxu0 %v4149
  %4185 = vmatprep.subr.mxu0 %v4148
  %4186 = vmatpush1.msra.mxu0 %v4147
  %4187 = vmatprep.subr.mxu0 %v4146
  %4188 = vmatpush1.msra.mxu0 %v4145
  %4189 = vmatprep.subr.mxu0 %v4144
  %4190 = vmatpush1.msra.mxu0 %v4143
  %4191 = vmatprep.subr.mxu0 %v4142
  %4192 = vmatpush1.msra.mxu0 %v4141
  %4193 = vmatprep.subr.mxu0 %v4140
  %4194 = vmatpush1.msra.mxu0 %v4139
  %4195 = vmatprep.subr.mxu0 %v4138
  %4196 = vmatpush1.msra.mxu0 %v4137
  %4197 = vmatprep.subr.mxu0 %v4136
  %4198 = vmatpush1.msra.mxu0 %v4135
  %4199 = vmatprep.subr.mxu0 0.0
  %4200 = vmatpush2.msra.mxu0 0.0
  %4201 = vmatprep.subr.mxu0 0.0
  %4202 = vmatpush2.msra.mxu0 0.0
  %4203 = vmatprep.subr.mxu0 0.0
  %4204 = vmatpush2.msra.mxu0 0.0
  %4205 = vmatprep.subr.mxu0 0.0
  %4206 = vmatpush2.msra.mxu0 0.0
  %4207 = vmatprep.subr.mxu0 0.0
  %4208 = vmatpush2.msra.mxu0 0.0
  %4209 = vmatprep.subr.mxu0 0.0
  %4210 = vmatpush2.msra.mxu0 0.0
  %4211 = vmatprep.subr.mxu0 0.0
  %4212 = vmatpush2.msra.mxu0 0.0
  %4213 = vmatprep.subr.mxu0 0.0
  %4214 = vmatpush2.msra.mxu0 0.0
  %4215 = vmatprep.subr.mxu0 0.0
  %4216 = vmatpush2.msra.mxu0 0.0
  %4217 = vmatprep.subr.mxu0 0.0
  %4218 = vmatpush2.msra.mxu0 0.0
  %4219 = vmatprep.subr.mxu0 0.0
  %4220 = vmatpush2.msra.mxu0 0.0
  %4221 = vmatprep.subr.mxu0 0.0
  %4222 = vmatpush2.msra.mxu0 0.0
  %4223 = vmatprep.subr.mxu0 0.0
  %4224 = vmatpush2.msra.mxu0 0.0
  %4225 = vmatprep.subr.mxu0 0.0
  %4226 = vmatpush2.msra.mxu0 0.0
  %4227 = vmatprep.subr.mxu0 0.0
  %4228 = vmatpush2.msra.mxu0 0.0
  %4229 = vmatprep.subr.mxu0 0.0
  %4230 = vmatpush2.msra.mxu0 0.0
  %4231 = vmatprep.mubr.f32.mxu0 0.0
  %4232 = vmatmul.mubr.f32.gmra.mxu0 %v4131
  %v4233 = vpop.f32.mrf.mxu0
  %v4234 = vadd.f32 0.0, %v4233
  %v4235 = vpop.f32.mrf.mxu0
  %v4236 = vadd.f32 0.0, %v4235
  %4237 = vdwg.mxu0
  %v4238 = vadd.f32 %v4057, %v4234
  %v4239 = vadd.f32 %v4058, %v4236
  %s4240 = scalar_lea.vmem %s6, 18
  %v4241 = vld [vmem:[%s4240] sm:$0x3]
  %v4243 = vsel %vm2617, %v4241, 0
  %4245 = vmatprep.subr.mxu0 0.0
  %4246 = vmatpush1.msra.mxu0 0.0
  %4247 = vmatprep.subr.mxu0 0.0
  %4248 = vmatpush1.msra.mxu0 0.0
  %4249 = vmatprep.subr.mxu0 0.0
  %4250 = vmatpush1.msra.mxu0 0.0
  %4251 = vmatprep.subr.mxu0 0.0
  %4252 = vmatpush1.msra.mxu0 0.0
  %4253 = vmatprep.subr.mxu0 0.0
  %4254 = vmatpush1.msra.mxu0 0.0
  %4255 = vmatprep.subr.mxu0 0.0
  %4256 = vmatpush1.msra.mxu0 0.0
  %4257 = vmatprep.subr.mxu0 0.0
  %4258 = vmatpush1.msra.mxu0 0.0
  %4259 = vmatprep.subr.mxu0 0.0
  %4260 = vmatpush1.msra.mxu0 0.0
  %4261 = vmatprep.subr.mxu0 0.0
  %4262 = vmatpush1.msra.mxu0 0.0
  %4263 = vmatprep.subr.mxu0 0.0
  %4264 = vmatpush1.msra.mxu0 0.0
  %4265 = vmatprep.subr.mxu0 0.0
  %4266 = vmatpush1.msra.mxu0 0.0
  %4267 = vmatprep.subr.mxu0 0.0
  %4268 = vmatpush1.msra.mxu0 0.0
  %4269 = vmatprep.subr.mxu0 0.0
  %4270 = vmatpush1.msra.mxu0 %v2615
  %4271 = vmatprep.subr.mxu0 0.0
  %4272 = vmatpush1.msra.mxu0 %v2614
  %4273 = vmatprep.subr.mxu0 0.0
  %4274 = vmatpush1.msra.mxu0 %v2613
  %4275 = vmatprep.subr.mxu0 0.0
  %4276 = vmatpush1.msra.mxu0 %v2612
  %4277 = vmatprep.subr.mxu0 0.0
  %4278 = vmatpush2.msra.mxu0 0.0
  %4279 = vmatprep.subr.mxu0 0.0
  %4280 = vmatpush2.msra.mxu0 0.0
  %4281 = vmatprep.subr.mxu0 0.0
  %4282 = vmatpush2.msra.mxu0 0.0
  %4283 = vmatprep.subr.mxu0 0.0
  %4284 = vmatpush2.msra.mxu0 0.0
  %4285 = vmatprep.subr.mxu0 0.0
  %4286 = vmatpush2.msra.mxu0 0.0
  %4287 = vmatprep.subr.mxu0 0.0
  %4288 = vmatpush2.msra.mxu0 0.0
  %4289 = vmatprep.subr.mxu0 0.0
  %4290 = vmatpush2.msra.mxu0 0.0
  %4291 = vmatprep.subr.mxu0 0.0
  %4292 = vmatpush2.msra.mxu0 0.0
  %4293 = vmatprep.subr.mxu0 0.0
  %4294 = vmatpush2.msra.mxu0 0.0
  %4295 = vmatprep.subr.mxu0 0.0
  %4296 = vmatpush2.msra.mxu0 0.0
  %4297 = vmatprep.subr.mxu0 0.0
  %4298 = vmatpush2.msra.mxu0 0.0
  %4299 = vmatprep.subr.mxu0 0.0
  %4300 = vmatpush2.msra.mxu0 0.0
  %4301 = vmatprep.subr.mxu0 0.0
  %4302 = vmatpush2.msra.mxu0 0.0
  %4303 = vmatprep.subr.mxu0 0.0
  %4304 = vmatpush2.msra.mxu0 0.0
  %4305 = vmatprep.subr.mxu0 0.0
  %4306 = vmatpush2.msra.mxu0 0.0
  %4307 = vmatprep.subr.mxu0 0.0
  %4308 = vmatpush2.msra.mxu0 0.0
  %4309 = vmatprep.mubr.f32.mxu0 0.0
  %4310 = vmatmul.mubr.f32.gmra.mxu0 %v4243
  %v4311 = vpop.f32.mrf.mxu0
  %v4312 = vadd.f32 0.0, %v4311
  %v4313 = vpop.f32.mrf.mxu0
  %4314 = vdwg.mxu0
  %s4315 = scalar_lea.vmem %s7, 2304
  %v4316 = vld [vmem:[%s4315] sm:$0xff]
  %v4317 = vld [vmem:[%s4315 + $0x8] sm:$0xff]
  %v4318 = vld [vmem:[%s4315 + $0x10] sm:$0xff]
  %v4319 = vld [vmem:[%s4315 + $0x18] sm:$0xff]
  %v4320 = vld [vmem:[%s4315 + $0x20] sm:$0xff]
  %v4321 = vld [vmem:[%s4315 + $0x28] sm:$0xff]
  %v4322 = vld [vmem:[%s4315 + $0x30] sm:$0xff]
  %v4323 = vld [vmem:[%s4315 + $0x38] sm:$0xff]
  %v4324 = vld [vmem:[%s4315 + $0x40] sm:$0xff]
  %v4325 = vld [vmem:[%s4315 + $0x48] sm:$0xff]
  %v4326 = vld [vmem:[%s4315 + $0x50] sm:$0xff]
  %v4327 = vld [vmem:[%s4315 + $0x58] sm:$0xff]
  %v4328 = vld [vmem:[%s4315 + $0x60] sm:$0xff]
  %v4329 = vld [vmem:[%s4315 + $0x68] sm:$0xff]
  %v4330 = vld [vmem:[%s4315 + $0x70] sm:$0xff]
  %v4331 = vld [vmem:[%s4315 + $0x78] sm:$0xff]
  %v4332 = vld [vmem:[%s4315 + $0x80] sm:$0xff]
  %v4333 = vld [vmem:[%s4315 + $0x88] sm:$0xff]
  %v4334 = vld [vmem:[%s4315 + $0x90] sm:$0xff]
  %v4335 = vld [vmem:[%s4315 + $0x98] sm:$0xff]
  %v4336 = vld [vmem:[%s4315 + $0xa0] sm:$0xff]
  %v4337 = vld [vmem:[%s4315 + $0xa8] sm:$0xff]
  %v4338 = vld [vmem:[%s4315 + $0xb0] sm:$0xff]
  %v4339 = vld [vmem:[%s4315 + $0xb8] sm:$0xff]
  %v4340 = vld [vmem:[%s4315 + $0xc0] sm:$0xff]
  %v4341 = vld [vmem:[%s4315 + $0xc8] sm:$0xff]
  %v4342 = vld [vmem:[%s4315 + $0xd0] sm:$0xff]
  %v4343 = vld [vmem:[%s4315 + $0xd8] sm:$0xff]
  %v4344 = vld [vmem:[%s4315 + $0xe0] sm:$0xff]
  %v4345 = vld [vmem:[%s4315 + $0xe8] sm:$0xff]
  %v4346 = vld [vmem:[%s4315 + $0xf0] sm:$0xff]
  %v4347 = vld [vmem:[%s4315 + $0xf8] sm:$0xff]
  %4348 = vmatprep.subr.mxu0 %v4347
  %4349 = vmatpush1.msra.mxu0 %v4346
  %4350 = vmatprep.subr.mxu0 %v4345
  %4351 = vmatpush1.msra.mxu0 %v4344
  %4352 = vmatprep.subr.mxu0 %v4343
  %4353 = vmatpush1.msra.mxu0 %v4342
  %4354 = vmatprep.subr.mxu0 %v4341
  %4355 = vmatpush1.msra.mxu0 %v4340
  %4356 = vmatprep.subr.mxu0 %v4339
  %4357 = vmatpush1.msra.mxu0 %v4338
  %4358 = vmatprep.subr.mxu0 %v4337
  %4359 = vmatpush1.msra.mxu0 %v4336
  %4360 = vmatprep.subr.mxu0 %v4335
  %4361 = vmatpush1.msra.mxu0 %v4334
  %4362 = vmatprep.subr.mxu0 %v4333
  %4363 = vmatpush1.msra.mxu0 %v4332
  %4364 = vmatprep.subr.mxu0 %v4331
  %4365 = vmatpush1.msra.mxu0 %v4330
  %4366 = vmatprep.subr.mxu0 %v4329
  %4367 = vmatpush1.msra.mxu0 %v4328
  %4368 = vmatprep.subr.mxu0 %v4327
  %4369 = vmatpush1.msra.mxu0 %v4326
  %4370 = vmatprep.subr.mxu0 %v4325
  %4371 = vmatpush1.msra.mxu0 %v4324
  %4372 = vmatprep.subr.mxu0 %v4323
  %4373 = vmatpush1.msra.mxu0 %v4322
  %4374 = vmatprep.subr.mxu0 %v4321
  %4375 = vmatpush1.msra.mxu0 %v4320
  %4376 = vmatprep.subr.mxu0 %v4319
  %4377 = vmatpush1.msra.mxu0 %v4318
  %4378 = vmatprep.subr.mxu0 %v4317
  %4379 = vmatpush1.msra.mxu0 %v4316
  %4380 = vmatprep.subr.mxu0 0.0
  %4381 = vmatpush2.msra.mxu0 0.0
  %4382 = vmatprep.subr.mxu0 0.0
  %4383 = vmatpush2.msra.mxu0 0.0
  %4384 = vmatprep.subr.mxu0 0.0
  %4385 = vmatpush2.msra.mxu0 0.0
  %4386 = vmatprep.subr.mxu0 0.0
  %4387 = vmatpush2.msra.mxu0 0.0
  %4388 = vmatprep.subr.mxu0 0.0
  %4389 = vmatpush2.msra.mxu0 0.0
  %4390 = vmatprep.subr.mxu0 0.0
  %4391 = vmatpush2.msra.mxu0 0.0
  %4392 = vmatprep.subr.mxu0 0.0
  %4393 = vmatpush2.msra.mxu0 0.0
  %4394 = vmatprep.subr.mxu0 0.0
  %4395 = vmatpush2.msra.mxu0 0.0
  %4396 = vmatprep.subr.mxu0 0.0
  %4397 = vmatpush2.msra.mxu0 0.0
  %4398 = vmatprep.subr.mxu0 0.0
  %4399 = vmatpush2.msra.mxu0 0.0
  %4400 = vmatprep.subr.mxu0 0.0
  %4401 = vmatpush2.msra.mxu0 0.0
  %4402 = vmatprep.subr.mxu0 0.0
  %4403 = vmatpush2.msra.mxu0 0.0
  %4404 = vmatprep.subr.mxu0 0.0
  %4405 = vmatpush2.msra.mxu0 0.0
  %4406 = vmatprep.subr.mxu0 0.0
  %4407 = vmatpush2.msra.mxu0 0.0
  %4408 = vmatprep.subr.mxu0 0.0
  %4409 = vmatpush2.msra.mxu0 0.0
  %4410 = vmatprep.subr.mxu0 0.0
  %4411 = vmatpush2.msra.mxu0 0.0
  %4412 = vmatprep.mubr.f32.mxu0 0.0
  %4413 = vmatmul.mubr.f32.gmra.mxu0 %v4312
  %v4414 = vpop.f32.mrf.mxu0
  %v4415 = vadd.f32 0.0, %v4414
  %v4416 = vpop.f32.mrf.mxu0
  %v4417 = vadd.f32 0.0, %v4416
  %4418 = vdwg.mxu0
  %v4419 = vadd.f32 %v4238, %v4415
  %v4420 = vadd.f32 %v4239, %v4417
  %s4421 = scalar_lea.vmem %s6, 20
  %v4422 = vld [vmem:[%s4421] sm:$0x3]
  %v4424 = vsel %vm2617, %v4422, 0
  %4426 = vmatprep.subr.mxu0 0.0
  %4427 = vmatpush1.msra.mxu0 0.0
  %4428 = vmatprep.subr.mxu0 0.0
  %4429 = vmatpush1.msra.mxu0 0.0
  %4430 = vmatprep.subr.mxu0 0.0
  %4431 = vmatpush1.msra.mxu0 0.0
  %4432 = vmatprep.subr.mxu0 0.0
  %4433 = vmatpush1.msra.mxu0 0.0
  %4434 = vmatprep.subr.mxu0 0.0
  %4435 = vmatpush1.msra.mxu0 0.0
  %4436 = vmatprep.subr.mxu0 0.0
  %4437 = vmatpush1.msra.mxu0 0.0
  %4438 = vmatprep.subr.mxu0 0.0
  %4439 = vmatpush1.msra.mxu0 0.0
  %4440 = vmatprep.subr.mxu0 0.0
  %4441 = vmatpush1.msra.mxu0 0.0
  %4442 = vmatprep.subr.mxu0 0.0
  %4443 = vmatpush1.msra.mxu0 0.0
  %4444 = vmatprep.subr.mxu0 0.0
  %4445 = vmatpush1.msra.mxu0 0.0
  %4446 = vmatprep.subr.mxu0 0.0
  %4447 = vmatpush1.msra.mxu0 0.0
  %4448 = vmatprep.subr.mxu0 0.0
  %4449 = vmatpush1.msra.mxu0 0.0
  %4450 = vmatprep.subr.mxu0 0.0
  %4451 = vmatpush1.msra.mxu0 %v2615
  %4452 = vmatprep.subr.mxu0 0.0
  %4453 = vmatpush1.msra.mxu0 %v2614
  %4454 = vmatprep.subr.mxu0 0.0
  %4455 = vmatpush1.msra.mxu0 %v2613
  %4456 = vmatprep.subr.mxu0 0.0
  %4457 = vmatpush1.msra.mxu0 %v2612
  %4458 = vmatprep.subr.mxu0 0.0
  %4459 = vmatpush2.msra.mxu0 0.0
  %4460 = vmatprep.subr.mxu0 0.0
  %4461 = vmatpush2.msra.mxu0 0.0
  %4462 = vmatprep.subr.mxu0 0.0
  %4463 = vmatpush2.msra.mxu0 0.0
  %4464 = vmatprep.subr.mxu0 0.0
  %4465 = vmatpush2.msra.mxu0 0.0
  %4466 = vmatprep.subr.mxu0 0.0
  %4467 = vmatpush2.msra.mxu0 0.0
  %4468 = vmatprep.subr.mxu0 0.0
  %4469 = vmatpush2.msra.mxu0 0.0
  %4470 = vmatprep.subr.mxu0 0.0
  %4471 = vmatpush2.msra.mxu0 0.0
  %4472 = vmatprep.subr.mxu0 0.0
  %4473 = vmatpush2.msra.mxu0 0.0
  %4474 = vmatprep.subr.mxu0 0.0
  %4475 = vmatpush2.msra.mxu0 0.0
  %4476 = vmatprep.subr.mxu0 0.0
  %4477 = vmatpush2.msra.mxu0 0.0
  %4478 = vmatprep.subr.mxu0 0.0
  %4479 = vmatpush2.msra.mxu0 0.0
  %4480 = vmatprep.subr.mxu0 0.0
  %4481 = vmatpush2.msra.mxu0 0.0
  %4482 = vmatprep.subr.mxu0 0.0
  %4483 = vmatpush2.msra.mxu0 0.0
  %4484 = vmatprep.subr.mxu0 0.0
  %4485 = vmatpush2.msra.mxu0 0.0
  %4486 = vmatprep.subr.mxu0 0.0
  %4487 = vmatpush2.msra.mxu0 0.0
  %4488 = vmatprep.subr.mxu0 0.0
  %4489 = vmatpush2.msra.mxu0 0.0
  %4490 = vmatprep.mubr.f32.mxu0 0.0
  %4491 = vmatmul.mubr.f32.gmra.mxu0 %v4424
  %v4492 = vpop.f32.mrf.mxu0
  %v4493 = vadd.f32 0.0, %v4492
  %v4494 = vpop.f32.mrf.mxu0
  %4495 = vdwg.mxu0
  %s4496 = scalar_lea.vmem %s7, 2560
  %v4497 = vld [vmem:[%s4496] sm:$0xff]
  %v4498 = vld [vmem:[%s4496 + $0x8] sm:$0xff]
  %v4499 = vld [vmem:[%s4496 + $0x10] sm:$0xff]
  %v4500 = vld [vmem:[%s4496 + $0x18] sm:$0xff]
  %v4501 = vld [vmem:[%s4496 + $0x20] sm:$0xff]
  %v4502 = vld [vmem:[%s4496 + $0x28] sm:$0xff]
  %v4503 = vld [vmem:[%s4496 + $0x30] sm:$0xff]
  %v4504 = vld [vmem:[%s4496 + $0x38] sm:$0xff]
  %v4505 = vld [vmem:[%s4496 + $0x40] sm:$0xff]
  %v4506 = vld [vmem:[%s4496 + $0x48] sm:$0xff]
  %v4507 = vld [vmem:[%s4496 + $0x50] sm:$0xff]
  %v4508 = vld [vmem:[%s4496 + $0x58] sm:$0xff]
  %v4509 = vld [vmem:[%s4496 + $0x60] sm:$0xff]
  %v4510 = vld [vmem:[%s4496 + $0x68] sm:$0xff]
  %v4511 = vld [vmem:[%s4496 + $0x70] sm:$0xff]
  %v4512 = vld [vmem:[%s4496 + $0x78] sm:$0xff]
  %v4513 = vld [vmem:[%s4496 + $0x80] sm:$0xff]
  %v4514 = vld [vmem:[%s4496 + $0x88] sm:$0xff]
  %v4515 = vld [vmem:[%s4496 + $0x90] sm:$0xff]
  %v4516 = vld [vmem:[%s4496 + $0x98] sm:$0xff]
  %v4517 = vld [vmem:[%s4496 + $0xa0] sm:$0xff]
  %v4518 = vld [vmem:[%s4496 + $0xa8] sm:$0xff]
  %v4519 = vld [vmem:[%s4496 + $0xb0] sm:$0xff]
  %v4520 = vld [vmem:[%s4496 + $0xb8] sm:$0xff]
  %v4521 = vld [vmem:[%s4496 + $0xc0] sm:$0xff]
  %v4522 = vld [vmem:[%s4496 + $0xc8] sm:$0xff]
  %v4523 = vld [vmem:[%s4496 + $0xd0] sm:$0xff]
  %v4524 = vld [vmem:[%s4496 + $0xd8] sm:$0xff]
  %v4525 = vld [vmem:[%s4496 + $0xe0] sm:$0xff]
  %v4526 = vld [vmem:[%s4496 + $0xe8] sm:$0xff]
  %v4527 = vld [vmem:[%s4496 + $0xf0] sm:$0xff]
  %v4528 = vld [vmem:[%s4496 + $0xf8] sm:$0xff]
  %4529 = vmatprep.subr.mxu0 %v4528
  %4530 = vmatpush1.msra.mxu0 %v4527
  %4531 = vmatprep.subr.mxu0 %v4526
  %4532 = vmatpush1.msra.mxu0 %v4525
  %4533 = vmatprep.subr.mxu0 %v4524
  %4534 = vmatpush1.msra.mxu0 %v4523
  %4535 = vmatprep.subr.mxu0 %v4522
  %4536 = vmatpush1.msra.mxu0 %v4521
  %4537 = vmatprep.subr.mxu0 %v4520
  %4538 = vmatpush1.msra.mxu0 %v4519
  %4539 = vmatprep.subr.mxu0 %v4518
  %4540 = vmatpush1.msra.mxu0 %v4517
  %4541 = vmatprep.subr.mxu0 %v4516
  %4542 = vmatpush1.msra.mxu0 %v4515
  %4543 = vmatprep.subr.mxu0 %v4514
  %4544 = vmatpush1.msra.mxu0 %v4513
  %4545 = vmatprep.subr.mxu0 %v4512
  %4546 = vmatpush1.msra.mxu0 %v4511
  %4547 = vmatprep.subr.mxu0 %v4510
  %4548 = vmatpush1.msra.mxu0 %v4509
  %4549 = vmatprep.subr.mxu0 %v4508
  %4550 = vmatpush1.msra.mxu0 %v4507
  %4551 = vmatprep.subr.mxu0 %v4506
  %4552 = vmatpush1.msra.mxu0 %v4505
  %4553 = vmatprep.subr.mxu0 %v4504
  %4554 = vmatpush1.msra.mxu0 %v4503
  %4555 = vmatprep.subr.mxu0 %v4502
  %4556 = vmatpush1.msra.mxu0 %v4501
  %4557 = vmatprep.subr.mxu0 %v4500
  %4558 = vmatpush1.msra.mxu0 %v4499
  %4559 = vmatprep.subr.mxu0 %v4498
  %4560 = vmatpush1.msra.mxu0 %v4497
  %4561 = vmatprep.subr.mxu0 0.0
  %4562 = vmatpush2.msra.mxu0 0.0
  %4563 = vmatprep.subr.mxu0 0.0
  %4564 = vmatpush2.msra.mxu0 0.0
  %4565 = vmatprep.subr.mxu0 0.0
  %4566 = vmatpush2.msra.mxu0 0.0
  %4567 = vmatprep.subr.mxu0 0.0
  %4568 = vmatpush2.msra.mxu0 0.0
  %4569 = vmatprep.subr.mxu0 0.0
  %4570 = vmatpush2.msra.mxu0 0.0
  %4571 = vmatprep.subr.mxu0 0.0
  %4572 = vmatpush2.msra.mxu0 0.0
  %4573 = vmatprep.subr.mxu0 0.0
  %4574 = vmatpush2.msra.mxu0 0.0
  %4575 = vmatprep.subr.mxu0 0.0
  %4576 = vmatpush2.msra.mxu0 0.0
  %4577 = vmatprep.subr.mxu0 0.0
  %4578 = vmatpush2.msra.mxu0 0.0
  %4579 = vmatprep.subr.mxu0 0.0
  %4580 = vmatpush2.msra.mxu0 0.0
  %4581 = vmatprep.subr.mxu0 0.0
  %4582 = vmatpush2.msra.mxu0 0.0
  %4583 = vmatprep.subr.mxu0 0.0
  %4584 = vmatpush2.msra.mxu0 0.0
  %4585 = vmatprep.subr.mxu0 0.0
  %4586 = vmatpush2.msra.mxu0 0.0
  %4587 = vmatprep.subr.mxu0 0.0
  %4588 = vmatpush2.msra.mxu0 0.0
  %4589 = vmatprep.subr.mxu0 0.0
  %4590 = vmatpush2.msra.mxu0 0.0
  %4591 = vmatprep.subr.mxu0 0.0
  %4592 = vmatpush2.msra.mxu0 0.0
  %4593 = vmatprep.mubr.f32.mxu0 0.0
  %4594 = vmatmul.mubr.f32.gmra.mxu0 %v4493
  %v4595 = vpop.f32.mrf.mxu0
  %v4596 = vadd.f32 0.0, %v4595
  %v4597 = vpop.f32.mrf.mxu0
  %v4598 = vadd.f32 0.0, %v4597
  %4599 = vdwg.mxu0
  %v4600 = vadd.f32 %v4419, %v4596
  %v4601 = vadd.f32 %v4420, %v4598
  %s4602 = scalar_lea.vmem %s6, 22
  %v4603 = vld [vmem:[%s4602] sm:$0x3]
  %v4605 = vsel %vm2617, %v4603, 0
  %4607 = vmatprep.subr.mxu0 0.0
  %4608 = vmatpush1.msra.mxu0 0.0
  %4609 = vmatprep.subr.mxu0 0.0
  %4610 = vmatpush1.msra.mxu0 0.0
  %4611 = vmatprep.subr.mxu0 0.0
  %4612 = vmatpush1.msra.mxu0 0.0
  %4613 = vmatprep.subr.mxu0 0.0
  %4614 = vmatpush1.msra.mxu0 0.0
  %4615 = vmatprep.subr.mxu0 0.0
  %4616 = vmatpush1.msra.mxu0 0.0
  %4617 = vmatprep.subr.mxu0 0.0
  %4618 = vmatpush1.msra.mxu0 0.0
  %4619 = vmatprep.subr.mxu0 0.0
  %4620 = vmatpush1.msra.mxu0 0.0
  %4621 = vmatprep.subr.mxu0 0.0
  %4622 = vmatpush1.msra.mxu0 0.0
  %4623 = vmatprep.subr.mxu0 0.0
  %4624 = vmatpush1.msra.mxu0 0.0
  %4625 = vmatprep.subr.mxu0 0.0
  %4626 = vmatpush1.msra.mxu0 0.0
  %4627 = vmatprep.subr.mxu0 0.0
  %4628 = vmatpush1.msra.mxu0 0.0
  %4629 = vmatprep.subr.mxu0 0.0
  %4630 = vmatpush1.msra.mxu0 0.0
  %4631 = vmatprep.subr.mxu0 0.0
  %4632 = vmatpush1.msra.mxu0 %v2615
  %4633 = vmatprep.subr.mxu0 0.0
  %4634 = vmatpush1.msra.mxu0 %v2614
  %4635 = vmatprep.subr.mxu0 0.0
  %4636 = vmatpush1.msra.mxu0 %v2613
  %4637 = vmatprep.subr.mxu0 0.0
  %4638 = vmatpush1.msra.mxu0 %v2612
  %4639 = vmatprep.subr.mxu0 0.0
  %4640 = vmatpush2.msra.mxu0 0.0
  %4641 = vmatprep.subr.mxu0 0.0
  %4642 = vmatpush2.msra.mxu0 0.0
  %4643 = vmatprep.subr.mxu0 0.0
  %4644 = vmatpush2.msra.mxu0 0.0
  %4645 = vmatprep.subr.mxu0 0.0
  %4646 = vmatpush2.msra.mxu0 0.0
  %4647 = vmatprep.subr.mxu0 0.0
  %4648 = vmatpush2.msra.mxu0 0.0
  %4649 = vmatprep.subr.mxu0 0.0
  %4650 = vmatpush2.msra.mxu0 0.0
  %4651 = vmatprep.subr.mxu0 0.0
  %4652 = vmatpush2.msra.mxu0 0.0
  %4653 = vmatprep.subr.mxu0 0.0
  %4654 = vmatpush2.msra.mxu0 0.0
  %4655 = vmatprep.subr.mxu0 0.0
  %4656 = vmatpush2.msra.mxu0 0.0
  %4657 = vmatprep.subr.mxu0 0.0
  %4658 = vmatpush2.msra.mxu0 0.0
  %4659 = vmatprep.subr.mxu0 0.0
  %4660 = vmatpush2.msra.mxu0 0.0
  %4661 = vmatprep.subr.mxu0 0.0
  %4662 = vmatpush2.msra.mxu0 0.0
  %4663 = vmatprep.subr.mxu0 0.0
  %4664 = vmatpush2.msra.mxu0 0.0
  %4665 = vmatprep.subr.mxu0 0.0
  %4666 = vmatpush2.msra.mxu0 0.0
  %4667 = vmatprep.subr.mxu0 0.0
  %4668 = vmatpush2.msra.mxu0 0.0
  %4669 = vmatprep.subr.mxu0 0.0
  %4670 = vmatpush2.msra.mxu0 0.0
  %4671 = vmatprep.mubr.f32.mxu0 0.0
  %4672 = vmatmul.mubr.f32.gmra.mxu0 %v4605
  %v4673 = vpop.f32.mrf.mxu0
  %v4674 = vadd.f32 0.0, %v4673
  %v4675 = vpop.f32.mrf.mxu0
  %4676 = vdwg.mxu0
  %s4677 = scalar_lea.vmem %s7, 2816
  %v4678 = vld [vmem:[%s4677] sm:$0xff]
  %v4679 = vld [vmem:[%s4677 + $0x8] sm:$0xff]
  %v4680 = vld [vmem:[%s4677 + $0x10] sm:$0xff]
  %v4681 = vld [vmem:[%s4677 + $0x18] sm:$0xff]
  %v4682 = vld [vmem:[%s4677 + $0x20] sm:$0xff]
  %v4683 = vld [vmem:[%s4677 + $0x28] sm:$0xff]
  %v4684 = vld [vmem:[%s4677 + $0x30] sm:$0xff]
  %v4685 = vld [vmem:[%s4677 + $0x38] sm:$0xff]
  %v4686 = vld [vmem:[%s4677 + $0x40] sm:$0xff]
  %v4687 = vld [vmem:[%s4677 + $0x48] sm:$0xff]
  %v4688 = vld [vmem:[%s4677 + $0x50] sm:$0xff]
  %v4689 = vld [vmem:[%s4677 + $0x58] sm:$0xff]
  %v4690 = vld [vmem:[%s4677 + $0x60] sm:$0xff]
  %v4691 = vld [vmem:[%s4677 + $0x68] sm:$0xff]
  %v4692 = vld [vmem:[%s4677 + $0x70] sm:$0xff]
  %v4693 = vld [vmem:[%s4677 + $0x78] sm:$0xff]
  %v4694 = vld [vmem:[%s4677 + $0x80] sm:$0xff]
  %v4695 = vld [vmem:[%s4677 + $0x88] sm:$0xff]
  %v4696 = vld [vmem:[%s4677 + $0x90] sm:$0xff]
  %v4697 = vld [vmem:[%s4677 + $0x98] sm:$0xff]
  %v4698 = vld [vmem:[%s4677 + $0xa0] sm:$0xff]
  %v4699 = vld [vmem:[%s4677 + $0xa8] sm:$0xff]
  %v4700 = vld [vmem:[%s4677 + $0xb0] sm:$0xff]
  %v4701 = vld [vmem:[%s4677 + $0xb8] sm:$0xff]
  %v4702 = vld [vmem:[%s4677 + $0xc0] sm:$0xff]
  %v4703 = vld [vmem:[%s4677 + $0xc8] sm:$0xff]
  %v4704 = vld [vmem:[%s4677 + $0xd0] sm:$0xff]
  %v4705 = vld [vmem:[%s4677 + $0xd8] sm:$0xff]
  %v4706 = vld [vmem:[%s4677 + $0xe0] sm:$0xff]
  %v4707 = vld [vmem:[%s4677 + $0xe8] sm:$0xff]
  %v4708 = vld [vmem:[%s4677 + $0xf0] sm:$0xff]
  %v4709 = vld [vmem:[%s4677 + $0xf8] sm:$0xff]
  %4710 = vmatprep.subr.mxu0 %v4709
  %4711 = vmatpush1.msra.mxu0 %v4708
  %4712 = vmatprep.subr.mxu0 %v4707
  %4713 = vmatpush1.msra.mxu0 %v4706
  %4714 = vmatprep.subr.mxu0 %v4705
  %4715 = vmatpush1.msra.mxu0 %v4704
  %4716 = vmatprep.subr.mxu0 %v4703
  %4717 = vmatpush1.msra.mxu0 %v4702
  %4718 = vmatprep.subr.mxu0 %v4701
  %4719 = vmatpush1.msra.mxu0 %v4700
  %4720 = vmatprep.subr.mxu0 %v4699
  %4721 = vmatpush1.msra.mxu0 %v4698
  %4722 = vmatprep.subr.mxu0 %v4697
  %4723 = vmatpush1.msra.mxu0 %v4696
  %4724 = vmatprep.subr.mxu0 %v4695
  %4725 = vmatpush1.msra.mxu0 %v4694
  %4726 = vmatprep.subr.mxu0 %v4693
  %4727 = vmatpush1.msra.mxu0 %v4692
  %4728 = vmatprep.subr.mxu0 %v4691
  %4729 = vmatpush1.msra.mxu0 %v4690
  %4730 = vmatprep.subr.mxu0 %v4689
  %4731 = vmatpush1.msra.mxu0 %v4688
  %4732 = vmatprep.subr.mxu0 %v4687
  %4733 = vmatpush1.msra.mxu0 %v4686
  %4734 = vmatprep.subr.mxu0 %v4685
  %4735 = vmatpush1.msra.mxu0 %v4684
  %4736 = vmatprep.subr.mxu0 %v4683
  %4737 = vmatpush1.msra.mxu0 %v4682
  %4738 = vmatprep.subr.mxu0 %v4681
  %4739 = vmatpush1.msra.mxu0 %v4680
  %4740 = vmatprep.subr.mxu0 %v4679
  %4741 = vmatpush1.msra.mxu0 %v4678
  %4742 = vmatprep.subr.mxu0 0.0
  %4743 = vmatpush2.msra.mxu0 0.0
  %4744 = vmatprep.subr.mxu0 0.0
  %4745 = vmatpush2.msra.mxu0 0.0
  %4746 = vmatprep.subr.mxu0 0.0
  %4747 = vmatpush2.msra.mxu0 0.0
  %4748 = vmatprep.subr.mxu0 0.0
  %4749 = vmatpush2.msra.mxu0 0.0
  %4750 = vmatprep.subr.mxu0 0.0
  %4751 = vmatpush2.msra.mxu0 0.0
  %4752 = vmatprep.subr.mxu0 0.0
  %4753 = vmatpush2.msra.mxu0 0.0
  %4754 = vmatprep.subr.mxu0 0.0
  %4755 = vmatpush2.msra.mxu0 0.0
  %4756 = vmatprep.subr.mxu0 0.0
  %4757 = vmatpush2.msra.mxu0 0.0
  %4758 = vmatprep.subr.mxu0 0.0
  %4759 = vmatpush2.msra.mxu0 0.0
  %4760 = vmatprep.subr.mxu0 0.0
  %4761 = vmatpush2.msra.mxu0 0.0
  %4762 = vmatprep.subr.mxu0 0.0
  %4763 = vmatpush2.msra.mxu0 0.0
  %4764 = vmatprep.subr.mxu0 0.0
  %4765 = vmatpush2.msra.mxu0 0.0
  %4766 = vmatprep.subr.mxu0 0.0
  %4767 = vmatpush2.msra.mxu0 0.0
  %4768 = vmatprep.subr.mxu0 0.0
  %4769 = vmatpush2.msra.mxu0 0.0
  %4770 = vmatprep.subr.mxu0 0.0
  %4771 = vmatpush2.msra.mxu0 0.0
  %4772 = vmatprep.subr.mxu0 0.0
  %4773 = vmatpush2.msra.mxu0 0.0
  %4774 = vmatprep.mubr.f32.mxu0 0.0
  %4775 = vmatmul.mubr.f32.gmra.mxu0 %v4674
  %v4776 = vpop.f32.mrf.mxu0
  %v4777 = vadd.f32 0.0, %v4776
  %v4778 = vpop.f32.mrf.mxu0
  %v4779 = vadd.f32 0.0, %v4778
  %4780 = vdwg.mxu0
  %v4781 = vadd.f32 %v4600, %v4777
  %v4782 = vadd.f32 %v4601, %v4779
  %s4783 = scalar_lea.vmem %s6, 24
  %v4784 = vld [vmem:[%s4783] sm:$0x3]
  %v4786 = vsel %vm2617, %v4784, 0
  %4788 = vmatprep.subr.mxu0 0.0
  %4789 = vmatpush1.msra.mxu0 0.0
  %4790 = vmatprep.subr.mxu0 0.0
  %4791 = vmatpush1.msra.mxu0 0.0
  %4792 = vmatprep.subr.mxu0 0.0
  %4793 = vmatpush1.msra.mxu0 0.0
  %4794 = vmatprep.subr.mxu0 0.0
  %4795 = vmatpush1.msra.mxu0 0.0
  %4796 = vmatprep.subr.mxu0 0.0
  %4797 = vmatpush1.msra.mxu0 0.0
  %4798 = vmatprep.subr.mxu0 0.0
  %4799 = vmatpush1.msra.mxu0 0.0
  %4800 = vmatprep.subr.mxu0 0.0
  %4801 = vmatpush1.msra.mxu0 0.0
  %4802 = vmatprep.subr.mxu0 0.0
  %4803 = vmatpush1.msra.mxu0 0.0
  %4804 = vmatprep.subr.mxu0 0.0
  %4805 = vmatpush1.msra.mxu0 0.0
  %4806 = vmatprep.subr.mxu0 0.0
  %4807 = vmatpush1.msra.mxu0 0.0
  %4808 = vmatprep.subr.mxu0 0.0
  %4809 = vmatpush1.msra.mxu0 0.0
  %4810 = vmatprep.subr.mxu0 0.0
  %4811 = vmatpush1.msra.mxu0 0.0
  %4812 = vmatprep.subr.mxu0 0.0
  %4813 = vmatpush1.msra.mxu0 %v2615
  %4814 = vmatprep.subr.mxu0 0.0
  %4815 = vmatpush1.msra.mxu0 %v2614
  %4816 = vmatprep.subr.mxu0 0.0
  %4817 = vmatpush1.msra.mxu0 %v2613
  %4818 = vmatprep.subr.mxu0 0.0
  %4819 = vmatpush1.msra.mxu0 %v2612
  %4820 = vmatprep.subr.mxu0 0.0
  %4821 = vmatpush2.msra.mxu0 0.0
  %4822 = vmatprep.subr.mxu0 0.0
  %4823 = vmatpush2.msra.mxu0 0.0
  %4824 = vmatprep.subr.mxu0 0.0
  %4825 = vmatpush2.msra.mxu0 0.0
  %4826 = vmatprep.subr.mxu0 0.0
  %4827 = vmatpush2.msra.mxu0 0.0
  %4828 = vmatprep.subr.mxu0 0.0
  %4829 = vmatpush2.msra.mxu0 0.0
  %4830 = vmatprep.subr.mxu0 0.0
  %4831 = vmatpush2.msra.mxu0 0.0
  %4832 = vmatprep.subr.mxu0 0.0
  %4833 = vmatpush2.msra.mxu0 0.0
  %4834 = vmatprep.subr.mxu0 0.0
  %4835 = vmatpush2.msra.mxu0 0.0
  %4836 = vmatprep.subr.mxu0 0.0
  %4837 = vmatpush2.msra.mxu0 0.0
  %4838 = vmatprep.subr.mxu0 0.0
  %4839 = vmatpush2.msra.mxu0 0.0
  %4840 = vmatprep.subr.mxu0 0.0
  %4841 = vmatpush2.msra.mxu0 0.0
  %4842 = vmatprep.subr.mxu0 0.0
  %4843 = vmatpush2.msra.mxu0 0.0
  %4844 = vmatprep.subr.mxu0 0.0
  %4845 = vmatpush2.msra.mxu0 0.0
  %4846 = vmatprep.subr.mxu0 0.0
  %4847 = vmatpush2.msra.mxu0 0.0
  %4848 = vmatprep.subr.mxu0 0.0
  %4849 = vmatpush2.msra.mxu0 0.0
  %4850 = vmatprep.subr.mxu0 0.0
  %4851 = vmatpush2.msra.mxu0 0.0
  %4852 = vmatprep.mubr.f32.mxu0 0.0
  %4853 = vmatmul.mubr.f32.gmra.mxu0 %v4786
  %v4854 = vpop.f32.mrf.mxu0
  %v4855 = vadd.f32 0.0, %v4854
  %v4856 = vpop.f32.mrf.mxu0
  %4857 = vdwg.mxu0
  %s4858 = scalar_lea.vmem %s7, 3072
  %v4859 = vld [vmem:[%s4858] sm:$0xff]
  %v4860 = vld [vmem:[%s4858 + $0x8] sm:$0xff]
  %v4861 = vld [vmem:[%s4858 + $0x10] sm:$0xff]
  %v4862 = vld [vmem:[%s4858 + $0x18] sm:$0xff]
  %v4863 = vld [vmem:[%s4858 + $0x20] sm:$0xff]
  %v4864 = vld [vmem:[%s4858 + $0x28] sm:$0xff]
  %v4865 = vld [vmem:[%s4858 + $0x30] sm:$0xff]
  %v4866 = vld [vmem:[%s4858 + $0x38] sm:$0xff]
  %v4867 = vld [vmem:[%s4858 + $0x40] sm:$0xff]
  %v4868 = vld [vmem:[%s4858 + $0x48] sm:$0xff]
  %v4869 = vld [vmem:[%s4858 + $0x50] sm:$0xff]
  %v4870 = vld [vmem:[%s4858 + $0x58] sm:$0xff]
  %v4871 = vld [vmem:[%s4858 + $0x60] sm:$0xff]
  %v4872 = vld [vmem:[%s4858 + $0x68] sm:$0xff]
  %v4873 = vld [vmem:[%s4858 + $0x70] sm:$0xff]
  %v4874 = vld [vmem:[%s4858 + $0x78] sm:$0xff]
  %v4875 = vld [vmem:[%s4858 + $0x80] sm:$0xff]
  %v4876 = vld [vmem:[%s4858 + $0x88] sm:$0xff]
  %v4877 = vld [vmem:[%s4858 + $0x90] sm:$0xff]
  %v4878 = vld [vmem:[%s4858 + $0x98] sm:$0xff]
  %v4879 = vld [vmem:[%s4858 + $0xa0] sm:$0xff]
  %v4880 = vld [vmem:[%s4858 + $0xa8] sm:$0xff]
  %v4881 = vld [vmem:[%s4858 + $0xb0] sm:$0xff]
  %v4882 = vld [vmem:[%s4858 + $0xb8] sm:$0xff]
  %v4883 = vld [vmem:[%s4858 + $0xc0] sm:$0xff]
  %v4884 = vld [vmem:[%s4858 + $0xc8] sm:$0xff]
  %v4885 = vld [vmem:[%s4858 + $0xd0] sm:$0xff]
  %v4886 = vld [vmem:[%s4858 + $0xd8] sm:$0xff]
  %v4887 = vld [vmem:[%s4858 + $0xe0] sm:$0xff]
  %v4888 = vld [vmem:[%s4858 + $0xe8] sm:$0xff]
  %v4889 = vld [vmem:[%s4858 + $0xf0] sm:$0xff]
  %v4890 = vld [vmem:[%s4858 + $0xf8] sm:$0xff]
  %4891 = vmatprep.subr.mxu0 %v4890
  %4892 = vmatpush1.msra.mxu0 %v4889
  %4893 = vmatprep.subr.mxu0 %v4888
  %4894 = vmatpush1.msra.mxu0 %v4887
  %4895 = vmatprep.subr.mxu0 %v4886
  %4896 = vmatpush1.msra.mxu0 %v4885
  %4897 = vmatprep.subr.mxu0 %v4884
  %4898 = vmatpush1.msra.mxu0 %v4883
  %4899 = vmatprep.subr.mxu0 %v4882
  %4900 = vmatpush1.msra.mxu0 %v4881
  %4901 = vmatprep.subr.mxu0 %v4880
  %4902 = vmatpush1.msra.mxu0 %v4879
  %4903 = vmatprep.subr.mxu0 %v4878
  %4904 = vmatpush1.msra.mxu0 %v4877
  %4905 = vmatprep.subr.mxu0 %v4876
  %4906 = vmatpush1.msra.mxu0 %v4875
  %4907 = vmatprep.subr.mxu0 %v4874
  %4908 = vmatpush1.msra.mxu0 %v4873
  %4909 = vmatprep.subr.mxu0 %v4872
  %4910 = vmatpush1.msra.mxu0 %v4871
  %4911 = vmatprep.subr.mxu0 %v4870
  %4912 = vmatpush1.msra.mxu0 %v4869
  %4913 = vmatprep.subr.mxu0 %v4868
  %4914 = vmatpush1.msra.mxu0 %v4867
  %4915 = vmatprep.subr.mxu0 %v4866
  %4916 = vmatpush1.msra.mxu0 %v4865
  %4917 = vmatprep.subr.mxu0 %v4864
  %4918 = vmatpush1.msra.mxu0 %v4863
  %4919 = vmatprep.subr.mxu0 %v4862
  %4920 = vmatpush1.msra.mxu0 %v4861
  %4921 = vmatprep.subr.mxu0 %v4860
  %4922 = vmatpush1.msra.mxu0 %v4859
  %4923 = vmatprep.subr.mxu0 0.0
  %4924 = vmatpush2.msra.mxu0 0.0
  %4925 = vmatprep.subr.mxu0 0.0
  %4926 = vmatpush2.msra.mxu0 0.0
  %4927 = vmatprep.subr.mxu0 0.0
  %4928 = vmatpush2.msra.mxu0 0.0
  %4929 = vmatprep.subr.mxu0 0.0
  %4930 = vmatpush2.msra.mxu0 0.0
  %4931 = vmatprep.subr.mxu0 0.0
  %4932 = vmatpush2.msra.mxu0 0.0
  %4933 = vmatprep.subr.mxu0 0.0
  %4934 = vmatpush2.msra.mxu0 0.0
  %4935 = vmatprep.subr.mxu0 0.0
  %4936 = vmatpush2.msra.mxu0 0.0
  %4937 = vmatprep.subr.mxu0 0.0
  %4938 = vmatpush2.msra.mxu0 0.0
  %4939 = vmatprep.subr.mxu0 0.0
  %4940 = vmatpush2.msra.mxu0 0.0
  %4941 = vmatprep.subr.mxu0 0.0
  %4942 = vmatpush2.msra.mxu0 0.0
  %4943 = vmatprep.subr.mxu0 0.0
  %4944 = vmatpush2.msra.mxu0 0.0
  %4945 = vmatprep.subr.mxu0 0.0
  %4946 = vmatpush2.msra.mxu0 0.0
  %4947 = vmatprep.subr.mxu0 0.0
  %4948 = vmatpush2.msra.mxu0 0.0
  %4949 = vmatprep.subr.mxu0 0.0
  %4950 = vmatpush2.msra.mxu0 0.0
  %4951 = vmatprep.subr.mxu0 0.0
  %4952 = vmatpush2.msra.mxu0 0.0
  %4953 = vmatprep.subr.mxu0 0.0
  %4954 = vmatpush2.msra.mxu0 0.0
  %4955 = vmatprep.mubr.f32.mxu0 0.0
  %4956 = vmatmul.mubr.f32.gmra.mxu0 %v4855
  %v4957 = vpop.f32.mrf.mxu0
  %v4958 = vadd.f32 0.0, %v4957
  %v4959 = vpop.f32.mrf.mxu0
  %v4960 = vadd.f32 0.0, %v4959
  %4961 = vdwg.mxu0
  %v4962 = vadd.f32 %v4781, %v4958
  %v4963 = vadd.f32 %v4782, %v4960
  %s4964 = scalar_lea.vmem %s6, 26
  %v4965 = vld [vmem:[%s4964] sm:$0x3]
  %v4967 = vsel %vm2617, %v4965, 0
  %4969 = vmatprep.subr.mxu0 0.0
  %4970 = vmatpush1.msra.mxu0 0.0
  %4971 = vmatprep.subr.mxu0 0.0
  %4972 = vmatpush1.msra.mxu0 0.0
  %4973 = vmatprep.subr.mxu0 0.0
  %4974 = vmatpush1.msra.mxu0 0.0
  %4975 = vmatprep.subr.mxu0 0.0
  %4976 = vmatpush1.msra.mxu0 0.0
  %4977 = vmatprep.subr.mxu0 0.0
  %4978 = vmatpush1.msra.mxu0 0.0
  %4979 = vmatprep.subr.mxu0 0.0
  %4980 = vmatpush1.msra.mxu0 0.0
  %4981 = vmatprep.subr.mxu0 0.0
  %4982 = vmatpush1.msra.mxu0 0.0
  %4983 = vmatprep.subr.mxu0 0.0
  %4984 = vmatpush1.msra.mxu0 0.0
  %4985 = vmatprep.subr.mxu0 0.0
  %4986 = vmatpush1.msra.mxu0 0.0
  %4987 = vmatprep.subr.mxu0 0.0
  %4988 = vmatpush1.msra.mxu0 0.0
  %4989 = vmatprep.subr.mxu0 0.0
  %4990 = vmatpush1.msra.mxu0 0.0
  %4991 = vmatprep.subr.mxu0 0.0
  %4992 = vmatpush1.msra.mxu0 0.0
  %4993 = vmatprep.subr.mxu0 0.0
  %4994 = vmatpush1.msra.mxu0 %v2615
  %4995 = vmatprep.subr.mxu0 0.0
  %4996 = vmatpush1.msra.mxu0 %v2614
  %4997 = vmatprep.subr.mxu0 0.0
  %4998 = vmatpush1.msra.mxu0 %v2613
  %4999 = vmatprep.subr.mxu0 0.0
  %5000 = vmatpush1.msra.mxu0 %v2612
  %5001 = vmatprep.subr.mxu0 0.0
  %5002 = vmatpush2.msra.mxu0 0.0
  %5003 = vmatprep.subr.mxu0 0.0
  %5004 = vmatpush2.msra.mxu0 0.0
  %5005 = vmatprep.subr.mxu0 0.0
  %5006 = vmatpush2.msra.mxu0 0.0
  %5007 = vmatprep.subr.mxu0 0.0
  %5008 = vmatpush2.msra.mxu0 0.0
  %5009 = vmatprep.subr.mxu0 0.0
  %5010 = vmatpush2.msra.mxu0 0.0
  %5011 = vmatprep.subr.mxu0 0.0
  %5012 = vmatpush2.msra.mxu0 0.0
  %5013 = vmatprep.subr.mxu0 0.0
  %5014 = vmatpush2.msra.mxu0 0.0
  %5015 = vmatprep.subr.mxu0 0.0
  %5016 = vmatpush2.msra.mxu0 0.0
  %5017 = vmatprep.subr.mxu0 0.0
  %5018 = vmatpush2.msra.mxu0 0.0
  %5019 = vmatprep.subr.mxu0 0.0
  %5020 = vmatpush2.msra.mxu0 0.0
  %5021 = vmatprep.subr.mxu0 0.0
  %5022 = vmatpush2.msra.mxu0 0.0
  %5023 = vmatprep.subr.mxu0 0.0
  %5024 = vmatpush2.msra.mxu0 0.0
  %5025 = vmatprep.subr.mxu0 0.0
  %5026 = vmatpush2.msra.mxu0 0.0
  %5027 = vmatprep.subr.mxu0 0.0
  %5028 = vmatpush2.msra.mxu0 0.0
  %5029 = vmatprep.subr.mxu0 0.0
  %5030 = vmatpush2.msra.mxu0 0.0
  %5031 = vmatprep.subr.mxu0 0.0
  %5032 = vmatpush2.msra.mxu0 0.0
  %5033 = vmatprep.mubr.f32.mxu0 0.0
  %5034 = vmatmul.mubr.f32.gmra.mxu0 %v4967
  %v5035 = vpop.f32.mrf.mxu0
  %v5036 = vadd.f32 0.0, %v5035
  %v5037 = vpop.f32.mrf.mxu0
  %5038 = vdwg.mxu0
  %s5039 = scalar_lea.vmem %s7, 3328
  %v5040 = vld [vmem:[%s5039] sm:$0xff]
  %v5041 = vld [vmem:[%s5039 + $0x8] sm:$0xff]
  %v5042 = vld [vmem:[%s5039 + $0x10] sm:$0xff]
  %v5043 = vld [vmem:[%s5039 + $0x18] sm:$0xff]
  %v5044 = vld [vmem:[%s5039 + $0x20] sm:$0xff]
  %v5045 = vld [vmem:[%s5039 + $0x28] sm:$0xff]
  %v5046 = vld [vmem:[%s5039 + $0x30] sm:$0xff]
  %v5047 = vld [vmem:[%s5039 + $0x38] sm:$0xff]
  %v5048 = vld [vmem:[%s5039 + $0x40] sm:$0xff]
  %v5049 = vld [vmem:[%s5039 + $0x48] sm:$0xff]
  %v5050 = vld [vmem:[%s5039 + $0x50] sm:$0xff]
  %v5051 = vld [vmem:[%s5039 + $0x58] sm:$0xff]
  %v5052 = vld [vmem:[%s5039 + $0x60] sm:$0xff]
  %v5053 = vld [vmem:[%s5039 + $0x68] sm:$0xff]
  %v5054 = vld [vmem:[%s5039 + $0x70] sm:$0xff]
  %v5055 = vld [vmem:[%s5039 + $0x78] sm:$0xff]
  %v5056 = vld [vmem:[%s5039 + $0x80] sm:$0xff]
  %v5057 = vld [vmem:[%s5039 + $0x88] sm:$0xff]
  %v5058 = vld [vmem:[%s5039 + $0x90] sm:$0xff]
  %v5059 = vld [vmem:[%s5039 + $0x98] sm:$0xff]
  %v5060 = vld [vmem:[%s5039 + $0xa0] sm:$0xff]
  %v5061 = vld [vmem:[%s5039 + $0xa8] sm:$0xff]
  %v5062 = vld [vmem:[%s5039 + $0xb0] sm:$0xff]
  %v5063 = vld [vmem:[%s5039 + $0xb8] sm:$0xff]
  %v5064 = vld [vmem:[%s5039 + $0xc0] sm:$0xff]
  %v5065 = vld [vmem:[%s5039 + $0xc8] sm:$0xff]
  %v5066 = vld [vmem:[%s5039 + $0xd0] sm:$0xff]
  %v5067 = vld [vmem:[%s5039 + $0xd8] sm:$0xff]
  %v5068 = vld [vmem:[%s5039 + $0xe0] sm:$0xff]
  %v5069 = vld [vmem:[%s5039 + $0xe8] sm:$0xff]
  %v5070 = vld [vmem:[%s5039 + $0xf0] sm:$0xff]
  %v5071 = vld [vmem:[%s5039 + $0xf8] sm:$0xff]
  %5072 = vmatprep.subr.mxu0 %v5071
  %5073 = vmatpush1.msra.mxu0 %v5070
  %5074 = vmatprep.subr.mxu0 %v5069
  %5075 = vmatpush1.msra.mxu0 %v5068
  %5076 = vmatprep.subr.mxu0 %v5067
  %5077 = vmatpush1.msra.mxu0 %v5066
  %5078 = vmatprep.subr.mxu0 %v5065
  %5079 = vmatpush1.msra.mxu0 %v5064
  %5080 = vmatprep.subr.mxu0 %v5063
  %5081 = vmatpush1.msra.mxu0 %v5062
  %5082 = vmatprep.subr.mxu0 %v5061
  %5083 = vmatpush1.msra.mxu0 %v5060
  %5084 = vmatprep.subr.mxu0 %v5059
  %5085 = vmatpush1.msra.mxu0 %v5058
  %5086 = vmatprep.subr.mxu0 %v5057
  %5087 = vmatpush1.msra.mxu0 %v5056
  %5088 = vmatprep.subr.mxu0 %v5055
  %5089 = vmatpush1.msra.mxu0 %v5054
  %5090 = vmatprep.subr.mxu0 %v5053
  %5091 = vmatpush1.msra.mxu0 %v5052
  %5092 = vmatprep.subr.mxu0 %v5051
  %5093 = vmatpush1.msra.mxu0 %v5050
  %5094 = vmatprep.subr.mxu0 %v5049
  %5095 = vmatpush1.msra.mxu0 %v5048
  %5096 = vmatprep.subr.mxu0 %v5047
  %5097 = vmatpush1.msra.mxu0 %v5046
  %5098 = vmatprep.subr.mxu0 %v5045
  %5099 = vmatpush1.msra.mxu0 %v5044
  %5100 = vmatprep.subr.mxu0 %v5043
  %5101 = vmatpush1.msra.mxu0 %v5042
  %5102 = vmatprep.subr.mxu0 %v5041
  %5103 = vmatpush1.msra.mxu0 %v5040
  %5104 = vmatprep.subr.mxu0 0.0
  %5105 = vmatpush2.msra.mxu0 0.0
  %5106 = vmatprep.subr.mxu0 0.0
  %5107 = vmatpush2.msra.mxu0 0.0
  %5108 = vmatprep.subr.mxu0 0.0
  %5109 = vmatpush2.msra.mxu0 0.0
  %5110 = vmatprep.subr.mxu0 0.0
  %5111 = vmatpush2.msra.mxu0 0.0
  %5112 = vmatprep.subr.mxu0 0.0
  %5113 = vmatpush2.msra.mxu0 0.0
  %5114 = vmatprep.subr.mxu0 0.0
  %5115 = vmatpush2.msra.mxu0 0.0
  %5116 = vmatprep.subr.mxu0 0.0
  %5117 = vmatpush2.msra.mxu0 0.0
  %5118 = vmatprep.subr.mxu0 0.0
  %5119 = vmatpush2.msra.mxu0 0.0
  %5120 = vmatprep.subr.mxu0 0.0
  %5121 = vmatpush2.msra.mxu0 0.0
  %5122 = vmatprep.subr.mxu0 0.0
  %5123 = vmatpush2.msra.mxu0 0.0
  %5124 = vmatprep.subr.mxu0 0.0
  %5125 = vmatpush2.msra.mxu0 0.0
  %5126 = vmatprep.subr.mxu0 0.0
  %5127 = vmatpush2.msra.mxu0 0.0
  %5128 = vmatprep.subr.mxu0 0.0
  %5129 = vmatpush2.msra.mxu0 0.0
  %5130 = vmatprep.subr.mxu0 0.0
  %5131 = vmatpush2.msra.mxu0 0.0
  %5132 = vmatprep.subr.mxu0 0.0
  %5133 = vmatpush2.msra.mxu0 0.0
  %5134 = vmatprep.subr.mxu0 0.0
  %5135 = vmatpush2.msra.mxu0 0.0
  %5136 = vmatprep.mubr.f32.mxu0 0.0
  %5137 = vmatmul.mubr.f32.gmra.mxu0 %v5036
  %v5138 = vpop.f32.mrf.mxu0
  %v5139 = vadd.f32 0.0, %v5138
  %v5140 = vpop.f32.mrf.mxu0
  %v5141 = vadd.f32 0.0, %v5140
  %5142 = vdwg.mxu0
  %v5143 = vadd.f32 %v4962, %v5139
  %v5144 = vadd.f32 %v4963, %v5141
  %s5145 = scalar_lea.vmem %s6, 28
  %v5146 = vld [vmem:[%s5145] sm:$0x3]
  %v5148 = vsel %vm2617, %v5146, 0
  %5150 = vmatprep.subr.mxu0 0.0
  %5151 = vmatpush1.msra.mxu0 0.0
  %5152 = vmatprep.subr.mxu0 0.0
  %5153 = vmatpush1.msra.mxu0 0.0
  %5154 = vmatprep.subr.mxu0 0.0
  %5155 = vmatpush1.msra.mxu0 0.0
  %5156 = vmatprep.subr.mxu0 0.0
  %5157 = vmatpush1.msra.mxu0 0.0
  %5158 = vmatprep.subr.mxu0 0.0
  %5159 = vmatpush1.msra.mxu0 0.0
  %5160 = vmatprep.subr.mxu0 0.0
  %5161 = vmatpush1.msra.mxu0 0.0
  %5162 = vmatprep.subr.mxu0 0.0
  %5163 = vmatpush1.msra.mxu0 0.0
  %5164 = vmatprep.subr.mxu0 0.0
  %5165 = vmatpush1.msra.mxu0 0.0
  %5166 = vmatprep.subr.mxu0 0.0
  %5167 = vmatpush1.msra.mxu0 0.0
  %5168 = vmatprep.subr.mxu0 0.0
  %5169 = vmatpush1.msra.mxu0 0.0
  %5170 = vmatprep.subr.mxu0 0.0
  %5171 = vmatpush1.msra.mxu0 0.0
  %5172 = vmatprep.subr.mxu0 0.0
  %5173 = vmatpush1.msra.mxu0 0.0
  %5174 = vmatprep.subr.mxu0 0.0
  %5175 = vmatpush1.msra.mxu0 %v2615
  %5176 = vmatprep.subr.mxu0 0.0
  %5177 = vmatpush1.msra.mxu0 %v2614
  %5178 = vmatprep.subr.mxu0 0.0
  %5179 = vmatpush1.msra.mxu0 %v2613
  %5180 = vmatprep.subr.mxu0 0.0
  %5181 = vmatpush1.msra.mxu0 %v2612
  %5182 = vmatprep.subr.mxu0 0.0
  %5183 = vmatpush2.msra.mxu0 0.0
  %5184 = vmatprep.subr.mxu0 0.0
  %5185 = vmatpush2.msra.mxu0 0.0
  %5186 = vmatprep.subr.mxu0 0.0
  %5187 = vmatpush2.msra.mxu0 0.0
  %5188 = vmatprep.subr.mxu0 0.0
  %5189 = vmatpush2.msra.mxu0 0.0
  %5190 = vmatprep.subr.mxu0 0.0
  %5191 = vmatpush2.msra.mxu0 0.0
  %5192 = vmatprep.subr.mxu0 0.0
  %5193 = vmatpush2.msra.mxu0 0.0
  %5194 = vmatprep.subr.mxu0 0.0
  %5195 = vmatpush2.msra.mxu0 0.0
  %5196 = vmatprep.subr.mxu0 0.0
  %5197 = vmatpush2.msra.mxu0 0.0
  %5198 = vmatprep.subr.mxu0 0.0
  %5199 = vmatpush2.msra.mxu0 0.0
  %5200 = vmatprep.subr.mxu0 0.0
  %5201 = vmatpush2.msra.mxu0 0.0
  %5202 = vmatprep.subr.mxu0 0.0
  %5203 = vmatpush2.msra.mxu0 0.0
  %5204 = vmatprep.subr.mxu0 0.0
  %5205 = vmatpush2.msra.mxu0 0.0
  %5206 = vmatprep.subr.mxu0 0.0
  %5207 = vmatpush2.msra.mxu0 0.0
  %5208 = vmatprep.subr.mxu0 0.0
  %5209 = vmatpush2.msra.mxu0 0.0
  %5210 = vmatprep.subr.mxu0 0.0
  %5211 = vmatpush2.msra.mxu0 0.0
  %5212 = vmatprep.subr.mxu0 0.0
  %5213 = vmatpush2.msra.mxu0 0.0
  %5214 = vmatprep.mubr.f32.mxu0 0.0
  %5215 = vmatmul.mubr.f32.gmra.mxu0 %v5148
  %v5216 = vpop.f32.mrf.mxu0
  %v5217 = vadd.f32 0.0, %v5216
  %v5218 = vpop.f32.mrf.mxu0
  %5219 = vdwg.mxu0
  %s5220 = scalar_lea.vmem %s7, 3584
  %v5221 = vld [vmem:[%s5220] sm:$0xff]
  %v5222 = vld [vmem:[%s5220 + $0x8] sm:$0xff]
  %v5223 = vld [vmem:[%s5220 + $0x10] sm:$0xff]
  %v5224 = vld [vmem:[%s5220 + $0x18] sm:$0xff]
  %v5225 = vld [vmem:[%s5220 + $0x20] sm:$0xff]
  %v5226 = vld [vmem:[%s5220 + $0x28] sm:$0xff]
  %v5227 = vld [vmem:[%s5220 + $0x30] sm:$0xff]
  %v5228 = vld [vmem:[%s5220 + $0x38] sm:$0xff]
  %v5229 = vld [vmem:[%s5220 + $0x40] sm:$0xff]
  %v5230 = vld [vmem:[%s5220 + $0x48] sm:$0xff]
  %v5231 = vld [vmem:[%s5220 + $0x50] sm:$0xff]
  %v5232 = vld [vmem:[%s5220 + $0x58] sm:$0xff]
  %v5233 = vld [vmem:[%s5220 + $0x60] sm:$0xff]
  %v5234 = vld [vmem:[%s5220 + $0x68] sm:$0xff]
  %v5235 = vld [vmem:[%s5220 + $0x70] sm:$0xff]
  %v5236 = vld [vmem:[%s5220 + $0x78] sm:$0xff]
  %v5237 = vld [vmem:[%s5220 + $0x80] sm:$0xff]
  %v5238 = vld [vmem:[%s5220 + $0x88] sm:$0xff]
  %v5239 = vld [vmem:[%s5220 + $0x90] sm:$0xff]
  %v5240 = vld [vmem:[%s5220 + $0x98] sm:$0xff]
  %v5241 = vld [vmem:[%s5220 + $0xa0] sm:$0xff]
  %v5242 = vld [vmem:[%s5220 + $0xa8] sm:$0xff]
  %v5243 = vld [vmem:[%s5220 + $0xb0] sm:$0xff]
  %v5244 = vld [vmem:[%s5220 + $0xb8] sm:$0xff]
  %v5245 = vld [vmem:[%s5220 + $0xc0] sm:$0xff]
  %v5246 = vld [vmem:[%s5220 + $0xc8] sm:$0xff]
  %v5247 = vld [vmem:[%s5220 + $0xd0] sm:$0xff]
  %v5248 = vld [vmem:[%s5220 + $0xd8] sm:$0xff]
  %v5249 = vld [vmem:[%s5220 + $0xe0] sm:$0xff]
  %v5250 = vld [vmem:[%s5220 + $0xe8] sm:$0xff]
  %v5251 = vld [vmem:[%s5220 + $0xf0] sm:$0xff]
  %v5252 = vld [vmem:[%s5220 + $0xf8] sm:$0xff]
  %5253 = vmatprep.subr.mxu0 %v5252
  %5254 = vmatpush1.msra.mxu0 %v5251
  %5255 = vmatprep.subr.mxu0 %v5250
  %5256 = vmatpush1.msra.mxu0 %v5249
  %5257 = vmatprep.subr.mxu0 %v5248
  %5258 = vmatpush1.msra.mxu0 %v5247
  %5259 = vmatprep.subr.mxu0 %v5246
  %5260 = vmatpush1.msra.mxu0 %v5245
  %5261 = vmatprep.subr.mxu0 %v5244
  %5262 = vmatpush1.msra.mxu0 %v5243
  %5263 = vmatprep.subr.mxu0 %v5242
  %5264 = vmatpush1.msra.mxu0 %v5241
  %5265 = vmatprep.subr.mxu0 %v5240
  %5266 = vmatpush1.msra.mxu0 %v5239
  %5267 = vmatprep.subr.mxu0 %v5238
  %5268 = vmatpush1.msra.mxu0 %v5237
  %5269 = vmatprep.subr.mxu0 %v5236
  %5270 = vmatpush1.msra.mxu0 %v5235
  %5271 = vmatprep.subr.mxu0 %v5234
  %5272 = vmatpush1.msra.mxu0 %v5233
  %5273 = vmatprep.subr.mxu0 %v5232
  %5274 = vmatpush1.msra.mxu0 %v5231
  %5275 = vmatprep.subr.mxu0 %v5230
  %5276 = vmatpush1.msra.mxu0 %v5229
  %5277 = vmatprep.subr.mxu0 %v5228
  %5278 = vmatpush1.msra.mxu0 %v5227
  %5279 = vmatprep.subr.mxu0 %v5226
  %5280 = vmatpush1.msra.mxu0 %v5225
  %5281 = vmatprep.subr.mxu0 %v5224
  %5282 = vmatpush1.msra.mxu0 %v5223
  %5283 = vmatprep.subr.mxu0 %v5222
  %5284 = vmatpush1.msra.mxu0 %v5221
  %5285 = vmatprep.subr.mxu0 0.0
  %5286 = vmatpush2.msra.mxu0 0.0
  %5287 = vmatprep.subr.mxu0 0.0
  %5288 = vmatpush2.msra.mxu0 0.0
  %5289 = vmatprep.subr.mxu0 0.0
  %5290 = vmatpush2.msra.mxu0 0.0
  %5291 = vmatprep.subr.mxu0 0.0
  %5292 = vmatpush2.msra.mxu0 0.0
  %5293 = vmatprep.subr.mxu0 0.0
  %5294 = vmatpush2.msra.mxu0 0.0
  %5295 = vmatprep.subr.mxu0 0.0
  %5296 = vmatpush2.msra.mxu0 0.0
  %5297 = vmatprep.subr.mxu0 0.0
  %5298 = vmatpush2.msra.mxu0 0.0
  %5299 = vmatprep.subr.mxu0 0.0
  %5300 = vmatpush2.msra.mxu0 0.0
  %5301 = vmatprep.subr.mxu0 0.0
  %5302 = vmatpush2.msra.mxu0 0.0
  %5303 = vmatprep.subr.mxu0 0.0
  %5304 = vmatpush2.msra.mxu0 0.0
  %5305 = vmatprep.subr.mxu0 0.0
  %5306 = vmatpush2.msra.mxu0 0.0
  %5307 = vmatprep.subr.mxu0 0.0
  %5308 = vmatpush2.msra.mxu0 0.0
  %5309 = vmatprep.subr.mxu0 0.0
  %5310 = vmatpush2.msra.mxu0 0.0
  %5311 = vmatprep.subr.mxu0 0.0
  %5312 = vmatpush2.msra.mxu0 0.0
  %5313 = vmatprep.subr.mxu0 0.0
  %5314 = vmatpush2.msra.mxu0 0.0
  %5315 = vmatprep.subr.mxu0 0.0
  %5316 = vmatpush2.msra.mxu0 0.0
  %5317 = vmatprep.mubr.f32.mxu0 0.0
  %5318 = vmatmul.mubr.f32.gmra.mxu0 %v5217
  %v5319 = vpop.f32.mrf.mxu0
  %v5320 = vadd.f32 0.0, %v5319
  %v5321 = vpop.f32.mrf.mxu0
  %v5322 = vadd.f32 0.0, %v5321
  %5323 = vdwg.mxu0
  %v5324 = vadd.f32 %v5143, %v5320
  %v5325 = vadd.f32 %v5144, %v5322
  %s5326 = scalar_lea.vmem %s6, 30
  %v5327 = vld [vmem:[%s5326] sm:$0x3]
  %v5329 = vsel %vm2617, %v5327, 0
  %5331 = vmatprep.subr.mxu0 0.0
  %5332 = vmatpush1.msra.mxu0 0.0
  %5333 = vmatprep.subr.mxu0 0.0
  %5334 = vmatpush1.msra.mxu0 0.0
  %5335 = vmatprep.subr.mxu0 0.0
  %5336 = vmatpush1.msra.mxu0 0.0
  %5337 = vmatprep.subr.mxu0 0.0
  %5338 = vmatpush1.msra.mxu0 0.0
  %5339 = vmatprep.subr.mxu0 0.0
  %5340 = vmatpush1.msra.mxu0 0.0
  %5341 = vmatprep.subr.mxu0 0.0
  %5342 = vmatpush1.msra.mxu0 0.0
  %5343 = vmatprep.subr.mxu0 0.0
  %5344 = vmatpush1.msra.mxu0 0.0
  %5345 = vmatprep.subr.mxu0 0.0
  %5346 = vmatpush1.msra.mxu0 0.0
  %5347 = vmatprep.subr.mxu0 0.0
  %5348 = vmatpush1.msra.mxu0 0.0
  %5349 = vmatprep.subr.mxu0 0.0
  %5350 = vmatpush1.msra.mxu0 0.0
  %5351 = vmatprep.subr.mxu0 0.0
  %5352 = vmatpush1.msra.mxu0 0.0
  %5353 = vmatprep.subr.mxu0 0.0
  %5354 = vmatpush1.msra.mxu0 0.0
  %5355 = vmatprep.subr.mxu0 0.0
  %5356 = vmatpush1.msra.mxu0 %v2615
  %5357 = vmatprep.subr.mxu0 0.0
  %5358 = vmatpush1.msra.mxu0 %v2614
  %5359 = vmatprep.subr.mxu0 0.0
  %5360 = vmatpush1.msra.mxu0 %v2613
  %5361 = vmatprep.subr.mxu0 0.0
  %5362 = vmatpush1.msra.mxu0 %v2612
  %5363 = vmatprep.subr.mxu0 0.0
  %5364 = vmatpush2.msra.mxu0 0.0
  %5365 = vmatprep.subr.mxu0 0.0
  %5366 = vmatpush2.msra.mxu0 0.0
  %5367 = vmatprep.subr.mxu0 0.0
  %5368 = vmatpush2.msra.mxu0 0.0
  %5369 = vmatprep.subr.mxu0 0.0
  %5370 = vmatpush2.msra.mxu0 0.0
  %5371 = vmatprep.subr.mxu0 0.0
  %5372 = vmatpush2.msra.mxu0 0.0
  %5373 = vmatprep.subr.mxu0 0.0
  %5374 = vmatpush2.msra.mxu0 0.0
  %5375 = vmatprep.subr.mxu0 0.0
  %5376 = vmatpush2.msra.mxu0 0.0
  %5377 = vmatprep.subr.mxu0 0.0
  %5378 = vmatpush2.msra.mxu0 0.0
  %5379 = vmatprep.subr.mxu0 0.0
  %5380 = vmatpush2.msra.mxu0 0.0
  %5381 = vmatprep.subr.mxu0 0.0
  %5382 = vmatpush2.msra.mxu0 0.0
  %5383 = vmatprep.subr.mxu0 0.0
  %5384 = vmatpush2.msra.mxu0 0.0
  %5385 = vmatprep.subr.mxu0 0.0
  %5386 = vmatpush2.msra.mxu0 0.0
  %5387 = vmatprep.subr.mxu0 0.0
  %5388 = vmatpush2.msra.mxu0 0.0
  %5389 = vmatprep.subr.mxu0 0.0
  %5390 = vmatpush2.msra.mxu0 0.0
  %5391 = vmatprep.subr.mxu0 0.0
  %5392 = vmatpush2.msra.mxu0 0.0
  %5393 = vmatprep.subr.mxu0 0.0
  %5394 = vmatpush2.msra.mxu0 0.0
  %5395 = vmatprep.mubr.f32.mxu0 0.0
  %5396 = vmatmul.mubr.f32.gmra.mxu0 %v5329
  %v5397 = vpop.f32.mrf.mxu0
  %v5398 = vadd.f32 0.0, %v5397
  %v5399 = vpop.f32.mrf.mxu0
  %5400 = vdwg.mxu0
  %s5401 = scalar_lea.vmem %s7, 3840
  %v5402 = vld [vmem:[%s5401] sm:$0xff]
  %v5403 = vld [vmem:[%s5401 + $0x8] sm:$0xff]
  %v5404 = vld [vmem:[%s5401 + $0x10] sm:$0xff]
  %v5405 = vld [vmem:[%s5401 + $0x18] sm:$0xff]
  %v5406 = vld [vmem:[%s5401 + $0x20] sm:$0xff]
  %v5407 = vld [vmem:[%s5401 + $0x28] sm:$0xff]
  %v5408 = vld [vmem:[%s5401 + $0x30] sm:$0xff]
  %v5409 = vld [vmem:[%s5401 + $0x38] sm:$0xff]
  %v5410 = vld [vmem:[%s5401 + $0x40] sm:$0xff]
  %v5411 = vld [vmem:[%s5401 + $0x48] sm:$0xff]
  %v5412 = vld [vmem:[%s5401 + $0x50] sm:$0xff]
  %v5413 = vld [vmem:[%s5401 + $0x58] sm:$0xff]
  %v5414 = vld [vmem:[%s5401 + $0x60] sm:$0xff]
  %v5415 = vld [vmem:[%s5401 + $0x68] sm:$0xff]
  %v5416 = vld [vmem:[%s5401 + $0x70] sm:$0xff]
  %v5417 = vld [vmem:[%s5401 + $0x78] sm:$0xff]
  %v5418 = vld [vmem:[%s5401 + $0x80] sm:$0xff]
  %v5419 = vld [vmem:[%s5401 + $0x88] sm:$0xff]
  %v5420 = vld [vmem:[%s5401 + $0x90] sm:$0xff]
  %v5421 = vld [vmem:[%s5401 + $0x98] sm:$0xff]
  %v5422 = vld [vmem:[%s5401 + $0xa0] sm:$0xff]
  %v5423 = vld [vmem:[%s5401 + $0xa8] sm:$0xff]
  %v5424 = vld [vmem:[%s5401 + $0xb0] sm:$0xff]
  %v5425 = vld [vmem:[%s5401 + $0xb8] sm:$0xff]
  %v5426 = vld [vmem:[%s5401 + $0xc0] sm:$0xff]
  %v5427 = vld [vmem:[%s5401 + $0xc8] sm:$0xff]
  %v5428 = vld [vmem:[%s5401 + $0xd0] sm:$0xff]
  %v5429 = vld [vmem:[%s5401 + $0xd8] sm:$0xff]
  %v5430 = vld [vmem:[%s5401 + $0xe0] sm:$0xff]
  %v5431 = vld [vmem:[%s5401 + $0xe8] sm:$0xff]
  %v5432 = vld [vmem:[%s5401 + $0xf0] sm:$0xff]
  %v5433 = vld [vmem:[%s5401 + $0xf8] sm:$0xff]
  %5434 = vmatprep.subr.mxu0 %v5433
  %5435 = vmatpush1.msra.mxu0 %v5432
  %5436 = vmatprep.subr.mxu0 %v5431
  %5437 = vmatpush1.msra.mxu0 %v5430
  %5438 = vmatprep.subr.mxu0 %v5429
  %5439 = vmatpush1.msra.mxu0 %v5428
  %5440 = vmatprep.subr.mxu0 %v5427
  %5441 = vmatpush1.msra.mxu0 %v5426
  %5442 = vmatprep.subr.mxu0 %v5425
  %5443 = vmatpush1.msra.mxu0 %v5424
  %5444 = vmatprep.subr.mxu0 %v5423
  %5445 = vmatpush1.msra.mxu0 %v5422
  %5446 = vmatprep.subr.mxu0 %v5421
  %5447 = vmatpush1.msra.mxu0 %v5420
  %5448 = vmatprep.subr.mxu0 %v5419
  %5449 = vmatpush1.msra.mxu0 %v5418
  %5450 = vmatprep.subr.mxu0 %v5417
  %5451 = vmatpush1.msra.mxu0 %v5416
  %5452 = vmatprep.subr.mxu0 %v5415
  %5453 = vmatpush1.msra.mxu0 %v5414
  %5454 = vmatprep.subr.mxu0 %v5413
  %5455 = vmatpush1.msra.mxu0 %v5412
  %5456 = vmatprep.subr.mxu0 %v5411
  %5457 = vmatpush1.msra.mxu0 %v5410
  %5458 = vmatprep.subr.mxu0 %v5409
  %5459 = vmatpush1.msra.mxu0 %v5408
  %5460 = vmatprep.subr.mxu0 %v5407
  %5461 = vmatpush1.msra.mxu0 %v5406
  %5462 = vmatprep.subr.mxu0 %v5405
  %5463 = vmatpush1.msra.mxu0 %v5404
  %5464 = vmatprep.subr.mxu0 %v5403
  %5465 = vmatpush1.msra.mxu0 %v5402
  %5466 = vmatprep.subr.mxu0 0.0
  %5467 = vmatpush2.msra.mxu0 0.0
  %5468 = vmatprep.subr.mxu0 0.0
  %5469 = vmatpush2.msra.mxu0 0.0
  %5470 = vmatprep.subr.mxu0 0.0
  %5471 = vmatpush2.msra.mxu0 0.0
  %5472 = vmatprep.subr.mxu0 0.0
  %5473 = vmatpush2.msra.mxu0 0.0
  %5474 = vmatprep.subr.mxu0 0.0
  %5475 = vmatpush2.msra.mxu0 0.0
  %5476 = vmatprep.subr.mxu0 0.0
  %5477 = vmatpush2.msra.mxu0 0.0
  %5478 = vmatprep.subr.mxu0 0.0
  %5479 = vmatpush2.msra.mxu0 0.0
  %5480 = vmatprep.subr.mxu0 0.0
  %5481 = vmatpush2.msra.mxu0 0.0
  %5482 = vmatprep.subr.mxu0 0.0
  %5483 = vmatpush2.msra.mxu0 0.0
  %5484 = vmatprep.subr.mxu0 0.0
  %5485 = vmatpush2.msra.mxu0 0.0
  %5486 = vmatprep.subr.mxu0 0.0
  %5487 = vmatpush2.msra.mxu0 0.0
  %5488 = vmatprep.subr.mxu0 0.0
  %5489 = vmatpush2.msra.mxu0 0.0
  %5490 = vmatprep.subr.mxu0 0.0
  %5491 = vmatpush2.msra.mxu0 0.0
  %5492 = vmatprep.subr.mxu0 0.0
  %5493 = vmatpush2.msra.mxu0 0.0
  %5494 = vmatprep.subr.mxu0 0.0
  %5495 = vmatpush2.msra.mxu0 0.0
  %5496 = vmatprep.subr.mxu0 0.0
  %5497 = vmatpush2.msra.mxu0 0.0
  %5498 = vmatprep.mubr.f32.mxu0 0.0
  %5499 = vmatmul.mubr.f32.gmra.mxu0 %v5398
  %v5500 = vpop.f32.mrf.mxu0
  %v5501 = vadd.f32 0.0, %v5500
  %v5502 = vpop.f32.mrf.mxu0
  %v5503 = vadd.f32 0.0, %v5502
  %5504 = vdwg.mxu0
  %v5505 = vadd.f32 %v5324, %v5501
  %v5506 = vadd.f32 %v5325, %v5503
  %v5507 = vld [vmem:[%s8] sm:$0x3]
  %v5509 = vlaneseq
  %v5510 = vshrl.u32 %v5509, 7
  %v5511 = vsub.s32 0, %v5510
  %v5512 = vrot.slane %v5507, %v5511
  %v5513 = vlaneseq
  %v5514 = vshrl.u32 %v5513, 7
  %v5515 = vsub.s32 1, %v5514
  %v5516 = vrot.slane %v5507, %v5515
  %v5519 = vadd.f32 %v5505, %v5512
  %v5520 = vadd.f32 %v5506, %v5516
  %v5521 = vld [vmem:[%s9] sm:$0xff]
  %v5522 = vld [vmem:[%s9 + $0x8] sm:$0xff]
  %v5523 = vld [vmem:[%s9 + $0x10] sm:$0xff]
  %v5524 = vld [vmem:[%s9 + $0x18] sm:$0xff]
  %v5525 = vld [vmem:[%s9 + $0x20] sm:$0xff]
  %v5526 = vld [vmem:[%s9 + $0x28] sm:$0xff]
  %v5527 = vld [vmem:[%s9 + $0x30] sm:$0xff]
  %v5528 = vld [vmem:[%s9 + $0x38] sm:$0xff]
  %v5529 = vld [vmem:[%s9 + $0x40] sm:$0xff]
  %v5530 = vld [vmem:[%s9 + $0x48] sm:$0xff]
  %v5531 = vld [vmem:[%s9 + $0x50] sm:$0xff]
  %v5532 = vld [vmem:[%s9 + $0x58] sm:$0x3f]
  %v5533 = vld [vmem:[%s10] sm:$0xff]
  %v5534 = vld [vmem:[%s10 + $0x8] sm:$0xff]
  %v5535 = vld [vmem:[%s11] sm:$0x1]
  %v5536 = vlaneseq
  %v5537 = vshrl.u32 %v5536, 7
  %v5538 = vsub.s32 0, %v5537
  %v5539 = vrot.slane %v5535, %v5538
  %v5541 = vsel %vm378, %v5521, 0
  %v5544 = vsel %vm378, %v5522, 0
  %v5547 = vsel %vm378, %v5523, 0
  %v5550 = vsel %vm378, %v5524, 0
  %v5553 = vsel %vm378, %v5525, 0
  %v5556 = vsel %vm378, %v5526, 0
  %v5559 = vsel %vm378, %v5527, 0
  %v5562 = vsel %vm378, %v5528, 0
  %v5565 = vsel %vm378, %v5529, 0
  %v5568 = vsel %vm378, %v5530, 0
  %v5571 = vsel %vm378, %v5531, 0
  %v5574 = vsel %vm378, %v5532, 0
  %5576 = vmatprep.subr.mxu0 0.0
  %5577 = vmatpush1.msra.mxu0 0.0
  %5578 = vmatprep.subr.mxu0 0.0
  %5579 = vmatpush1.msra.mxu0 0.0
  %5580 = vmatprep.subr.mxu0 0.0
  %5581 = vmatpush1.msra.mxu0 0.0
  %5582 = vmatprep.subr.mxu0 0.0
  %5583 = vmatpush1.msra.mxu0 0.0
  %5584 = vmatprep.subr.mxu0 0.0
  %5585 = vmatpush1.msra.mxu0 0.0
  %5586 = vmatprep.subr.mxu0 0.0
  %5587 = vmatpush1.msra.mxu0 0.0
  %5588 = vmatprep.subr.mxu0 0.0
  %5589 = vmatpush1.msra.mxu0 0.0
  %5590 = vmatprep.subr.mxu0 0.0
  %5591 = vmatpush1.msra.mxu0 0.0
  %5592 = vmatprep.subr.mxu0 0.0
  %5593 = vmatpush1.msra.mxu0 0.0
  %5594 = vmatprep.subr.mxu0 0.0
  %5595 = vmatpush1.msra.mxu0 0.0
  %5596 = vmatprep.subr.mxu0 0.0
  %5597 = vmatpush1.msra.mxu0 0.0
  %5598 = vmatprep.subr.mxu0 0.0
  %5599 = vmatpush1.msra.mxu0 0.0
  %5600 = vmatprep.subr.mxu0 0.0
  %5601 = vmatpush1.msra.mxu0 0.0
  %5602 = vmatprep.subr.mxu0 0.0
  %5603 = vmatpush1.msra.mxu0 0.0
  %5604 = vmatprep.subr.mxu0 0.0
  %5605 = vmatpush1.msra.mxu0 %v5534
  %5606 = vmatprep.subr.mxu0 0.0
  %5607 = vmatpush1.msra.mxu0 %v5533
  %5608 = vmatprep.subr.mxu0 0.0
  %5609 = vmatpush2.msra.mxu0 0.0
  %5610 = vmatprep.subr.mxu0 0.0
  %5611 = vmatpush2.msra.mxu0 0.0
  %5612 = vmatprep.subr.mxu0 0.0
  %5613 = vmatpush2.msra.mxu0 0.0
  %5614 = vmatprep.subr.mxu0 0.0
  %5615 = vmatpush2.msra.mxu0 0.0
  %5616 = vmatprep.subr.mxu0 0.0
  %5617 = vmatpush2.msra.mxu0 0.0
  %5618 = vmatprep.subr.mxu0 0.0
  %5619 = vmatpush2.msra.mxu0 0.0
  %5620 = vmatprep.subr.mxu0 0.0
  %5621 = vmatpush2.msra.mxu0 0.0
  %5622 = vmatprep.subr.mxu0 0.0
  %5623 = vmatpush2.msra.mxu0 0.0
  %5624 = vmatprep.subr.mxu0 0.0
  %5625 = vmatpush2.msra.mxu0 0.0
  %5626 = vmatprep.subr.mxu0 0.0
  %5627 = vmatpush2.msra.mxu0 0.0
  %5628 = vmatprep.subr.mxu0 0.0
  %5629 = vmatpush2.msra.mxu0 0.0
  %5630 = vmatprep.subr.mxu0 0.0
  %5631 = vmatpush2.msra.mxu0 0.0
  %5632 = vmatprep.subr.mxu0 0.0
  %5633 = vmatpush2.msra.mxu0 0.0
  %5634 = vmatprep.subr.mxu0 0.0
  %5635 = vmatpush2.msra.mxu0 0.0
  %5636 = vmatprep.subr.mxu0 0.0
  %5637 = vmatpush2.msra.mxu0 0.0
  %5638 = vmatprep.subr.mxu0 0.0
  %5639 = vmatpush2.msra.mxu0 0.0
  %5640 = vmatprep.mubr.f32.mxu0 0.0
  %5641 = vmatmul.mubr.f32.gmra.mxu0 %v5541
  %v5642 = vpop.f32.mrf.mxu0
  %v5643 = vadd.f32 %v5539, %v5642
  %v5644 = vpop.f32.mrf.mxu0
  %5645 = vmatprep.mubr.f32.mxu0 0.0
  %5646 = vmatmul.mubr.f32.gmra.mxu0 %v5544
  %v5647 = vpop.f32.mrf.mxu0
  %v5648 = vadd.f32 %v5539, %v5647
  %v5649 = vpop.f32.mrf.mxu0
  %5650 = vmatprep.mubr.f32.mxu0 0.0
  %5651 = vmatmul.mubr.f32.gmra.mxu0 %v5547
  %v5652 = vpop.f32.mrf.mxu0
  %v5653 = vadd.f32 %v5539, %v5652
  %v5654 = vpop.f32.mrf.mxu0
  %5655 = vmatprep.mubr.f32.mxu0 0.0
  %5656 = vmatmul.mubr.f32.gmra.mxu0 %v5550
  %v5657 = vpop.f32.mrf.mxu0
  %v5658 = vadd.f32 %v5539, %v5657
  %v5659 = vpop.f32.mrf.mxu0
  %5660 = vmatprep.mubr.f32.mxu0 0.0
  %5661 = vmatmul.mubr.f32.gmra.mxu0 %v5553
  %v5662 = vpop.f32.mrf.mxu0
  %v5663 = vadd.f32 %v5539, %v5662
  %v5664 = vpop.f32.mrf.mxu0
  %5665 = vmatprep.mubr.f32.mxu0 0.0
  %5666 = vmatmul.mubr.f32.gmra.mxu0 %v5556
  %v5667 = vpop.f32.mrf.mxu0
  %v5668 = vadd.f32 %v5539, %v5667
  %v5669 = vpop.f32.mrf.mxu0
  %5670 = vmatprep.mubr.f32.mxu0 0.0
  %5671 = vmatmul.mubr.f32.gmra.mxu0 %v5559
  %v5672 = vpop.f32.mrf.mxu0
  %v5673 = vadd.f32 %v5539, %v5672
  %v5674 = vpop.f32.mrf.mxu0
  %5675 = vmatprep.mubr.f32.mxu0 0.0
  %5676 = vmatmul.mubr.f32.gmra.mxu0 %v5562
  %v5677 = vpop.f32.mrf.mxu0
  %v5678 = vadd.f32 %v5539, %v5677
  %v5679 = vpop.f32.mrf.mxu0
  %5680 = vmatprep.mubr.f32.mxu0 0.0
  %5681 = vmatmul.mubr.f32.gmra.mxu0 %v5565
  %v5682 = vpop.f32.mrf.mxu0
  %v5683 = vadd.f32 %v5539, %v5682
  %v5684 = vpop.f32.mrf.mxu0
  %5685 = vmatprep.mubr.f32.mxu0 0.0
  %5686 = vmatmul.mubr.f32.gmra.mxu0 %v5568
  %v5687 = vpop.f32.mrf.mxu0
  %v5688 = vadd.f32 %v5539, %v5687
  %v5689 = vpop.f32.mrf.mxu0
  %5690 = vmatprep.mubr.f32.mxu0 0.0
  %5691 = vmatmul.mubr.f32.gmra.mxu0 %v5571
  %v5692 = vpop.f32.mrf.mxu0
  %v5693 = vadd.f32 %v5539, %v5692
  %v5694 = vpop.f32.mrf.mxu0
  %5695 = vmatprep.mubr.f32.mxu0 0.0
  %5696 = vmatmul.mubr.f32.gmra.mxu0 %v5574
  %v5697 = vpop.f32.mrf.mxu0
  %v5698 = vadd.f32 %v5539, %v5697
  %v5699 = vpop.f32.mrf.mxu0
  %5700 = vdwg.mxu0
  %v5701 = vsel %vm2617, %v5643, 0.0
  %v5702 = vsel %vm2617, %v5648, 0.0
  %v5703 = vadd.f32 %v5701, %v5702
  %v5704 = vsel %vm2617, %v5653, 0.0
  %v5705 = vadd.f32 %v5703, %v5704
  %v5706 = vsel %vm2617, %v5658, 0.0
  %v5707 = vadd.f32 %v5705, %v5706
  %v5708 = vsel %vm2617, %v5663, 0.0
  %v5709 = vadd.f32 %v5707, %v5708
  %v5710 = vsel %vm2617, %v5668, 0.0
  %v5711 = vadd.f32 %v5709, %v5710
  %v5712 = vsel %vm2617, %v5673, 0.0
  %v5713 = vadd.f32 %v5711, %v5712
  %v5714 = vsel %vm2617, %v5678, 0.0
  %v5715 = vadd.f32 %v5713, %v5714
  %v5716 = vsel %vm2617, %v5683, 0.0
  %v5717 = vadd.f32 %v5715, %v5716
  %v5718 = vsel %vm2617, %v5688, 0.0
  %v5719 = vadd.f32 %v5717, %v5718
  %v5720 = vsel %vm2617, %v5693, 0.0
  %v5721 = vadd.f32 %v5719, %v5720
  %vm5722 = vcmask 259072
  %v5723 = vsel %vm5722, %v5698, 0.0
  %v5724 = vadd.f32 %v5721, %v5723
  %v5725 = vrot.slane %v5724, 4
  %v5726 = vadd.f32 %v5724, %v5725
  %v5727 = vrot.slane %v5726, 2
  %v5728 = vadd.f32 %v5726, %v5727
  %v5729 = vrot.slane %v5728, 1
  %v5730 = vadd.f32 %v5728, %v5729
  %v5731 = vrcp.pop 94.0
  %v5732 = vmul.f32 %v5730, %v5731
  %v5733 = vsub.f32 %v5643, %v5732
  %v5734 = vsub.f32 %v5648, %v5732
  %v5735 = vsub.f32 %v5653, %v5732
  %v5736 = vsub.f32 %v5658, %v5732
  %v5737 = vsub.f32 %v5663, %v5732
  %v5738 = vsub.f32 %v5668, %v5732
  %v5739 = vsub.f32 %v5673, %v5732
  %v5740 = vsub.f32 %v5678, %v5732
  %v5741 = vsub.f32 %v5683, %v5732
  %v5742 = vsub.f32 %v5688, %v5732
  %v5743 = vsub.f32 %v5693, %v5732
  %v5744 = vsub.f32 %v5698, %v5732
  %v5745 = vmul.f32 %v5733, %v5733
  %v5746 = vmul.f32 %v5734, %v5734
  %v5747 = vmul.f32 %v5735, %v5735
  %v5748 = vmul.f32 %v5736, %v5736
  %v5749 = vmul.f32 %v5737, %v5737
  %v5750 = vmul.f32 %v5738, %v5738
  %v5751 = vmul.f32 %v5739, %v5739
  %v5752 = vmul.f32 %v5740, %v5740
  %v5753 = vmul.f32 %v5741, %v5741
  %v5754 = vmul.f32 %v5742, %v5742
  %v5755 = vmul.f32 %v5743, %v5743
  %v5756 = vmul.f32 %v5744, %v5744
  %v5757 = vsel %vm2617, %v5745, 0.0
  %v5758 = vsel %vm2617, %v5746, 0.0
  %v5759 = vadd.f32 %v5757, %v5758
  %v5760 = vsel %vm2617, %v5747, 0.0
  %v5761 = vadd.f32 %v5759, %v5760
  %v5762 = vsel %vm2617, %v5748, 0.0
  %v5763 = vadd.f32 %v5761, %v5762
  %v5764 = vsel %vm2617, %v5749, 0.0
  %v5765 = vadd.f32 %v5763, %v5764
  %v5766 = vsel %vm2617, %v5750, 0.0
  %v5767 = vadd.f32 %v5765, %v5766
  %v5768 = vsel %vm2617, %v5751, 0.0
  %v5769 = vadd.f32 %v5767, %v5768
  %v5770 = vsel %vm2617, %v5752, 0.0
  %v5771 = vadd.f32 %v5769, %v5770
  %v5772 = vsel %vm2617, %v5753, 0.0
  %v5773 = vadd.f32 %v5771, %v5772
  %v5774 = vsel %vm2617, %v5754, 0.0
  %v5775 = vadd.f32 %v5773, %v5774
  %v5776 = vsel %vm2617, %v5755, 0.0
  %v5777 = vadd.f32 %v5775, %v5776
  %v5778 = vsel %vm5722, %v5756, 0.0
  %v5779 = vadd.f32 %v5777, %v5778
  %v5780 = vrot.slane %v5779, 4
  %v5781 = vadd.f32 %v5779, %v5780
  %v5782 = vrot.slane %v5781, 2
  %v5783 = vadd.f32 %v5781, %v5782
  %v5784 = vrot.slane %v5783, 1
  %v5785 = vadd.f32 %v5783, %v5784
  %v5786 = vmul.f32 %v5785, %v5731
  %v5787 = vadd.f32 %v5786, 1e-05
  %v5788 = vrsqrt.pop %v5787
  %v5789 = vmul.f32 %v5733, %v5788
  %v5790 = vmul.f32 %v5734, %v5788
  %v5791 = vmul.f32 %v5735, %v5788
  %v5792 = vmul.f32 %v5736, %v5788
  %v5793 = vmul.f32 %v5737, %v5788
  %v5794 = vmul.f32 %v5738, %v5788
  %v5795 = vmul.f32 %v5739, %v5788
  %v5796 = vmul.f32 %v5740, %v5788
  %v5797 = vmul.f32 %v5741, %v5788
  %v5798 = vmul.f32 %v5742, %v5788
  %v5799 = vmul.f32 %v5743, %v5788
  %v5800 = vmul.f32 %v5744, %v5788
  %v5801 = vld [vmem:[%s11 + $0x1] sm:$0x1]
  %v5802 = vlaneseq
  %v5803 = vshrl.u32 %v5802, 7
  %v5804 = vsub.s32 0, %v5803
  %v5805 = vrot.slane %v5801, %v5804
  %v5806 = vmul.f32 %v5789, %v5805
  %v5807 = vmul.f32 %v5790, %v5805
  %v5808 = vmul.f32 %v5791, %v5805
  %v5809 = vmul.f32 %v5792, %v5805
  %v5810 = vmul.f32 %v5793, %v5805
  %v5811 = vmul.f32 %v5794, %v5805
  %v5812 = vmul.f32 %v5795, %v5805
  %v5813 = vmul.f32 %v5796, %v5805
  %v5814 = vmul.f32 %v5797, %v5805
  %v5815 = vmul.f32 %v5798, %v5805
  %v5816 = vmul.f32 %v5799, %v5805
  %v5817 = vmul.f32 %v5800, %v5805
  %v5818 = vld [vmem:[%s11 + $0x2] sm:$0x1]
  %v5819 = vlaneseq
  %v5820 = vshrl.u32 %v5819, 7
  %v5821 = vsub.s32 0, %v5820
  %v5822 = vrot.slane %v5818, %v5821
  %v5823 = vadd.f32 %v5806, %v5822
  %v5824 = vadd.f32 %v5807, %v5822
  %v5825 = vadd.f32 %v5808, %v5822
  %v5826 = vadd.f32 %v5809, %v5822
  %v5827 = vadd.f32 %v5810, %v5822
  %v5828 = vadd.f32 %v5811, %v5822
  %v5829 = vadd.f32 %v5812, %v5822
  %v5830 = vadd.f32 %v5813, %v5822
  %v5831 = vadd.f32 %v5814, %v5822
  %v5832 = vadd.f32 %v5815, %v5822
  %v5833 = vadd.f32 %v5816, %v5822
  %v5834 = vadd.f32 %v5817, %v5822
  %vm5835 = vcmp.ge.f32.partialorder %v5823, 0.0
  %vm5836 = vcmp.ge.f32.partialorder %v5824, 0.0
  %vm5837 = vcmp.ge.f32.partialorder %v5825, 0.0
  %vm5838 = vcmp.ge.f32.partialorder %v5826, 0.0
  %vm5839 = vcmp.ge.f32.partialorder %v5827, 0.0
  %vm5840 = vcmp.ge.f32.partialorder %v5828, 0.0
  %vm5841 = vcmp.ge.f32.partialorder %v5829, 0.0
  %vm5842 = vcmp.ge.f32.partialorder %v5830, 0.0
  %vm5843 = vcmp.ge.f32.partialorder %v5831, 0.0
  %vm5844 = vcmp.ge.f32.partialorder %v5832, 0.0
  %vm5845 = vcmp.ge.f32.partialorder %v5833, 0.0
  %vm5846 = vcmp.ge.f32.partialorder %v5834, 0.0
  %v5847 = vmul.f32 %v5823, 0.2
  %v5848 = vmul.f32 %v5824, 0.2
  %v5849 = vmul.f32 %v5825, 0.2
  %v5850 = vmul.f32 %v5826, 0.2
  %v5851 = vmul.f32 %v5827, 0.2
  %v5852 = vmul.f32 %v5828, 0.2
  %v5853 = vmul.f32 %v5829, 0.2
  %v5854 = vmul.f32 %v5830, 0.2
  %v5855 = vmul.f32 %v5831, 0.2
  %v5856 = vmul.f32 %v5832, 0.2
  %v5857 = vmul.f32 %v5833, 0.2
  %v5858 = vmul.f32 %v5834, 0.2
  %v5859 = vsel %vm5835, %v5823, %v5847
  %v5860 = vsel %vm5836, %v5824, %v5848
  %v5861 = vsel %vm5837, %v5825, %v5849
  %v5862 = vsel %vm5838, %v5826, %v5850
  %v5863 = vsel %vm5839, %v5827, %v5851
  %v5864 = vsel %vm5840, %v5828, %v5852
  %v5865 = vsel %vm5841, %v5829, %v5853
  %v5866 = vsel %vm5842, %v5830, %v5854
  %v5867 = vsel %vm5843, %v5831, %v5855
  %v5868 = vsel %vm5844, %v5832, %v5856
  %v5869 = vsel %vm5845, %v5833, %v5857
  %v5870 = vsel %vm5846, %v5834, %v5858
  %v5871 = vld [vmem:[%s12] sm:$0xff]
  %v5872 = vld [vmem:[%s12 + $0x8] sm:$0xff]
  %v5873 = vld [vmem:[%s12 + $0x10] sm:$0xff]
  %v5874 = vld [vmem:[%s12 + $0x18] sm:$0xff]
  %v5875 = vld [vmem:[%s12 + $0x20] sm:$0xff]
  %vm5876 = vcmask 769024
  %v5878 = vsel %vm5876, %v5871, 0
  %v5881 = vsel %vm5876, %v5872, 0
  %v5884 = vsel %vm5876, %v5873, 0
  %v5887 = vsel %vm5876, %v5874, 0
  %v5890 = vsel %vm5876, %v5875, 0
  %vm5892 = vcmask 1045504
  %v5894 = vsel %vm5892, %v5870, 0
  %5896 = vmatprep.subr.mxu0 0.0
  %5897 = vmatpush1.msra.mxu0 0.0
  %5898 = vmatprep.subr.mxu0 0.0
  %5899 = vmatpush1.msra.mxu0 0.0
  %5900 = vmatprep.subr.mxu0 0.0
  %5901 = vmatpush1.msra.mxu0 0.0
  %5902 = vmatprep.subr.mxu0 0.0
  %5903 = vmatpush1.msra.mxu0 0.0
  %5904 = vmatprep.subr.mxu0 0.0
  %5905 = vmatpush1.msra.mxu0 %v5894
  %5906 = vmatprep.subr.mxu0 0.0
  %5907 = vmatpush1.msra.mxu0 %v5869
  %5908 = vmatprep.subr.mxu0 0.0
  %5909 = vmatpush1.msra.mxu0 %v5868
  %5910 = vmatprep.subr.mxu0 0.0
  %5911 = vmatpush1.msra.mxu0 %v5867
  %5912 = vmatprep.subr.mxu0 0.0
  %5913 = vmatpush1.msra.mxu0 %v5866
  %5914 = vmatprep.subr.mxu0 0.0
  %5915 = vmatpush1.msra.mxu0 %v5865
  %5916 = vmatprep.subr.mxu0 0.0
  %5917 = vmatpush1.msra.mxu0 %v5864
  %5918 = vmatprep.subr.mxu0 0.0
  %5919 = vmatpush1.msra.mxu0 %v5863
  %5920 = vmatprep.subr.mxu0 0.0
  %5921 = vmatpush1.msra.mxu0 %v5862
  %5922 = vmatprep.subr.mxu0 0.0
  %5923 = vmatpush1.msra.mxu0 %v5861
  %5924 = vmatprep.subr.mxu0 0.0
  %5925 = vmatpush1.msra.mxu0 %v5860
  %5926 = vmatprep.subr.mxu0 0.0
  %5927 = vmatpush1.msra.mxu0 %v5859
  %5928 = vmatprep.subr.mxu0 0.0
  %5929 = vmatpush2.msra.mxu0 0.0
  %5930 = vmatprep.subr.mxu0 0.0
  %5931 = vmatpush2.msra.mxu0 0.0
  %5932 = vmatprep.subr.mxu0 0.0
  %5933 = vmatpush2.msra.mxu0 0.0
  %5934 = vmatprep.subr.mxu0 0.0
  %5935 = vmatpush2.msra.mxu0 0.0
  %5936 = vmatprep.subr.mxu0 0.0
  %5937 = vmatpush2.msra.mxu0 0.0
  %5938 = vmatprep.subr.mxu0 0.0
  %5939 = vmatpush2.msra.mxu0 0.0
  %5940 = vmatprep.subr.mxu0 0.0
  %5941 = vmatpush2.msra.mxu0 0.0
  %5942 = vmatprep.subr.mxu0 0.0
  %5943 = vmatpush2.msra.mxu0 0.0
  %5944 = vmatprep.subr.mxu0 0.0
  %5945 = vmatpush2.msra.mxu0 0.0
  %5946 = vmatprep.subr.mxu0 0.0
  %5947 = vmatpush2.msra.mxu0 0.0
  %5948 = vmatprep.subr.mxu0 0.0
  %5949 = vmatpush2.msra.mxu0 0.0
  %5950 = vmatprep.subr.mxu0 0.0
  %5951 = vmatpush2.msra.mxu0 0.0
  %5952 = vmatprep.subr.mxu0 0.0
  %5953 = vmatpush2.msra.mxu0 0.0
  %5954 = vmatprep.subr.mxu0 0.0
  %5955 = vmatpush2.msra.mxu0 0.0
  %5956 = vmatprep.subr.mxu0 0.0
  %5957 = vmatpush2.msra.mxu0 0.0
  %5958 = vmatprep.subr.mxu0 0.0
  %5959 = vmatpush2.msra.mxu0 0.0
  %5960 = vmatprep.mubr.f32.mxu0 0.0
  %5961 = vmatmul.mubr.f32.gmra.mxu0 %v5878
  %v5962 = vpop.f32.mrf.mxu0
  %v5963 = vadd.f32 0.0, %v5962
  %v5964 = vpop.f32.mrf.mxu0
  %5965 = vmatprep.mubr.f32.mxu0 0.0
  %5966 = vmatmul.mubr.f32.gmra.mxu0 %v5881
  %v5967 = vpop.f32.mrf.mxu0
  %v5968 = vadd.f32 0.0, %v5967
  %v5969 = vpop.f32.mrf.mxu0
  %5970 = vmatprep.mubr.f32.mxu0 0.0
  %5971 = vmatmul.mubr.f32.gmra.mxu0 %v5884
  %v5972 = vpop.f32.mrf.mxu0
  %v5973 = vadd.f32 0.0, %v5972
  %v5974 = vpop.f32.mrf.mxu0
  %5975 = vmatprep.mubr.f32.mxu0 0.0
  %5976 = vmatmul.mubr.f32.gmra.mxu0 %v5887
  %v5977 = vpop.f32.mrf.mxu0
  %v5978 = vadd.f32 0.0, %v5977
  %v5979 = vpop.f32.mrf.mxu0
  %5980 = vmatprep.mubr.f32.mxu0 0.0
  %5981 = vmatmul.mubr.f32.gmra.mxu0 %v5890
  %v5982 = vpop.f32.mrf.mxu0
  %v5983 = vadd.f32 0.0, %v5982
  %v5984 = vpop.f32.mrf.mxu0
  %5985 = vdwg.mxu0
  %v5986 = vld [vmem:[%s13] sm:$0xff]
  %v5987 = vld [vmem:[%s13 + $0x8] sm:$0xff]
  %v5988 = vld [vmem:[%s13 + $0x10] sm:$0xff]
  %v5989 = vld [vmem:[%s13 + $0x18] sm:$0xff]
  %s5990 = scalar_lea.vmem %s12, 40
  %v5991 = vld [vmem:[%s5990] sm:$0xff]
  %v5992 = vld [vmem:[%s5990 + $0x8] sm:$0xff]
  %v5993 = vld [vmem:[%s5990 + $0x10] sm:$0xff]
  %v5994 = vld [vmem:[%s5990 + $0x18] sm:$0xff]
  %v5995 = vld [vmem:[%s5990 + $0x20] sm:$0xff]
  %v5997 = vsel %vm5876, %v5991, 0
  %v6000 = vsel %vm5876, %v5992, 0
  %v6003 = vsel %vm5876, %v5993, 0
  %v6006 = vsel %vm5876, %v5994, 0
  %v6009 = vsel %vm5876, %v5995, 0
  %6011 = vmatprep.subr.mxu0 0.0
  %6012 = vmatpush1.msra.mxu0 0.0
  %6013 = vmatprep.subr.mxu0 0.0
  %6014 = vmatpush1.msra.mxu0 0.0
  %6015 = vmatprep.subr.mxu0 0.0
  %6016 = vmatpush1.msra.mxu0 0.0
  %6017 = vmatprep.subr.mxu0 0.0
  %6018 = vmatpush1.msra.mxu0 0.0
  %6019 = vmatprep.subr.mxu0 0.0
  %6020 = vmatpush1.msra.mxu0 %v5894
  %6021 = vmatprep.subr.mxu0 0.0
  %6022 = vmatpush1.msra.mxu0 %v5869
  %6023 = vmatprep.subr.mxu0 0.0
  %6024 = vmatpush1.msra.mxu0 %v5868
  %6025 = vmatprep.subr.mxu0 0.0
  %6026 = vmatpush1.msra.mxu0 %v5867
  %6027 = vmatprep.subr.mxu0 0.0
  %6028 = vmatpush1.msra.mxu0 %v5866
  %6029 = vmatprep.subr.mxu0 0.0
  %6030 = vmatpush1.msra.mxu0 %v5865
  %6031 = vmatprep.subr.mxu0 0.0
  %6032 = vmatpush1.msra.mxu0 %v5864
  %6033 = vmatprep.subr.mxu0 0.0
  %6034 = vmatpush1.msra.mxu0 %v5863
  %6035 = vmatprep.subr.mxu0 0.0
  %6036 = vmatpush1.msra.mxu0 %v5862
  %6037 = vmatprep.subr.mxu0 0.0
  %6038 = vmatpush1.msra.mxu0 %v5861
  %6039 = vmatprep.subr.mxu0 0.0
  %6040 = vmatpush1.msra.mxu0 %v5860
  %6041 = vmatprep.subr.mxu0 0.0
  %6042 = vmatpush1.msra.mxu0 %v5859
  %6043 = vmatprep.subr.mxu0 0.0
  %6044 = vmatpush2.msra.mxu0 0.0
  %6045 = vmatprep.subr.mxu0 0.0
  %6046 = vmatpush2.msra.mxu0 0.0
  %6047 = vmatprep.subr.mxu0 0.0
  %6048 = vmatpush2.msra.mxu0 0.0
  %6049 = vmatprep.subr.mxu0 0.0
  %6050 = vmatpush2.msra.mxu0 0.0
  %6051 = vmatprep.subr.mxu0 0.0
  %6052 = vmatpush2.msra.mxu0 0.0
  %6053 = vmatprep.subr.mxu0 0.0
  %6054 = vmatpush2.msra.mxu0 0.0
  %6055 = vmatprep.subr.mxu0 0.0
  %6056 = vmatpush2.msra.mxu0 0.0
  %6057 = vmatprep.subr.mxu0 0.0
  %6058 = vmatpush2.msra.mxu0 0.0
  %6059 = vmatprep.subr.mxu0 0.0
  %6060 = vmatpush2.msra.mxu0 0.0
  %6061 = vmatprep.subr.mxu0 0.0
  %6062 = vmatpush2.msra.mxu0 0.0
  %6063 = vmatprep.subr.mxu0 0.0
  %6064 = vmatpush2.msra.mxu0 0.0
  %6065 = vmatprep.subr.mxu0 0.0
  %6066 = vmatpush2.msra.mxu0 0.0
  %6067 = vmatprep.subr.mxu0 0.0
  %6068 = vmatpush2.msra.mxu0 0.0
  %6069 = vmatprep.subr.mxu0 0.0
  %6070 = vmatpush2.msra.mxu0 0.0
  %6071 = vmatprep.subr.mxu0 0.0
  %6072 = vmatpush2.msra.mxu0 0.0
  %6073 = vmatprep.subr.mxu0 0.0
  %6074 = vmatpush2.msra.mxu0 0.0
  %6075 = vmatprep.mubr.f32.mxu0 0.0
  %6076 = vmatmul.mubr.f32.gmra.mxu0 %v5997
  %v6077 = vpop.f32.mrf.mxu0
  %v6078 = vadd.f32 0.0, %v6077
  %v6079 = vpop.f32.mrf.mxu0
  %6080 = vmatprep.mubr.f32.mxu0 0.0
  %6081 = vmatmul.mubr.f32.gmra.mxu0 %v6000
  %v6082 = vpop.f32.mrf.mxu0
  %v6083 = vadd.f32 0.0, %v6082
  %v6084 = vpop.f32.mrf.mxu0
  %6085 = vmatprep.mubr.f32.mxu0 0.0
  %6086 = vmatmul.mubr.f32.gmra.mxu0 %v6003
  %v6087 = vpop.f32.mrf.mxu0
  %v6088 = vadd.f32 0.0, %v6087
  %v6089 = vpop.f32.mrf.mxu0
  %6090 = vmatprep.mubr.f32.mxu0 0.0
  %6091 = vmatmul.mubr.f32.gmra.mxu0 %v6006
  %v6092 = vpop.f32.mrf.mxu0
  %v6093 = vadd.f32 0.0, %v6092
  %v6094 = vpop.f32.mrf.mxu0
  %6095 = vmatprep.mubr.f32.mxu0 0.0
  %6096 = vmatmul.mubr.f32.gmra.mxu0 %v6009
  %v6097 = vpop.f32.mrf.mxu0
  %v6098 = vadd.f32 0.0, %v6097
  %v6099 = vpop.f32.mrf.mxu0
  %6100 = vdwg.mxu0
  %s6101 = scalar_lea.vmem %s13, 32
  %v6102 = vld [vmem:[%s6101] sm:$0xff]
  %v6103 = vld [vmem:[%s6101 + $0x8] sm:$0xff]
  %v6104 = vld [vmem:[%s6101 + $0x10] sm:$0xff]
  %v6105 = vld [vmem:[%s6101 + $0x18] sm:$0xff]
  %v6107 = vsel %vm2617, %v6078, 0
  %v6110 = vsel %vm2617, %v6083, 0
  %v6113 = vsel %vm2617, %v6088, 0
  %v6116 = vsel %vm2617, %v6093, 0
  %v6119 = vsel %vm2617, %v6098, 0
  %6121 = vmatprep.subr.mxu0 0.0
  %6122 = vmatpush1.msra.mxu0 0.0
  %6123 = vmatprep.subr.mxu0 0.0
  %6124 = vmatpush1.msra.mxu0 0.0
  %6125 = vmatprep.subr.mxu0 0.0
  %6126 = vmatpush1.msra.mxu0 0.0
  %6127 = vmatprep.subr.mxu0 0.0
  %6128 = vmatpush1.msra.mxu0 0.0
  %6129 = vmatprep.subr.mxu0 0.0
  %6130 = vmatpush1.msra.mxu0 0.0
  %6131 = vmatprep.subr.mxu0 0.0
  %6132 = vmatpush1.msra.mxu0 0.0
  %6133 = vmatprep.subr.mxu0 0.0
  %6134 = vmatpush1.msra.mxu0 0.0
  %6135 = vmatprep.subr.mxu0 0.0
  %6136 = vmatpush1.msra.mxu0 0.0
  %6137 = vmatprep.subr.mxu0 0.0
  %6138 = vmatpush1.msra.mxu0 0.0
  %6139 = vmatprep.subr.mxu0 0.0
  %6140 = vmatpush1.msra.mxu0 0.0
  %6141 = vmatprep.subr.mxu0 0.0
  %6142 = vmatpush1.msra.mxu0 0.0
  %6143 = vmatprep.subr.mxu0 0.0
  %6144 = vmatpush1.msra.mxu0 0.0
  %6145 = vmatprep.subr.mxu0 0.0
  %6146 = vmatpush1.msra.mxu0 %v6105
  %6147 = vmatprep.subr.mxu0 0.0
  %6148 = vmatpush1.msra.mxu0 %v6104
  %6149 = vmatprep.subr.mxu0 0.0
  %6150 = vmatpush1.msra.mxu0 %v6103
  %6151 = vmatprep.subr.mxu0 0.0
  %6152 = vmatpush1.msra.mxu0 %v6102
  %6153 = vmatprep.subr.mxu0 0.0
  %6154 = vmatpush2.msra.mxu0 0.0
  %6155 = vmatprep.subr.mxu0 0.0
  %6156 = vmatpush2.msra.mxu0 0.0
  %6157 = vmatprep.subr.mxu0 0.0
  %6158 = vmatpush2.msra.mxu0 0.0
  %6159 = vmatprep.subr.mxu0 0.0
  %6160 = vmatpush2.msra.mxu0 0.0
  %6161 = vmatprep.subr.mxu0 0.0
  %6162 = vmatpush2.msra.mxu0 0.0
  %6163 = vmatprep.subr.mxu0 0.0
  %6164 = vmatpush2.msra.mxu0 0.0
  %6165 = vmatprep.subr.mxu0 0.0
  %6166 = vmatpush2.msra.mxu0 0.0
  %6167 = vmatprep.subr.mxu0 0.0
  %6168 = vmatpush2.msra.mxu0 0.0
  %6169 = vmatprep.subr.mxu0 0.0
  %6170 = vmatpush2.msra.mxu0 0.0
  %6171 = vmatprep.subr.mxu0 0.0
  %6172 = vmatpush2.msra.mxu0 0.0
  %6173 = vmatprep.subr.mxu0 0.0
  %6174 = vmatpush2.msra.mxu0 0.0
  %6175 = vmatprep.subr.mxu0 0.0
  %6176 = vmatpush2.msra.mxu0 0.0
  %6177 = vmatprep.subr.mxu0 0.0
  %6178 = vmatpush2.msra.mxu0 0.0
  %6179 = vmatprep.subr.mxu0 0.0
  %6180 = vmatpush2.msra.mxu0 0.0
  %6181 = vmatprep.subr.mxu0 0.0
  %6182 = vmatpush2.msra.mxu0 0.0
  %6183 = vmatprep.subr.mxu0 0.0
  %6184 = vmatpush2.msra.mxu0 0.0
  %6185 = vmatprep.mubr.f32.mxu0 0.0
  %6186 = vmatmul.mubr.f32.gmra.mxu0 %v6107
  %v6187 = vpop.f32.mrf.mxu0
  %v6188 = vadd.f32 0.0, %v6187
  %v6189 = vpop.f32.mrf.mxu0
  %6190 = vmatprep.mubr.f32.mxu0 0.0
  %6191 = vmatmul.mubr.f32.gmra.mxu0 %v6110
  %v6192 = vpop.f32.mrf.mxu0
  %v6193 = vadd.f32 0.0, %v6192
  %v6194 = vpop.f32.mrf.mxu0
  %6195 = vmatprep.mubr.f32.mxu0 0.0
  %6196 = vmatmul.mubr.f32.gmra.mxu0 %v6113
  %v6197 = vpop.f32.mrf.mxu0
  %v6198 = vadd.f32 0.0, %v6197
  %v6199 = vpop.f32.mrf.mxu0
  %6200 = vmatprep.mubr.f32.mxu0 0.0
  %6201 = vmatmul.mubr.f32.gmra.mxu0 %v6116
  %v6202 = vpop.f32.mrf.mxu0
  %v6203 = vadd.f32 0.0, %v6202
  %v6204 = vpop.f32.mrf.mxu0
  %6205 = vmatprep.mubr.f32.mxu0 0.0
  %6206 = vmatmul.mubr.f32.gmra.mxu0 %v6119
  %v6207 = vpop.f32.mrf.mxu0
  %v6208 = vadd.f32 0.0, %v6207
  %v6209 = vpop.f32.mrf.mxu0
  %6210 = vdwg.mxu0
  %v6212 = vsel %vm2617, %v5963, 0
  %v6215 = vsel %vm2617, %v5968, 0
  %v6218 = vsel %vm2617, %v5973, 0
  %v6221 = vsel %vm2617, %v5978, 0
  %v6224 = vsel %vm2617, %v5983, 0
  %6226 = vmatprep.subr.mxu0 0.0
  %6227 = vmatpush1.msra.mxu0 0.0
  %6228 = vmatprep.subr.mxu0 0.0
  %6229 = vmatpush1.msra.mxu0 0.0
  %6230 = vmatprep.subr.mxu0 0.0
  %6231 = vmatpush1.msra.mxu0 0.0
  %6232 = vmatprep.subr.mxu0 0.0
  %6233 = vmatpush1.msra.mxu0 0.0
  %6234 = vmatprep.subr.mxu0 0.0
  %6235 = vmatpush1.msra.mxu0 0.0
  %6236 = vmatprep.subr.mxu0 0.0
  %6237 = vmatpush1.msra.mxu0 0.0
  %6238 = vmatprep.subr.mxu0 0.0
  %6239 = vmatpush1.msra.mxu0 0.0
  %6240 = vmatprep.subr.mxu0 0.0
  %6241 = vmatpush1.msra.mxu0 0.0
  %6242 = vmatprep.subr.mxu0 0.0
  %6243 = vmatpush1.msra.mxu0 0.0
  %6244 = vmatprep.subr.mxu0 0.0
  %6245 = vmatpush1.msra.mxu0 0.0
  %6246 = vmatprep.subr.mxu0 0.0
  %6247 = vmatpush1.msra.mxu0 0.0
  %6248 = vmatprep.subr.mxu0 0.0
  %6249 = vmatpush1.msra.mxu0 0.0
  %6250 = vmatprep.subr.mxu0 0.0
  %6251 = vmatpush1.msra.mxu0 %v5989
  %6252 = vmatprep.subr.mxu0 0.0
  %6253 = vmatpush1.msra.mxu0 %v5988
  %6254 = vmatprep.subr.mxu0 0.0
  %6255 = vmatpush1.msra.mxu0 %v5987
  %6256 = vmatprep.subr.mxu0 0.0
  %6257 = vmatpush1.msra.mxu0 %v5986
  %6258 = vmatprep.subr.mxu0 0.0
  %6259 = vmatpush2.msra.mxu0 0.0
  %6260 = vmatprep.subr.mxu0 0.0
  %6261 = vmatpush2.msra.mxu0 0.0
  %6262 = vmatprep.subr.mxu0 0.0
  %6263 = vmatpush2.msra.mxu0 0.0
  %6264 = vmatprep.subr.mxu0 0.0
  %6265 = vmatpush2.msra.mxu0 0.0
  %6266 = vmatprep.subr.mxu0 0.0
  %6267 = vmatpush2.msra.mxu0 0.0
  %6268 = vmatprep.subr.mxu0 0.0
  %6269 = vmatpush2.msra.mxu0 0.0
  %6270 = vmatprep.subr.mxu0 0.0
  %6271 = vmatpush2.msra.mxu0 0.0
  %6272 = vmatprep.subr.mxu0 0.0
  %6273 = vmatpush2.msra.mxu0 0.0
  %6274 = vmatprep.subr.mxu0 0.0
  %6275 = vmatpush2.msra.mxu0 0.0
  %6276 = vmatprep.subr.mxu0 0.0
  %6277 = vmatpush2.msra.mxu0 0.0
  %6278 = vmatprep.subr.mxu0 0.0
  %6279 = vmatpush2.msra.mxu0 0.0
  %6280 = vmatprep.subr.mxu0 0.0
  %6281 = vmatpush2.msra.mxu0 0.0
  %6282 = vmatprep.subr.mxu0 0.0
  %6283 = vmatpush2.msra.mxu0 0.0
  %6284 = vmatprep.subr.mxu0 0.0
  %6285 = vmatpush2.msra.mxu0 0.0
  %6286 = vmatprep.subr.mxu0 0.0
  %6287 = vmatpush2.msra.mxu0 0.0
  %6288 = vmatprep.subr.mxu0 0.0
  %6289 = vmatpush2.msra.mxu0 0.0
  %6290 = vmatprep.mubr.f32.mxu0 0.0
  %6291 = vmatmul.mubr.f32.gmra.mxu0 %v6212
  %v6292 = vpop.f32.mrf.mxu0
  %v6293 = vadd.f32 %v6188, %v6292
  %v6294 = vpop.f32.mrf.mxu0
  %6295 = vmatprep.mubr.f32.mxu0 0.0
  %6296 = vmatmul.mubr.f32.gmra.mxu0 %v6215
  %v6297 = vpop.f32.mrf.mxu0
  %v6298 = vadd.f32 %v6193, %v6297
  %v6299 = vpop.f32.mrf.mxu0
  %6300 = vmatprep.mubr.f32.mxu0 0.0
  %6301 = vmatmul.mubr.f32.gmra.mxu0 %v6218
  %v6302 = vpop.f32.mrf.mxu0
  %v6303 = vadd.f32 %v6198, %v6302
  %v6304 = vpop.f32.mrf.mxu0
  %6305 = vmatprep.mubr.f32.mxu0 0.0
  %6306 = vmatmul.mubr.f32.gmra.mxu0 %v6221
  %v6307 = vpop.f32.mrf.mxu0
  %v6308 = vadd.f32 %v6203, %v6307
  %v6309 = vpop.f32.mrf.mxu0
  %6310 = vmatprep.mubr.f32.mxu0 0.0
  %6311 = vmatmul.mubr.f32.gmra.mxu0 %v6224
  %v6312 = vpop.f32.mrf.mxu0
  %v6313 = vadd.f32 %v6208, %v6312
  %v6314 = vpop.f32.mrf.mxu0
  %6315 = vdwg.mxu0
  %s6316 = scalar_lea.vmem %s12, 80
  %v6317 = vld [vmem:[%s6316] sm:$0xff]
  %v6318 = vld [vmem:[%s6316 + $0x8] sm:$0xff]
  %v6319 = vld [vmem:[%s6316 + $0x10] sm:$0xff]
  %v6320 = vld [vmem:[%s6316 + $0x18] sm:$0xff]
  %v6321 = vld [vmem:[%s6316 + $0x20] sm:$0xff]
  %v6323 = vsel %vm5876, %v6317, 0
  %v6326 = vsel %vm5876, %v6318, 0
  %v6329 = vsel %vm5876, %v6319, 0
  %v6332 = vsel %vm5876, %v6320, 0
  %v6335 = vsel %vm5876, %v6321, 0
  %6337 = vmatprep.subr.mxu0 0.0
  %6338 = vmatpush1.msra.mxu0 0.0
  %6339 = vmatprep.subr.mxu0 0.0
  %6340 = vmatpush1.msra.mxu0 0.0
  %6341 = vmatprep.subr.mxu0 0.0
  %6342 = vmatpush1.msra.mxu0 0.0
  %6343 = vmatprep.subr.mxu0 0.0
  %6344 = vmatpush1.msra.mxu0 0.0
  %6345 = vmatprep.subr.mxu0 0.0
  %6346 = vmatpush1.msra.mxu0 %v5894
  %6347 = vmatprep.subr.mxu0 0.0
  %6348 = vmatpush1.msra.mxu0 %v5869
  %6349 = vmatprep.subr.mxu0 0.0
  %6350 = vmatpush1.msra.mxu0 %v5868
  %6351 = vmatprep.subr.mxu0 0.0
  %6352 = vmatpush1.msra.mxu0 %v5867
  %6353 = vmatprep.subr.mxu0 0.0
  %6354 = vmatpush1.msra.mxu0 %v5866
  %6355 = vmatprep.subr.mxu0 0.0
  %6356 = vmatpush1.msra.mxu0 %v5865
  %6357 = vmatprep.subr.mxu0 0.0
  %6358 = vmatpush1.msra.mxu0 %v5864
  %6359 = vmatprep.subr.mxu0 0.0
  %6360 = vmatpush1.msra.mxu0 %v5863
  %6361 = vmatprep.subr.mxu0 0.0
  %6362 = vmatpush1.msra.mxu0 %v5862
  %6363 = vmatprep.subr.mxu0 0.0
  %6364 = vmatpush1.msra.mxu0 %v5861
  %6365 = vmatprep.subr.mxu0 0.0
  %6366 = vmatpush1.msra.mxu0 %v5860
  %6367 = vmatprep.subr.mxu0 0.0
  %6368 = vmatpush1.msra.mxu0 %v5859
  %6369 = vmatprep.subr.mxu0 0.0
  %6370 = vmatpush2.msra.mxu0 0.0
  %6371 = vmatprep.subr.mxu0 0.0
  %6372 = vmatpush2.msra.mxu0 0.0
  %6373 = vmatprep.subr.mxu0 0.0
  %6374 = vmatpush2.msra.mxu0 0.0
  %6375 = vmatprep.subr.mxu0 0.0
  %6376 = vmatpush2.msra.mxu0 0.0
  %6377 = vmatprep.subr.mxu0 0.0
  %6378 = vmatpush2.msra.mxu0 0.0
  %6379 = vmatprep.subr.mxu0 0.0
  %6380 = vmatpush2.msra.mxu0 0.0
  %6381 = vmatprep.subr.mxu0 0.0
  %6382 = vmatpush2.msra.mxu0 0.0
  %6383 = vmatprep.subr.mxu0 0.0
  %6384 = vmatpush2.msra.mxu0 0.0
  %6385 = vmatprep.subr.mxu0 0.0
  %6386 = vmatpush2.msra.mxu0 0.0
  %6387 = vmatprep.subr.mxu0 0.0
  %6388 = vmatpush2.msra.mxu0 0.0
  %6389 = vmatprep.subr.mxu0 0.0
  %6390 = vmatpush2.msra.mxu0 0.0
  %6391 = vmatprep.subr.mxu0 0.0
  %6392 = vmatpush2.msra.mxu0 0.0
  %6393 = vmatprep.subr.mxu0 0.0
  %6394 = vmatpush2.msra.mxu0 0.0
  %6395 = vmatprep.subr.mxu0 0.0
  %6396 = vmatpush2.msra.mxu0 0.0
  %6397 = vmatprep.subr.mxu0 0.0
  %6398 = vmatpush2.msra.mxu0 0.0
  %6399 = vmatprep.subr.mxu0 0.0
  %6400 = vmatpush2.msra.mxu0 0.0
  %6401 = vmatprep.mubr.f32.mxu0 0.0
  %6402 = vmatmul.mubr.f32.gmra.mxu0 %v6323
  %v6403 = vpop.f32.mrf.mxu0
  %v6404 = vadd.f32 0.0, %v6403
  %v6405 = vpop.f32.mrf.mxu0
  %6406 = vmatprep.mubr.f32.mxu0 0.0
  %6407 = vmatmul.mubr.f32.gmra.mxu0 %v6326
  %v6408 = vpop.f32.mrf.mxu0
  %v6409 = vadd.f32 0.0, %v6408
  %v6410 = vpop.f32.mrf.mxu0
  %6411 = vmatprep.mubr.f32.mxu0 0.0
  %6412 = vmatmul.mubr.f32.gmra.mxu0 %v6329
  %v6413 = vpop.f32.mrf.mxu0
  %v6414 = vadd.f32 0.0, %v6413
  %v6415 = vpop.f32.mrf.mxu0
  %6416 = vmatprep.mubr.f32.mxu0 0.0
  %6417 = vmatmul.mubr.f32.gmra.mxu0 %v6332
  %v6418 = vpop.f32.mrf.mxu0
  %v6419 = vadd.f32 0.0, %v6418
  %v6420 = vpop.f32.mrf.mxu0
  %6421 = vmatprep.mubr.f32.mxu0 0.0
  %6422 = vmatmul.mubr.f32.gmra.mxu0 %v6335
  %v6423 = vpop.f32.mrf.mxu0
  %v6424 = vadd.f32 0.0, %v6423
  %v6425 = vpop.f32.mrf.mxu0
  %6426 = vdwg.mxu0
  %s6427 = scalar_lea.vmem %s13, 64
  %v6428 = vld [vmem:[%s6427] sm:$0xff]
  %v6429 = vld [vmem:[%s6427 + $0x8] sm:$0xff]
  %v6430 = vld [vmem:[%s6427 + $0x10] sm:$0xff]
  %v6431 = vld [vmem:[%s6427 + $0x18] sm:$0xff]
  %v6433 = vsel %vm2617, %v6404, 0
  %v6436 = vsel %vm2617, %v6409, 0
  %v6439 = vsel %vm2617, %v6414, 0
  %v6442 = vsel %vm2617, %v6419, 0
  %v6445 = vsel %vm2617, %v6424, 0
  %6447 = vmatprep.subr.mxu0 0.0
  %6448 = vmatpush1.msra.mxu0 0.0
  %6449 = vmatprep.subr.mxu0 0.0
  %6450 = vmatpush1.msra.mxu0 0.0
  %6451 = vmatprep.subr.mxu0 0.0
  %6452 = vmatpush1.msra.mxu0 0.0
  %6453 = vmatprep.subr.mxu0 0.0
  %6454 = vmatpush1.msra.mxu0 0.0
  %6455 = vmatprep.subr.mxu0 0.0
  %6456 = vmatpush1.msra.mxu0 0.0
  %6457 = vmatprep.subr.mxu0 0.0
  %6458 = vmatpush1.msra.mxu0 0.0
  %6459 = vmatprep.subr.mxu0 0.0
  %6460 = vmatpush1.msra.mxu0 0.0
  %6461 = vmatprep.subr.mxu0 0.0
  %6462 = vmatpush1.msra.mxu0 0.0
  %6463 = vmatprep.subr.mxu0 0.0
  %6464 = vmatpush1.msra.mxu0 0.0
  %6465 = vmatprep.subr.mxu0 0.0
  %6466 = vmatpush1.msra.mxu0 0.0
  %6467 = vmatprep.subr.mxu0 0.0
  %6468 = vmatpush1.msra.mxu0 0.0
  %6469 = vmatprep.subr.mxu0 0.0
  %6470 = vmatpush1.msra.mxu0 0.0
  %6471 = vmatprep.subr.mxu0 0.0
  %6472 = vmatpush1.msra.mxu0 %v6431
  %6473 = vmatprep.subr.mxu0 0.0
  %6474 = vmatpush1.msra.mxu0 %v6430
  %6475 = vmatprep.subr.mxu0 0.0
  %6476 = vmatpush1.msra.mxu0 %v6429
  %6477 = vmatprep.subr.mxu0 0.0
  %6478 = vmatpush1.msra.mxu0 %v6428
  %6479 = vmatprep.subr.mxu0 0.0
  %6480 = vmatpush2.msra.mxu0 0.0
  %6481 = vmatprep.subr.mxu0 0.0
  %6482 = vmatpush2.msra.mxu0 0.0
  %6483 = vmatprep.subr.mxu0 0.0
  %6484 = vmatpush2.msra.mxu0 0.0
  %6485 = vmatprep.subr.mxu0 0.0
  %6486 = vmatpush2.msra.mxu0 0.0
  %6487 = vmatprep.subr.mxu0 0.0
  %6488 = vmatpush2.msra.mxu0 0.0
  %6489 = vmatprep.subr.mxu0 0.0
  %6490 = vmatpush2.msra.mxu0 0.0
  %6491 = vmatprep.subr.mxu0 0.0
  %6492 = vmatpush2.msra.mxu0 0.0
  %6493 = vmatprep.subr.mxu0 0.0
  %6494 = vmatpush2.msra.mxu0 0.0
  %6495 = vmatprep.subr.mxu0 0.0
  %6496 = vmatpush2.msra.mxu0 0.0
  %6497 = vmatprep.subr.mxu0 0.0
  %6498 = vmatpush2.msra.mxu0 0.0
  %6499 = vmatprep.subr.mxu0 0.0
  %6500 = vmatpush2.msra.mxu0 0.0
  %6501 = vmatprep.subr.mxu0 0.0
  %6502 = vmatpush2.msra.mxu0 0.0
  %6503 = vmatprep.subr.mxu0 0.0
  %6504 = vmatpush2.msra.mxu0 0.0
  %6505 = vmatprep.subr.mxu0 0.0
  %6506 = vmatpush2.msra.mxu0 0.0
  %6507 = vmatprep.subr.mxu0 0.0
  %6508 = vmatpush2.msra.mxu0 0.0
  %6509 = vmatprep.subr.mxu0 0.0
  %6510 = vmatpush2.msra.mxu0 0.0
  %6511 = vmatprep.mubr.f32.mxu0 0.0
  %6512 = vmatmul.mubr.f32.gmra.mxu0 %v6433
  %v6513 = vpop.f32.mrf.mxu0
  %v6514 = vadd.f32 0.0, %v6513
  %v6515 = vpop.f32.mrf.mxu0
  %6516 = vmatprep.mubr.f32.mxu0 0.0
  %6517 = vmatmul.mubr.f32.gmra.mxu0 %v6436
  %v6518 = vpop.f32.mrf.mxu0
  %v6519 = vadd.f32 0.0, %v6518
  %v6520 = vpop.f32.mrf.mxu0
  %6521 = vmatprep.mubr.f32.mxu0 0.0
  %6522 = vmatmul.mubr.f32.gmra.mxu0 %v6439
  %v6523 = vpop.f32.mrf.mxu0
  %v6524 = vadd.f32 0.0, %v6523
  %v6525 = vpop.f32.mrf.mxu0
  %6526 = vmatprep.mubr.f32.mxu0 0.0
  %6527 = vmatmul.mubr.f32.gmra.mxu0 %v6442
  %v6528 = vpop.f32.mrf.mxu0
  %v6529 = vadd.f32 0.0, %v6528
  %v6530 = vpop.f32.mrf.mxu0
  %6531 = vmatprep.mubr.f32.mxu0 0.0
  %6532 = vmatmul.mubr.f32.gmra.mxu0 %v6445
  %v6533 = vpop.f32.mrf.mxu0
  %v6534 = vadd.f32 0.0, %v6533
  %v6535 = vpop.f32.mrf.mxu0
  %6536 = vdwg.mxu0
  %v6537 = vadd.f32 %v6293, %v6514
  %v6538 = vadd.f32 %v6298, %v6519
  %v6539 = vadd.f32 %v6303, %v6524
  %v6540 = vadd.f32 %v6308, %v6529
  %v6541 = vadd.f32 %v6313, %v6534
  %s6542 = scalar_lea.vmem %s12, 120
  %v6543 = vld [vmem:[%s6542] sm:$0xff]
  %v6544 = vld [vmem:[%s6542 + $0x8] sm:$0xff]
  %v6545 = vld [vmem:[%s6542 + $0x10] sm:$0xff]
  %v6546 = vld [vmem:[%s6542 + $0x18] sm:$0xff]
  %v6547 = vld [vmem:[%s6542 + $0x20] sm:$0xff]
  %v6549 = vsel %vm5876, %v6543, 0
  %v6552 = vsel %vm5876, %v6544, 0
  %v6555 = vsel %vm5876, %v6545, 0
  %v6558 = vsel %vm5876, %v6546, 0
  %v6561 = vsel %vm5876, %v6547, 0
  %6563 = vmatprep.subr.mxu0 0.0
  %6564 = vmatpush1.msra.mxu0 0.0
  %6565 = vmatprep.subr.mxu0 0.0
  %6566 = vmatpush1.msra.mxu0 0.0
  %6567 = vmatprep.subr.mxu0 0.0
  %6568 = vmatpush1.msra.mxu0 0.0
  %6569 = vmatprep.subr.mxu0 0.0
  %6570 = vmatpush1.msra.mxu0 0.0
  %6571 = vmatprep.subr.mxu0 0.0
  %6572 = vmatpush1.msra.mxu0 %v5894
  %6573 = vmatprep.subr.mxu0 0.0
  %6574 = vmatpush1.msra.mxu0 %v5869
  %6575 = vmatprep.subr.mxu0 0.0
  %6576 = vmatpush1.msra.mxu0 %v5868
  %6577 = vmatprep.subr.mxu0 0.0
  %6578 = vmatpush1.msra.mxu0 %v5867
  %6579 = vmatprep.subr.mxu0 0.0
  %6580 = vmatpush1.msra.mxu0 %v5866
  %6581 = vmatprep.subr.mxu0 0.0
  %6582 = vmatpush1.msra.mxu0 %v5865
  %6583 = vmatprep.subr.mxu0 0.0
  %6584 = vmatpush1.msra.mxu0 %v5864
  %6585 = vmatprep.subr.mxu0 0.0
  %6586 = vmatpush1.msra.mxu0 %v5863
  %6587 = vmatprep.subr.mxu0 0.0
  %6588 = vmatpush1.msra.mxu0 %v5862
  %6589 = vmatprep.subr.mxu0 0.0
  %6590 = vmatpush1.msra.mxu0 %v5861
  %6591 = vmatprep.subr.mxu0 0.0
  %6592 = vmatpush1.msra.mxu0 %v5860
  %6593 = vmatprep.subr.mxu0 0.0
  %6594 = vmatpush1.msra.mxu0 %v5859
  %6595 = vmatprep.subr.mxu0 0.0
  %6596 = vmatpush2.msra.mxu0 0.0
  %6597 = vmatprep.subr.mxu0 0.0
  %6598 = vmatpush2.msra.mxu0 0.0
  %6599 = vmatprep.subr.mxu0 0.0
  %6600 = vmatpush2.msra.mxu0 0.0
  %6601 = vmatprep.subr.mxu0 0.0
  %6602 = vmatpush2.msra.mxu0 0.0
  %6603 = vmatprep.subr.mxu0 0.0
  %6604 = vmatpush2.msra.mxu0 0.0
  %6605 = vmatprep.subr.mxu0 0.0
  %6606 = vmatpush2.msra.mxu0 0.0
  %6607 = vmatprep.subr.mxu0 0.0
  %6608 = vmatpush2.msra.mxu0 0.0
  %6609 = vmatprep.subr.mxu0 0.0
  %6610 = vmatpush2.msra.mxu0 0.0
  %6611 = vmatprep.subr.mxu0 0.0
  %6612 = vmatpush2.msra.mxu0 0.0
  %6613 = vmatprep.subr.mxu0 0.0
  %6614 = vmatpush2.msra.mxu0 0.0
  %6615 = vmatprep.subr.mxu0 0.0
  %6616 = vmatpush2.msra.mxu0 0.0
  %6617 = vmatprep.subr.mxu0 0.0
  %6618 = vmatpush2.msra.mxu0 0.0
  %6619 = vmatprep.subr.mxu0 0.0
  %6620 = vmatpush2.msra.mxu0 0.0
  %6621 = vmatprep.subr.mxu0 0.0
  %6622 = vmatpush2.msra.mxu0 0.0
  %6623 = vmatprep.subr.mxu0 0.0
  %6624 = vmatpush2.msra.mxu0 0.0
  %6625 = vmatprep.subr.mxu0 0.0
  %6626 = vmatpush2.msra.mxu0 0.0
  %6627 = vmatprep.mubr.f32.mxu0 0.0
  %6628 = vmatmul.mubr.f32.gmra.mxu0 %v6549
  %v6629 = vpop.f32.mrf.mxu0
  %v6630 = vadd.f32 0.0, %v6629
  %v6631 = vpop.f32.mrf.mxu0
  %6632 = vmatprep.mubr.f32.mxu0 0.0
  %6633 = vmatmul.mubr.f32.gmra.mxu0 %v6552
  %v6634 = vpop.f32.mrf.mxu0
  %v6635 = vadd.f32 0.0, %v6634
  %v6636 = vpop.f32.mrf.mxu0
  %6637 = vmatprep.mubr.f32.mxu0 0.0
  %6638 = vmatmul.mubr.f32.gmra.mxu0 %v6555
  %v6639 = vpop.f32.mrf.mxu0
  %v6640 = vadd.f32 0.0, %v6639
  %v6641 = vpop.f32.mrf.mxu0
  %6642 = vmatprep.mubr.f32.mxu0 0.0
  %6643 = vmatmul.mubr.f32.gmra.mxu0 %v6558
  %v6644 = vpop.f32.mrf.mxu0
  %v6645 = vadd.f32 0.0, %v6644
  %v6646 = vpop.f32.mrf.mxu0
  %6647 = vmatprep.mubr.f32.mxu0 0.0
  %6648 = vmatmul.mubr.f32.gmra.mxu0 %v6561
  %v6649 = vpop.f32.mrf.mxu0
  %v6650 = vadd.f32 0.0, %v6649
  %v6651 = vpop.f32.mrf.mxu0
  %6652 = vdwg.mxu0
  %s6653 = scalar_lea.vmem %s13, 96
  %v6654 = vld [vmem:[%s6653] sm:$0xff]
  %v6655 = vld [vmem:[%s6653 + $0x8] sm:$0xff]
  %v6656 = vld [vmem:[%s6653 + $0x10] sm:$0xff]
  %v6657 = vld [vmem:[%s6653 + $0x18] sm:$0xff]
  %v6659 = vsel %vm2617, %v6630, 0
  %v6662 = vsel %vm2617, %v6635, 0
  %v6665 = vsel %vm2617, %v6640, 0
  %v6668 = vsel %vm2617, %v6645, 0
  %v6671 = vsel %vm2617, %v6650, 0
  %6673 = vmatprep.subr.mxu0 0.0
  %6674 = vmatpush1.msra.mxu0 0.0
  %6675 = vmatprep.subr.mxu0 0.0
  %6676 = vmatpush1.msra.mxu0 0.0
  %6677 = vmatprep.subr.mxu0 0.0
  %6678 = vmatpush1.msra.mxu0 0.0
  %6679 = vmatprep.subr.mxu0 0.0
  %6680 = vmatpush1.msra.mxu0 0.0
  %6681 = vmatprep.subr.mxu0 0.0
  %6682 = vmatpush1.msra.mxu0 0.0
  %6683 = vmatprep.subr.mxu0 0.0
  %6684 = vmatpush1.msra.mxu0 0.0
  %6685 = vmatprep.subr.mxu0 0.0
  %6686 = vmatpush1.msra.mxu0 0.0
  %6687 = vmatprep.subr.mxu0 0.0
  %6688 = vmatpush1.msra.mxu0 0.0
  %6689 = vmatprep.subr.mxu0 0.0
  %6690 = vmatpush1.msra.mxu0 0.0
  %6691 = vmatprep.subr.mxu0 0.0
  %6692 = vmatpush1.msra.mxu0 0.0
  %6693 = vmatprep.subr.mxu0 0.0
  %6694 = vmatpush1.msra.mxu0 0.0
  %6695 = vmatprep.subr.mxu0 0.0
  %6696 = vmatpush1.msra.mxu0 0.0
  %6697 = vmatprep.subr.mxu0 0.0
  %6698 = vmatpush1.msra.mxu0 %v6657
  %6699 = vmatprep.subr.mxu0 0.0
  %6700 = vmatpush1.msra.mxu0 %v6656
  %6701 = vmatprep.subr.mxu0 0.0
  %6702 = vmatpush1.msra.mxu0 %v6655
  %6703 = vmatprep.subr.mxu0 0.0
  %6704 = vmatpush1.msra.mxu0 %v6654
  %6705 = vmatprep.subr.mxu0 0.0
  %6706 = vmatpush2.msra.mxu0 0.0
  %6707 = vmatprep.subr.mxu0 0.0
  %6708 = vmatpush2.msra.mxu0 0.0
  %6709 = vmatprep.subr.mxu0 0.0
  %6710 = vmatpush2.msra.mxu0 0.0
  %6711 = vmatprep.subr.mxu0 0.0
  %6712 = vmatpush2.msra.mxu0 0.0
  %6713 = vmatprep.subr.mxu0 0.0
  %6714 = vmatpush2.msra.mxu0 0.0
  %6715 = vmatprep.subr.mxu0 0.0
  %6716 = vmatpush2.msra.mxu0 0.0
  %6717 = vmatprep.subr.mxu0 0.0
  %6718 = vmatpush2.msra.mxu0 0.0
  %6719 = vmatprep.subr.mxu0 0.0
  %6720 = vmatpush2.msra.mxu0 0.0
  %6721 = vmatprep.subr.mxu0 0.0
  %6722 = vmatpush2.msra.mxu0 0.0
  %6723 = vmatprep.subr.mxu0 0.0
  %6724 = vmatpush2.msra.mxu0 0.0
  %6725 = vmatprep.subr.mxu0 0.0
  %6726 = vmatpush2.msra.mxu0 0.0
  %6727 = vmatprep.subr.mxu0 0.0
  %6728 = vmatpush2.msra.mxu0 0.0
  %6729 = vmatprep.subr.mxu0 0.0
  %6730 = vmatpush2.msra.mxu0 0.0
  %6731 = vmatprep.subr.mxu0 0.0
  %6732 = vmatpush2.msra.mxu0 0.0
  %6733 = vmatprep.subr.mxu0 0.0
  %6734 = vmatpush2.msra.mxu0 0.0
  %6735 = vmatprep.subr.mxu0 0.0
  %6736 = vmatpush2.msra.mxu0 0.0
  %6737 = vmatprep.mubr.f32.mxu0 0.0
  %6738 = vmatmul.mubr.f32.gmra.mxu0 %v6659
  %v6739 = vpop.f32.mrf.mxu0
  %v6740 = vadd.f32 0.0, %v6739
  %v6741 = vpop.f32.mrf.mxu0
  %6742 = vmatprep.mubr.f32.mxu0 0.0
  %6743 = vmatmul.mubr.f32.gmra.mxu0 %v6662
  %v6744 = vpop.f32.mrf.mxu0
  %v6745 = vadd.f32 0.0, %v6744
  %v6746 = vpop.f32.mrf.mxu0
  %6747 = vmatprep.mubr.f32.mxu0 0.0
  %6748 = vmatmul.mubr.f32.gmra.mxu0 %v6665
  %v6749 = vpop.f32.mrf.mxu0
  %v6750 = vadd.f32 0.0, %v6749
  %v6751 = vpop.f32.mrf.mxu0
  %6752 = vmatprep.mubr.f32.mxu0 0.0
  %6753 = vmatmul.mubr.f32.gmra.mxu0 %v6668
  %v6754 = vpop.f32.mrf.mxu0
  %v6755 = vadd.f32 0.0, %v6754
  %v6756 = vpop.f32.mrf.mxu0
  %6757 = vmatprep.mubr.f32.mxu0 0.0
  %6758 = vmatmul.mubr.f32.gmra.mxu0 %v6671
  %v6759 = vpop.f32.mrf.mxu0
  %v6760 = vadd.f32 0.0, %v6759
  %v6761 = vpop.f32.mrf.mxu0
  %6762 = vdwg.mxu0
  %v6763 = vadd.f32 %v6537, %v6740
  %v6764 = vadd.f32 %v6538, %v6745
  %v6765 = vadd.f32 %v6539, %v6750
  %v6766 = vadd.f32 %v6540, %v6755
  %v6767 = vadd.f32 %v6541, %v6760
  %s6768 = scalar_lea.vmem %s12, 160
  %v6769 = vld [vmem:[%s6768] sm:$0xff]
  %v6770 = vld [vmem:[%s6768 + $0x8] sm:$0xff]
  %v6771 = vld [vmem:[%s6768 + $0x10] sm:$0xff]
  %v6772 = vld [vmem:[%s6768 + $0x18] sm:$0xff]
  %v6773 = vld [vmem:[%s6768 + $0x20] sm:$0xff]
  %v6775 = vsel %vm5876, %v6769, 0
  %v6778 = vsel %vm5876, %v6770, 0
  %v6781 = vsel %vm5876, %v6771, 0
  %v6784 = vsel %vm5876, %v6772, 0
  %v6787 = vsel %vm5876, %v6773, 0
  %6789 = vmatprep.subr.mxu0 0.0
  %6790 = vmatpush1.msra.mxu0 0.0
  %6791 = vmatprep.subr.mxu0 0.0
  %6792 = vmatpush1.msra.mxu0 0.0
  %6793 = vmatprep.subr.mxu0 0.0
  %6794 = vmatpush1.msra.mxu0 0.0
  %6795 = vmatprep.subr.mxu0 0.0
  %6796 = vmatpush1.msra.mxu0 0.0
  %6797 = vmatprep.subr.mxu0 0.0
  %6798 = vmatpush1.msra.mxu0 %v5894
  %6799 = vmatprep.subr.mxu0 0.0
  %6800 = vmatpush1.msra.mxu0 %v5869
  %6801 = vmatprep.subr.mxu0 0.0
  %6802 = vmatpush1.msra.mxu0 %v5868
  %6803 = vmatprep.subr.mxu0 0.0
  %6804 = vmatpush1.msra.mxu0 %v5867
  %6805 = vmatprep.subr.mxu0 0.0
  %6806 = vmatpush1.msra.mxu0 %v5866
  %6807 = vmatprep.subr.mxu0 0.0
  %6808 = vmatpush1.msra.mxu0 %v5865
  %6809 = vmatprep.subr.mxu0 0.0
  %6810 = vmatpush1.msra.mxu0 %v5864
  %6811 = vmatprep.subr.mxu0 0.0
  %6812 = vmatpush1.msra.mxu0 %v5863
  %6813 = vmatprep.subr.mxu0 0.0
  %6814 = vmatpush1.msra.mxu0 %v5862
  %6815 = vmatprep.subr.mxu0 0.0
  %6816 = vmatpush1.msra.mxu0 %v5861
  %6817 = vmatprep.subr.mxu0 0.0
  %6818 = vmatpush1.msra.mxu0 %v5860
  %6819 = vmatprep.subr.mxu0 0.0
  %6820 = vmatpush1.msra.mxu0 %v5859
  %6821 = vmatprep.subr.mxu0 0.0
  %6822 = vmatpush2.msra.mxu0 0.0
  %6823 = vmatprep.subr.mxu0 0.0
  %6824 = vmatpush2.msra.mxu0 0.0
  %6825 = vmatprep.subr.mxu0 0.0
  %6826 = vmatpush2.msra.mxu0 0.0
  %6827 = vmatprep.subr.mxu0 0.0
  %6828 = vmatpush2.msra.mxu0 0.0
  %6829 = vmatprep.subr.mxu0 0.0
  %6830 = vmatpush2.msra.mxu0 0.0
  %6831 = vmatprep.subr.mxu0 0.0
  %6832 = vmatpush2.msra.mxu0 0.0
  %6833 = vmatprep.subr.mxu0 0.0
  %6834 = vmatpush2.msra.mxu0 0.0
  %6835 = vmatprep.subr.mxu0 0.0
  %6836 = vmatpush2.msra.mxu0 0.0
  %6837 = vmatprep.subr.mxu0 0.0
  %6838 = vmatpush2.msra.mxu0 0.0
  %6839 = vmatprep.subr.mxu0 0.0
  %6840 = vmatpush2.msra.mxu0 0.0
  %6841 = vmatprep.subr.mxu0 0.0
  %6842 = vmatpush2.msra.mxu0 0.0
  %6843 = vmatprep.subr.mxu0 0.0
  %6844 = vmatpush2.msra.mxu0 0.0
  %6845 = vmatprep.subr.mxu0 0.0
  %6846 = vmatpush2.msra.mxu0 0.0
  %6847 = vmatprep.subr.mxu0 0.0
  %6848 = vmatpush2.msra.mxu0 0.0
  %6849 = vmatprep.subr.mxu0 0.0
  %6850 = vmatpush2.msra.mxu0 0.0
  %6851 = vmatprep.subr.mxu0 0.0
  %6852 = vmatpush2.msra.mxu0 0.0
  %6853 = vmatprep.mubr.f32.mxu0 0.0
  %6854 = vmatmul.mubr.f32.gmra.mxu0 %v6775
  %v6855 = vpop.f32.mrf.mxu0
  %v6856 = vadd.f32 0.0, %v6855
  %v6857 = vpop.f32.mrf.mxu0
  %6858 = vmatprep.mubr.f32.mxu0 0.0
  %6859 = vmatmul.mubr.f32.gmra.mxu0 %v6778
  %v6860 = vpop.f32.mrf.mxu0
  %v6861 = vadd.f32 0.0, %v6860
  %v6862 = vpop.f32.mrf.mxu0
  %6863 = vmatprep.mubr.f32.mxu0 0.0
  %6864 = vmatmul.mubr.f32.gmra.mxu0 %v6781
  %v6865 = vpop.f32.mrf.mxu0
  %v6866 = vadd.f32 0.0, %v6865
  %v6867 = vpop.f32.mrf.mxu0
  %6868 = vmatprep.mubr.f32.mxu0 0.0
  %6869 = vmatmul.mubr.f32.gmra.mxu0 %v6784
  %v6870 = vpop.f32.mrf.mxu0
  %v6871 = vadd.f32 0.0, %v6870
  %v6872 = vpop.f32.mrf.mxu0
  %6873 = vmatprep.mubr.f32.mxu0 0.0
  %6874 = vmatmul.mubr.f32.gmra.mxu0 %v6787
  %v6875 = vpop.f32.mrf.mxu0
  %v6876 = vadd.f32 0.0, %v6875
  %v6877 = vpop.f32.mrf.mxu0
  %6878 = vdwg.mxu0
  %s6879 = scalar_lea.vmem %s13, 128
  %v6880 = vld [vmem:[%s6879] sm:$0xff]
  %v6881 = vld [vmem:[%s6879 + $0x8] sm:$0xff]
  %v6882 = vld [vmem:[%s6879 + $0x10] sm:$0xff]
  %v6883 = vld [vmem:[%s6879 + $0x18] sm:$0xff]
  %v6885 = vsel %vm2617, %v6856, 0
  %v6888 = vsel %vm2617, %v6861, 0
  %v6891 = vsel %vm2617, %v6866, 0
  %v6894 = vsel %vm2617, %v6871, 0
  %v6897 = vsel %vm2617, %v6876, 0
  %6899 = vmatprep.subr.mxu0 0.0
  %6900 = vmatpush1.msra.mxu0 0.0
  %6901 = vmatprep.subr.mxu0 0.0
  %6902 = vmatpush1.msra.mxu0 0.0
  %6903 = vmatprep.subr.mxu0 0.0
  %6904 = vmatpush1.msra.mxu0 0.0
  %6905 = vmatprep.subr.mxu0 0.0
  %6906 = vmatpush1.msra.mxu0 0.0
  %6907 = vmatprep.subr.mxu0 0.0
  %6908 = vmatpush1.msra.mxu0 0.0
  %6909 = vmatprep.subr.mxu0 0.0
  %6910 = vmatpush1.msra.mxu0 0.0
  %6911 = vmatprep.subr.mxu0 0.0
  %6912 = vmatpush1.msra.mxu0 0.0
  %6913 = vmatprep.subr.mxu0 0.0
  %6914 = vmatpush1.msra.mxu0 0.0
  %6915 = vmatprep.subr.mxu0 0.0
  %6916 = vmatpush1.msra.mxu0 0.0
  %6917 = vmatprep.subr.mxu0 0.0
  %6918 = vmatpush1.msra.mxu0 0.0
  %6919 = vmatprep.subr.mxu0 0.0
  %6920 = vmatpush1.msra.mxu0 0.0
  %6921 = vmatprep.subr.mxu0 0.0
  %6922 = vmatpush1.msra.mxu0 0.0
  %6923 = vmatprep.subr.mxu0 0.0
  %6924 = vmatpush1.msra.mxu0 %v6883
  %6925 = vmatprep.subr.mxu0 0.0
  %6926 = vmatpush1.msra.mxu0 %v6882
  %6927 = vmatprep.subr.mxu0 0.0
  %6928 = vmatpush1.msra.mxu0 %v6881
  %6929 = vmatprep.subr.mxu0 0.0
  %6930 = vmatpush1.msra.mxu0 %v6880
  %6931 = vmatprep.subr.mxu0 0.0
  %6932 = vmatpush2.msra.mxu0 0.0
  %6933 = vmatprep.subr.mxu0 0.0
  %6934 = vmatpush2.msra.mxu0 0.0
  %6935 = vmatprep.subr.mxu0 0.0
  %6936 = vmatpush2.msra.mxu0 0.0
  %6937 = vmatprep.subr.mxu0 0.0
  %6938 = vmatpush2.msra.mxu0 0.0
  %6939 = vmatprep.subr.mxu0 0.0
  %6940 = vmatpush2.msra.mxu0 0.0
  %6941 = vmatprep.subr.mxu0 0.0
  %6942 = vmatpush2.msra.mxu0 0.0
  %6943 = vmatprep.subr.mxu0 0.0
  %6944 = vmatpush2.msra.mxu0 0.0
  %6945 = vmatprep.subr.mxu0 0.0
  %6946 = vmatpush2.msra.mxu0 0.0
  %6947 = vmatprep.subr.mxu0 0.0
  %6948 = vmatpush2.msra.mxu0 0.0
  %6949 = vmatprep.subr.mxu0 0.0
  %6950 = vmatpush2.msra.mxu0 0.0
  %6951 = vmatprep.subr.mxu0 0.0
  %6952 = vmatpush2.msra.mxu0 0.0
  %6953 = vmatprep.subr.mxu0 0.0
  %6954 = vmatpush2.msra.mxu0 0.0
  %6955 = vmatprep.subr.mxu0 0.0
  %6956 = vmatpush2.msra.mxu0 0.0
  %6957 = vmatprep.subr.mxu0 0.0
  %6958 = vmatpush2.msra.mxu0 0.0
  %6959 = vmatprep.subr.mxu0 0.0
  %6960 = vmatpush2.msra.mxu0 0.0
  %6961 = vmatprep.subr.mxu0 0.0
  %6962 = vmatpush2.msra.mxu0 0.0
  %6963 = vmatprep.mubr.f32.mxu0 0.0
  %6964 = vmatmul.mubr.f32.gmra.mxu0 %v6885
  %v6965 = vpop.f32.mrf.mxu0
  %v6966 = vadd.f32 0.0, %v6965
  %v6967 = vpop.f32.mrf.mxu0
  %6968 = vmatprep.mubr.f32.mxu0 0.0
  %6969 = vmatmul.mubr.f32.gmra.mxu0 %v6888
  %v6970 = vpop.f32.mrf.mxu0
  %v6971 = vadd.f32 0.0, %v6970
  %v6972 = vpop.f32.mrf.mxu0
  %6973 = vmatprep.mubr.f32.mxu0 0.0
  %6974 = vmatmul.mubr.f32.gmra.mxu0 %v6891
  %v6975 = vpop.f32.mrf.mxu0
  %v6976 = vadd.f32 0.0, %v6975
  %v6977 = vpop.f32.mrf.mxu0
  %6978 = vmatprep.mubr.f32.mxu0 0.0
  %6979 = vmatmul.mubr.f32.gmra.mxu0 %v6894
  %v6980 = vpop.f32.mrf.mxu0
  %v6981 = vadd.f32 0.0, %v6980
  %v6982 = vpop.f32.mrf.mxu0
  %6983 = vmatprep.mubr.f32.mxu0 0.0
  %6984 = vmatmul.mubr.f32.gmra.mxu0 %v6897
  %v6985 = vpop.f32.mrf.mxu0
  %v6986 = vadd.f32 0.0, %v6985
  %v6987 = vpop.f32.mrf.mxu0
  %6988 = vdwg.mxu0
  %v6989 = vadd.f32 %v6763, %v6966
  %v6990 = vadd.f32 %v6764, %v6971
  %v6991 = vadd.f32 %v6765, %v6976
  %v6992 = vadd.f32 %v6766, %v6981
  %v6993 = vadd.f32 %v6767, %v6986
  %s6994 = scalar_lea.vmem %s12, 200
  %v6995 = vld [vmem:[%s6994] sm:$0xff]
  %v6996 = vld [vmem:[%s6994 + $0x8] sm:$0xff]
  %v6997 = vld [vmem:[%s6994 + $0x10] sm:$0xff]
  %v6998 = vld [vmem:[%s6994 + $0x18] sm:$0xff]
  %v6999 = vld [vmem:[%s6994 + $0x20] sm:$0xff]
  %v7001 = vsel %vm5876, %v6995, 0
  %v7004 = vsel %vm5876, %v6996, 0
  %v7007 = vsel %vm5876, %v6997, 0
  %v7010 = vsel %vm5876, %v6998, 0
  %v7013 = vsel %vm5876, %v6999, 0
  %7015 = vmatprep.subr.mxu0 0.0
  %7016 = vmatpush1.msra.mxu0 0.0
  %7017 = vmatprep.subr.mxu0 0.0
  %7018 = vmatpush1.msra.mxu0 0.0
  %7019 = vmatprep.subr.mxu0 0.0
  %7020 = vmatpush1.msra.mxu0 0.0
  %7021 = vmatprep.subr.mxu0 0.0
  %7022 = vmatpush1.msra.mxu0 0.0
  %7023 = vmatprep.subr.mxu0 0.0
  %7024 = vmatpush1.msra.mxu0 %v5894
  %7025 = vmatprep.subr.mxu0 0.0
  %7026 = vmatpush1.msra.mxu0 %v5869
  %7027 = vmatprep.subr.mxu0 0.0
  %7028 = vmatpush1.msra.mxu0 %v5868
  %7029 = vmatprep.subr.mxu0 0.0
  %7030 = vmatpush1.msra.mxu0 %v5867
  %7031 = vmatprep.subr.mxu0 0.0
  %7032 = vmatpush1.msra.mxu0 %v5866
  %7033 = vmatprep.subr.mxu0 0.0
  %7034 = vmatpush1.msra.mxu0 %v5865
  %7035 = vmatprep.subr.mxu0 0.0
  %7036 = vmatpush1.msra.mxu0 %v5864
  %7037 = vmatprep.subr.mxu0 0.0
  %7038 = vmatpush1.msra.mxu0 %v5863
  %7039 = vmatprep.subr.mxu0 0.0
  %7040 = vmatpush1.msra.mxu0 %v5862
  %7041 = vmatprep.subr.mxu0 0.0
  %7042 = vmatpush1.msra.mxu0 %v5861
  %7043 = vmatprep.subr.mxu0 0.0
  %7044 = vmatpush1.msra.mxu0 %v5860
  %7045 = vmatprep.subr.mxu0 0.0
  %7046 = vmatpush1.msra.mxu0 %v5859
  %7047 = vmatprep.subr.mxu0 0.0
  %7048 = vmatpush2.msra.mxu0 0.0
  %7049 = vmatprep.subr.mxu0 0.0
  %7050 = vmatpush2.msra.mxu0 0.0
  %7051 = vmatprep.subr.mxu0 0.0
  %7052 = vmatpush2.msra.mxu0 0.0
  %7053 = vmatprep.subr.mxu0 0.0
  %7054 = vmatpush2.msra.mxu0 0.0
  %7055 = vmatprep.subr.mxu0 0.0
  %7056 = vmatpush2.msra.mxu0 0.0
  %7057 = vmatprep.subr.mxu0 0.0
  %7058 = vmatpush2.msra.mxu0 0.0
  %7059 = vmatprep.subr.mxu0 0.0
  %7060 = vmatpush2.msra.mxu0 0.0
  %7061 = vmatprep.subr.mxu0 0.0
  %7062 = vmatpush2.msra.mxu0 0.0
  %7063 = vmatprep.subr.mxu0 0.0
  %7064 = vmatpush2.msra.mxu0 0.0
  %7065 = vmatprep.subr.mxu0 0.0
  %7066 = vmatpush2.msra.mxu0 0.0
  %7067 = vmatprep.subr.mxu0 0.0
  %7068 = vmatpush2.msra.mxu0 0.0
  %7069 = vmatprep.subr.mxu0 0.0
  %7070 = vmatpush2.msra.mxu0 0.0
  %7071 = vmatprep.subr.mxu0 0.0
  %7072 = vmatpush2.msra.mxu0 0.0
  %7073 = vmatprep.subr.mxu0 0.0
  %7074 = vmatpush2.msra.mxu0 0.0
  %7075 = vmatprep.subr.mxu0 0.0
  %7076 = vmatpush2.msra.mxu0 0.0
  %7077 = vmatprep.subr.mxu0 0.0
  %7078 = vmatpush2.msra.mxu0 0.0
  %7079 = vmatprep.mubr.f32.mxu0 0.0
  %7080 = vmatmul.mubr.f32.gmra.mxu0 %v7001
  %v7081 = vpop.f32.mrf.mxu0
  %v7082 = vadd.f32 0.0, %v7081
  %v7083 = vpop.f32.mrf.mxu0
  %7084 = vmatprep.mubr.f32.mxu0 0.0
  %7085 = vmatmul.mubr.f32.gmra.mxu0 %v7004
  %v7086 = vpop.f32.mrf.mxu0
  %v7087 = vadd.f32 0.0, %v7086
  %v7088 = vpop.f32.mrf.mxu0
  %7089 = vmatprep.mubr.f32.mxu0 0.0
  %7090 = vmatmul.mubr.f32.gmra.mxu0 %v7007
  %v7091 = vpop.f32.mrf.mxu0
  %v7092 = vadd.f32 0.0, %v7091
  %v7093 = vpop.f32.mrf.mxu0
  %7094 = vmatprep.mubr.f32.mxu0 0.0
  %7095 = vmatmul.mubr.f32.gmra.mxu0 %v7010
  %v7096 = vpop.f32.mrf.mxu0
  %v7097 = vadd.f32 0.0, %v7096
  %v7098 = vpop.f32.mrf.mxu0
  %7099 = vmatprep.mubr.f32.mxu0 0.0
  %7100 = vmatmul.mubr.f32.gmra.mxu0 %v7013
  %v7101 = vpop.f32.mrf.mxu0
  %v7102 = vadd.f32 0.0, %v7101
  %v7103 = vpop.f32.mrf.mxu0
  %7104 = vdwg.mxu0
  %s7105 = scalar_lea.vmem %s13, 160
  %v7106 = vld [vmem:[%s7105] sm:$0xff]
  %v7107 = vld [vmem:[%s7105 + $0x8] sm:$0xff]
  %v7108 = vld [vmem:[%s7105 + $0x10] sm:$0xff]
  %v7109 = vld [vmem:[%s7105 + $0x18] sm:$0xff]
  %v7111 = vsel %vm2617, %v7082, 0
  %v7114 = vsel %vm2617, %v7087, 0
  %v7117 = vsel %vm2617, %v7092, 0
  %v7120 = vsel %vm2617, %v7097, 0
  %v7123 = vsel %vm2617, %v7102, 0
  %7125 = vmatprep.subr.mxu0 0.0
  %7126 = vmatpush1.msra.mxu0 0.0
  %7127 = vmatprep.subr.mxu0 0.0
  %7128 = vmatpush1.msra.mxu0 0.0
  %7129 = vmatprep.subr.mxu0 0.0
  %7130 = vmatpush1.msra.mxu0 0.0
  %7131 = vmatprep.subr.mxu0 0.0
  %7132 = vmatpush1.msra.mxu0 0.0
  %7133 = vmatprep.subr.mxu0 0.0
  %7134 = vmatpush1.msra.mxu0 0.0
  %7135 = vmatprep.subr.mxu0 0.0
  %7136 = vmatpush1.msra.mxu0 0.0
  %7137 = vmatprep.subr.mxu0 0.0
  %7138 = vmatpush1.msra.mxu0 0.0
  %7139 = vmatprep.subr.mxu0 0.0
  %7140 = vmatpush1.msra.mxu0 0.0
  %7141 = vmatprep.subr.mxu0 0.0
  %7142 = vmatpush1.msra.mxu0 0.0
  %7143 = vmatprep.subr.mxu0 0.0
  %7144 = vmatpush1.msra.mxu0 0.0
  %7145 = vmatprep.subr.mxu0 0.0
  %7146 = vmatpush1.msra.mxu0 0.0
  %7147 = vmatprep.subr.mxu0 0.0
  %7148 = vmatpush1.msra.mxu0 0.0
  %7149 = vmatprep.subr.mxu0 0.0
  %7150 = vmatpush1.msra.mxu0 %v7109
  %7151 = vmatprep.subr.mxu0 0.0
  %7152 = vmatpush1.msra.mxu0 %v7108
  %7153 = vmatprep.subr.mxu0 0.0
  %7154 = vmatpush1.msra.mxu0 %v7107
  %7155 = vmatprep.subr.mxu0 0.0
  %7156 = vmatpush1.msra.mxu0 %v7106
  %7157 = vmatprep.subr.mxu0 0.0
  %7158 = vmatpush2.msra.mxu0 0.0
  %7159 = vmatprep.subr.mxu0 0.0
  %7160 = vmatpush2.msra.mxu0 0.0
  %7161 = vmatprep.subr.mxu0 0.0
  %7162 = vmatpush2.msra.mxu0 0.0
  %7163 = vmatprep.subr.mxu0 0.0
  %7164 = vmatpush2.msra.mxu0 0.0
  %7165 = vmatprep.subr.mxu0 0.0
  %7166 = vmatpush2.msra.mxu0 0.0
  %7167 = vmatprep.subr.mxu0 0.0
  %7168 = vmatpush2.msra.mxu0 0.0
  %7169 = vmatprep.subr.mxu0 0.0
  %7170 = vmatpush2.msra.mxu0 0.0
  %7171 = vmatprep.subr.mxu0 0.0
  %7172 = vmatpush2.msra.mxu0 0.0
  %7173 = vmatprep.subr.mxu0 0.0
  %7174 = vmatpush2.msra.mxu0 0.0
  %7175 = vmatprep.subr.mxu0 0.0
  %7176 = vmatpush2.msra.mxu0 0.0
  %7177 = vmatprep.subr.mxu0 0.0
  %7178 = vmatpush2.msra.mxu0 0.0
  %7179 = vmatprep.subr.mxu0 0.0
  %7180 = vmatpush2.msra.mxu0 0.0
  %7181 = vmatprep.subr.mxu0 0.0
  %7182 = vmatpush2.msra.mxu0 0.0
  %7183 = vmatprep.subr.mxu0 0.0
  %7184 = vmatpush2.msra.mxu0 0.0
  %7185 = vmatprep.subr.mxu0 0.0
  %7186 = vmatpush2.msra.mxu0 0.0
  %7187 = vmatprep.subr.mxu0 0.0
  %7188 = vmatpush2.msra.mxu0 0.0
  %7189 = vmatprep.mubr.f32.mxu0 0.0
  %7190 = vmatmul.mubr.f32.gmra.mxu0 %v7111
  %v7191 = vpop.f32.mrf.mxu0
  %v7192 = vadd.f32 0.0, %v7191
  %v7193 = vpop.f32.mrf.mxu0
  %7194 = vmatprep.mubr.f32.mxu0 0.0
  %7195 = vmatmul.mubr.f32.gmra.mxu0 %v7114
  %v7196 = vpop.f32.mrf.mxu0
  %v7197 = vadd.f32 0.0, %v7196
  %v7198 = vpop.f32.mrf.mxu0
  %7199 = vmatprep.mubr.f32.mxu0 0.0
  %7200 = vmatmul.mubr.f32.gmra.mxu0 %v7117
  %v7201 = vpop.f32.mrf.mxu0
  %v7202 = vadd.f32 0.0, %v7201
  %v7203 = vpop.f32.mrf.mxu0
  %7204 = vmatprep.mubr.f32.mxu0 0.0
  %7205 = vmatmul.mubr.f32.gmra.mxu0 %v7120
  %v7206 = vpop.f32.mrf.mxu0
  %v7207 = vadd.f32 0.0, %v7206
  %v7208 = vpop.f32.mrf.mxu0
  %7209 = vmatprep.mubr.f32.mxu0 0.0
  %7210 = vmatmul.mubr.f32.gmra.mxu0 %v7123
  %v7211 = vpop.f32.mrf.mxu0
  %v7212 = vadd.f32 0.0, %v7211
  %v7213 = vpop.f32.mrf.mxu0
  %7214 = vdwg.mxu0
  %v7215 = vadd.f32 %v6989, %v7192
  %v7216 = vadd.f32 %v6990, %v7197
  %v7217 = vadd.f32 %v6991, %v7202
  %v7218 = vadd.f32 %v6992, %v7207
  %v7219 = vadd.f32 %v6993, %v7212
  %s7220 = scalar_lea.vmem %s12, 240
  %v7221 = vld [vmem:[%s7220] sm:$0xff]
  %v7222 = vld [vmem:[%s7220 + $0x8] sm:$0xff]
  %v7223 = vld [vmem:[%s7220 + $0x10] sm:$0xff]
  %v7224 = vld [vmem:[%s7220 + $0x18] sm:$0xff]
  %v7225 = vld [vmem:[%s7220 + $0x20] sm:$0xff]
  %v7227 = vsel %vm5876, %v7221, 0
  %v7230 = vsel %vm5876, %v7222, 0
  %v7233 = vsel %vm5876, %v7223, 0
  %v7236 = vsel %vm5876, %v7224, 0
  %v7239 = vsel %vm5876, %v7225, 0
  %7241 = vmatprep.subr.mxu0 0.0
  %7242 = vmatpush1.msra.mxu0 0.0
  %7243 = vmatprep.subr.mxu0 0.0
  %7244 = vmatpush1.msra.mxu0 0.0
  %7245 = vmatprep.subr.mxu0 0.0
  %7246 = vmatpush1.msra.mxu0 0.0
  %7247 = vmatprep.subr.mxu0 0.0
  %7248 = vmatpush1.msra.mxu0 0.0
  %7249 = vmatprep.subr.mxu0 0.0
  %7250 = vmatpush1.msra.mxu0 %v5894
  %7251 = vmatprep.subr.mxu0 0.0
  %7252 = vmatpush1.msra.mxu0 %v5869
  %7253 = vmatprep.subr.mxu0 0.0
  %7254 = vmatpush1.msra.mxu0 %v5868
  %7255 = vmatprep.subr.mxu0 0.0
  %7256 = vmatpush1.msra.mxu0 %v5867
  %7257 = vmatprep.subr.mxu0 0.0
  %7258 = vmatpush1.msra.mxu0 %v5866
  %7259 = vmatprep.subr.mxu0 0.0
  %7260 = vmatpush1.msra.mxu0 %v5865
  %7261 = vmatprep.subr.mxu0 0.0
  %7262 = vmatpush1.msra.mxu0 %v5864
  %7263 = vmatprep.subr.mxu0 0.0
  %7264 = vmatpush1.msra.mxu0 %v5863
  %7265 = vmatprep.subr.mxu0 0.0
  %7266 = vmatpush1.msra.mxu0 %v5862
  %7267 = vmatprep.subr.mxu0 0.0
  %7268 = vmatpush1.msra.mxu0 %v5861
  %7269 = vmatprep.subr.mxu0 0.0
  %7270 = vmatpush1.msra.mxu0 %v5860
  %7271 = vmatprep.subr.mxu0 0.0
  %7272 = vmatpush1.msra.mxu0 %v5859
  %7273 = vmatprep.subr.mxu0 0.0
  %7274 = vmatpush2.msra.mxu0 0.0
  %7275 = vmatprep.subr.mxu0 0.0
  %7276 = vmatpush2.msra.mxu0 0.0
  %7277 = vmatprep.subr.mxu0 0.0
  %7278 = vmatpush2.msra.mxu0 0.0
  %7279 = vmatprep.subr.mxu0 0.0
  %7280 = vmatpush2.msra.mxu0 0.0
  %7281 = vmatprep.subr.mxu0 0.0
  %7282 = vmatpush2.msra.mxu0 0.0
  %7283 = vmatprep.subr.mxu0 0.0
  %7284 = vmatpush2.msra.mxu0 0.0
  %7285 = vmatprep.subr.mxu0 0.0
  %7286 = vmatpush2.msra.mxu0 0.0
  %7287 = vmatprep.subr.mxu0 0.0
  %7288 = vmatpush2.msra.mxu0 0.0
  %7289 = vmatprep.subr.mxu0 0.0
  %7290 = vmatpush2.msra.mxu0 0.0
  %7291 = vmatprep.subr.mxu0 0.0
  %7292 = vmatpush2.msra.mxu0 0.0
  %7293 = vmatprep.subr.mxu0 0.0
  %7294 = vmatpush2.msra.mxu0 0.0
  %7295 = vmatprep.subr.mxu0 0.0
  %7296 = vmatpush2.msra.mxu0 0.0
  %7297 = vmatprep.subr.mxu0 0.0
  %7298 = vmatpush2.msra.mxu0 0.0
  %7299 = vmatprep.subr.mxu0 0.0
  %7300 = vmatpush2.msra.mxu0 0.0
  %7301 = vmatprep.subr.mxu0 0.0
  %7302 = vmatpush2.msra.mxu0 0.0
  %7303 = vmatprep.subr.mxu0 0.0
  %7304 = vmatpush2.msra.mxu0 0.0
  %7305 = vmatprep.mubr.f32.mxu0 0.0
  %7306 = vmatmul.mubr.f32.gmra.mxu0 %v7227
  %v7307 = vpop.f32.mrf.mxu0
  %v7308 = vadd.f32 0.0, %v7307
  %v7309 = vpop.f32.mrf.mxu0
  %7310 = vmatprep.mubr.f32.mxu0 0.0
  %7311 = vmatmul.mubr.f32.gmra.mxu0 %v7230
  %v7312 = vpop.f32.mrf.mxu0
  %v7313 = vadd.f32 0.0, %v7312
  %v7314 = vpop.f32.mrf.mxu0
  %7315 = vmatprep.mubr.f32.mxu0 0.0
  %7316 = vmatmul.mubr.f32.gmra.mxu0 %v7233
  %v7317 = vpop.f32.mrf.mxu0
  %v7318 = vadd.f32 0.0, %v7317
  %v7319 = vpop.f32.mrf.mxu0
  %7320 = vmatprep.mubr.f32.mxu0 0.0
  %7321 = vmatmul.mubr.f32.gmra.mxu0 %v7236
  %v7322 = vpop.f32.mrf.mxu0
  %v7323 = vadd.f32 0.0, %v7322
  %v7324 = vpop.f32.mrf.mxu0
  %7325 = vmatprep.mubr.f32.mxu0 0.0
  %7326 = vmatmul.mubr.f32.gmra.mxu0 %v7239
  %v7327 = vpop.f32.mrf.mxu0
  %v7328 = vadd.f32 0.0, %v7327
  %v7329 = vpop.f32.mrf.mxu0
  %7330 = vdwg.mxu0
  %s7331 = scalar_lea.vmem %s13, 192
  %v7332 = vld [vmem:[%s7331] sm:$0xff]
  %v7333 = vld [vmem:[%s7331 + $0x8] sm:$0xff]
  %v7334 = vld [vmem:[%s7331 + $0x10] sm:$0xff]
  %v7335 = vld [vmem:[%s7331 + $0x18] sm:$0xff]
  %v7337 = vsel %vm2617, %v7308, 0
  %v7340 = vsel %vm2617, %v7313, 0
  %v7343 = vsel %vm2617, %v7318, 0
  %v7346 = vsel %vm2617, %v7323, 0
  %v7349 = vsel %vm2617, %v7328, 0
  %7351 = vmatprep.subr.mxu0 0.0
  %7352 = vmatpush1.msra.mxu0 0.0
  %7353 = vmatprep.subr.mxu0 0.0
  %7354 = vmatpush1.msra.mxu0 0.0
  %7355 = vmatprep.subr.mxu0 0.0
  %7356 = vmatpush1.msra.mxu0 0.0
  %7357 = vmatprep.subr.mxu0 0.0
  %7358 = vmatpush1.msra.mxu0 0.0
  %7359 = vmatprep.subr.mxu0 0.0
  %7360 = vmatpush1.msra.mxu0 0.0
  %7361 = vmatprep.subr.mxu0 0.0
  %7362 = vmatpush1.msra.mxu0 0.0
  %7363 = vmatprep.subr.mxu0 0.0
  %7364 = vmatpush1.msra.mxu0 0.0
  %7365 = vmatprep.subr.mxu0 0.0
  %7366 = vmatpush1.msra.mxu0 0.0
  %7367 = vmatprep.subr.mxu0 0.0
  %7368 = vmatpush1.msra.mxu0 0.0
  %7369 = vmatprep.subr.mxu0 0.0
  %7370 = vmatpush1.msra.mxu0 0.0
  %7371 = vmatprep.subr.mxu0 0.0
  %7372 = vmatpush1.msra.mxu0 0.0
  %7373 = vmatprep.subr.mxu0 0.0
  %7374 = vmatpush1.msra.mxu0 0.0
  %7375 = vmatprep.subr.mxu0 0.0
  %7376 = vmatpush1.msra.mxu0 %v7335
  %7377 = vmatprep.subr.mxu0 0.0
  %7378 = vmatpush1.msra.mxu0 %v7334
  %7379 = vmatprep.subr.mxu0 0.0
  %7380 = vmatpush1.msra.mxu0 %v7333
  %7381 = vmatprep.subr.mxu0 0.0
  %7382 = vmatpush1.msra.mxu0 %v7332
  %7383 = vmatprep.subr.mxu0 0.0
  %7384 = vmatpush2.msra.mxu0 0.0
  %7385 = vmatprep.subr.mxu0 0.0
  %7386 = vmatpush2.msra.mxu0 0.0
  %7387 = vmatprep.subr.mxu0 0.0
  %7388 = vmatpush2.msra.mxu0 0.0
  %7389 = vmatprep.subr.mxu0 0.0
  %7390 = vmatpush2.msra.mxu0 0.0
  %7391 = vmatprep.subr.mxu0 0.0
  %7392 = vmatpush2.msra.mxu0 0.0
  %7393 = vmatprep.subr.mxu0 0.0
  %7394 = vmatpush2.msra.mxu0 0.0
  %7395 = vmatprep.subr.mxu0 0.0
  %7396 = vmatpush2.msra.mxu0 0.0
  %7397 = vmatprep.subr.mxu0 0.0
  %7398 = vmatpush2.msra.mxu0 0.0
  %7399 = vmatprep.subr.mxu0 0.0
  %7400 = vmatpush2.msra.mxu0 0.0
  %7401 = vmatprep.subr.mxu0 0.0
  %7402 = vmatpush2.msra.mxu0 0.0
  %7403 = vmatprep.subr.mxu0 0.0
  %7404 = vmatpush2.msra.mxu0 0.0
  %7405 = vmatprep.subr.mxu0 0.0
  %7406 = vmatpush2.msra.mxu0 0.0
  %7407 = vmatprep.subr.mxu0 0.0
  %7408 = vmatpush2.msra.mxu0 0.0
  %7409 = vmatprep.subr.mxu0 0.0
  %7410 = vmatpush2.msra.mxu0 0.0
  %7411 = vmatprep.subr.mxu0 0.0
  %7412 = vmatpush2.msra.mxu0 0.0
  %7413 = vmatprep.subr.mxu0 0.0
  %7414 = vmatpush2.msra.mxu0 0.0
  %7415 = vmatprep.mubr.f32.mxu0 0.0
  %7416 = vmatmul.mubr.f32.gmra.mxu0 %v7337
  %v7417 = vpop.f32.mrf.mxu0
  %v7418 = vadd.f32 0.0, %v7417
  %v7419 = vpop.f32.mrf.mxu0
  %7420 = vmatprep.mubr.f32.mxu0 0.0
  %7421 = vmatmul.mubr.f32.gmra.mxu0 %v7340
  %v7422 = vpop.f32.mrf.mxu0
  %v7423 = vadd.f32 0.0, %v7422
  %v7424 = vpop.f32.mrf.mxu0
  %7425 = vmatprep.mubr.f32.mxu0 0.0
  %7426 = vmatmul.mubr.f32.gmra.mxu0 %v7343
  %v7427 = vpop.f32.mrf.mxu0
  %v7428 = vadd.f32 0.0, %v7427
  %v7429 = vpop.f32.mrf.mxu0
  %7430 = vmatprep.mubr.f32.mxu0 0.0
  %7431 = vmatmul.mubr.f32.gmra.mxu0 %v7346
  %v7432 = vpop.f32.mrf.mxu0
  %v7433 = vadd.f32 0.0, %v7432
  %v7434 = vpop.f32.mrf.mxu0
  %7435 = vmatprep.mubr.f32.mxu0 0.0
  %7436 = vmatmul.mubr.f32.gmra.mxu0 %v7349
  %v7437 = vpop.f32.mrf.mxu0
  %v7438 = vadd.f32 0.0, %v7437
  %v7439 = vpop.f32.mrf.mxu0
  %7440 = vdwg.mxu0
  %v7441 = vadd.f32 %v7215, %v7418
  %v7442 = vadd.f32 %v7216, %v7423
  %v7443 = vadd.f32 %v7217, %v7428
  %v7444 = vadd.f32 %v7218, %v7433
  %v7445 = vadd.f32 %v7219, %v7438
  %s7446 = scalar_lea.vmem %s12, 280
  %v7447 = vld [vmem:[%s7446] sm:$0xff]
  %v7448 = vld [vmem:[%s7446 + $0x8] sm:$0xff]
  %v7449 = vld [vmem:[%s7446 + $0x10] sm:$0xff]
  %v7450 = vld [vmem:[%s7446 + $0x18] sm:$0xff]
  %v7451 = vld [vmem:[%s7446 + $0x20] sm:$0xff]
  %v7453 = vsel %vm5876, %v7447, 0
  %v7456 = vsel %vm5876, %v7448, 0
  %v7459 = vsel %vm5876, %v7449, 0
  %v7462 = vsel %vm5876, %v7450, 0
  %v7465 = vsel %vm5876, %v7451, 0
  %7467 = vmatprep.subr.mxu0 0.0
  %7468 = vmatpush1.msra.mxu0 0.0
  %7469 = vmatprep.subr.mxu0 0.0
  %7470 = vmatpush1.msra.mxu0 0.0
  %7471 = vmatprep.subr.mxu0 0.0
  %7472 = vmatpush1.msra.mxu0 0.0
  %7473 = vmatprep.subr.mxu0 0.0
  %7474 = vmatpush1.msra.mxu0 0.0
  %7475 = vmatprep.subr.mxu0 0.0
  %7476 = vmatpush1.msra.mxu0 %v5894
  %7477 = vmatprep.subr.mxu0 0.0
  %7478 = vmatpush1.msra.mxu0 %v5869
  %7479 = vmatprep.subr.mxu0 0.0
  %7480 = vmatpush1.msra.mxu0 %v5868
  %7481 = vmatprep.subr.mxu0 0.0
  %7482 = vmatpush1.msra.mxu0 %v5867
  %7483 = vmatprep.subr.mxu0 0.0
  %7484 = vmatpush1.msra.mxu0 %v5866
  %7485 = vmatprep.subr.mxu0 0.0
  %7486 = vmatpush1.msra.mxu0 %v5865
  %7487 = vmatprep.subr.mxu0 0.0
  %7488 = vmatpush1.msra.mxu0 %v5864
  %7489 = vmatprep.subr.mxu0 0.0
  %7490 = vmatpush1.msra.mxu0 %v5863
  %7491 = vmatprep.subr.mxu0 0.0
  %7492 = vmatpush1.msra.mxu0 %v5862
  %7493 = vmatprep.subr.mxu0 0.0
  %7494 = vmatpush1.msra.mxu0 %v5861
  %7495 = vmatprep.subr.mxu0 0.0
  %7496 = vmatpush1.msra.mxu0 %v5860
  %7497 = vmatprep.subr.mxu0 0.0
  %7498 = vmatpush1.msra.mxu0 %v5859
  %7499 = vmatprep.subr.mxu0 0.0
  %7500 = vmatpush2.msra.mxu0 0.0
  %7501 = vmatprep.subr.mxu0 0.0
  %7502 = vmatpush2.msra.mxu0 0.0
  %7503 = vmatprep.subr.mxu0 0.0
  %7504 = vmatpush2.msra.mxu0 0.0
  %7505 = vmatprep.subr.mxu0 0.0
  %7506 = vmatpush2.msra.mxu0 0.0
  %7507 = vmatprep.subr.mxu0 0.0
  %7508 = vmatpush2.msra.mxu0 0.0
  %7509 = vmatprep.subr.mxu0 0.0
  %7510 = vmatpush2.msra.mxu0 0.0
  %7511 = vmatprep.subr.mxu0 0.0
  %7512 = vmatpush2.msra.mxu0 0.0
  %7513 = vmatprep.subr.mxu0 0.0
  %7514 = vmatpush2.msra.mxu0 0.0
  %7515 = vmatprep.subr.mxu0 0.0
  %7516 = vmatpush2.msra.mxu0 0.0
  %7517 = vmatprep.subr.mxu0 0.0
  %7518 = vmatpush2.msra.mxu0 0.0
  %7519 = vmatprep.subr.mxu0 0.0
  %7520 = vmatpush2.msra.mxu0 0.0
  %7521 = vmatprep.subr.mxu0 0.0
  %7522 = vmatpush2.msra.mxu0 0.0
  %7523 = vmatprep.subr.mxu0 0.0
  %7524 = vmatpush2.msra.mxu0 0.0
  %7525 = vmatprep.subr.mxu0 0.0
  %7526 = vmatpush2.msra.mxu0 0.0
  %7527 = vmatprep.subr.mxu0 0.0
  %7528 = vmatpush2.msra.mxu0 0.0
  %7529 = vmatprep.subr.mxu0 0.0
  %7530 = vmatpush2.msra.mxu0 0.0
  %7531 = vmatprep.mubr.f32.mxu0 0.0
  %7532 = vmatmul.mubr.f32.gmra.mxu0 %v7453
  %v7533 = vpop.f32.mrf.mxu0
  %v7534 = vadd.f32 0.0, %v7533
  %v7535 = vpop.f32.mrf.mxu0
  %7536 = vmatprep.mubr.f32.mxu0 0.0
  %7537 = vmatmul.mubr.f32.gmra.mxu0 %v7456
  %v7538 = vpop.f32.mrf.mxu0
  %v7539 = vadd.f32 0.0, %v7538
  %v7540 = vpop.f32.mrf.mxu0
  %7541 = vmatprep.mubr.f32.mxu0 0.0
  %7542 = vmatmul.mubr.f32.gmra.mxu0 %v7459
  %v7543 = vpop.f32.mrf.mxu0
  %v7544 = vadd.f32 0.0, %v7543
  %v7545 = vpop.f32.mrf.mxu0
  %7546 = vmatprep.mubr.f32.mxu0 0.0
  %7547 = vmatmul.mubr.f32.gmra.mxu0 %v7462
  %v7548 = vpop.f32.mrf.mxu0
  %v7549 = vadd.f32 0.0, %v7548
  %v7550 = vpop.f32.mrf.mxu0
  %7551 = vmatprep.mubr.f32.mxu0 0.0
  %7552 = vmatmul.mubr.f32.gmra.mxu0 %v7465
  %v7553 = vpop.f32.mrf.mxu0
  %v7554 = vadd.f32 0.0, %v7553
  %v7555 = vpop.f32.mrf.mxu0
  %7556 = vdwg.mxu0
  %s7557 = scalar_lea.vmem %s13, 224
  %v7558 = vld [vmem:[%s7557] sm:$0xff]
  %v7559 = vld [vmem:[%s7557 + $0x8] sm:$0xff]
  %v7560 = vld [vmem:[%s7557 + $0x10] sm:$0xff]
  %v7561 = vld [vmem:[%s7557 + $0x18] sm:$0xff]
  %v7563 = vsel %vm2617, %v7534, 0
  %v7566 = vsel %vm2617, %v7539, 0
  %v7569 = vsel %vm2617, %v7544, 0
  %v7572 = vsel %vm2617, %v7549, 0
  %v7575 = vsel %vm2617, %v7554, 0
  %7577 = vmatprep.subr.mxu0 0.0
  %7578 = vmatpush1.msra.mxu0 0.0
  %7579 = vmatprep.subr.mxu0 0.0
  %7580 = vmatpush1.msra.mxu0 0.0
  %7581 = vmatprep.subr.mxu0 0.0
  %7582 = vmatpush1.msra.mxu0 0.0
  %7583 = vmatprep.subr.mxu0 0.0
  %7584 = vmatpush1.msra.mxu0 0.0
  %7585 = vmatprep.subr.mxu0 0.0
  %7586 = vmatpush1.msra.mxu0 0.0
  %7587 = vmatprep.subr.mxu0 0.0
  %7588 = vmatpush1.msra.mxu0 0.0
  %7589 = vmatprep.subr.mxu0 0.0
  %7590 = vmatpush1.msra.mxu0 0.0
  %7591 = vmatprep.subr.mxu0 0.0
  %7592 = vmatpush1.msra.mxu0 0.0
  %7593 = vmatprep.subr.mxu0 0.0
  %7594 = vmatpush1.msra.mxu0 0.0
  %7595 = vmatprep.subr.mxu0 0.0
  %7596 = vmatpush1.msra.mxu0 0.0
  %7597 = vmatprep.subr.mxu0 0.0
  %7598 = vmatpush1.msra.mxu0 0.0
  %7599 = vmatprep.subr.mxu0 0.0
  %7600 = vmatpush1.msra.mxu0 0.0
  %7601 = vmatprep.subr.mxu0 0.0
  %7602 = vmatpush1.msra.mxu0 %v7561
  %7603 = vmatprep.subr.mxu0 0.0
  %7604 = vmatpush1.msra.mxu0 %v7560
  %7605 = vmatprep.subr.mxu0 0.0
  %7606 = vmatpush1.msra.mxu0 %v7559
  %7607 = vmatprep.subr.mxu0 0.0
  %7608 = vmatpush1.msra.mxu0 %v7558
  %7609 = vmatprep.subr.mxu0 0.0
  %7610 = vmatpush2.msra.mxu0 0.0
  %7611 = vmatprep.subr.mxu0 0.0
  %7612 = vmatpush2.msra.mxu0 0.0
  %7613 = vmatprep.subr.mxu0 0.0
  %7614 = vmatpush2.msra.mxu0 0.0
  %7615 = vmatprep.subr.mxu0 0.0
  %7616 = vmatpush2.msra.mxu0 0.0
  %7617 = vmatprep.subr.mxu0 0.0
  %7618 = vmatpush2.msra.mxu0 0.0
  %7619 = vmatprep.subr.mxu0 0.0
  %7620 = vmatpush2.msra.mxu0 0.0
  %7621 = vmatprep.subr.mxu0 0.0
  %7622 = vmatpush2.msra.mxu0 0.0
  %7623 = vmatprep.subr.mxu0 0.0
  %7624 = vmatpush2.msra.mxu0 0.0
  %7625 = vmatprep.subr.mxu0 0.0
  %7626 = vmatpush2.msra.mxu0 0.0
  %7627 = vmatprep.subr.mxu0 0.0
  %7628 = vmatpush2.msra.mxu0 0.0
  %7629 = vmatprep.subr.mxu0 0.0
  %7630 = vmatpush2.msra.mxu0 0.0
  %7631 = vmatprep.subr.mxu0 0.0
  %7632 = vmatpush2.msra.mxu0 0.0
  %7633 = vmatprep.subr.mxu0 0.0
  %7634 = vmatpush2.msra.mxu0 0.0
  %7635 = vmatprep.subr.mxu0 0.0
  %7636 = vmatpush2.msra.mxu0 0.0
  %7637 = vmatprep.subr.mxu0 0.0
  %7638 = vmatpush2.msra.mxu0 0.0
  %7639 = vmatprep.subr.mxu0 0.0
  %7640 = vmatpush2.msra.mxu0 0.0
  %7641 = vmatprep.mubr.f32.mxu0 0.0
  %7642 = vmatmul.mubr.f32.gmra.mxu0 %v7563
  %v7643 = vpop.f32.mrf.mxu0
  %v7644 = vadd.f32 0.0, %v7643
  %v7645 = vpop.f32.mrf.mxu0
  %7646 = vmatprep.mubr.f32.mxu0 0.0
  %7647 = vmatmul.mubr.f32.gmra.mxu0 %v7566
  %v7648 = vpop.f32.mrf.mxu0
  %v7649 = vadd.f32 0.0, %v7648
  %v7650 = vpop.f32.mrf.mxu0
  %7651 = vmatprep.mubr.f32.mxu0 0.0
  %7652 = vmatmul.mubr.f32.gmra.mxu0 %v7569
  %v7653 = vpop.f32.mrf.mxu0
  %v7654 = vadd.f32 0.0, %v7653
  %v7655 = vpop.f32.mrf.mxu0
  %7656 = vmatprep.mubr.f32.mxu0 0.0
  %7657 = vmatmul.mubr.f32.gmra.mxu0 %v7572
  %v7658 = vpop.f32.mrf.mxu0
  %v7659 = vadd.f32 0.0, %v7658
  %v7660 = vpop.f32.mrf.mxu0
  %7661 = vmatprep.mubr.f32.mxu0 0.0
  %7662 = vmatmul.mubr.f32.gmra.mxu0 %v7575
  %v7663 = vpop.f32.mrf.mxu0
  %v7664 = vadd.f32 0.0, %v7663
  %v7665 = vpop.f32.mrf.mxu0
  %7666 = vdwg.mxu0
  %v7667 = vadd.f32 %v7441, %v7644
  %v7668 = vadd.f32 %v7442, %v7649
  %v7669 = vadd.f32 %v7443, %v7654
  %v7670 = vadd.f32 %v7444, %v7659
  %v7671 = vadd.f32 %v7445, %v7664
  %v7672 = vld [vmem:[%s14] sm:$0x1]
  %v7673 = vlaneseq
  %v7674 = vshrl.u32 %v7673, 7
  %v7675 = vsub.s32 0, %v7674
  %v7676 = vrot.slane %v7672, %v7675
  %v7677 = vadd.f32 %v7667, %v7676
  %v7678 = vadd.f32 %v7668, %v7676
  %v7679 = vadd.f32 %v7669, %v7676
  %v7680 = vadd.f32 %v7670, %v7676
  %v7681 = vadd.f32 %v7671, %v7676
  %vm7682 = vcmask 523264
  %v7683 = vsel %vm7682, %v7677, 0.0
  %v7684 = vsel %vm7682, %v7678, 0.0
  %v7685 = vadd.f32 %v7683, %v7684
  %v7686 = vsel %vm7682, %v7679, 0.0
  %v7687 = vadd.f32 %v7685, %v7686
  %v7688 = vsel %vm7682, %v7680, 0.0
  %v7689 = vadd.f32 %v7687, %v7688
  %v7690 = vsel %vm7682, %v7681, 0.0
  %v7691 = vadd.f32 %v7689, %v7690
  %v7692 = vrot.slane %v7691, 4
  %v7693 = vadd.f32 %v7691, %v7692
  %v7694 = vrot.slane %v7693, 2
  %v7695 = vadd.f32 %v7693, %v7694
  %v7696 = vrot.slane %v7695, 1
  %v7697 = vadd.f32 %v7695, %v7696
  %v7698 = vrcp.pop 40.0
  %v7699 = vmul.f32 %v7697, %v7698
  %v7700 = vsub.f32 %v7677, %v7699
  %v7701 = vsub.f32 %v7678, %v7699
  %v7702 = vsub.f32 %v7679, %v7699
  %v7703 = vsub.f32 %v7680, %v7699
  %v7704 = vsub.f32 %v7681, %v7699
  %v7705 = vmul.f32 %v7700, %v7700
  %v7706 = vmul.f32 %v7701, %v7701
  %v7707 = vmul.f32 %v7702, %v7702
  %v7708 = vmul.f32 %v7703, %v7703
  %v7709 = vmul.f32 %v7704, %v7704
  %v7710 = vsel %vm7682, %v7705, 0.0
  %v7711 = vsel %vm7682, %v7706, 0.0
  %v7712 = vadd.f32 %v7710, %v7711
  %v7713 = vsel %vm7682, %v7707, 0.0
  %v7714 = vadd.f32 %v7712, %v7713
  %v7715 = vsel %vm7682, %v7708, 0.0
  %v7716 = vadd.f32 %v7714, %v7715
  %v7717 = vsel %vm7682, %v7709, 0.0
  %v7718 = vadd.f32 %v7716, %v7717
  %v7719 = vrot.slane %v7718, 4
  %v7720 = vadd.f32 %v7718, %v7719
  %v7721 = vrot.slane %v7720, 2
  %v7722 = vadd.f32 %v7720, %v7721
  %v7723 = vrot.slane %v7722, 1
  %v7724 = vadd.f32 %v7722, %v7723
  %v7725 = vmul.f32 %v7724, %v7698
  %v7726 = vadd.f32 %v7725, 1e-05
  %v7727 = vrsqrt.pop %v7726
  %v7728 = vmul.f32 %v7700, %v7727
  %v7729 = vmul.f32 %v7701, %v7727
  %v7730 = vmul.f32 %v7702, %v7727
  %v7731 = vmul.f32 %v7703, %v7727
  %v7732 = vmul.f32 %v7704, %v7727
  %v7733 = vld [vmem:[%s14 + $0x1] sm:$0x1]
  %v7734 = vlaneseq
  %v7735 = vshrl.u32 %v7734, 7
  %v7736 = vsub.s32 0, %v7735
  %v7737 = vrot.slane %v7733, %v7736
  %v7738 = vmul.f32 %v7728, %v7737
  %v7739 = vmul.f32 %v7729, %v7737
  %v7740 = vmul.f32 %v7730, %v7737
  %v7741 = vmul.f32 %v7731, %v7737
  %v7742 = vmul.f32 %v7732, %v7737
  %v7743 = vld [vmem:[%s14 + $0x2] sm:$0x1]
  %v7744 = vlaneseq
  %v7745 = vshrl.u32 %v7744, 7
  %v7746 = vsub.s32 0, %v7745
  %v7747 = vrot.slane %v7743, %v7746
  %v7748 = vadd.f32 %v7738, %v7747
  %v7749 = vadd.f32 %v7739, %v7747
  %v7750 = vadd.f32 %v7740, %v7747
  %v7751 = vadd.f32 %v7741, %v7747
  %v7752 = vadd.f32 %v7742, %v7747
  %vm7753 = vcmp.ge.f32.partialorder %v7748, 0.0
  %vm7754 = vcmp.ge.f32.partialorder %v7749, 0.0
  %vm7755 = vcmp.ge.f32.partialorder %v7750, 0.0
  %vm7756 = vcmp.ge.f32.partialorder %v7751, 0.0
  %vm7757 = vcmp.ge.f32.partialorder %v7752, 0.0
  %v7758 = vmul.f32 %v7748, 0.2
  %v7759 = vmul.f32 %v7749, 0.2
  %v7760 = vmul.f32 %v7750, 0.2
  %v7761 = vmul.f32 %v7751, 0.2
  %v7762 = vmul.f32 %v7752, 0.2
  %v7763 = vsel %vm7753, %v7748, %v7758
  %v7764 = vsel %vm7754, %v7749, %v7759
  %v7765 = vsel %vm7755, %v7750, %v7760
  %v7766 = vsel %vm7756, %v7751, %v7761
  %v7767 = vsel %vm7757, %v7752, %v7762
  %v7768 = vld [vmem:[%s15] sm:$0x3]
  %vm7769 = vcmask 326656
  %v7771 = vsel %vm7769, %v7768, 0
  %7773 = vmatprep.subr.mxu0 0.0
  %7774 = vmatpush1.msra.mxu0 0.0
  %7775 = vmatprep.subr.mxu0 0.0
  %7776 = vmatpush1.msra.mxu0 0.0
  %7777 = vmatprep.subr.mxu0 0.0
  %7778 = vmatpush1.msra.mxu0 0.0
  %7779 = vmatprep.subr.mxu0 0.0
  %7780 = vmatpush1.msra.mxu0 0.0
  %7781 = vmatprep.subr.mxu0 0.0
  %7782 = vmatpush1.msra.mxu0 0.0
  %7783 = vmatprep.subr.mxu0 0.0
  %7784 = vmatpush1.msra.mxu0 0.0
  %7785 = vmatprep.subr.mxu0 0.0
  %7786 = vmatpush1.msra.mxu0 0.0
  %7787 = vmatprep.subr.mxu0 0.0
  %7788 = vmatpush1.msra.mxu0 0.0
  %7789 = vmatprep.subr.mxu0 0.0
  %7790 = vmatpush1.msra.mxu0 0.0
  %7791 = vmatprep.subr.mxu0 0.0
  %7792 = vmatpush1.msra.mxu0 0.0
  %7793 = vmatprep.subr.mxu0 0.0
  %7794 = vmatpush1.msra.mxu0 0.0
  %7795 = vmatprep.subr.mxu0 0.0
  %7796 = vmatpush1.msra.mxu0 %v7767
  %7797 = vmatprep.subr.mxu0 0.0
  %7798 = vmatpush1.msra.mxu0 %v7766
  %7799 = vmatprep.subr.mxu0 0.0
  %7800 = vmatpush1.msra.mxu0 %v7765
  %7801 = vmatprep.subr.mxu0 0.0
  %7802 = vmatpush1.msra.mxu0 %v7764
  %7803 = vmatprep.subr.mxu0 0.0
  %7804 = vmatpush1.msra.mxu0 %v7763
  %7805 = vmatprep.subr.mxu0 0.0
  %7806 = vmatpush2.msra.mxu0 0.0
  %7807 = vmatprep.subr.mxu0 0.0
  %7808 = vmatpush2.msra.mxu0 0.0
  %7809 = vmatprep.subr.mxu0 0.0
  %7810 = vmatpush2.msra.mxu0 0.0
  %7811 = vmatprep.subr.mxu0 0.0
  %7812 = vmatpush2.msra.mxu0 0.0
  %7813 = vmatprep.subr.mxu0 0.0
  %7814 = vmatpush2.msra.mxu0 0.0
  %7815 = vmatprep.subr.mxu0 0.0
  %7816 = vmatpush2.msra.mxu0 0.0
  %7817 = vmatprep.subr.mxu0 0.0
  %7818 = vmatpush2.msra.mxu0 0.0
  %7819 = vmatprep.subr.mxu0 0.0
  %7820 = vmatpush2.msra.mxu0 0.0
  %7821 = vmatprep.subr.mxu0 0.0
  %7822 = vmatpush2.msra.mxu0 0.0
  %7823 = vmatprep.subr.mxu0 0.0
  %7824 = vmatpush2.msra.mxu0 0.0
  %7825 = vmatprep.subr.mxu0 0.0
  %7826 = vmatpush2.msra.mxu0 0.0
  %7827 = vmatprep.subr.mxu0 0.0
  %7828 = vmatpush2.msra.mxu0 0.0
  %7829 = vmatprep.subr.mxu0 0.0
  %7830 = vmatpush2.msra.mxu0 0.0
  %7831 = vmatprep.subr.mxu0 0.0
  %7832 = vmatpush2.msra.mxu0 0.0
  %7833 = vmatprep.subr.mxu0 0.0
  %7834 = vmatpush2.msra.mxu0 0.0
  %7835 = vmatprep.subr.mxu0 0.0
  %7836 = vmatpush2.msra.mxu0 0.0
  %7837 = vmatprep.mubr.f32.mxu0 0.0
  %7838 = vmatmul.mubr.f32.gmra.mxu0 %v7771
  %v7839 = vpop.f32.mrf.mxu0
  %v7840 = vadd.f32 0.0, %v7839
  %v7841 = vpop.f32.mrf.mxu0
  %7842 = vdwg.mxu0
  %v7843 = vld [vmem:[%s16] sm:$0xff]
  %v7844 = vld [vmem:[%s16 + $0x8] sm:$0xff]
  %v7845 = vld [vmem:[%s16 + $0x10] sm:$0xff]
  %v7846 = vld [vmem:[%s16 + $0x18] sm:$0xff]
  %v7847 = vld [vmem:[%s16 + $0x20] sm:$0xff]
  %v7848 = vld [vmem:[%s16 + $0x28] sm:$0xff]
  %v7849 = vld [vmem:[%s16 + $0x30] sm:$0xff]
  %v7850 = vld [vmem:[%s16 + $0x38] sm:$0xff]
  %v7851 = vld [vmem:[%s16 + $0x40] sm:$0xff]
  %v7852 = vld [vmem:[%s16 + $0x48] sm:$0xff]
  %v7853 = vld [vmem:[%s16 + $0x50] sm:$0xff]
  %v7854 = vld [vmem:[%s16 + $0x58] sm:$0xff]
  %v7855 = vld [vmem:[%s16 + $0x60] sm:$0xff]
  %v7856 = vld [vmem:[%s16 + $0x68] sm:$0xff]
  %v7857 = vld [vmem:[%s16 + $0x70] sm:$0xff]
  %v7858 = vld [vmem:[%s16 + $0x78] sm:$0xff]
  %s7859 = scalar_lea.vmem %s15, 2
  %v7860 = vld [vmem:[%s7859] sm:$0x3]
  %v7862 = vsel %vm7769, %v7860, 0
  %7864 = vmatprep.subr.mxu0 0.0
  %7865 = vmatpush1.msra.mxu0 0.0
  %7866 = vmatprep.subr.mxu0 0.0
  %7867 = vmatpush1.msra.mxu0 0.0
  %7868 = vmatprep.subr.mxu0 0.0
  %7869 = vmatpush1.msra.mxu0 0.0
  %7870 = vmatprep.subr.mxu0 0.0
  %7871 = vmatpush1.msra.mxu0 0.0
  %7872 = vmatprep.subr.mxu0 0.0
  %7873 = vmatpush1.msra.mxu0 0.0
  %7874 = vmatprep.subr.mxu0 0.0
  %7875 = vmatpush1.msra.mxu0 0.0
  %7876 = vmatprep.subr.mxu0 0.0
  %7877 = vmatpush1.msra.mxu0 0.0
  %7878 = vmatprep.subr.mxu0 0.0
  %7879 = vmatpush1.msra.mxu0 0.0
  %7880 = vmatprep.subr.mxu0 0.0
  %7881 = vmatpush1.msra.mxu0 0.0
  %7882 = vmatprep.subr.mxu0 0.0
  %7883 = vmatpush1.msra.mxu0 0.0
  %7884 = vmatprep.subr.mxu0 0.0
  %7885 = vmatpush1.msra.mxu0 0.0
  %7886 = vmatprep.subr.mxu0 0.0
  %7887 = vmatpush1.msra.mxu0 %v7767
  %7888 = vmatprep.subr.mxu0 0.0
  %7889 = vmatpush1.msra.mxu0 %v7766
  %7890 = vmatprep.subr.mxu0 0.0
  %7891 = vmatpush1.msra.mxu0 %v7765
  %7892 = vmatprep.subr.mxu0 0.0
  %7893 = vmatpush1.msra.mxu0 %v7764
  %7894 = vmatprep.subr.mxu0 0.0
  %7895 = vmatpush1.msra.mxu0 %v7763
  %7896 = vmatprep.subr.mxu0 0.0
  %7897 = vmatpush2.msra.mxu0 0.0
  %7898 = vmatprep.subr.mxu0 0.0
  %7899 = vmatpush2.msra.mxu0 0.0
  %7900 = vmatprep.subr.mxu0 0.0
  %7901 = vmatpush2.msra.mxu0 0.0
  %7902 = vmatprep.subr.mxu0 0.0
  %7903 = vmatpush2.msra.mxu0 0.0
  %7904 = vmatprep.subr.mxu0 0.0
  %7905 = vmatpush2.msra.mxu0 0.0
  %7906 = vmatprep.subr.mxu0 0.0
  %7907 = vmatpush2.msra.mxu0 0.0
  %7908 = vmatprep.subr.mxu0 0.0
  %7909 = vmatpush2.msra.mxu0 0.0
  %7910 = vmatprep.subr.mxu0 0.0
  %7911 = vmatpush2.msra.mxu0 0.0
  %7912 = vmatprep.subr.mxu0 0.0
  %7913 = vmatpush2.msra.mxu0 0.0
  %7914 = vmatprep.subr.mxu0 0.0
  %7915 = vmatpush2.msra.mxu0 0.0
  %7916 = vmatprep.subr.mxu0 0.0
  %7917 = vmatpush2.msra.mxu0 0.0
  %7918 = vmatprep.subr.mxu0 0.0
  %7919 = vmatpush2.msra.mxu0 0.0
  %7920 = vmatprep.subr.mxu0 0.0
  %7921 = vmatpush2.msra.mxu0 0.0
  %7922 = vmatprep.subr.mxu0 0.0
  %7923 = vmatpush2.msra.mxu0 0.0
  %7924 = vmatprep.subr.mxu0 0.0
  %7925 = vmatpush2.msra.mxu0 0.0
  %7926 = vmatprep.subr.mxu0 0.0
  %7927 = vmatpush2.msra.mxu0 0.0
  %7928 = vmatprep.mubr.f32.mxu0 0.0
  %7929 = vmatmul.mubr.f32.gmra.mxu0 %v7862
  %v7930 = vpop.f32.mrf.mxu0
  %v7931 = vadd.f32 0.0, %v7930
  %v7932 = vpop.f32.mrf.mxu0
  %7933 = vdwg.mxu0
  %s7934 = scalar_lea.vmem %s16, 128
  %v7935 = vld [vmem:[%s7934] sm:$0xff]
  %v7936 = vld [vmem:[%s7934 + $0x8] sm:$0xff]
  %v7937 = vld [vmem:[%s7934 + $0x10] sm:$0xff]
  %v7938 = vld [vmem:[%s7934 + $0x18] sm:$0xff]
  %v7939 = vld [vmem:[%s7934 + $0x20] sm:$0xff]
  %v7940 = vld [vmem:[%s7934 + $0x28] sm:$0xff]
  %v7941 = vld [vmem:[%s7934 + $0x30] sm:$0xff]
  %v7942 = vld [vmem:[%s7934 + $0x38] sm:$0xff]
  %v7943 = vld [vmem:[%s7934 + $0x40] sm:$0xff]
  %v7944 = vld [vmem:[%s7934 + $0x48] sm:$0xff]
  %v7945 = vld [vmem:[%s7934 + $0x50] sm:$0xff]
  %v7946 = vld [vmem:[%s7934 + $0x58] sm:$0xff]
  %v7947 = vld [vmem:[%s7934 + $0x60] sm:$0xff]
  %v7948 = vld [vmem:[%s7934 + $0x68] sm:$0xff]
  %v7949 = vld [vmem:[%s7934 + $0x70] sm:$0xff]
  %v7950 = vld [vmem:[%s7934 + $0x78] sm:$0xff]
  %v7952 = vsel %vm7682, %v7931, 0
  %7954 = vmatprep.subr.mxu0 0.0
  %7955 = vmatpush1.msra.mxu0 0.0
  %7956 = vmatprep.subr.mxu0 0.0
  %7957 = vmatpush1.msra.mxu0 0.0
  %7958 = vmatprep.subr.mxu0 0.0
  %7959 = vmatpush1.msra.mxu0 0.0
  %7960 = vmatprep.subr.mxu0 0.0
  %7961 = vmatpush1.msra.mxu0 0.0
  %7962 = vmatprep.subr.mxu0 0.0
  %7963 = vmatpush1.msra.mxu0 0.0
  %7964 = vmatprep.subr.mxu0 0.0
  %7965 = vmatpush1.msra.mxu0 0.0
  %7966 = vmatprep.subr.mxu0 0.0
  %7967 = vmatpush1.msra.mxu0 0.0
  %7968 = vmatprep.subr.mxu0 0.0
  %7969 = vmatpush1.msra.mxu0 0.0
  %7970 = vmatprep.subr.mxu0 %v7950
  %7971 = vmatpush1.msra.mxu0 %v7949
  %7972 = vmatprep.subr.mxu0 %v7948
  %7973 = vmatpush1.msra.mxu0 %v7947
  %7974 = vmatprep.subr.mxu0 %v7946
  %7975 = vmatpush1.msra.mxu0 %v7945
  %7976 = vmatprep.subr.mxu0 %v7944
  %7977 = vmatpush1.msra.mxu0 %v7943
  %7978 = vmatprep.subr.mxu0 %v7942
  %7979 = vmatpush1.msra.mxu0 %v7941
  %7980 = vmatprep.subr.mxu0 %v7940
  %7981 = vmatpush1.msra.mxu0 %v7939
  %7982 = vmatprep.subr.mxu0 %v7938
  %7983 = vmatpush1.msra.mxu0 %v7937
  %7984 = vmatprep.subr.mxu0 %v7936
  %7985 = vmatpush1.msra.mxu0 %v7935
  %7986 = vmatprep.subr.mxu0 0.0
  %7987 = vmatpush2.msra.mxu0 0.0
  %7988 = vmatprep.subr.mxu0 0.0
  %7989 = vmatpush2.msra.mxu0 0.0
  %7990 = vmatprep.subr.mxu0 0.0
  %7991 = vmatpush2.msra.mxu0 0.0
  %7992 = vmatprep.subr.mxu0 0.0
  %7993 = vmatpush2.msra.mxu0 0.0
  %7994 = vmatprep.subr.mxu0 0.0
  %7995 = vmatpush2.msra.mxu0 0.0
  %7996 = vmatprep.subr.mxu0 0.0
  %7997 = vmatpush2.msra.mxu0 0.0
  %7998 = vmatprep.subr.mxu0 0.0
  %7999 = vmatpush2.msra.mxu0 0.0
  %8000 = vmatprep.subr.mxu0 0.0
  %8001 = vmatpush2.msra.mxu0 0.0
  %8002 = vmatprep.subr.mxu0 0.0
  %8003 = vmatpush2.msra.mxu0 0.0
  %8004 = vmatprep.subr.mxu0 0.0
  %8005 = vmatpush2.msra.mxu0 0.0
  %8006 = vmatprep.subr.mxu0 0.0
  %8007 = vmatpush2.msra.mxu0 0.0
  %8008 = vmatprep.subr.mxu0 0.0
  %8009 = vmatpush2.msra.mxu0 0.0
  %8010 = vmatprep.subr.mxu0 0.0
  %8011 = vmatpush2.msra.mxu0 0.0
  %8012 = vmatprep.subr.mxu0 0.0
  %8013 = vmatpush2.msra.mxu0 0.0
  %8014 = vmatprep.subr.mxu0 0.0
  %8015 = vmatpush2.msra.mxu0 0.0
  %8016 = vmatprep.subr.mxu0 0.0
  %8017 = vmatpush2.msra.mxu0 0.0
  %8018 = vmatprep.mubr.f32.mxu0 0.0
  %8019 = vmatmul.mubr.f32.gmra.mxu0 %v7952
  %v8020 = vpop.f32.mrf.mxu0
  %v8021 = vadd.f32 0.0, %v8020
  %v8022 = vpop.f32.mrf.mxu0
  %v8023 = vadd.f32 0.0, %v8022
  %8024 = vdwg.mxu0
  %v8026 = vsel %vm7682, %v7840, 0
  %8028 = vmatprep.subr.mxu0 0.0
  %8029 = vmatpush1.msra.mxu0 0.0
  %8030 = vmatprep.subr.mxu0 0.0
  %8031 = vmatpush1.msra.mxu0 0.0
  %8032 = vmatprep.subr.mxu0 0.0
  %8033 = vmatpush1.msra.mxu0 0.0
  %8034 = vmatprep.subr.mxu0 0.0
  %8035 = vmatpush1.msra.mxu0 0.0
  %8036 = vmatprep.subr.mxu0 0.0
  %8037 = vmatpush1.msra.mxu0 0.0
  %8038 = vmatprep.subr.mxu0 0.0
  %8039 = vmatpush1.msra.mxu0 0.0
  %8040 = vmatprep.subr.mxu0 0.0
  %8041 = vmatpush1.msra.mxu0 0.0
  %8042 = vmatprep.subr.mxu0 0.0
  %8043 = vmatpush1.msra.mxu0 0.0
  %8044 = vmatprep.subr.mxu0 %v7858
  %8045 = vmatpush1.msra.mxu0 %v7857
  %8046 = vmatprep.subr.mxu0 %v7856
  %8047 = vmatpush1.msra.mxu0 %v7855
  %8048 = vmatprep.subr.mxu0 %v7854
  %8049 = vmatpush1.msra.mxu0 %v7853
  %8050 = vmatprep.subr.mxu0 %v7852
  %8051 = vmatpush1.msra.mxu0 %v7851
  %8052 = vmatprep.subr.mxu0 %v7850
  %8053 = vmatpush1.msra.mxu0 %v7849
  %8054 = vmatprep.subr.mxu0 %v7848
  %8055 = vmatpush1.msra.mxu0 %v7847
  %8056 = vmatprep.subr.mxu0 %v7846
  %8057 = vmatpush1.msra.mxu0 %v7845
  %8058 = vmatprep.subr.mxu0 %v7844
  %8059 = vmatpush1.msra.mxu0 %v7843
  %8060 = vmatprep.subr.mxu0 0.0
  %8061 = vmatpush2.msra.mxu0 0.0
  %8062 = vmatprep.subr.mxu0 0.0
  %8063 = vmatpush2.msra.mxu0 0.0
  %8064 = vmatprep.subr.mxu0 0.0
  %8065 = vmatpush2.msra.mxu0 0.0
  %8066 = vmatprep.subr.mxu0 0.0
  %8067 = vmatpush2.msra.mxu0 0.0
  %8068 = vmatprep.subr.mxu0 0.0
  %8069 = vmatpush2.msra.mxu0 0.0
  %8070 = vmatprep.subr.mxu0 0.0
  %8071 = vmatpush2.msra.mxu0 0.0
  %8072 = vmatprep.subr.mxu0 0.0
  %8073 = vmatpush2.msra.mxu0 0.0
  %8074 = vmatprep.subr.mxu0 0.0
  %8075 = vmatpush2.msra.mxu0 0.0
  %8076 = vmatprep.subr.mxu0 0.0
  %8077 = vmatpush2.msra.mxu0 0.0
  %8078 = vmatprep.subr.mxu0 0.0
  %8079 = vmatpush2.msra.mxu0 0.0
  %8080 = vmatprep.subr.mxu0 0.0
  %8081 = vmatpush2.msra.mxu0 0.0
  %8082 = vmatprep.subr.mxu0 0.0
  %8083 = vmatpush2.msra.mxu0 0.0
  %8084 = vmatprep.subr.mxu0 0.0
  %8085 = vmatpush2.msra.mxu0 0.0
  %8086 = vmatprep.subr.mxu0 0.0
  %8087 = vmatpush2.msra.mxu0 0.0
  %8088 = vmatprep.subr.mxu0 0.0
  %8089 = vmatpush2.msra.mxu0 0.0
  %8090 = vmatprep.subr.mxu0 0.0
  %8091 = vmatpush2.msra.mxu0 0.0
  %8092 = vmatprep.mubr.f32.mxu0 0.0
  %8093 = vmatmul.mubr.f32.gmra.mxu0 %v8026
  %v8094 = vpop.f32.mrf.mxu0
  %v8095 = vadd.f32 %v8021, %v8094
  %v8096 = vpop.f32.mrf.mxu0
  %v8097 = vadd.f32 %v8023, %v8096
  %8098 = vdwg.mxu0
  %s8099 = scalar_lea.vmem %s15, 4
  %v8100 = vld [vmem:[%s8099] sm:$0x3]
  %v8102 = vsel %vm7769, %v8100, 0
  %8104 = vmatprep.subr.mxu0 0.0
  %8105 = vmatpush1.msra.mxu0 0.0
  %8106 = vmatprep.subr.mxu0 0.0
  %8107 = vmatpush1.msra.mxu0 0.0
  %8108 = vmatprep.subr.mxu0 0.0
  %8109 = vmatpush1.msra.mxu0 0.0
  %8110 = vmatprep.subr.mxu0 0.0
  %8111 = vmatpush1.msra.mxu0 0.0
  %8112 = vmatprep.subr.mxu0 0.0
  %8113 = vmatpush1.msra.mxu0 0.0
  %8114 = vmatprep.subr.mxu0 0.0
  %8115 = vmatpush1.msra.mxu0 0.0
  %8116 = vmatprep.subr.mxu0 0.0
  %8117 = vmatpush1.msra.mxu0 0.0
  %8118 = vmatprep.subr.mxu0 0.0
  %8119 = vmatpush1.msra.mxu0 0.0
  %8120 = vmatprep.subr.mxu0 0.0
  %8121 = vmatpush1.msra.mxu0 0.0
  %8122 = vmatprep.subr.mxu0 0.0
  %8123 = vmatpush1.msra.mxu0 0.0
  %8124 = vmatprep.subr.mxu0 0.0
  %8125 = vmatpush1.msra.mxu0 0.0
  %8126 = vmatprep.subr.mxu0 0.0
  %8127 = vmatpush1.msra.mxu0 %v7767
  %8128 = vmatprep.subr.mxu0 0.0
  %8129 = vmatpush1.msra.mxu0 %v7766
  %8130 = vmatprep.subr.mxu0 0.0
  %8131 = vmatpush1.msra.mxu0 %v7765
  %8132 = vmatprep.subr.mxu0 0.0
  %8133 = vmatpush1.msra.mxu0 %v7764
  %8134 = vmatprep.subr.mxu0 0.0
  %8135 = vmatpush1.msra.mxu0 %v7763
  %8136 = vmatprep.subr.mxu0 0.0
  %8137 = vmatpush2.msra.mxu0 0.0
  %8138 = vmatprep.subr.mxu0 0.0
  %8139 = vmatpush2.msra.mxu0 0.0
  %8140 = vmatprep.subr.mxu0 0.0
  %8141 = vmatpush2.msra.mxu0 0.0
  %8142 = vmatprep.subr.mxu0 0.0
  %8143 = vmatpush2.msra.mxu0 0.0
  %8144 = vmatprep.subr.mxu0 0.0
  %8145 = vmatpush2.msra.mxu0 0.0
  %8146 = vmatprep.subr.mxu0 0.0
  %8147 = vmatpush2.msra.mxu0 0.0
  %8148 = vmatprep.subr.mxu0 0.0
  %8149 = vmatpush2.msra.mxu0 0.0
  %8150 = vmatprep.subr.mxu0 0.0
  %8151 = vmatpush2.msra.mxu0 0.0
  %8152 = vmatprep.subr.mxu0 0.0
  %8153 = vmatpush2.msra.mxu0 0.0
  %8154 = vmatprep.subr.mxu0 0.0
  %8155 = vmatpush2.msra.mxu0 0.0
  %8156 = vmatprep.subr.mxu0 0.0
  %8157 = vmatpush2.msra.mxu0 0.0
  %8158 = vmatprep.subr.mxu0 0.0
  %8159 = vmatpush2.msra.mxu0 0.0
  %8160 = vmatprep.subr.mxu0 0.0
  %8161 = vmatpush2.msra.mxu0 0.0
  %8162 = vmatprep.subr.mxu0 0.0
  %8163 = vmatpush2.msra.mxu0 0.0
  %8164 = vmatprep.subr.mxu0 0.0
  %8165 = vmatpush2.msra.mxu0 0.0
  %8166 = vmatprep.subr.mxu0 0.0
  %8167 = vmatpush2.msra.mxu0 0.0
  %8168 = vmatprep.mubr.f32.mxu0 0.0
  %8169 = vmatmul.mubr.f32.gmra.mxu0 %v8102
  %v8170 = vpop.f32.mrf.mxu0
  %v8171 = vadd.f32 0.0, %v8170
  %v8172 = vpop.f32.mrf.mxu0
  %8173 = vdwg.mxu0
  %s8174 = scalar_lea.vmem %s16, 256
  %v8175 = vld [vmem:[%s8174] sm:$0xff]
  %v8176 = vld [vmem:[%s8174 + $0x8] sm:$0xff]
  %v8177 = vld [vmem:[%s8174 + $0x10] sm:$0xff]
  %v8178 = vld [vmem:[%s8174 + $0x18] sm:$0xff]
  %v8179 = vld [vmem:[%s8174 + $0x20] sm:$0xff]
  %v8180 = vld [vmem:[%s8174 + $0x28] sm:$0xff]
  %v8181 = vld [vmem:[%s8174 + $0x30] sm:$0xff]
  %v8182 = vld [vmem:[%s8174 + $0x38] sm:$0xff]
  %v8183 = vld [vmem:[%s8174 + $0x40] sm:$0xff]
  %v8184 = vld [vmem:[%s8174 + $0x48] sm:$0xff]
  %v8185 = vld [vmem:[%s8174 + $0x50] sm:$0xff]
  %v8186 = vld [vmem:[%s8174 + $0x58] sm:$0xff]
  %v8187 = vld [vmem:[%s8174 + $0x60] sm:$0xff]
  %v8188 = vld [vmem:[%s8174 + $0x68] sm:$0xff]
  %v8189 = vld [vmem:[%s8174 + $0x70] sm:$0xff]
  %v8190 = vld [vmem:[%s8174 + $0x78] sm:$0xff]
  %v8192 = vsel %vm7682, %v8171, 0
  %8194 = vmatprep.subr.mxu0 0.0
  %8195 = vmatpush1.msra.mxu0 0.0
  %8196 = vmatprep.subr.mxu0 0.0
  %8197 = vmatpush1.msra.mxu0 0.0
  %8198 = vmatprep.subr.mxu0 0.0
  %8199 = vmatpush1.msra.mxu0 0.0
  %8200 = vmatprep.subr.mxu0 0.0
  %8201 = vmatpush1.msra.mxu0 0.0
  %8202 = vmatprep.subr.mxu0 0.0
  %8203 = vmatpush1.msra.mxu0 0.0
  %8204 = vmatprep.subr.mxu0 0.0
  %8205 = vmatpush1.msra.mxu0 0.0
  %8206 = vmatprep.subr.mxu0 0.0
  %8207 = vmatpush1.msra.mxu0 0.0
  %8208 = vmatprep.subr.mxu0 0.0
  %8209 = vmatpush1.msra.mxu0 0.0
  %8210 = vmatprep.subr.mxu0 %v8190
  %8211 = vmatpush1.msra.mxu0 %v8189
  %8212 = vmatprep.subr.mxu0 %v8188
  %8213 = vmatpush1.msra.mxu0 %v8187
  %8214 = vmatprep.subr.mxu0 %v8186
  %8215 = vmatpush1.msra.mxu0 %v8185
  %8216 = vmatprep.subr.mxu0 %v8184
  %8217 = vmatpush1.msra.mxu0 %v8183
  %8218 = vmatprep.subr.mxu0 %v8182
  %8219 = vmatpush1.msra.mxu0 %v8181
  %8220 = vmatprep.subr.mxu0 %v8180
  %8221 = vmatpush1.msra.mxu0 %v8179
  %8222 = vmatprep.subr.mxu0 %v8178
  %8223 = vmatpush1.msra.mxu0 %v8177
  %8224 = vmatprep.subr.mxu0 %v8176
  %8225 = vmatpush1.msra.mxu0 %v8175
  %8226 = vmatprep.subr.mxu0 0.0
  %8227 = vmatpush2.msra.mxu0 0.0
  %8228 = vmatprep.subr.mxu0 0.0
  %8229 = vmatpush2.msra.mxu0 0.0
  %8230 = vmatprep.subr.mxu0 0.0
  %8231 = vmatpush2.msra.mxu0 0.0
  %8232 = vmatprep.subr.mxu0 0.0
  %8233 = vmatpush2.msra.mxu0 0.0
  %8234 = vmatprep.subr.mxu0 0.0
  %8235 = vmatpush2.msra.mxu0 0.0
  %8236 = vmatprep.subr.mxu0 0.0
  %8237 = vmatpush2.msra.mxu0 0.0
  %8238 = vmatprep.subr.mxu0 0.0
  %8239 = vmatpush2.msra.mxu0 0.0
  %8240 = vmatprep.subr.mxu0 0.0
  %8241 = vmatpush2.msra.mxu0 0.0
  %8242 = vmatprep.subr.mxu0 0.0
  %8243 = vmatpush2.msra.mxu0 0.0
  %8244 = vmatprep.subr.mxu0 0.0
  %8245 = vmatpush2.msra.mxu0 0.0
  %8246 = vmatprep.subr.mxu0 0.0
  %8247 = vmatpush2.msra.mxu0 0.0
  %8248 = vmatprep.subr.mxu0 0.0
  %8249 = vmatpush2.msra.mxu0 0.0
  %8250 = vmatprep.subr.mxu0 0.0
  %8251 = vmatpush2.msra.mxu0 0.0
  %8252 = vmatprep.subr.mxu0 0.0
  %8253 = vmatpush2.msra.mxu0 0.0
  %8254 = vmatprep.subr.mxu0 0.0
  %8255 = vmatpush2.msra.mxu0 0.0
  %8256 = vmatprep.subr.mxu0 0.0
  %8257 = vmatpush2.msra.mxu0 0.0
  %8258 = vmatprep.mubr.f32.mxu0 0.0
  %8259 = vmatmul.mubr.f32.gmra.mxu0 %v8192
  %v8260 = vpop.f32.mrf.mxu0
  %v8261 = vadd.f32 0.0, %v8260
  %v8262 = vpop.f32.mrf.mxu0
  %v8263 = vadd.f32 0.0, %v8262
  %8264 = vdwg.mxu0
  %v8265 = vadd.f32 %v8095, %v8261
  %v8266 = vadd.f32 %v8097, %v8263
  %s8267 = scalar_lea.vmem %s15, 6
  %v8268 = vld [vmem:[%s8267] sm:$0x3]
  %v8270 = vsel %vm7769, %v8268, 0
  %8272 = vmatprep.subr.mxu0 0.0
  %8273 = vmatpush1.msra.mxu0 0.0
  %8274 = vmatprep.subr.mxu0 0.0
  %8275 = vmatpush1.msra.mxu0 0.0
  %8276 = vmatprep.subr.mxu0 0.0
  %8277 = vmatpush1.msra.mxu0 0.0
  %8278 = vmatprep.subr.mxu0 0.0
  %8279 = vmatpush1.msra.mxu0 0.0
  %8280 = vmatprep.subr.mxu0 0.0
  %8281 = vmatpush1.msra.mxu0 0.0
  %8282 = vmatprep.subr.mxu0 0.0
  %8283 = vmatpush1.msra.mxu0 0.0
  %8284 = vmatprep.subr.mxu0 0.0
  %8285 = vmatpush1.msra.mxu0 0.0
  %8286 = vmatprep.subr.mxu0 0.0
  %8287 = vmatpush1.msra.mxu0 0.0
  %8288 = vmatprep.subr.mxu0 0.0
  %8289 = vmatpush1.msra.mxu0 0.0
  %8290 = vmatprep.subr.mxu0 0.0
  %8291 = vmatpush1.msra.mxu0 0.0
  %8292 = vmatprep.subr.mxu0 0.0
  %8293 = vmatpush1.msra.mxu0 0.0
  %8294 = vmatprep.subr.mxu0 0.0
  %8295 = vmatpush1.msra.mxu0 %v7767
  %8296 = vmatprep.subr.mxu0 0.0
  %8297 = vmatpush1.msra.mxu0 %v7766
  %8298 = vmatprep.subr.mxu0 0.0
  %8299 = vmatpush1.msra.mxu0 %v7765
  %8300 = vmatprep.subr.mxu0 0.0
  %8301 = vmatpush1.msra.mxu0 %v7764
  %8302 = vmatprep.subr.mxu0 0.0
  %8303 = vmatpush1.msra.mxu0 %v7763
  %8304 = vmatprep.subr.mxu0 0.0
  %8305 = vmatpush2.msra.mxu0 0.0
  %8306 = vmatprep.subr.mxu0 0.0
  %8307 = vmatpush2.msra.mxu0 0.0
  %8308 = vmatprep.subr.mxu0 0.0
  %8309 = vmatpush2.msra.mxu0 0.0
  %8310 = vmatprep.subr.mxu0 0.0
  %8311 = vmatpush2.msra.mxu0 0.0
  %8312 = vmatprep.subr.mxu0 0.0
  %8313 = vmatpush2.msra.mxu0 0.0
  %8314 = vmatprep.subr.mxu0 0.0
  %8315 = vmatpush2.msra.mxu0 0.0
  %8316 = vmatprep.subr.mxu0 0.0
  %8317 = vmatpush2.msra.mxu0 0.0
  %8318 = vmatprep.subr.mxu0 0.0
  %8319 = vmatpush2.msra.mxu0 0.0
  %8320 = vmatprep.subr.mxu0 0.0
  %8321 = vmatpush2.msra.mxu0 0.0
  %8322 = vmatprep.subr.mxu0 0.0
  %8323 = vmatpush2.msra.mxu0 0.0
  %8324 = vmatprep.subr.mxu0 0.0
  %8325 = vmatpush2.msra.mxu0 0.0
  %8326 = vmatprep.subr.mxu0 0.0
  %8327 = vmatpush2.msra.mxu0 0.0
  %8328 = vmatprep.subr.mxu0 0.0
  %8329 = vmatpush2.msra.mxu0 0.0
  %8330 = vmatprep.subr.mxu0 0.0
  %8331 = vmatpush2.msra.mxu0 0.0
  %8332 = vmatprep.subr.mxu0 0.0
  %8333 = vmatpush2.msra.mxu0 0.0
  %8334 = vmatprep.subr.mxu0 0.0
  %8335 = vmatpush2.msra.mxu0 0.0
  %8336 = vmatprep.mubr.f32.mxu0 0.0
  %8337 = vmatmul.mubr.f32.gmra.mxu0 %v8270
  %v8338 = vpop.f32.mrf.mxu0
  %v8339 = vadd.f32 0.0, %v8338
  %v8340 = vpop.f32.mrf.mxu0
  %8341 = vdwg.mxu0
  %s8342 = scalar_lea.vmem %s16, 384
  %v8343 = vld [vmem:[%s8342] sm:$0xff]
  %v8344 = vld [vmem:[%s8342 + $0x8] sm:$0xff]
  %v8345 = vld [vmem:[%s8342 + $0x10] sm:$0xff]
  %v8346 = vld [vmem:[%s8342 + $0x18] sm:$0xff]
  %v8347 = vld [vmem:[%s8342 + $0x20] sm:$0xff]
  %v8348 = vld [vmem:[%s8342 + $0x28] sm:$0xff]
  %v8349 = vld [vmem:[%s8342 + $0x30] sm:$0xff]
  %v8350 = vld [vmem:[%s8342 + $0x38] sm:$0xff]
  %v8351 = vld [vmem:[%s8342 + $0x40] sm:$0xff]
  %v8352 = vld [vmem:[%s8342 + $0x48] sm:$0xff]
  %v8353 = vld [vmem:[%s8342 + $0x50] sm:$0xff]
  %v8354 = vld [vmem:[%s8342 + $0x58] sm:$0xff]
  %v8355 = vld [vmem:[%s8342 + $0x60] sm:$0xff]
  %v8356 = vld [vmem:[%s8342 + $0x68] sm:$0xff]
  %v8357 = vld [vmem:[%s8342 + $0x70] sm:$0xff]
  %v8358 = vld [vmem:[%s8342 + $0x78] sm:$0xff]
  %v8360 = vsel %vm7682, %v8339, 0
  %8362 = vmatprep.subr.mxu0 0.0
  %8363 = vmatpush1.msra.mxu0 0.0
  %8364 = vmatprep.subr.mxu0 0.0
  %8365 = vmatpush1.msra.mxu0 0.0
  %8366 = vmatprep.subr.mxu0 0.0
  %8367 = vmatpush1.msra.mxu0 0.0
  %8368 = vmatprep.subr.mxu0 0.0
  %8369 = vmatpush1.msra.mxu0 0.0
  %8370 = vmatprep.subr.mxu0 0.0
  %8371 = vmatpush1.msra.mxu0 0.0
  %8372 = vmatprep.subr.mxu0 0.0
  %8373 = vmatpush1.msra.mxu0 0.0
  %8374 = vmatprep.subr.mxu0 0.0
  %8375 = vmatpush1.msra.mxu0 0.0
  %8376 = vmatprep.subr.mxu0 0.0
  %8377 = vmatpush1.msra.mxu0 0.0
  %8378 = vmatprep.subr.mxu0 %v8358
  %8379 = vmatpush1.msra.mxu0 %v8357
  %8380 = vmatprep.subr.mxu0 %v8356
  %8381 = vmatpush1.msra.mxu0 %v8355
  %8382 = vmatprep.subr.mxu0 %v8354
  %8383 = vmatpush1.msra.mxu0 %v8353
  %8384 = vmatprep.subr.mxu0 %v8352
  %8385 = vmatpush1.msra.mxu0 %v8351
  %8386 = vmatprep.subr.mxu0 %v8350
  %8387 = vmatpush1.msra.mxu0 %v8349
  %8388 = vmatprep.subr.mxu0 %v8348
  %8389 = vmatpush1.msra.mxu0 %v8347
  %8390 = vmatprep.subr.mxu0 %v8346
  %8391 = vmatpush1.msra.mxu0 %v8345
  %8392 = vmatprep.subr.mxu0 %v8344
  %8393 = vmatpush1.msra.mxu0 %v8343
  %8394 = vmatprep.subr.mxu0 0.0
  %8395 = vmatpush2.msra.mxu0 0.0
  %8396 = vmatprep.subr.mxu0 0.0
  %8397 = vmatpush2.msra.mxu0 0.0
  %8398 = vmatprep.subr.mxu0 0.0
  %8399 = vmatpush2.msra.mxu0 0.0
  %8400 = vmatprep.subr.mxu0 0.0
  %8401 = vmatpush2.msra.mxu0 0.0
  %8402 = vmatprep.subr.mxu0 0.0
  %8403 = vmatpush2.msra.mxu0 0.0
  %8404 = vmatprep.subr.mxu0 0.0
  %8405 = vmatpush2.msra.mxu0 0.0
  %8406 = vmatprep.subr.mxu0 0.0
  %8407 = vmatpush2.msra.mxu0 0.0
  %8408 = vmatprep.subr.mxu0 0.0
  %8409 = vmatpush2.msra.mxu0 0.0
  %8410 = vmatprep.subr.mxu0 0.0
  %8411 = vmatpush2.msra.mxu0 0.0
  %8412 = vmatprep.subr.mxu0 0.0
  %8413 = vmatpush2.msra.mxu0 0.0
  %8414 = vmatprep.subr.mxu0 0.0
  %8415 = vmatpush2.msra.mxu0 0.0
  %8416 = vmatprep.subr.mxu0 0.0
  %8417 = vmatpush2.msra.mxu0 0.0
  %8418 = vmatprep.subr.mxu0 0.0
  %8419 = vmatpush2.msra.mxu0 0.0
  %8420 = vmatprep.subr.mxu0 0.0
  %8421 = vmatpush2.msra.mxu0 0.0
  %8422 = vmatprep.subr.mxu0 0.0
  %8423 = vmatpush2.msra.mxu0 0.0
  %8424 = vmatprep.subr.mxu0 0.0
  %8425 = vmatpush2.msra.mxu0 0.0
  %8426 = vmatprep.mubr.f32.mxu0 0.0
  %8427 = vmatmul.mubr.f32.gmra.mxu0 %v8360
  %v8428 = vpop.f32.mrf.mxu0
  %v8429 = vadd.f32 0.0, %v8428
  %v8430 = vpop.f32.mrf.mxu0
  %v8431 = vadd.f32 0.0, %v8430
  %8432 = vdwg.mxu0
  %v8433 = vadd.f32 %v8265, %v8429
  %v8434 = vadd.f32 %v8266, %v8431
  %s8435 = scalar_lea.vmem %s15, 8
  %v8436 = vld [vmem:[%s8435] sm:$0x3]
  %v8438 = vsel %vm7769, %v8436, 0
  %8440 = vmatprep.subr.mxu0 0.0
  %8441 = vmatpush1.msra.mxu0 0.0
  %8442 = vmatprep.subr.mxu0 0.0
  %8443 = vmatpush1.msra.mxu0 0.0
  %8444 = vmatprep.subr.mxu0 0.0
  %8445 = vmatpush1.msra.mxu0 0.0
  %8446 = vmatprep.subr.mxu0 0.0
  %8447 = vmatpush1.msra.mxu0 0.0
  %8448 = vmatprep.subr.mxu0 0.0
  %8449 = vmatpush1.msra.mxu0 0.0
  %8450 = vmatprep.subr.mxu0 0.0
  %8451 = vmatpush1.msra.mxu0 0.0
  %8452 = vmatprep.subr.mxu0 0.0
  %8453 = vmatpush1.msra.mxu0 0.0
  %8454 = vmatprep.subr.mxu0 0.0
  %8455 = vmatpush1.msra.mxu0 0.0
  %8456 = vmatprep.subr.mxu0 0.0
  %8457 = vmatpush1.msra.mxu0 0.0
  %8458 = vmatprep.subr.mxu0 0.0
  %8459 = vmatpush1.msra.mxu0 0.0
  %8460 = vmatprep.subr.mxu0 0.0
  %8461 = vmatpush1.msra.mxu0 0.0
  %8462 = vmatprep.subr.mxu0 0.0
  %8463 = vmatpush1.msra.mxu0 %v7767
  %8464 = vmatprep.subr.mxu0 0.0
  %8465 = vmatpush1.msra.mxu0 %v7766
  %8466 = vmatprep.subr.mxu0 0.0
  %8467 = vmatpush1.msra.mxu0 %v7765
  %8468 = vmatprep.subr.mxu0 0.0
  %8469 = vmatpush1.msra.mxu0 %v7764
  %8470 = vmatprep.subr.mxu0 0.0
  %8471 = vmatpush1.msra.mxu0 %v7763
  %8472 = vmatprep.subr.mxu0 0.0
  %8473 = vmatpush2.msra.mxu0 0.0
  %8474 = vmatprep.subr.mxu0 0.0
  %8475 = vmatpush2.msra.mxu0 0.0
  %8476 = vmatprep.subr.mxu0 0.0
  %8477 = vmatpush2.msra.mxu0 0.0
  %8478 = vmatprep.subr.mxu0 0.0
  %8479 = vmatpush2.msra.mxu0 0.0
  %8480 = vmatprep.subr.mxu0 0.0
  %8481 = vmatpush2.msra.mxu0 0.0
  %8482 = vmatprep.subr.mxu0 0.0
  %8483 = vmatpush2.msra.mxu0 0.0
  %8484 = vmatprep.subr.mxu0 0.0
  %8485 = vmatpush2.msra.mxu0 0.0
  %8486 = vmatprep.subr.mxu0 0.0
  %8487 = vmatpush2.msra.mxu0 0.0
  %8488 = vmatprep.subr.mxu0 0.0
  %8489 = vmatpush2.msra.mxu0 0.0
  %8490 = vmatprep.subr.mxu0 0.0
  %8491 = vmatpush2.msra.mxu0 0.0
  %8492 = vmatprep.subr.mxu0 0.0
  %8493 = vmatpush2.msra.mxu0 0.0
  %8494 = vmatprep.subr.mxu0 0.0
  %8495 = vmatpush2.msra.mxu0 0.0
  %8496 = vmatprep.subr.mxu0 0.0
  %8497 = vmatpush2.msra.mxu0 0.0
  %8498 = vmatprep.subr.mxu0 0.0
  %8499 = vmatpush2.msra.mxu0 0.0
  %8500 = vmatprep.subr.mxu0 0.0
  %8501 = vmatpush2.msra.mxu0 0.0
  %8502 = vmatprep.subr.mxu0 0.0
  %8503 = vmatpush2.msra.mxu0 0.0
  %8504 = vmatprep.mubr.f32.mxu0 0.0
  %8505 = vmatmul.mubr.f32.gmra.mxu0 %v8438
  %v8506 = vpop.f32.mrf.mxu0
  %v8507 = vadd.f32 0.0, %v8506
  %v8508 = vpop.f32.mrf.mxu0
  %8509 = vdwg.mxu0
  %s8510 = scalar_lea.vmem %s16, 512
  %v8511 = vld [vmem:[%s8510] sm:$0xff]
  %v8512 = vld [vmem:[%s8510 + $0x8] sm:$0xff]
  %v8513 = vld [vmem:[%s8510 + $0x10] sm:$0xff]
  %v8514 = vld [vmem:[%s8510 + $0x18] sm:$0xff]
  %v8515 = vld [vmem:[%s8510 + $0x20] sm:$0xff]
  %v8516 = vld [vmem:[%s8510 + $0x28] sm:$0xff]
  %v8517 = vld [vmem:[%s8510 + $0x30] sm:$0xff]
  %v8518 = vld [vmem:[%s8510 + $0x38] sm:$0xff]
  %v8519 = vld [vmem:[%s8510 + $0x40] sm:$0xff]
  %v8520 = vld [vmem:[%s8510 + $0x48] sm:$0xff]
  %v8521 = vld [vmem:[%s8510 + $0x50] sm:$0xff]
  %v8522 = vld [vmem:[%s8510 + $0x58] sm:$0xff]
  %v8523 = vld [vmem:[%s8510 + $0x60] sm:$0xff]
  %v8524 = vld [vmem:[%s8510 + $0x68] sm:$0xff]
  %v8525 = vld [vmem:[%s8510 + $0x70] sm:$0xff]
  %v8526 = vld [vmem:[%s8510 + $0x78] sm:$0xff]
  %v8528 = vsel %vm7682, %v8507, 0
  %8530 = vmatprep.subr.mxu0 0.0
  %8531 = vmatpush1.msra.mxu0 0.0
  %8532 = vmatprep.subr.mxu0 0.0
  %8533 = vmatpush1.msra.mxu0 0.0
  %8534 = vmatprep.subr.mxu0 0.0
  %8535 = vmatpush1.msra.mxu0 0.0
  %8536 = vmatprep.subr.mxu0 0.0
  %8537 = vmatpush1.msra.mxu0 0.0
  %8538 = vmatprep.subr.mxu0 0.0
  %8539 = vmatpush1.msra.mxu0 0.0
  %8540 = vmatprep.subr.mxu0 0.0
  %8541 = vmatpush1.msra.mxu0 0.0
  %8542 = vmatprep.subr.mxu0 0.0
  %8543 = vmatpush1.msra.mxu0 0.0
  %8544 = vmatprep.subr.mxu0 0.0
  %8545 = vmatpush1.msra.mxu0 0.0
  %8546 = vmatprep.subr.mxu0 %v8526
  %8547 = vmatpush1.msra.mxu0 %v8525
  %8548 = vmatprep.subr.mxu0 %v8524
  %8549 = vmatpush1.msra.mxu0 %v8523
  %8550 = vmatprep.subr.mxu0 %v8522
  %8551 = vmatpush1.msra.mxu0 %v8521
  %8552 = vmatprep.subr.mxu0 %v8520
  %8553 = vmatpush1.msra.mxu0 %v8519
  %8554 = vmatprep.subr.mxu0 %v8518
  %8555 = vmatpush1.msra.mxu0 %v8517
  %8556 = vmatprep.subr.mxu0 %v8516
  %8557 = vmatpush1.msra.mxu0 %v8515
  %8558 = vmatprep.subr.mxu0 %v8514
  %8559 = vmatpush1.msra.mxu0 %v8513
  %8560 = vmatprep.subr.mxu0 %v8512
  %8561 = vmatpush1.msra.mxu0 %v8511
  %8562 = vmatprep.subr.mxu0 0.0
  %8563 = vmatpush2.msra.mxu0 0.0
  %8564 = vmatprep.subr.mxu0 0.0
  %8565 = vmatpush2.msra.mxu0 0.0
  %8566 = vmatprep.subr.mxu0 0.0
  %8567 = vmatpush2.msra.mxu0 0.0
  %8568 = vmatprep.subr.mxu0 0.0
  %8569 = vmatpush2.msra.mxu0 0.0
  %8570 = vmatprep.subr.mxu0 0.0
  %8571 = vmatpush2.msra.mxu0 0.0
  %8572 = vmatprep.subr.mxu0 0.0
  %8573 = vmatpush2.msra.mxu0 0.0
  %8574 = vmatprep.subr.mxu0 0.0
  %8575 = vmatpush2.msra.mxu0 0.0
  %8576 = vmatprep.subr.mxu0 0.0
  %8577 = vmatpush2.msra.mxu0 0.0
  %8578 = vmatprep.subr.mxu0 0.0
  %8579 = vmatpush2.msra.mxu0 0.0
  %8580 = vmatprep.subr.mxu0 0.0
  %8581 = vmatpush2.msra.mxu0 0.0
  %8582 = vmatprep.subr.mxu0 0.0
  %8583 = vmatpush2.msra.mxu0 0.0
  %8584 = vmatprep.subr.mxu0 0.0
  %8585 = vmatpush2.msra.mxu0 0.0
  %8586 = vmatprep.subr.mxu0 0.0
  %8587 = vmatpush2.msra.mxu0 0.0
  %8588 = vmatprep.subr.mxu0 0.0
  %8589 = vmatpush2.msra.mxu0 0.0
  %8590 = vmatprep.subr.mxu0 0.0
  %8591 = vmatpush2.msra.mxu0 0.0
  %8592 = vmatprep.subr.mxu0 0.0
  %8593 = vmatpush2.msra.mxu0 0.0
  %8594 = vmatprep.mubr.f32.mxu0 0.0
  %8595 = vmatmul.mubr.f32.gmra.mxu0 %v8528
  %v8596 = vpop.f32.mrf.mxu0
  %v8597 = vadd.f32 0.0, %v8596
  %v8598 = vpop.f32.mrf.mxu0
  %v8599 = vadd.f32 0.0, %v8598
  %8600 = vdwg.mxu0
  %v8601 = vadd.f32 %v8433, %v8597
  %v8602 = vadd.f32 %v8434, %v8599
  %s8603 = scalar_lea.vmem %s15, 10
  %v8604 = vld [vmem:[%s8603] sm:$0x3]
  %v8606 = vsel %vm7769, %v8604, 0
  %8608 = vmatprep.subr.mxu0 0.0
  %8609 = vmatpush1.msra.mxu0 0.0
  %8610 = vmatprep.subr.mxu0 0.0
  %8611 = vmatpush1.msra.mxu0 0.0
  %8612 = vmatprep.subr.mxu0 0.0
  %8613 = vmatpush1.msra.mxu0 0.0
  %8614 = vmatprep.subr.mxu0 0.0
  %8615 = vmatpush1.msra.mxu0 0.0
  %8616 = vmatprep.subr.mxu0 0.0
  %8617 = vmatpush1.msra.mxu0 0.0
  %8618 = vmatprep.subr.mxu0 0.0
  %8619 = vmatpush1.msra.mxu0 0.0
  %8620 = vmatprep.subr.mxu0 0.0
  %8621 = vmatpush1.msra.mxu0 0.0
  %8622 = vmatprep.subr.mxu0 0.0
  %8623 = vmatpush1.msra.mxu0 0.0
  %8624 = vmatprep.subr.mxu0 0.0
  %8625 = vmatpush1.msra.mxu0 0.0
  %8626 = vmatprep.subr.mxu0 0.0
  %8627 = vmatpush1.msra.mxu0 0.0
  %8628 = vmatprep.subr.mxu0 0.0
  %8629 = vmatpush1.msra.mxu0 0.0
  %8630 = vmatprep.subr.mxu0 0.0
  %8631 = vmatpush1.msra.mxu0 %v7767
  %8632 = vmatprep.subr.mxu0 0.0
  %8633 = vmatpush1.msra.mxu0 %v7766
  %8634 = vmatprep.subr.mxu0 0.0
  %8635 = vmatpush1.msra.mxu0 %v7765
  %8636 = vmatprep.subr.mxu0 0.0
  %8637 = vmatpush1.msra.mxu0 %v7764
  %8638 = vmatprep.subr.mxu0 0.0
  %8639 = vmatpush1.msra.mxu0 %v7763
  %8640 = vmatprep.subr.mxu0 0.0
  %8641 = vmatpush2.msra.mxu0 0.0
  %8642 = vmatprep.subr.mxu0 0.0
  %8643 = vmatpush2.msra.mxu0 0.0
  %8644 = vmatprep.subr.mxu0 0.0
  %8645 = vmatpush2.msra.mxu0 0.0
  %8646 = vmatprep.subr.mxu0 0.0
  %8647 = vmatpush2.msra.mxu0 0.0
  %8648 = vmatprep.subr.mxu0 0.0
  %8649 = vmatpush2.msra.mxu0 0.0
  %8650 = vmatprep.subr.mxu0 0.0
  %8651 = vmatpush2.msra.mxu0 0.0
  %8652 = vmatprep.subr.mxu0 0.0
  %8653 = vmatpush2.msra.mxu0 0.0
  %8654 = vmatprep.subr.mxu0 0.0
  %8655 = vmatpush2.msra.mxu0 0.0
  %8656 = vmatprep.subr.mxu0 0.0
  %8657 = vmatpush2.msra.mxu0 0.0
  %8658 = vmatprep.subr.mxu0 0.0
  %8659 = vmatpush2.msra.mxu0 0.0
  %8660 = vmatprep.subr.mxu0 0.0
  %8661 = vmatpush2.msra.mxu0 0.0
  %8662 = vmatprep.subr.mxu0 0.0
  %8663 = vmatpush2.msra.mxu0 0.0
  %8664 = vmatprep.subr.mxu0 0.0
  %8665 = vmatpush2.msra.mxu0 0.0
  %8666 = vmatprep.subr.mxu0 0.0
  %8667 = vmatpush2.msra.mxu0 0.0
  %8668 = vmatprep.subr.mxu0 0.0
  %8669 = vmatpush2.msra.mxu0 0.0
  %8670 = vmatprep.subr.mxu0 0.0
  %8671 = vmatpush2.msra.mxu0 0.0
  %8672 = vmatprep.mubr.f32.mxu0 0.0
  %8673 = vmatmul.mubr.f32.gmra.mxu0 %v8606
  %v8674 = vpop.f32.mrf.mxu0
  %v8675 = vadd.f32 0.0, %v8674
  %v8676 = vpop.f32.mrf.mxu0
  %8677 = vdwg.mxu0
  %s8678 = scalar_lea.vmem %s16, 640
  %v8679 = vld [vmem:[%s8678] sm:$0xff]
  %v8680 = vld [vmem:[%s8678 + $0x8] sm:$0xff]
  %v8681 = vld [vmem:[%s8678 + $0x10] sm:$0xff]
  %v8682 = vld [vmem:[%s8678 + $0x18] sm:$0xff]
  %v8683 = vld [vmem:[%s8678 + $0x20] sm:$0xff]
  %v8684 = vld [vmem:[%s8678 + $0x28] sm:$0xff]
  %v8685 = vld [vmem:[%s8678 + $0x30] sm:$0xff]
  %v8686 = vld [vmem:[%s8678 + $0x38] sm:$0xff]
  %v8687 = vld [vmem:[%s8678 + $0x40] sm:$0xff]
  %v8688 = vld [vmem:[%s8678 + $0x48] sm:$0xff]
  %v8689 = vld [vmem:[%s8678 + $0x50] sm:$0xff]
  %v8690 = vld [vmem:[%s8678 + $0x58] sm:$0xff]
  %v8691 = vld [vmem:[%s8678 + $0x60] sm:$0xff]
  %v8692 = vld [vmem:[%s8678 + $0x68] sm:$0xff]
  %v8693 = vld [vmem:[%s8678 + $0x70] sm:$0xff]
  %v8694 = vld [vmem:[%s8678 + $0x78] sm:$0xff]
  %v8696 = vsel %vm7682, %v8675, 0
  %8698 = vmatprep.subr.mxu0 0.0
  %8699 = vmatpush1.msra.mxu0 0.0
  %8700 = vmatprep.subr.mxu0 0.0
  %8701 = vmatpush1.msra.mxu0 0.0
  %8702 = vmatprep.subr.mxu0 0.0
  %8703 = vmatpush1.msra.mxu0 0.0
  %8704 = vmatprep.subr.mxu0 0.0
  %8705 = vmatpush1.msra.mxu0 0.0
  %8706 = vmatprep.subr.mxu0 0.0
  %8707 = vmatpush1.msra.mxu0 0.0
  %8708 = vmatprep.subr.mxu0 0.0
  %8709 = vmatpush1.msra.mxu0 0.0
  %8710 = vmatprep.subr.mxu0 0.0
  %8711 = vmatpush1.msra.mxu0 0.0
  %8712 = vmatprep.subr.mxu0 0.0
  %8713 = vmatpush1.msra.mxu0 0.0
  %8714 = vmatprep.subr.mxu0 %v8694
  %8715 = vmatpush1.msra.mxu0 %v8693
  %8716 = vmatprep.subr.mxu0 %v8692
  %8717 = vmatpush1.msra.mxu0 %v8691
  %8718 = vmatprep.subr.mxu0 %v8690
  %8719 = vmatpush1.msra.mxu0 %v8689
  %8720 = vmatprep.subr.mxu0 %v8688
  %8721 = vmatpush1.msra.mxu0 %v8687
  %8722 = vmatprep.subr.mxu0 %v8686
  %8723 = vmatpush1.msra.mxu0 %v8685
  %8724 = vmatprep.subr.mxu0 %v8684
  %8725 = vmatpush1.msra.mxu0 %v8683
  %8726 = vmatprep.subr.mxu0 %v8682
  %8727 = vmatpush1.msra.mxu0 %v8681
  %8728 = vmatprep.subr.mxu0 %v8680
  %8729 = vmatpush1.msra.mxu0 %v8679
  %8730 = vmatprep.subr.mxu0 0.0
  %8731 = vmatpush2.msra.mxu0 0.0
  %8732 = vmatprep.subr.mxu0 0.0
  %8733 = vmatpush2.msra.mxu0 0.0
  %8734 = vmatprep.subr.mxu0 0.0
  %8735 = vmatpush2.msra.mxu0 0.0
  %8736 = vmatprep.subr.mxu0 0.0
  %8737 = vmatpush2.msra.mxu0 0.0
  %8738 = vmatprep.subr.mxu0 0.0
  %8739 = vmatpush2.msra.mxu0 0.0
  %8740 = vmatprep.subr.mxu0 0.0
  %8741 = vmatpush2.msra.mxu0 0.0
  %8742 = vmatprep.subr.mxu0 0.0
  %8743 = vmatpush2.msra.mxu0 0.0
  %8744 = vmatprep.subr.mxu0 0.0
  %8745 = vmatpush2.msra.mxu0 0.0
  %8746 = vmatprep.subr.mxu0 0.0
  %8747 = vmatpush2.msra.mxu0 0.0
  %8748 = vmatprep.subr.mxu0 0.0
  %8749 = vmatpush2.msra.mxu0 0.0
  %8750 = vmatprep.subr.mxu0 0.0
  %8751 = vmatpush2.msra.mxu0 0.0
  %8752 = vmatprep.subr.mxu0 0.0
  %8753 = vmatpush2.msra.mxu0 0.0
  %8754 = vmatprep.subr.mxu0 0.0
  %8755 = vmatpush2.msra.mxu0 0.0
  %8756 = vmatprep.subr.mxu0 0.0
  %8757 = vmatpush2.msra.mxu0 0.0
  %8758 = vmatprep.subr.mxu0 0.0
  %8759 = vmatpush2.msra.mxu0 0.0
  %8760 = vmatprep.subr.mxu0 0.0
  %8761 = vmatpush2.msra.mxu0 0.0
  %8762 = vmatprep.mubr.f32.mxu0 0.0
  %8763 = vmatmul.mubr.f32.gmra.mxu0 %v8696
  %v8764 = vpop.f32.mrf.mxu0
  %v8765 = vadd.f32 0.0, %v8764
  %v8766 = vpop.f32.mrf.mxu0
  %v8767 = vadd.f32 0.0, %v8766
  %8768 = vdwg.mxu0
  %v8769 = vadd.f32 %v8601, %v8765
  %v8770 = vadd.f32 %v8602, %v8767
  %s8771 = scalar_lea.vmem %s15, 12
  %v8772 = vld [vmem:[%s8771] sm:$0x3]
  %v8774 = vsel %vm7769, %v8772, 0
  %8776 = vmatprep.subr.mxu0 0.0
  %8777 = vmatpush1.msra.mxu0 0.0
  %8778 = vmatprep.subr.mxu0 0.0
  %8779 = vmatpush1.msra.mxu0 0.0
  %8780 = vmatprep.subr.mxu0 0.0
  %8781 = vmatpush1.msra.mxu0 0.0
  %8782 = vmatprep.subr.mxu0 0.0
  %8783 = vmatpush1.msra.mxu0 0.0
  %8784 = vmatprep.subr.mxu0 0.0
  %8785 = vmatpush1.msra.mxu0 0.0
  %8786 = vmatprep.subr.mxu0 0.0
  %8787 = vmatpush1.msra.mxu0 0.0
  %8788 = vmatprep.subr.mxu0 0.0
  %8789 = vmatpush1.msra.mxu0 0.0
  %8790 = vmatprep.subr.mxu0 0.0
  %8791 = vmatpush1.msra.mxu0 0.0
  %8792 = vmatprep.subr.mxu0 0.0
  %8793 = vmatpush1.msra.mxu0 0.0
  %8794 = vmatprep.subr.mxu0 0.0
  %8795 = vmatpush1.msra.mxu0 0.0
  %8796 = vmatprep.subr.mxu0 0.0
  %8797 = vmatpush1.msra.mxu0 0.0
  %8798 = vmatprep.subr.mxu0 0.0
  %8799 = vmatpush1.msra.mxu0 %v7767
  %8800 = vmatprep.subr.mxu0 0.0
  %8801 = vmatpush1.msra.mxu0 %v7766
  %8802 = vmatprep.subr.mxu0 0.0
  %8803 = vmatpush1.msra.mxu0 %v7765
  %8804 = vmatprep.subr.mxu0 0.0
  %8805 = vmatpush1.msra.mxu0 %v7764
  %8806 = vmatprep.subr.mxu0 0.0
  %8807 = vmatpush1.msra.mxu0 %v7763
  %8808 = vmatprep.subr.mxu0 0.0
  %8809 = vmatpush2.msra.mxu0 0.0
  %8810 = vmatprep.subr.mxu0 0.0
  %8811 = vmatpush2.msra.mxu0 0.0
  %8812 = vmatprep.subr.mxu0 0.0
  %8813 = vmatpush2.msra.mxu0 0.0
  %8814 = vmatprep.subr.mxu0 0.0
  %8815 = vmatpush2.msra.mxu0 0.0
  %8816 = vmatprep.subr.mxu0 0.0
  %8817 = vmatpush2.msra.mxu0 0.0
  %8818 = vmatprep.subr.mxu0 0.0
  %8819 = vmatpush2.msra.mxu0 0.0
  %8820 = vmatprep.subr.mxu0 0.0
  %8821 = vmatpush2.msra.mxu0 0.0
  %8822 = vmatprep.subr.mxu0 0.0
  %8823 = vmatpush2.msra.mxu0 0.0
  %8824 = vmatprep.subr.mxu0 0.0
  %8825 = vmatpush2.msra.mxu0 0.0
  %8826 = vmatprep.subr.mxu0 0.0
  %8827 = vmatpush2.msra.mxu0 0.0
  %8828 = vmatprep.subr.mxu0 0.0
  %8829 = vmatpush2.msra.mxu0 0.0
  %8830 = vmatprep.subr.mxu0 0.0
  %8831 = vmatpush2.msra.mxu0 0.0
  %8832 = vmatprep.subr.mxu0 0.0
  %8833 = vmatpush2.msra.mxu0 0.0
  %8834 = vmatprep.subr.mxu0 0.0
  %8835 = vmatpush2.msra.mxu0 0.0
  %8836 = vmatprep.subr.mxu0 0.0
  %8837 = vmatpush2.msra.mxu0 0.0
  %8838 = vmatprep.subr.mxu0 0.0
  %8839 = vmatpush2.msra.mxu0 0.0
  %8840 = vmatprep.mubr.f32.mxu0 0.0
  %8841 = vmatmul.mubr.f32.gmra.mxu0 %v8774
  %v8842 = vpop.f32.mrf.mxu0
  %v8843 = vadd.f32 0.0, %v8842
  %v8844 = vpop.f32.mrf.mxu0
  %8845 = vdwg.mxu0
  %s8846 = scalar_lea.vmem %s16, 768
  %v8847 = vld [vmem:[%s8846] sm:$0xff]
  %v8848 = vld [vmem:[%s8846 + $0x8] sm:$0xff]
  %v8849 = vld [vmem:[%s8846 + $0x10] sm:$0xff]
  %v8850 = vld [vmem:[%s8846 + $0x18] sm:$0xff]
  %v8851 = vld [vmem:[%s8846 + $0x20] sm:$0xff]
  %v8852 = vld [vmem:[%s8846 + $0x28] sm:$0xff]
  %v8853 = vld [vmem:[%s8846 + $0x30] sm:$0xff]
  %v8854 = vld [vmem:[%s8846 + $0x38] sm:$0xff]
  %v8855 = vld [vmem:[%s8846 + $0x40] sm:$0xff]
  %v8856 = vld [vmem:[%s8846 + $0x48] sm:$0xff]
  %v8857 = vld [vmem:[%s8846 + $0x50] sm:$0xff]
  %v8858 = vld [vmem:[%s8846 + $0x58] sm:$0xff]
  %v8859 = vld [vmem:[%s8846 + $0x60] sm:$0xff]
  %v8860 = vld [vmem:[%s8846 + $0x68] sm:$0xff]
  %v8861 = vld [vmem:[%s8846 + $0x70] sm:$0xff]
  %v8862 = vld [vmem:[%s8846 + $0x78] sm:$0xff]
  %v8864 = vsel %vm7682, %v8843, 0
  %8866 = vmatprep.subr.mxu0 0.0
  %8867 = vmatpush1.msra.mxu0 0.0
  %8868 = vmatprep.subr.mxu0 0.0
  %8869 = vmatpush1.msra.mxu0 0.0
  %8870 = vmatprep.subr.mxu0 0.0
  %8871 = vmatpush1.msra.mxu0 0.0
  %8872 = vmatprep.subr.mxu0 0.0
  %8873 = vmatpush1.msra.mxu0 0.0
  %8874 = vmatprep.subr.mxu0 0.0
  %8875 = vmatpush1.msra.mxu0 0.0
  %8876 = vmatprep.subr.mxu0 0.0
  %8877 = vmatpush1.msra.mxu0 0.0
  %8878 = vmatprep.subr.mxu0 0.0
  %8879 = vmatpush1.msra.mxu0 0.0
  %8880 = vmatprep.subr.mxu0 0.0
  %8881 = vmatpush1.msra.mxu0 0.0
  %8882 = vmatprep.subr.mxu0 %v8862
  %8883 = vmatpush1.msra.mxu0 %v8861
  %8884 = vmatprep.subr.mxu0 %v8860
  %8885 = vmatpush1.msra.mxu0 %v8859
  %8886 = vmatprep.subr.mxu0 %v8858
  %8887 = vmatpush1.msra.mxu0 %v8857
  %8888 = vmatprep.subr.mxu0 %v8856
  %8889 = vmatpush1.msra.mxu0 %v8855
  %8890 = vmatprep.subr.mxu0 %v8854
  %8891 = vmatpush1.msra.mxu0 %v8853
  %8892 = vmatprep.subr.mxu0 %v8852
  %8893 = vmatpush1.msra.mxu0 %v8851
  %8894 = vmatprep.subr.mxu0 %v8850
  %8895 = vmatpush1.msra.mxu0 %v8849
  %8896 = vmatprep.subr.mxu0 %v8848
  %8897 = vmatpush1.msra.mxu0 %v8847
  %8898 = vmatprep.subr.mxu0 0.0
  %8899 = vmatpush2.msra.mxu0 0.0
  %8900 = vmatprep.subr.mxu0 0.0
  %8901 = vmatpush2.msra.mxu0 0.0
  %8902 = vmatprep.subr.mxu0 0.0
  %8903 = vmatpush2.msra.mxu0 0.0
  %8904 = vmatprep.subr.mxu0 0.0
  %8905 = vmatpush2.msra.mxu0 0.0
  %8906 = vmatprep.subr.mxu0 0.0
  %8907 = vmatpush2.msra.mxu0 0.0
  %8908 = vmatprep.subr.mxu0 0.0
  %8909 = vmatpush2.msra.mxu0 0.0
  %8910 = vmatprep.subr.mxu0 0.0
  %8911 = vmatpush2.msra.mxu0 0.0
  %8912 = vmatprep.subr.mxu0 0.0
  %8913 = vmatpush2.msra.mxu0 0.0
  %8914 = vmatprep.subr.mxu0 0.0
  %8915 = vmatpush2.msra.mxu0 0.0
  %8916 = vmatprep.subr.mxu0 0.0
  %8917 = vmatpush2.msra.mxu0 0.0
  %8918 = vmatprep.subr.mxu0 0.0
  %8919 = vmatpush2.msra.mxu0 0.0
  %8920 = vmatprep.subr.mxu0 0.0
  %8921 = vmatpush2.msra.mxu0 0.0
  %8922 = vmatprep.subr.mxu0 0.0
  %8923 = vmatpush2.msra.mxu0 0.0
  %8924 = vmatprep.subr.mxu0 0.0
  %8925 = vmatpush2.msra.mxu0 0.0
  %8926 = vmatprep.subr.mxu0 0.0
  %8927 = vmatpush2.msra.mxu0 0.0
  %8928 = vmatprep.subr.mxu0 0.0
  %8929 = vmatpush2.msra.mxu0 0.0
  %8930 = vmatprep.mubr.f32.mxu0 0.0
  %8931 = vmatmul.mubr.f32.gmra.mxu0 %v8864
  %v8932 = vpop.f32.mrf.mxu0
  %v8933 = vadd.f32 0.0, %v8932
  %v8934 = vpop.f32.mrf.mxu0
  %v8935 = vadd.f32 0.0, %v8934
  %8936 = vdwg.mxu0
  %v8937 = vadd.f32 %v8769, %v8933
  %v8938 = vadd.f32 %v8770, %v8935
  %s8939 = scalar_lea.vmem %s15, 14
  %v8940 = vld [vmem:[%s8939] sm:$0x3]
  %v8942 = vsel %vm7769, %v8940, 0
  %8944 = vmatprep.subr.mxu0 0.0
  %8945 = vmatpush1.msra.mxu0 0.0
  %8946 = vmatprep.subr.mxu0 0.0
  %8947 = vmatpush1.msra.mxu0 0.0
  %8948 = vmatprep.subr.mxu0 0.0
  %8949 = vmatpush1.msra.mxu0 0.0
  %8950 = vmatprep.subr.mxu0 0.0
  %8951 = vmatpush1.msra.mxu0 0.0
  %8952 = vmatprep.subr.mxu0 0.0
  %8953 = vmatpush1.msra.mxu0 0.0
  %8954 = vmatprep.subr.mxu0 0.0
  %8955 = vmatpush1.msra.mxu0 0.0
  %8956 = vmatprep.subr.mxu0 0.0
  %8957 = vmatpush1.msra.mxu0 0.0
  %8958 = vmatprep.subr.mxu0 0.0
  %8959 = vmatpush1.msra.mxu0 0.0
  %8960 = vmatprep.subr.mxu0 0.0
  %8961 = vmatpush1.msra.mxu0 0.0
  %8962 = vmatprep.subr.mxu0 0.0
  %8963 = vmatpush1.msra.mxu0 0.0
  %8964 = vmatprep.subr.mxu0 0.0
  %8965 = vmatpush1.msra.mxu0 0.0
  %8966 = vmatprep.subr.mxu0 0.0
  %8967 = vmatpush1.msra.mxu0 %v7767
  %8968 = vmatprep.subr.mxu0 0.0
  %8969 = vmatpush1.msra.mxu0 %v7766
  %8970 = vmatprep.subr.mxu0 0.0
  %8971 = vmatpush1.msra.mxu0 %v7765
  %8972 = vmatprep.subr.mxu0 0.0
  %8973 = vmatpush1.msra.mxu0 %v7764
  %8974 = vmatprep.subr.mxu0 0.0
  %8975 = vmatpush1.msra.mxu0 %v7763
  %8976 = vmatprep.subr.mxu0 0.0
  %8977 = vmatpush2.msra.mxu0 0.0
  %8978 = vmatprep.subr.mxu0 0.0
  %8979 = vmatpush2.msra.mxu0 0.0
  %8980 = vmatprep.subr.mxu0 0.0
  %8981 = vmatpush2.msra.mxu0 0.0
  %8982 = vmatprep.subr.mxu0 0.0
  %8983 = vmatpush2.msra.mxu0 0.0
  %8984 = vmatprep.subr.mxu0 0.0
  %8985 = vmatpush2.msra.mxu0 0.0
  %8986 = vmatprep.subr.mxu0 0.0
  %8987 = vmatpush2.msra.mxu0 0.0
  %8988 = vmatprep.subr.mxu0 0.0
  %8989 = vmatpush2.msra.mxu0 0.0
  %8990 = vmatprep.subr.mxu0 0.0
  %8991 = vmatpush2.msra.mxu0 0.0
  %8992 = vmatprep.subr.mxu0 0.0
  %8993 = vmatpush2.msra.mxu0 0.0
  %8994 = vmatprep.subr.mxu0 0.0
  %8995 = vmatpush2.msra.mxu0 0.0
  %8996 = vmatprep.subr.mxu0 0.0
  %8997 = vmatpush2.msra.mxu0 0.0
  %8998 = vmatprep.subr.mxu0 0.0
  %8999 = vmatpush2.msra.mxu0 0.0
  %9000 = vmatprep.subr.mxu0 0.0
  %9001 = vmatpush2.msra.mxu0 0.0
  %9002 = vmatprep.subr.mxu0 0.0
  %9003 = vmatpush2.msra.mxu0 0.0
  %9004 = vmatprep.subr.mxu0 0.0
  %9005 = vmatpush2.msra.mxu0 0.0
  %9006 = vmatprep.subr.mxu0 0.0
  %9007 = vmatpush2.msra.mxu0 0.0
  %9008 = vmatprep.mubr.f32.mxu0 0.0
  %9009 = vmatmul.mubr.f32.gmra.mxu0 %v8942
  %v9010 = vpop.f32.mrf.mxu0
  %v9011 = vadd.f32 0.0, %v9010
  %v9012 = vpop.f32.mrf.mxu0
  %9013 = vdwg.mxu0
  %s9014 = scalar_lea.vmem %s16, 896
  %v9015 = vld [vmem:[%s9014] sm:$0xff]
  %v9016 = vld [vmem:[%s9014 + $0x8] sm:$0xff]
  %v9017 = vld [vmem:[%s9014 + $0x10] sm:$0xff]
  %v9018 = vld [vmem:[%s9014 + $0x18] sm:$0xff]
  %v9019 = vld [vmem:[%s9014 + $0x20] sm:$0xff]
  %v9020 = vld [vmem:[%s9014 + $0x28] sm:$0xff]
  %v9021 = vld [vmem:[%s9014 + $0x30] sm:$0xff]
  %v9022 = vld [vmem:[%s9014 + $0x38] sm:$0xff]
  %v9023 = vld [vmem:[%s9014 + $0x40] sm:$0xff]
  %v9024 = vld [vmem:[%s9014 + $0x48] sm:$0xff]
  %v9025 = vld [vmem:[%s9014 + $0x50] sm:$0xff]
  %v9026 = vld [vmem:[%s9014 + $0x58] sm:$0xff]
  %v9027 = vld [vmem:[%s9014 + $0x60] sm:$0xff]
  %v9028 = vld [vmem:[%s9014 + $0x68] sm:$0xff]
  %v9029 = vld [vmem:[%s9014 + $0x70] sm:$0xff]
  %v9030 = vld [vmem:[%s9014 + $0x78] sm:$0xff]
  %v9032 = vsel %vm7682, %v9011, 0
  %9034 = vmatprep.subr.mxu0 0.0
  %9035 = vmatpush1.msra.mxu0 0.0
  %9036 = vmatprep.subr.mxu0 0.0
  %9037 = vmatpush1.msra.mxu0 0.0
  %9038 = vmatprep.subr.mxu0 0.0
  %9039 = vmatpush1.msra.mxu0 0.0
  %9040 = vmatprep.subr.mxu0 0.0
  %9041 = vmatpush1.msra.mxu0 0.0
  %9042 = vmatprep.subr.mxu0 0.0
  %9043 = vmatpush1.msra.mxu0 0.0
  %9044 = vmatprep.subr.mxu0 0.0
  %9045 = vmatpush1.msra.mxu0 0.0
  %9046 = vmatprep.subr.mxu0 0.0
  %9047 = vmatpush1.msra.mxu0 0.0
  %9048 = vmatprep.subr.mxu0 0.0
  %9049 = vmatpush1.msra.mxu0 0.0
  %9050 = vmatprep.subr.mxu0 %v9030
  %9051 = vmatpush1.msra.mxu0 %v9029
  %9052 = vmatprep.subr.mxu0 %v9028
  %9053 = vmatpush1.msra.mxu0 %v9027
  %9054 = vmatprep.subr.mxu0 %v9026
  %9055 = vmatpush1.msra.mxu0 %v9025
  %9056 = vmatprep.subr.mxu0 %v9024
  %9057 = vmatpush1.msra.mxu0 %v9023
  %9058 = vmatprep.subr.mxu0 %v9022
  %9059 = vmatpush1.msra.mxu0 %v9021
  %9060 = vmatprep.subr.mxu0 %v9020
  %9061 = vmatpush1.msra.mxu0 %v9019
  %9062 = vmatprep.subr.mxu0 %v9018
  %9063 = vmatpush1.msra.mxu0 %v9017
  %9064 = vmatprep.subr.mxu0 %v9016
  %9065 = vmatpush1.msra.mxu0 %v9015
  %9066 = vmatprep.subr.mxu0 0.0
  %9067 = vmatpush2.msra.mxu0 0.0
  %9068 = vmatprep.subr.mxu0 0.0
  %9069 = vmatpush2.msra.mxu0 0.0
  %9070 = vmatprep.subr.mxu0 0.0
  %9071 = vmatpush2.msra.mxu0 0.0
  %9072 = vmatprep.subr.mxu0 0.0
  %9073 = vmatpush2.msra.mxu0 0.0
  %9074 = vmatprep.subr.mxu0 0.0
  %9075 = vmatpush2.msra.mxu0 0.0
  %9076 = vmatprep.subr.mxu0 0.0
  %9077 = vmatpush2.msra.mxu0 0.0
  %9078 = vmatprep.subr.mxu0 0.0
  %9079 = vmatpush2.msra.mxu0 0.0
  %9080 = vmatprep.subr.mxu0 0.0
  %9081 = vmatpush2.msra.mxu0 0.0
  %9082 = vmatprep.subr.mxu0 0.0
  %9083 = vmatpush2.msra.mxu0 0.0
  %9084 = vmatprep.subr.mxu0 0.0
  %9085 = vmatpush2.msra.mxu0 0.0
  %9086 = vmatprep.subr.mxu0 0.0
  %9087 = vmatpush2.msra.mxu0 0.0
  %9088 = vmatprep.subr.mxu0 0.0
  %9089 = vmatpush2.msra.mxu0 0.0
  %9090 = vmatprep.subr.mxu0 0.0
  %9091 = vmatpush2.msra.mxu0 0.0
  %9092 = vmatprep.subr.mxu0 0.0
  %9093 = vmatpush2.msra.mxu0 0.0
  %9094 = vmatprep.subr.mxu0 0.0
  %9095 = vmatpush2.msra.mxu0 0.0
  %9096 = vmatprep.subr.mxu0 0.0
  %9097 = vmatpush2.msra.mxu0 0.0
  %9098 = vmatprep.mubr.f32.mxu0 0.0
  %9099 = vmatmul.mubr.f32.gmra.mxu0 %v9032
  %v9100 = vpop.f32.mrf.mxu0
  %v9101 = vadd.f32 0.0, %v9100
  %v9102 = vpop.f32.mrf.mxu0
  %v9103 = vadd.f32 0.0, %v9102
  %9104 = vdwg.mxu0
  %v9105 = vadd.f32 %v8937, %v9101
  %v9106 = vadd.f32 %v8938, %v9103
  %s9107 = scalar_lea.vmem %s15, 16
  %v9108 = vld [vmem:[%s9107] sm:$0x3]
  %v9110 = vsel %vm7769, %v9108, 0
  %9112 = vmatprep.subr.mxu0 0.0
  %9113 = vmatpush1.msra.mxu0 0.0
  %9114 = vmatprep.subr.mxu0 0.0
  %9115 = vmatpush1.msra.mxu0 0.0
  %9116 = vmatprep.subr.mxu0 0.0
  %9117 = vmatpush1.msra.mxu0 0.0
  %9118 = vmatprep.subr.mxu0 0.0
  %9119 = vmatpush1.msra.mxu0 0.0
  %9120 = vmatprep.subr.mxu0 0.0
  %9121 = vmatpush1.msra.mxu0 0.0
  %9122 = vmatprep.subr.mxu0 0.0
  %9123 = vmatpush1.msra.mxu0 0.0
  %9124 = vmatprep.subr.mxu0 0.0
  %9125 = vmatpush1.msra.mxu0 0.0
  %9126 = vmatprep.subr.mxu0 0.0
  %9127 = vmatpush1.msra.mxu0 0.0
  %9128 = vmatprep.subr.mxu0 0.0
  %9129 = vmatpush1.msra.mxu0 0.0
  %9130 = vmatprep.subr.mxu0 0.0
  %9131 = vmatpush1.msra.mxu0 0.0
  %9132 = vmatprep.subr.mxu0 0.0
  %9133 = vmatpush1.msra.mxu0 0.0
  %9134 = vmatprep.subr.mxu0 0.0
  %9135 = vmatpush1.msra.mxu0 %v7767
  %9136 = vmatprep.subr.mxu0 0.0
  %9137 = vmatpush1.msra.mxu0 %v7766
  %9138 = vmatprep.subr.mxu0 0.0
  %9139 = vmatpush1.msra.mxu0 %v7765
  %9140 = vmatprep.subr.mxu0 0.0
  %9141 = vmatpush1.msra.mxu0 %v7764
  %9142 = vmatprep.subr.mxu0 0.0
  %9143 = vmatpush1.msra.mxu0 %v7763
  %9144 = vmatprep.subr.mxu0 0.0
  %9145 = vmatpush2.msra.mxu0 0.0
  %9146 = vmatprep.subr.mxu0 0.0
  %9147 = vmatpush2.msra.mxu0 0.0
  %9148 = vmatprep.subr.mxu0 0.0
  %9149 = vmatpush2.msra.mxu0 0.0
  %9150 = vmatprep.subr.mxu0 0.0
  %9151 = vmatpush2.msra.mxu0 0.0
  %9152 = vmatprep.subr.mxu0 0.0
  %9153 = vmatpush2.msra.mxu0 0.0
  %9154 = vmatprep.subr.mxu0 0.0
  %9155 = vmatpush2.msra.mxu0 0.0
  %9156 = vmatprep.subr.mxu0 0.0
  %9157 = vmatpush2.msra.mxu0 0.0
  %9158 = vmatprep.subr.mxu0 0.0
  %9159 = vmatpush2.msra.mxu0 0.0
  %9160 = vmatprep.subr.mxu0 0.0
  %9161 = vmatpush2.msra.mxu0 0.0
  %9162 = vmatprep.subr.mxu0 0.0
  %9163 = vmatpush2.msra.mxu0 0.0
  %9164 = vmatprep.subr.mxu0 0.0
  %9165 = vmatpush2.msra.mxu0 0.0
  %9166 = vmatprep.subr.mxu0 0.0
  %9167 = vmatpush2.msra.mxu0 0.0
  %9168 = vmatprep.subr.mxu0 0.0
  %9169 = vmatpush2.msra.mxu0 0.0
  %9170 = vmatprep.subr.mxu0 0.0
  %9171 = vmatpush2.msra.mxu0 0.0
  %9172 = vmatprep.subr.mxu0 0.0
  %9173 = vmatpush2.msra.mxu0 0.0
  %9174 = vmatprep.subr.mxu0 0.0
  %9175 = vmatpush2.msra.mxu0 0.0
  %9176 = vmatprep.mubr.f32.mxu0 0.0
  %9177 = vmatmul.mubr.f32.gmra.mxu0 %v9110
  %v9178 = vpop.f32.mrf.mxu0
  %v9179 = vadd.f32 0.0, %v9178
  %v9180 = vpop.f32.mrf.mxu0
  %9181 = vdwg.mxu0
  %s9182 = scalar_lea.vmem %s16, 1024
  %v9183 = vld [vmem:[%s9182] sm:$0xff]
  %v9184 = vld [vmem:[%s9182 + $0x8] sm:$0xff]
  %v9185 = vld [vmem:[%s9182 + $0x10] sm:$0xff]
  %v9186 = vld [vmem:[%s9182 + $0x18] sm:$0xff]
  %v9187 = vld [vmem:[%s9182 + $0x20] sm:$0xff]
  %v9188 = vld [vmem:[%s9182 + $0x28] sm:$0xff]
  %v9189 = vld [vmem:[%s9182 + $0x30] sm:$0xff]
  %v9190 = vld [vmem:[%s9182 + $0x38] sm:$0xff]
  %v9191 = vld [vmem:[%s9182 + $0x40] sm:$0xff]
  %v9192 = vld [vmem:[%s9182 + $0x48] sm:$0xff]
  %v9193 = vld [vmem:[%s9182 + $0x50] sm:$0xff]
  %v9194 = vld [vmem:[%s9182 + $0x58] sm:$0xff]
  %v9195 = vld [vmem:[%s9182 + $0x60] sm:$0xff]
  %v9196 = vld [vmem:[%s9182 + $0x68] sm:$0xff]
  %v9197 = vld [vmem:[%s9182 + $0x70] sm:$0xff]
  %v9198 = vld [vmem:[%s9182 + $0x78] sm:$0xff]
  %v9200 = vsel %vm7682, %v9179, 0
  %9202 = vmatprep.subr.mxu0 0.0
  %9203 = vmatpush1.msra.mxu0 0.0
  %9204 = vmatprep.subr.mxu0 0.0
  %9205 = vmatpush1.msra.mxu0 0.0
  %9206 = vmatprep.subr.mxu0 0.0
  %9207 = vmatpush1.msra.mxu0 0.0
  %9208 = vmatprep.subr.mxu0 0.0
  %9209 = vmatpush1.msra.mxu0 0.0
  %9210 = vmatprep.subr.mxu0 0.0
  %9211 = vmatpush1.msra.mxu0 0.0
  %9212 = vmatprep.subr.mxu0 0.0
  %9213 = vmatpush1.msra.mxu0 0.0
  %9214 = vmatprep.subr.mxu0 0.0
  %9215 = vmatpush1.msra.mxu0 0.0
  %9216 = vmatprep.subr.mxu0 0.0
  %9217 = vmatpush1.msra.mxu0 0.0
  %9218 = vmatprep.subr.mxu0 %v9198
  %9219 = vmatpush1.msra.mxu0 %v9197
  %9220 = vmatprep.subr.mxu0 %v9196
  %9221 = vmatpush1.msra.mxu0 %v9195
  %9222 = vmatprep.subr.mxu0 %v9194
  %9223 = vmatpush1.msra.mxu0 %v9193
  %9224 = vmatprep.subr.mxu0 %v9192
  %9225 = vmatpush1.msra.mxu0 %v9191
  %9226 = vmatprep.subr.mxu0 %v9190
  %9227 = vmatpush1.msra.mxu0 %v9189
  %9228 = vmatprep.subr.mxu0 %v9188
  %9229 = vmatpush1.msra.mxu0 %v9187
  %9230 = vmatprep.subr.mxu0 %v9186
  %9231 = vmatpush1.msra.mxu0 %v9185
  %9232 = vmatprep.subr.mxu0 %v9184
  %9233 = vmatpush1.msra.mxu0 %v9183
  %9234 = vmatprep.subr.mxu0 0.0
  %9235 = vmatpush2.msra.mxu0 0.0
  %9236 = vmatprep.subr.mxu0 0.0
  %9237 = vmatpush2.msra.mxu0 0.0
  %9238 = vmatprep.subr.mxu0 0.0
  %9239 = vmatpush2.msra.mxu0 0.0
  %9240 = vmatprep.subr.mxu0 0.0
  %9241 = vmatpush2.msra.mxu0 0.0
  %9242 = vmatprep.subr.mxu0 0.0
  %9243 = vmatpush2.msra.mxu0 0.0
  %9244 = vmatprep.subr.mxu0 0.0
  %9245 = vmatpush2.msra.mxu0 0.0
  %9246 = vmatprep.subr.mxu0 0.0
  %9247 = vmatpush2.msra.mxu0 0.0
  %9248 = vmatprep.subr.mxu0 0.0
  %9249 = vmatpush2.msra.mxu0 0.0
  %9250 = vmatprep.subr.mxu0 0.0
  %9251 = vmatpush2.msra.mxu0 0.0
  %9252 = vmatprep.subr.mxu0 0.0
  %9253 = vmatpush2.msra.mxu0 0.0
  %9254 = vmatprep.subr.mxu0 0.0
  %9255 = vmatpush2.msra.mxu0 0.0
  %9256 = vmatprep.subr.mxu0 0.0
  %9257 = vmatpush2.msra.mxu0 0.0
  %9258 = vmatprep.subr.mxu0 0.0
  %9259 = vmatpush2.msra.mxu0 0.0
  %9260 = vmatprep.subr.mxu0 0.0
  %9261 = vmatpush2.msra.mxu0 0.0
  %9262 = vmatprep.subr.mxu0 0.0
  %9263 = vmatpush2.msra.mxu0 0.0
  %9264 = vmatprep.subr.mxu0 0.0
  %9265 = vmatpush2.msra.mxu0 0.0
  %9266 = vmatprep.mubr.f32.mxu0 0.0
  %9267 = vmatmul.mubr.f32.gmra.mxu0 %v9200
  %v9268 = vpop.f32.mrf.mxu0
  %v9269 = vadd.f32 0.0, %v9268
  %v9270 = vpop.f32.mrf.mxu0
  %v9271 = vadd.f32 0.0, %v9270
  %9272 = vdwg.mxu0
  %v9273 = vadd.f32 %v9105, %v9269
  %v9274 = vadd.f32 %v9106, %v9271
  %s9275 = scalar_lea.vmem %s15, 18
  %v9276 = vld [vmem:[%s9275] sm:$0x3]
  %v9278 = vsel %vm7769, %v9276, 0
  %9280 = vmatprep.subr.mxu0 0.0
  %9281 = vmatpush1.msra.mxu0 0.0
  %9282 = vmatprep.subr.mxu0 0.0
  %9283 = vmatpush1.msra.mxu0 0.0
  %9284 = vmatprep.subr.mxu0 0.0
  %9285 = vmatpush1.msra.mxu0 0.0
  %9286 = vmatprep.subr.mxu0 0.0
  %9287 = vmatpush1.msra.mxu0 0.0
  %9288 = vmatprep.subr.mxu0 0.0
  %9289 = vmatpush1.msra.mxu0 0.0
  %9290 = vmatprep.subr.mxu0 0.0
  %9291 = vmatpush1.msra.mxu0 0.0
  %9292 = vmatprep.subr.mxu0 0.0
  %9293 = vmatpush1.msra.mxu0 0.0
  %9294 = vmatprep.subr.mxu0 0.0
  %9295 = vmatpush1.msra.mxu0 0.0
  %9296 = vmatprep.subr.mxu0 0.0
  %9297 = vmatpush1.msra.mxu0 0.0
  %9298 = vmatprep.subr.mxu0 0.0
  %9299 = vmatpush1.msra.mxu0 0.0
  %9300 = vmatprep.subr.mxu0 0.0
  %9301 = vmatpush1.msra.mxu0 0.0
  %9302 = vmatprep.subr.mxu0 0.0
  %9303 = vmatpush1.msra.mxu0 %v7767
  %9304 = vmatprep.subr.mxu0 0.0
  %9305 = vmatpush1.msra.mxu0 %v7766
  %9306 = vmatprep.subr.mxu0 0.0
  %9307 = vmatpush1.msra.mxu0 %v7765
  %9308 = vmatprep.subr.mxu0 0.0
  %9309 = vmatpush1.msra.mxu0 %v7764
  %9310 = vmatprep.subr.mxu0 0.0
  %9311 = vmatpush1.msra.mxu0 %v7763
  %9312 = vmatprep.subr.mxu0 0.0
  %9313 = vmatpush2.msra.mxu0 0.0
  %9314 = vmatprep.subr.mxu0 0.0
  %9315 = vmatpush2.msra.mxu0 0.0
  %9316 = vmatprep.subr.mxu0 0.0
  %9317 = vmatpush2.msra.mxu0 0.0
  %9318 = vmatprep.subr.mxu0 0.0
  %9319 = vmatpush2.msra.mxu0 0.0
  %9320 = vmatprep.subr.mxu0 0.0
  %9321 = vmatpush2.msra.mxu0 0.0
  %9322 = vmatprep.subr.mxu0 0.0
  %9323 = vmatpush2.msra.mxu0 0.0
  %9324 = vmatprep.subr.mxu0 0.0
  %9325 = vmatpush2.msra.mxu0 0.0
  %9326 = vmatprep.subr.mxu0 0.0
  %9327 = vmatpush2.msra.mxu0 0.0
  %9328 = vmatprep.subr.mxu0 0.0
  %9329 = vmatpush2.msra.mxu0 0.0
  %9330 = vmatprep.subr.mxu0 0.0
  %9331 = vmatpush2.msra.mxu0 0.0
  %9332 = vmatprep.subr.mxu0 0.0
  %9333 = vmatpush2.msra.mxu0 0.0
  %9334 = vmatprep.subr.mxu0 0.0
  %9335 = vmatpush2.msra.mxu0 0.0
  %9336 = vmatprep.subr.mxu0 0.0
  %9337 = vmatpush2.msra.mxu0 0.0
  %9338 = vmatprep.subr.mxu0 0.0
  %9339 = vmatpush2.msra.mxu0 0.0
  %9340 = vmatprep.subr.mxu0 0.0
  %9341 = vmatpush2.msra.mxu0 0.0
  %9342 = vmatprep.subr.mxu0 0.0
  %9343 = vmatpush2.msra.mxu0 0.0
  %9344 = vmatprep.mubr.f32.mxu0 0.0
  %9345 = vmatmul.mubr.f32.gmra.mxu0 %v9278
  %v9346 = vpop.f32.mrf.mxu0
  %v9347 = vadd.f32 0.0, %v9346
  %v9348 = vpop.f32.mrf.mxu0
  %9349 = vdwg.mxu0
  %s9350 = scalar_lea.vmem %s16, 1152
  %v9351 = vld [vmem:[%s9350] sm:$0xff]
  %v9352 = vld [vmem:[%s9350 + $0x8] sm:$0xff]
  %v9353 = vld [vmem:[%s9350 + $0x10] sm:$0xff]
  %v9354 = vld [vmem:[%s9350 + $0x18] sm:$0xff]
  %v9355 = vld [vmem:[%s9350 + $0x20] sm:$0xff]
  %v9356 = vld [vmem:[%s9350 + $0x28] sm:$0xff]
  %v9357 = vld [vmem:[%s9350 + $0x30] sm:$0xff]
  %v9358 = vld [vmem:[%s9350 + $0x38] sm:$0xff]
  %v9359 = vld [vmem:[%s9350 + $0x40] sm:$0xff]
  %v9360 = vld [vmem:[%s9350 + $0x48] sm:$0xff]
  %v9361 = vld [vmem:[%s9350 + $0x50] sm:$0xff]
  %v9362 = vld [vmem:[%s9350 + $0x58] sm:$0xff]
  %v9363 = vld [vmem:[%s9350 + $0x60] sm:$0xff]
  %v9364 = vld [vmem:[%s9350 + $0x68] sm:$0xff]
  %v9365 = vld [vmem:[%s9350 + $0x70] sm:$0xff]
  %v9366 = vld [vmem:[%s9350 + $0x78] sm:$0xff]
  %v9368 = vsel %vm7682, %v9347, 0
  %9370 = vmatprep.subr.mxu0 0.0
  %9371 = vmatpush1.msra.mxu0 0.0
  %9372 = vmatprep.subr.mxu0 0.0
  %9373 = vmatpush1.msra.mxu0 0.0
  %9374 = vmatprep.subr.mxu0 0.0
  %9375 = vmatpush1.msra.mxu0 0.0
  %9376 = vmatprep.subr.mxu0 0.0
  %9377 = vmatpush1.msra.mxu0 0.0
  %9378 = vmatprep.subr.mxu0 0.0
  %9379 = vmatpush1.msra.mxu0 0.0
  %9380 = vmatprep.subr.mxu0 0.0
  %9381 = vmatpush1.msra.mxu0 0.0
  %9382 = vmatprep.subr.mxu0 0.0
  %9383 = vmatpush1.msra.mxu0 0.0
  %9384 = vmatprep.subr.mxu0 0.0
  %9385 = vmatpush1.msra.mxu0 0.0
  %9386 = vmatprep.subr.mxu0 %v9366
  %9387 = vmatpush1.msra.mxu0 %v9365
  %9388 = vmatprep.subr.mxu0 %v9364
  %9389 = vmatpush1.msra.mxu0 %v9363
  %9390 = vmatprep.subr.mxu0 %v9362
  %9391 = vmatpush1.msra.mxu0 %v9361
  %9392 = vmatprep.subr.mxu0 %v9360
  %9393 = vmatpush1.msra.mxu0 %v9359
  %9394 = vmatprep.subr.mxu0 %v9358
  %9395 = vmatpush1.msra.mxu0 %v9357
  %9396 = vmatprep.subr.mxu0 %v9356
  %9397 = vmatpush1.msra.mxu0 %v9355
  %9398 = vmatprep.subr.mxu0 %v9354
  %9399 = vmatpush1.msra.mxu0 %v9353
  %9400 = vmatprep.subr.mxu0 %v9352
  %9401 = vmatpush1.msra.mxu0 %v9351
  %9402 = vmatprep.subr.mxu0 0.0
  %9403 = vmatpush2.msra.mxu0 0.0
  %9404 = vmatprep.subr.mxu0 0.0
  %9405 = vmatpush2.msra.mxu0 0.0
  %9406 = vmatprep.subr.mxu0 0.0
  %9407 = vmatpush2.msra.mxu0 0.0
  %9408 = vmatprep.subr.mxu0 0.0
  %9409 = vmatpush2.msra.mxu0 0.0
  %9410 = vmatprep.subr.mxu0 0.0
  %9411 = vmatpush2.msra.mxu0 0.0
  %9412 = vmatprep.subr.mxu0 0.0
  %9413 = vmatpush2.msra.mxu0 0.0
  %9414 = vmatprep.subr.mxu0 0.0
  %9415 = vmatpush2.msra.mxu0 0.0
  %9416 = vmatprep.subr.mxu0 0.0
  %9417 = vmatpush2.msra.mxu0 0.0
  %9418 = vmatprep.subr.mxu0 0.0
  %9419 = vmatpush2.msra.mxu0 0.0
  %9420 = vmatprep.subr.mxu0 0.0
  %9421 = vmatpush2.msra.mxu0 0.0
  %9422 = vmatprep.subr.mxu0 0.0
  %9423 = vmatpush2.msra.mxu0 0.0
  %9424 = vmatprep.subr.mxu0 0.0
  %9425 = vmatpush2.msra.mxu0 0.0
  %9426 = vmatprep.subr.mxu0 0.0
  %9427 = vmatpush2.msra.mxu0 0.0
  %9428 = vmatprep.subr.mxu0 0.0
  %9429 = vmatpush2.msra.mxu0 0.0
  %9430 = vmatprep.subr.mxu0 0.0
  %9431 = vmatpush2.msra.mxu0 0.0
  %9432 = vmatprep.subr.mxu0 0.0
  %9433 = vmatpush2.msra.mxu0 0.0
  %9434 = vmatprep.mubr.f32.mxu0 0.0
  %9435 = vmatmul.mubr.f32.gmra.mxu0 %v9368
  %v9436 = vpop.f32.mrf.mxu0
  %v9437 = vadd.f32 0.0, %v9436
  %v9438 = vpop.f32.mrf.mxu0
  %v9439 = vadd.f32 0.0, %v9438
  %9440 = vdwg.mxu0
  %v9441 = vadd.f32 %v9273, %v9437
  %v9442 = vadd.f32 %v9274, %v9439
  %s9443 = scalar_lea.vmem %s15, 20
  %v9444 = vld [vmem:[%s9443] sm:$0x3]
  %v9446 = vsel %vm7769, %v9444, 0
  %9448 = vmatprep.subr.mxu0 0.0
  %9449 = vmatpush1.msra.mxu0 0.0
  %9450 = vmatprep.subr.mxu0 0.0
  %9451 = vmatpush1.msra.mxu0 0.0
  %9452 = vmatprep.subr.mxu0 0.0
  %9453 = vmatpush1.msra.mxu0 0.0
  %9454 = vmatprep.subr.mxu0 0.0
  %9455 = vmatpush1.msra.mxu0 0.0
  %9456 = vmatprep.subr.mxu0 0.0
  %9457 = vmatpush1.msra.mxu0 0.0
  %9458 = vmatprep.subr.mxu0 0.0
  %9459 = vmatpush1.msra.mxu0 0.0
  %9460 = vmatprep.subr.mxu0 0.0
  %9461 = vmatpush1.msra.mxu0 0.0
  %9462 = vmatprep.subr.mxu0 0.0
  %9463 = vmatpush1.msra.mxu0 0.0
  %9464 = vmatprep.subr.mxu0 0.0
  %9465 = vmatpush1.msra.mxu0 0.0
  %9466 = vmatprep.subr.mxu0 0.0
  %9467 = vmatpush1.msra.mxu0 0.0
  %9468 = vmatprep.subr.mxu0 0.0
  %9469 = vmatpush1.msra.mxu0 0.0
  %9470 = vmatprep.subr.mxu0 0.0
  %9471 = vmatpush1.msra.mxu0 %v7767
  %9472 = vmatprep.subr.mxu0 0.0
  %9473 = vmatpush1.msra.mxu0 %v7766
  %9474 = vmatprep.subr.mxu0 0.0
  %9475 = vmatpush1.msra.mxu0 %v7765
  %9476 = vmatprep.subr.mxu0 0.0
  %9477 = vmatpush1.msra.mxu0 %v7764
  %9478 = vmatprep.subr.mxu0 0.0
  %9479 = vmatpush1.msra.mxu0 %v7763
  %9480 = vmatprep.subr.mxu0 0.0
  %9481 = vmatpush2.msra.mxu0 0.0
  %9482 = vmatprep.subr.mxu0 0.0
  %9483 = vmatpush2.msra.mxu0 0.0
  %9484 = vmatprep.subr.mxu0 0.0
  %9485 = vmatpush2.msra.mxu0 0.0
  %9486 = vmatprep.subr.mxu0 0.0
  %9487 = vmatpush2.msra.mxu0 0.0
  %9488 = vmatprep.subr.mxu0 0.0
  %9489 = vmatpush2.msra.mxu0 0.0
  %9490 = vmatprep.subr.mxu0 0.0
  %9491 = vmatpush2.msra.mxu0 0.0
  %9492 = vmatprep.subr.mxu0 0.0
  %9493 = vmatpush2.msra.mxu0 0.0
  %9494 = vmatprep.subr.mxu0 0.0
  %9495 = vmatpush2.msra.mxu0 0.0
  %9496 = vmatprep.subr.mxu0 0.0
  %9497 = vmatpush2.msra.mxu0 0.0
  %9498 = vmatprep.subr.mxu0 0.0
  %9499 = vmatpush2.msra.mxu0 0.0
  %9500 = vmatprep.subr.mxu0 0.0
  %9501 = vmatpush2.msra.mxu0 0.0
  %9502 = vmatprep.subr.mxu0 0.0
  %9503 = vmatpush2.msra.mxu0 0.0
  %9504 = vmatprep.subr.mxu0 0.0
  %9505 = vmatpush2.msra.mxu0 0.0
  %9506 = vmatprep.subr.mxu0 0.0
  %9507 = vmatpush2.msra.mxu0 0.0
  %9508 = vmatprep.subr.mxu0 0.0
  %9509 = vmatpush2.msra.mxu0 0.0
  %9510 = vmatprep.subr.mxu0 0.0
  %9511 = vmatpush2.msra.mxu0 0.0
  %9512 = vmatprep.mubr.f32.mxu0 0.0
  %9513 = vmatmul.mubr.f32.gmra.mxu0 %v9446
  %v9514 = vpop.f32.mrf.mxu0
  %v9515 = vadd.f32 0.0, %v9514
  %v9516 = vpop.f32.mrf.mxu0
  %9517 = vdwg.mxu0
  %s9518 = scalar_lea.vmem %s16, 1280
  %v9519 = vld [vmem:[%s9518] sm:$0xff]
  %v9520 = vld [vmem:[%s9518 + $0x8] sm:$0xff]
  %v9521 = vld [vmem:[%s9518 + $0x10] sm:$0xff]
  %v9522 = vld [vmem:[%s9518 + $0x18] sm:$0xff]
  %v9523 = vld [vmem:[%s9518 + $0x20] sm:$0xff]
  %v9524 = vld [vmem:[%s9518 + $0x28] sm:$0xff]
  %v9525 = vld [vmem:[%s9518 + $0x30] sm:$0xff]
  %v9526 = vld [vmem:[%s9518 + $0x38] sm:$0xff]
  %v9527 = vld [vmem:[%s9518 + $0x40] sm:$0xff]
  %v9528 = vld [vmem:[%s9518 + $0x48] sm:$0xff]
  %v9529 = vld [vmem:[%s9518 + $0x50] sm:$0xff]
  %v9530 = vld [vmem:[%s9518 + $0x58] sm:$0xff]
  %v9531 = vld [vmem:[%s9518 + $0x60] sm:$0xff]
  %v9532 = vld [vmem:[%s9518 + $0x68] sm:$0xff]
  %v9533 = vld [vmem:[%s9518 + $0x70] sm:$0xff]
  %v9534 = vld [vmem:[%s9518 + $0x78] sm:$0xff]
  %v9536 = vsel %vm7682, %v9515, 0
  %9538 = vmatprep.subr.mxu0 0.0
  %9539 = vmatpush1.msra.mxu0 0.0
  %9540 = vmatprep.subr.mxu0 0.0
  %9541 = vmatpush1.msra.mxu0 0.0
  %9542 = vmatprep.subr.mxu0 0.0
  %9543 = vmatpush1.msra.mxu0 0.0
  %9544 = vmatprep.subr.mxu0 0.0
  %9545 = vmatpush1.msra.mxu0 0.0
  %9546 = vmatprep.subr.mxu0 0.0
  %9547 = vmatpush1.msra.mxu0 0.0
  %9548 = vmatprep.subr.mxu0 0.0
  %9549 = vmatpush1.msra.mxu0 0.0
  %9550 = vmatprep.subr.mxu0 0.0
  %9551 = vmatpush1.msra.mxu0 0.0
  %9552 = vmatprep.subr.mxu0 0.0
  %9553 = vmatpush1.msra.mxu0 0.0
  %9554 = vmatprep.subr.mxu0 %v9534
  %9555 = vmatpush1.msra.mxu0 %v9533
  %9556 = vmatprep.subr.mxu0 %v9532
  %9557 = vmatpush1.msra.mxu0 %v9531
  %9558 = vmatprep.subr.mxu0 %v9530
  %9559 = vmatpush1.msra.mxu0 %v9529
  %9560 = vmatprep.subr.mxu0 %v9528
  %9561 = vmatpush1.msra.mxu0 %v9527
  %9562 = vmatprep.subr.mxu0 %v9526
  %9563 = vmatpush1.msra.mxu0 %v9525
  %9564 = vmatprep.subr.mxu0 %v9524
  %9565 = vmatpush1.msra.mxu0 %v9523
  %9566 = vmatprep.subr.mxu0 %v9522
  %9567 = vmatpush1.msra.mxu0 %v9521
  %9568 = vmatprep.subr.mxu0 %v9520
  %9569 = vmatpush1.msra.mxu0 %v9519
  %9570 = vmatprep.subr.mxu0 0.0
  %9571 = vmatpush2.msra.mxu0 0.0
  %9572 = vmatprep.subr.mxu0 0.0
  %9573 = vmatpush2.msra.mxu0 0.0
  %9574 = vmatprep.subr.mxu0 0.0
  %9575 = vmatpush2.msra.mxu0 0.0
  %9576 = vmatprep.subr.mxu0 0.0
  %9577 = vmatpush2.msra.mxu0 0.0
  %9578 = vmatprep.subr.mxu0 0.0
  %9579 = vmatpush2.msra.mxu0 0.0
  %9580 = vmatprep.subr.mxu0 0.0
  %9581 = vmatpush2.msra.mxu0 0.0
  %9582 = vmatprep.subr.mxu0 0.0
  %9583 = vmatpush2.msra.mxu0 0.0
  %9584 = vmatprep.subr.mxu0 0.0
  %9585 = vmatpush2.msra.mxu0 0.0
  %9586 = vmatprep.subr.mxu0 0.0
  %9587 = vmatpush2.msra.mxu0 0.0
  %9588 = vmatprep.subr.mxu0 0.0
  %9589 = vmatpush2.msra.mxu0 0.0
  %9590 = vmatprep.subr.mxu0 0.0
  %9591 = vmatpush2.msra.mxu0 0.0
  %9592 = vmatprep.subr.mxu0 0.0
  %9593 = vmatpush2.msra.mxu0 0.0
  %9594 = vmatprep.subr.mxu0 0.0
  %9595 = vmatpush2.msra.mxu0 0.0
  %9596 = vmatprep.subr.mxu0 0.0
  %9597 = vmatpush2.msra.mxu0 0.0
  %9598 = vmatprep.subr.mxu0 0.0
  %9599 = vmatpush2.msra.mxu0 0.0
  %9600 = vmatprep.subr.mxu0 0.0
  %9601 = vmatpush2.msra.mxu0 0.0
  %9602 = vmatprep.mubr.f32.mxu0 0.0
  %9603 = vmatmul.mubr.f32.gmra.mxu0 %v9536
  %v9604 = vpop.f32.mrf.mxu0
  %v9605 = vadd.f32 0.0, %v9604
  %v9606 = vpop.f32.mrf.mxu0
  %v9607 = vadd.f32 0.0, %v9606
  %9608 = vdwg.mxu0
  %v9609 = vadd.f32 %v9441, %v9605
  %v9610 = vadd.f32 %v9442, %v9607
  %s9611 = scalar_lea.vmem %s15, 22
  %v9612 = vld [vmem:[%s9611] sm:$0x3]
  %v9614 = vsel %vm7769, %v9612, 0
  %9616 = vmatprep.subr.mxu0 0.0
  %9617 = vmatpush1.msra.mxu0 0.0
  %9618 = vmatprep.subr.mxu0 0.0
  %9619 = vmatpush1.msra.mxu0 0.0
  %9620 = vmatprep.subr.mxu0 0.0
  %9621 = vmatpush1.msra.mxu0 0.0
  %9622 = vmatprep.subr.mxu0 0.0
  %9623 = vmatpush1.msra.mxu0 0.0
  %9624 = vmatprep.subr.mxu0 0.0
  %9625 = vmatpush1.msra.mxu0 0.0
  %9626 = vmatprep.subr.mxu0 0.0
  %9627 = vmatpush1.msra.mxu0 0.0
  %9628 = vmatprep.subr.mxu0 0.0
  %9629 = vmatpush1.msra.mxu0 0.0
  %9630 = vmatprep.subr.mxu0 0.0
  %9631 = vmatpush1.msra.mxu0 0.0
  %9632 = vmatprep.subr.mxu0 0.0
  %9633 = vmatpush1.msra.mxu0 0.0
  %9634 = vmatprep.subr.mxu0 0.0
  %9635 = vmatpush1.msra.mxu0 0.0
  %9636 = vmatprep.subr.mxu0 0.0
  %9637 = vmatpush1.msra.mxu0 0.0
  %9638 = vmatprep.subr.mxu0 0.0
  %9639 = vmatpush1.msra.mxu0 %v7767
  %9640 = vmatprep.subr.mxu0 0.0
  %9641 = vmatpush1.msra.mxu0 %v7766
  %9642 = vmatprep.subr.mxu0 0.0
  %9643 = vmatpush1.msra.mxu0 %v7765
  %9644 = vmatprep.subr.mxu0 0.0
  %9645 = vmatpush1.msra.mxu0 %v7764
  %9646 = vmatprep.subr.mxu0 0.0
  %9647 = vmatpush1.msra.mxu0 %v7763
  %9648 = vmatprep.subr.mxu0 0.0
  %9649 = vmatpush2.msra.mxu0 0.0
  %9650 = vmatprep.subr.mxu0 0.0
  %9651 = vmatpush2.msra.mxu0 0.0
  %9652 = vmatprep.subr.mxu0 0.0
  %9653 = vmatpush2.msra.mxu0 0.0
  %9654 = vmatprep.subr.mxu0 0.0
  %9655 = vmatpush2.msra.mxu0 0.0
  %9656 = vmatprep.subr.mxu0 0.0
  %9657 = vmatpush2.msra.mxu0 0.0
  %9658 = vmatprep.subr.mxu0 0.0
  %9659 = vmatpush2.msra.mxu0 0.0
  %9660 = vmatprep.subr.mxu0 0.0
  %9661 = vmatpush2.msra.mxu0 0.0
  %9662 = vmatprep.subr.mxu0 0.0
  %9663 = vmatpush2.msra.mxu0 0.0
  %9664 = vmatprep.subr.mxu0 0.0
  %9665 = vmatpush2.msra.mxu0 0.0
  %9666 = vmatprep.subr.mxu0 0.0
  %9667 = vmatpush2.msra.mxu0 0.0
  %9668 = vmatprep.subr.mxu0 0.0
  %9669 = vmatpush2.msra.mxu0 0.0
  %9670 = vmatprep.subr.mxu0 0.0
  %9671 = vmatpush2.msra.mxu0 0.0
  %9672 = vmatprep.subr.mxu0 0.0
  %9673 = vmatpush2.msra.mxu0 0.0
  %9674 = vmatprep.subr.mxu0 0.0
  %9675 = vmatpush2.msra.mxu0 0.0
  %9676 = vmatprep.subr.mxu0 0.0
  %9677 = vmatpush2.msra.mxu0 0.0
  %9678 = vmatprep.subr.mxu0 0.0
  %9679 = vmatpush2.msra.mxu0 0.0
  %9680 = vmatprep.mubr.f32.mxu0 0.0
  %9681 = vmatmul.mubr.f32.gmra.mxu0 %v9614
  %v9682 = vpop.f32.mrf.mxu0
  %v9683 = vadd.f32 0.0, %v9682
  %v9684 = vpop.f32.mrf.mxu0
  %9685 = vdwg.mxu0
  %s9686 = scalar_lea.vmem %s16, 1408
  %v9687 = vld [vmem:[%s9686] sm:$0xff]
  %v9688 = vld [vmem:[%s9686 + $0x8] sm:$0xff]
  %v9689 = vld [vmem:[%s9686 + $0x10] sm:$0xff]
  %v9690 = vld [vmem:[%s9686 + $0x18] sm:$0xff]
  %v9691 = vld [vmem:[%s9686 + $0x20] sm:$0xff]
  %v9692 = vld [vmem:[%s9686 + $0x28] sm:$0xff]
  %v9693 = vld [vmem:[%s9686 + $0x30] sm:$0xff]
  %v9694 = vld [vmem:[%s9686 + $0x38] sm:$0xff]
  %v9695 = vld [vmem:[%s9686 + $0x40] sm:$0xff]
  %v9696 = vld [vmem:[%s9686 + $0x48] sm:$0xff]
  %v9697 = vld [vmem:[%s9686 + $0x50] sm:$0xff]
  %v9698 = vld [vmem:[%s9686 + $0x58] sm:$0xff]
  %v9699 = vld [vmem:[%s9686 + $0x60] sm:$0xff]
  %v9700 = vld [vmem:[%s9686 + $0x68] sm:$0xff]
  %v9701 = vld [vmem:[%s9686 + $0x70] sm:$0xff]
  %v9702 = vld [vmem:[%s9686 + $0x78] sm:$0xff]
  %v9704 = vsel %vm7682, %v9683, 0
  %9706 = vmatprep.subr.mxu0 0.0
  %9707 = vmatpush1.msra.mxu0 0.0
  %9708 = vmatprep.subr.mxu0 0.0
  %9709 = vmatpush1.msra.mxu0 0.0
  %9710 = vmatprep.subr.mxu0 0.0
  %9711 = vmatpush1.msra.mxu0 0.0
  %9712 = vmatprep.subr.mxu0 0.0
  %9713 = vmatpush1.msra.mxu0 0.0
  %9714 = vmatprep.subr.mxu0 0.0
  %9715 = vmatpush1.msra.mxu0 0.0
  %9716 = vmatprep.subr.mxu0 0.0
  %9717 = vmatpush1.msra.mxu0 0.0
  %9718 = vmatprep.subr.mxu0 0.0
  %9719 = vmatpush1.msra.mxu0 0.0
  %9720 = vmatprep.subr.mxu0 0.0
  %9721 = vmatpush1.msra.mxu0 0.0
  %9722 = vmatprep.subr.mxu0 %v9702
  %9723 = vmatpush1.msra.mxu0 %v9701
  %9724 = vmatprep.subr.mxu0 %v9700
  %9725 = vmatpush1.msra.mxu0 %v9699
  %9726 = vmatprep.subr.mxu0 %v9698
  %9727 = vmatpush1.msra.mxu0 %v9697
  %9728 = vmatprep.subr.mxu0 %v9696
  %9729 = vmatpush1.msra.mxu0 %v9695
  %9730 = vmatprep.subr.mxu0 %v9694
  %9731 = vmatpush1.msra.mxu0 %v9693
  %9732 = vmatprep.subr.mxu0 %v9692
  %9733 = vmatpush1.msra.mxu0 %v9691
  %9734 = vmatprep.subr.mxu0 %v9690
  %9735 = vmatpush1.msra.mxu0 %v9689
  %9736 = vmatprep.subr.mxu0 %v9688
  %9737 = vmatpush1.msra.mxu0 %v9687
  %9738 = vmatprep.subr.mxu0 0.0
  %9739 = vmatpush2.msra.mxu0 0.0
  %9740 = vmatprep.subr.mxu0 0.0
  %9741 = vmatpush2.msra.mxu0 0.0
  %9742 = vmatprep.subr.mxu0 0.0
  %9743 = vmatpush2.msra.mxu0 0.0
  %9744 = vmatprep.subr.mxu0 0.0
  %9745 = vmatpush2.msra.mxu0 0.0
  %9746 = vmatprep.subr.mxu0 0.0
  %9747 = vmatpush2.msra.mxu0 0.0
  %9748 = vmatprep.subr.mxu0 0.0
  %9749 = vmatpush2.msra.mxu0 0.0
  %9750 = vmatprep.subr.mxu0 0.0
  %9751 = vmatpush2.msra.mxu0 0.0
  %9752 = vmatprep.subr.mxu0 0.0
  %9753 = vmatpush2.msra.mxu0 0.0
  %9754 = vmatprep.subr.mxu0 0.0
  %9755 = vmatpush2.msra.mxu0 0.0
  %9756 = vmatprep.subr.mxu0 0.0
  %9757 = vmatpush2.msra.mxu0 0.0
  %9758 = vmatprep.subr.mxu0 0.0
  %9759 = vmatpush2.msra.mxu0 0.0
  %9760 = vmatprep.subr.mxu0 0.0
  %9761 = vmatpush2.msra.mxu0 0.0
  %9762 = vmatprep.subr.mxu0 0.0
  %9763 = vmatpush2.msra.mxu0 0.0
  %9764 = vmatprep.subr.mxu0 0.0
  %9765 = vmatpush2.msra.mxu0 0.0
  %9766 = vmatprep.subr.mxu0 0.0
  %9767 = vmatpush2.msra.mxu0 0.0
  %9768 = vmatprep.subr.mxu0 0.0
  %9769 = vmatpush2.msra.mxu0 0.0
  %9770 = vmatprep.mubr.f32.mxu0 0.0
  %9771 = vmatmul.mubr.f32.gmra.mxu0 %v9704
  %v9772 = vpop.f32.mrf.mxu0
  %v9773 = vadd.f32 0.0, %v9772
  %v9774 = vpop.f32.mrf.mxu0
  %v9775 = vadd.f32 0.0, %v9774
  %9776 = vdwg.mxu0
  %v9777 = vadd.f32 %v9609, %v9773
  %v9778 = vadd.f32 %v9610, %v9775
  %s9779 = scalar_lea.vmem %s15, 24
  %v9780 = vld [vmem:[%s9779] sm:$0x3]
  %v9782 = vsel %vm7769, %v9780, 0
  %9784 = vmatprep.subr.mxu0 0.0
  %9785 = vmatpush1.msra.mxu0 0.0
  %9786 = vmatprep.subr.mxu0 0.0
  %9787 = vmatpush1.msra.mxu0 0.0
  %9788 = vmatprep.subr.mxu0 0.0
  %9789 = vmatpush1.msra.mxu0 0.0
  %9790 = vmatprep.subr.mxu0 0.0
  %9791 = vmatpush1.msra.mxu0 0.0
  %9792 = vmatprep.subr.mxu0 0.0
  %9793 = vmatpush1.msra.mxu0 0.0
  %9794 = vmatprep.subr.mxu0 0.0
  %9795 = vmatpush1.msra.mxu0 0.0
  %9796 = vmatprep.subr.mxu0 0.0
  %9797 = vmatpush1.msra.mxu0 0.0
  %9798 = vmatprep.subr.mxu0 0.0
  %9799 = vmatpush1.msra.mxu0 0.0
  %9800 = vmatprep.subr.mxu0 0.0
  %9801 = vmatpush1.msra.mxu0 0.0
  %9802 = vmatprep.subr.mxu0 0.0
  %9803 = vmatpush1.msra.mxu0 0.0
  %9804 = vmatprep.subr.mxu0 0.0
  %9805 = vmatpush1.msra.mxu0 0.0
  %9806 = vmatprep.subr.mxu0 0.0
  %9807 = vmatpush1.msra.mxu0 %v7767
  %9808 = vmatprep.subr.mxu0 0.0
  %9809 = vmatpush1.msra.mxu0 %v7766
  %9810 = vmatprep.subr.mxu0 0.0
  %9811 = vmatpush1.msra.mxu0 %v7765
  %9812 = vmatprep.subr.mxu0 0.0
  %9813 = vmatpush1.msra.mxu0 %v7764
  %9814 = vmatprep.subr.mxu0 0.0
  %9815 = vmatpush1.msra.mxu0 %v7763
  %9816 = vmatprep.subr.mxu0 0.0
  %9817 = vmatpush2.msra.mxu0 0.0
  %9818 = vmatprep.subr.mxu0 0.0
  %9819 = vmatpush2.msra.mxu0 0.0
  %9820 = vmatprep.subr.mxu0 0.0
  %9821 = vmatpush2.msra.mxu0 0.0
  %9822 = vmatprep.subr.mxu0 0.0
  %9823 = vmatpush2.msra.mxu0 0.0
  %9824 = vmatprep.subr.mxu0 0.0
  %9825 = vmatpush2.msra.mxu0 0.0
  %9826 = vmatprep.subr.mxu0 0.0
  %9827 = vmatpush2.msra.mxu0 0.0
  %9828 = vmatprep.subr.mxu0 0.0
  %9829 = vmatpush2.msra.mxu0 0.0
  %9830 = vmatprep.subr.mxu0 0.0
  %9831 = vmatpush2.msra.mxu0 0.0
  %9832 = vmatprep.subr.mxu0 0.0
  %9833 = vmatpush2.msra.mxu0 0.0
  %9834 = vmatprep.subr.mxu0 0.0
  %9835 = vmatpush2.msra.mxu0 0.0
  %9836 = vmatprep.subr.mxu0 0.0
  %9837 = vmatpush2.msra.mxu0 0.0
  %9838 = vmatprep.subr.mxu0 0.0
  %9839 = vmatpush2.msra.mxu0 0.0
  %9840 = vmatprep.subr.mxu0 0.0
  %9841 = vmatpush2.msra.mxu0 0.0
  %9842 = vmatprep.subr.mxu0 0.0
  %9843 = vmatpush2.msra.mxu0 0.0
  %9844 = vmatprep.subr.mxu0 0.0
  %9845 = vmatpush2.msra.mxu0 0.0
  %9846 = vmatprep.subr.mxu0 0.0
  %9847 = vmatpush2.msra.mxu0 0.0
  %9848 = vmatprep.mubr.f32.mxu0 0.0
  %9849 = vmatmul.mubr.f32.gmra.mxu0 %v9782
  %v9850 = vpop.f32.mrf.mxu0
  %v9851 = vadd.f32 0.0, %v9850
  %v9852 = vpop.f32.mrf.mxu0
  %9853 = vdwg.mxu0
  %s9854 = scalar_lea.vmem %s16, 1536
  %v9855 = vld [vmem:[%s9854] sm:$0xff]
  %v9856 = vld [vmem:[%s9854 + $0x8] sm:$0xff]
  %v9857 = vld [vmem:[%s9854 + $0x10] sm:$0xff]
  %v9858 = vld [vmem:[%s9854 + $0x18] sm:$0xff]
  %v9859 = vld [vmem:[%s9854 + $0x20] sm:$0xff]
  %v9860 = vld [vmem:[%s9854 + $0x28] sm:$0xff]
  %v9861 = vld [vmem:[%s9854 + $0x30] sm:$0xff]
  %v9862 = vld [vmem:[%s9854 + $0x38] sm:$0xff]
  %v9863 = vld [vmem:[%s9854 + $0x40] sm:$0xff]
  %v9864 = vld [vmem:[%s9854 + $0x48] sm:$0xff]
  %v9865 = vld [vmem:[%s9854 + $0x50] sm:$0xff]
  %v9866 = vld [vmem:[%s9854 + $0x58] sm:$0xff]
  %v9867 = vld [vmem:[%s9854 + $0x60] sm:$0xff]
  %v9868 = vld [vmem:[%s9854 + $0x68] sm:$0xff]
  %v9869 = vld [vmem:[%s9854 + $0x70] sm:$0xff]
  %v9870 = vld [vmem:[%s9854 + $0x78] sm:$0xff]
  %v9872 = vsel %vm7682, %v9851, 0
  %9874 = vmatprep.subr.mxu0 0.0
  %9875 = vmatpush1.msra.mxu0 0.0
  %9876 = vmatprep.subr.mxu0 0.0
  %9877 = vmatpush1.msra.mxu0 0.0
  %9878 = vmatprep.subr.mxu0 0.0
  %9879 = vmatpush1.msra.mxu0 0.0
  %9880 = vmatprep.subr.mxu0 0.0
  %9881 = vmatpush1.msra.mxu0 0.0
  %9882 = vmatprep.subr.mxu0 0.0
  %9883 = vmatpush1.msra.mxu0 0.0
  %9884 = vmatprep.subr.mxu0 0.0
  %9885 = vmatpush1.msra.mxu0 0.0
  %9886 = vmatprep.subr.mxu0 0.0
  %9887 = vmatpush1.msra.mxu0 0.0
  %9888 = vmatprep.subr.mxu0 0.0
  %9889 = vmatpush1.msra.mxu0 0.0
  %9890 = vmatprep.subr.mxu0 %v9870
  %9891 = vmatpush1.msra.mxu0 %v9869
  %9892 = vmatprep.subr.mxu0 %v9868
  %9893 = vmatpush1.msra.mxu0 %v9867
  %9894 = vmatprep.subr.mxu0 %v9866
  %9895 = vmatpush1.msra.mxu0 %v9865
  %9896 = vmatprep.subr.mxu0 %v9864
  %9897 = vmatpush1.msra.mxu0 %v9863
  %9898 = vmatprep.subr.mxu0 %v9862
  %9899 = vmatpush1.msra.mxu0 %v9861
  %9900 = vmatprep.subr.mxu0 %v9860
  %9901 = vmatpush1.msra.mxu0 %v9859
  %9902 = vmatprep.subr.mxu0 %v9858
  %9903 = vmatpush1.msra.mxu0 %v9857
  %9904 = vmatprep.subr.mxu0 %v9856
  %9905 = vmatpush1.msra.mxu0 %v9855
  %9906 = vmatprep.subr.mxu0 0.0
  %9907 = vmatpush2.msra.mxu0 0.0
  %9908 = vmatprep.subr.mxu0 0.0
  %9909 = vmatpush2.msra.mxu0 0.0
  %9910 = vmatprep.subr.mxu0 0.0
  %9911 = vmatpush2.msra.mxu0 0.0
  %9912 = vmatprep.subr.mxu0 0.0
  %9913 = vmatpush2.msra.mxu0 0.0
  %9914 = vmatprep.subr.mxu0 0.0
  %9915 = vmatpush2.msra.mxu0 0.0
  %9916 = vmatprep.subr.mxu0 0.0
  %9917 = vmatpush2.msra.mxu0 0.0
  %9918 = vmatprep.subr.mxu0 0.0
  %9919 = vmatpush2.msra.mxu0 0.0
  %9920 = vmatprep.subr.mxu0 0.0
  %9921 = vmatpush2.msra.mxu0 0.0
  %9922 = vmatprep.subr.mxu0 0.0
  %9923 = vmatpush2.msra.mxu0 0.0
  %9924 = vmatprep.subr.mxu0 0.0
  %9925 = vmatpush2.msra.mxu0 0.0
  %9926 = vmatprep.subr.mxu0 0.0
  %9927 = vmatpush2.msra.mxu0 0.0
  %9928 = vmatprep.subr.mxu0 0.0
  %9929 = vmatpush2.msra.mxu0 0.0
  %9930 = vmatprep.subr.mxu0 0.0
  %9931 = vmatpush2.msra.mxu0 0.0
  %9932 = vmatprep.subr.mxu0 0.0
  %9933 = vmatpush2.msra.mxu0 0.0
  %9934 = vmatprep.subr.mxu0 0.0
  %9935 = vmatpush2.msra.mxu0 0.0
  %9936 = vmatprep.subr.mxu0 0.0
  %9937 = vmatpush2.msra.mxu0 0.0
  %9938 = vmatprep.mubr.f32.mxu0 0.0
  %9939 = vmatmul.mubr.f32.gmra.mxu0 %v9872
  %v9940 = vpop.f32.mrf.mxu0
  %v9941 = vadd.f32 0.0, %v9940
  %v9942 = vpop.f32.mrf.mxu0
  %v9943 = vadd.f32 0.0, %v9942
  %9944 = vdwg.mxu0
  %v9945 = vadd.f32 %v9777, %v9941
  %v9946 = vadd.f32 %v9778, %v9943
  %s9947 = scalar_lea.vmem %s15, 26
  %v9948 = vld [vmem:[%s9947] sm:$0x3]
  %v9950 = vsel %vm7769, %v9948, 0
  %9952 = vmatprep.subr.mxu0 0.0
  %9953 = vmatpush1.msra.mxu0 0.0
  %9954 = vmatprep.subr.mxu0 0.0
  %9955 = vmatpush1.msra.mxu0 0.0
  %9956 = vmatprep.subr.mxu0 0.0
  %9957 = vmatpush1.msra.mxu0 0.0
  %9958 = vmatprep.subr.mxu0 0.0
  %9959 = vmatpush1.msra.mxu0 0.0
  %9960 = vmatprep.subr.mxu0 0.0
  %9961 = vmatpush1.msra.mxu0 0.0
  %9962 = vmatprep.subr.mxu0 0.0
  %9963 = vmatpush1.msra.mxu0 0.0
  %9964 = vmatprep.subr.mxu0 0.0
  %9965 = vmatpush1.msra.mxu0 0.0
  %9966 = vmatprep.subr.mxu0 0.0
  %9967 = vmatpush1.msra.mxu0 0.0
  %9968 = vmatprep.subr.mxu0 0.0
  %9969 = vmatpush1.msra.mxu0 0.0
  %9970 = vmatprep.subr.mxu0 0.0
  %9971 = vmatpush1.msra.mxu0 0.0
  %9972 = vmatprep.subr.mxu0 0.0
  %9973 = vmatpush1.msra.mxu0 0.0
  %9974 = vmatprep.subr.mxu0 0.0
  %9975 = vmatpush1.msra.mxu0 %v7767
  %9976 = vmatprep.subr.mxu0 0.0
  %9977 = vmatpush1.msra.mxu0 %v7766
  %9978 = vmatprep.subr.mxu0 0.0
  %9979 = vmatpush1.msra.mxu0 %v7765
  %9980 = vmatprep.subr.mxu0 0.0
  %9981 = vmatpush1.msra.mxu0 %v7764
  %9982 = vmatprep.subr.mxu0 0.0
  %9983 = vmatpush1.msra.mxu0 %v7763
  %9984 = vmatprep.subr.mxu0 0.0
  %9985 = vmatpush2.msra.mxu0 0.0
  %9986 = vmatprep.subr.mxu0 0.0
  %9987 = vmatpush2.msra.mxu0 0.0
  %9988 = vmatprep.subr.mxu0 0.0
  %9989 = vmatpush2.msra.mxu0 0.0
  %9990 = vmatprep.subr.mxu0 0.0
  %9991 = vmatpush2.msra.mxu0 0.0
  %9992 = vmatprep.subr.mxu0 0.0
  %9993 = vmatpush2.msra.mxu0 0.0
  %9994 = vmatprep.subr.mxu0 0.0
  %9995 = vmatpush2.msra.mxu0 0.0
  %9996 = vmatprep.subr.mxu0 0.0
  %9997 = vmatpush2.msra.mxu0 0.0
  %9998 = vmatprep.subr.mxu0 0.0
  %9999 = vmatpush2.msra.mxu0 0.0
  %10000 = vmatprep.subr.mxu0 0.0
  %10001 = vmatpush2.msra.mxu0 0.0
  %10002 = vmatprep.subr.mxu0 0.0
  %10003 = vmatpush2.msra.mxu0 0.0
  %10004 = vmatprep.subr.mxu0 0.0
  %10005 = vmatpush2.msra.mxu0 0.0
  %10006 = vmatprep.subr.mxu0 0.0
  %10007 = vmatpush2.msra.mxu0 0.0
  %10008 = vmatprep.subr.mxu0 0.0
  %10009 = vmatpush2.msra.mxu0 0.0
  %10010 = vmatprep.subr.mxu0 0.0
  %10011 = vmatpush2.msra.mxu0 0.0
  %10012 = vmatprep.subr.mxu0 0.0
  %10013 = vmatpush2.msra.mxu0 0.0
  %10014 = vmatprep.subr.mxu0 0.0
  %10015 = vmatpush2.msra.mxu0 0.0
  %10016 = vmatprep.mubr.f32.mxu0 0.0
  %10017 = vmatmul.mubr.f32.gmra.mxu0 %v9950
  %v10018 = vpop.f32.mrf.mxu0
  %v10019 = vadd.f32 0.0, %v10018
  %v10020 = vpop.f32.mrf.mxu0
  %10021 = vdwg.mxu0
  %s10022 = scalar_lea.vmem %s16, 1664
  %v10023 = vld [vmem:[%s10022] sm:$0xff]
  %v10024 = vld [vmem:[%s10022 + $0x8] sm:$0xff]
  %v10025 = vld [vmem:[%s10022 + $0x10] sm:$0xff]
  %v10026 = vld [vmem:[%s10022 + $0x18] sm:$0xff]
  %v10027 = vld [vmem:[%s10022 + $0x20] sm:$0xff]
  %v10028 = vld [vmem:[%s10022 + $0x28] sm:$0xff]
  %v10029 = vld [vmem:[%s10022 + $0x30] sm:$0xff]
  %v10030 = vld [vmem:[%s10022 + $0x38] sm:$0xff]
  %v10031 = vld [vmem:[%s10022 + $0x40] sm:$0xff]
  %v10032 = vld [vmem:[%s10022 + $0x48] sm:$0xff]
  %v10033 = vld [vmem:[%s10022 + $0x50] sm:$0xff]
  %v10034 = vld [vmem:[%s10022 + $0x58] sm:$0xff]
  %v10035 = vld [vmem:[%s10022 + $0x60] sm:$0xff]
  %v10036 = vld [vmem:[%s10022 + $0x68] sm:$0xff]
  %v10037 = vld [vmem:[%s10022 + $0x70] sm:$0xff]
  %v10038 = vld [vmem:[%s10022 + $0x78] sm:$0xff]
  %v10040 = vsel %vm7682, %v10019, 0
  %10042 = vmatprep.subr.mxu0 0.0
  %10043 = vmatpush1.msra.mxu0 0.0
  %10044 = vmatprep.subr.mxu0 0.0
  %10045 = vmatpush1.msra.mxu0 0.0
  %10046 = vmatprep.subr.mxu0 0.0
  %10047 = vmatpush1.msra.mxu0 0.0
  %10048 = vmatprep.subr.mxu0 0.0
  %10049 = vmatpush1.msra.mxu0 0.0
  %10050 = vmatprep.subr.mxu0 0.0
  %10051 = vmatpush1.msra.mxu0 0.0
  %10052 = vmatprep.subr.mxu0 0.0
  %10053 = vmatpush1.msra.mxu0 0.0
  %10054 = vmatprep.subr.mxu0 0.0
  %10055 = vmatpush1.msra.mxu0 0.0
  %10056 = vmatprep.subr.mxu0 0.0
  %10057 = vmatpush1.msra.mxu0 0.0
  %10058 = vmatprep.subr.mxu0 %v10038
  %10059 = vmatpush1.msra.mxu0 %v10037
  %10060 = vmatprep.subr.mxu0 %v10036
  %10061 = vmatpush1.msra.mxu0 %v10035
  %10062 = vmatprep.subr.mxu0 %v10034
  %10063 = vmatpush1.msra.mxu0 %v10033
  %10064 = vmatprep.subr.mxu0 %v10032
  %10065 = vmatpush1.msra.mxu0 %v10031
  %10066 = vmatprep.subr.mxu0 %v10030
  %10067 = vmatpush1.msra.mxu0 %v10029
  %10068 = vmatprep.subr.mxu0 %v10028
  %10069 = vmatpush1.msra.mxu0 %v10027
  %10070 = vmatprep.subr.mxu0 %v10026
  %10071 = vmatpush1.msra.mxu0 %v10025
  %10072 = vmatprep.subr.mxu0 %v10024
  %10073 = vmatpush1.msra.mxu0 %v10023
  %10074 = vmatprep.subr.mxu0 0.0
  %10075 = vmatpush2.msra.mxu0 0.0
  %10076 = vmatprep.subr.mxu0 0.0
  %10077 = vmatpush2.msra.mxu0 0.0
  %10078 = vmatprep.subr.mxu0 0.0
  %10079 = vmatpush2.msra.mxu0 0.0
  %10080 = vmatprep.subr.mxu0 0.0
  %10081 = vmatpush2.msra.mxu0 0.0
  %10082 = vmatprep.subr.mxu0 0.0
  %10083 = vmatpush2.msra.mxu0 0.0
  %10084 = vmatprep.subr.mxu0 0.0
  %10085 = vmatpush2.msra.mxu0 0.0
  %10086 = vmatprep.subr.mxu0 0.0
  %10087 = vmatpush2.msra.mxu0 0.0
  %10088 = vmatprep.subr.mxu0 0.0
  %10089 = vmatpush2.msra.mxu0 0.0
  %10090 = vmatprep.subr.mxu0 0.0
  %10091 = vmatpush2.msra.mxu0 0.0
  %10092 = vmatprep.subr.mxu0 0.0
  %10093 = vmatpush2.msra.mxu0 0.0
  %10094 = vmatprep.subr.mxu0 0.0
  %10095 = vmatpush2.msra.mxu0 0.0
  %10096 = vmatprep.subr.mxu0 0.0
  %10097 = vmatpush2.msra.mxu0 0.0
  %10098 = vmatprep.subr.mxu0 0.0
  %10099 = vmatpush2.msra.mxu0 0.0
  %10100 = vmatprep.subr.mxu0 0.0
  %10101 = vmatpush2.msra.mxu0 0.0
  %10102 = vmatprep.subr.mxu0 0.0
  %10103 = vmatpush2.msra.mxu0 0.0
  %10104 = vmatprep.subr.mxu0 0.0
  %10105 = vmatpush2.msra.mxu0 0.0
  %10106 = vmatprep.mubr.f32.mxu0 0.0
  %10107 = vmatmul.mubr.f32.gmra.mxu0 %v10040
  %v10108 = vpop.f32.mrf.mxu0
  %v10109 = vadd.f32 0.0, %v10108
  %v10110 = vpop.f32.mrf.mxu0
  %v10111 = vadd.f32 0.0, %v10110
  %10112 = vdwg.mxu0
  %v10113 = vadd.f32 %v9945, %v10109
  %v10114 = vadd.f32 %v9946, %v10111
  %s10115 = scalar_lea.vmem %s15, 28
  %v10116 = vld [vmem:[%s10115] sm:$0x3]
  %v10118 = vsel %vm7769, %v10116, 0
  %10120 = vmatprep.subr.mxu0 0.0
  %10121 = vmatpush1.msra.mxu0 0.0
  %10122 = vmatprep.subr.mxu0 0.0
  %10123 = vmatpush1.msra.mxu0 0.0
  %10124 = vmatprep.subr.mxu0 0.0
  %10125 = vmatpush1.msra.mxu0 0.0
  %10126 = vmatprep.subr.mxu0 0.0
  %10127 = vmatpush1.msra.mxu0 0.0
  %10128 = vmatprep.subr.mxu0 0.0
  %10129 = vmatpush1.msra.mxu0 0.0
  %10130 = vmatprep.subr.mxu0 0.0
  %10131 = vmatpush1.msra.mxu0 0.0
  %10132 = vmatprep.subr.mxu0 0.0
  %10133 = vmatpush1.msra.mxu0 0.0
  %10134 = vmatprep.subr.mxu0 0.0
  %10135 = vmatpush1.msra.mxu0 0.0
  %10136 = vmatprep.subr.mxu0 0.0
  %10137 = vmatpush1.msra.mxu0 0.0
  %10138 = vmatprep.subr.mxu0 0.0
  %10139 = vmatpush1.msra.mxu0 0.0
  %10140 = vmatprep.subr.mxu0 0.0
  %10141 = vmatpush1.msra.mxu0 0.0
  %10142 = vmatprep.subr.mxu0 0.0
  %10143 = vmatpush1.msra.mxu0 %v7767
  %10144 = vmatprep.subr.mxu0 0.0
  %10145 = vmatpush1.msra.mxu0 %v7766
  %10146 = vmatprep.subr.mxu0 0.0
  %10147 = vmatpush1.msra.mxu0 %v7765
  %10148 = vmatprep.subr.mxu0 0.0
  %10149 = vmatpush1.msra.mxu0 %v7764
  %10150 = vmatprep.subr.mxu0 0.0
  %10151 = vmatpush1.msra.mxu0 %v7763
  %10152 = vmatprep.subr.mxu0 0.0
  %10153 = vmatpush2.msra.mxu0 0.0
  %10154 = vmatprep.subr.mxu0 0.0
  %10155 = vmatpush2.msra.mxu0 0.0
  %10156 = vmatprep.subr.mxu0 0.0
  %10157 = vmatpush2.msra.mxu0 0.0
  %10158 = vmatprep.subr.mxu0 0.0
  %10159 = vmatpush2.msra.mxu0 0.0
  %10160 = vmatprep.subr.mxu0 0.0
  %10161 = vmatpush2.msra.mxu0 0.0
  %10162 = vmatprep.subr.mxu0 0.0
  %10163 = vmatpush2.msra.mxu0 0.0
  %10164 = vmatprep.subr.mxu0 0.0
  %10165 = vmatpush2.msra.mxu0 0.0
  %10166 = vmatprep.subr.mxu0 0.0
  %10167 = vmatpush2.msra.mxu0 0.0
  %10168 = vmatprep.subr.mxu0 0.0
  %10169 = vmatpush2.msra.mxu0 0.0
  %10170 = vmatprep.subr.mxu0 0.0
  %10171 = vmatpush2.msra.mxu0 0.0
  %10172 = vmatprep.subr.mxu0 0.0
  %10173 = vmatpush2.msra.mxu0 0.0
  %10174 = vmatprep.subr.mxu0 0.0
  %10175 = vmatpush2.msra.mxu0 0.0
  %10176 = vmatprep.subr.mxu0 0.0
  %10177 = vmatpush2.msra.mxu0 0.0
  %10178 = vmatprep.subr.mxu0 0.0
  %10179 = vmatpush2.msra.mxu0 0.0
  %10180 = vmatprep.subr.mxu0 0.0
  %10181 = vmatpush2.msra.mxu0 0.0
  %10182 = vmatprep.subr.mxu0 0.0
  %10183 = vmatpush2.msra.mxu0 0.0
  %10184 = vmatprep.mubr.f32.mxu0 0.0
  %10185 = vmatmul.mubr.f32.gmra.mxu0 %v10118
  %v10186 = vpop.f32.mrf.mxu0
  %v10187 = vadd.f32 0.0, %v10186
  %v10188 = vpop.f32.mrf.mxu0
  %10189 = vdwg.mxu0
  %s10190 = scalar_lea.vmem %s16, 1792
  %v10191 = vld [vmem:[%s10190] sm:$0xff]
  %v10192 = vld [vmem:[%s10190 + $0x8] sm:$0xff]
  %v10193 = vld [vmem:[%s10190 + $0x10] sm:$0xff]
  %v10194 = vld [vmem:[%s10190 + $0x18] sm:$0xff]
  %v10195 = vld [vmem:[%s10190 + $0x20] sm:$0xff]
  %v10196 = vld [vmem:[%s10190 + $0x28] sm:$0xff]
  %v10197 = vld [vmem:[%s10190 + $0x30] sm:$0xff]
  %v10198 = vld [vmem:[%s10190 + $0x38] sm:$0xff]
  %v10199 = vld [vmem:[%s10190 + $0x40] sm:$0xff]
  %v10200 = vld [vmem:[%s10190 + $0x48] sm:$0xff]
  %v10201 = vld [vmem:[%s10190 + $0x50] sm:$0xff]
  %v10202 = vld [vmem:[%s10190 + $0x58] sm:$0xff]
  %v10203 = vld [vmem:[%s10190 + $0x60] sm:$0xff]
  %v10204 = vld [vmem:[%s10190 + $0x68] sm:$0xff]
  %v10205 = vld [vmem:[%s10190 + $0x70] sm:$0xff]
  %v10206 = vld [vmem:[%s10190 + $0x78] sm:$0xff]
  %v10208 = vsel %vm7682, %v10187, 0
  %10210 = vmatprep.subr.mxu0 0.0
  %10211 = vmatpush1.msra.mxu0 0.0
  %10212 = vmatprep.subr.mxu0 0.0
  %10213 = vmatpush1.msra.mxu0 0.0
  %10214 = vmatprep.subr.mxu0 0.0
  %10215 = vmatpush1.msra.mxu0 0.0
  %10216 = vmatprep.subr.mxu0 0.0
  %10217 = vmatpush1.msra.mxu0 0.0
  %10218 = vmatprep.subr.mxu0 0.0
  %10219 = vmatpush1.msra.mxu0 0.0
  %10220 = vmatprep.subr.mxu0 0.0
  %10221 = vmatpush1.msra.mxu0 0.0
  %10222 = vmatprep.subr.mxu0 0.0
  %10223 = vmatpush1.msra.mxu0 0.0
  %10224 = vmatprep.subr.mxu0 0.0
  %10225 = vmatpush1.msra.mxu0 0.0
  %10226 = vmatprep.subr.mxu0 %v10206
  %10227 = vmatpush1.msra.mxu0 %v10205
  %10228 = vmatprep.subr.mxu0 %v10204
  %10229 = vmatpush1.msra.mxu0 %v10203
  %10230 = vmatprep.subr.mxu0 %v10202
  %10231 = vmatpush1.msra.mxu0 %v10201
  %10232 = vmatprep.subr.mxu0 %v10200
  %10233 = vmatpush1.msra.mxu0 %v10199
  %10234 = vmatprep.subr.mxu0 %v10198
  %10235 = vmatpush1.msra.mxu0 %v10197
  %10236 = vmatprep.subr.mxu0 %v10196
  %10237 = vmatpush1.msra.mxu0 %v10195
  %10238 = vmatprep.subr.mxu0 %v10194
  %10239 = vmatpush1.msra.mxu0 %v10193
  %10240 = vmatprep.subr.mxu0 %v10192
  %10241 = vmatpush1.msra.mxu0 %v10191
  %10242 = vmatprep.subr.mxu0 0.0
  %10243 = vmatpush2.msra.mxu0 0.0
  %10244 = vmatprep.subr.mxu0 0.0
  %10245 = vmatpush2.msra.mxu0 0.0
  %10246 = vmatprep.subr.mxu0 0.0
  %10247 = vmatpush2.msra.mxu0 0.0
  %10248 = vmatprep.subr.mxu0 0.0
  %10249 = vmatpush2.msra.mxu0 0.0
  %10250 = vmatprep.subr.mxu0 0.0
  %10251 = vmatpush2.msra.mxu0 0.0
  %10252 = vmatprep.subr.mxu0 0.0
  %10253 = vmatpush2.msra.mxu0 0.0
  %10254 = vmatprep.subr.mxu0 0.0
  %10255 = vmatpush2.msra.mxu0 0.0
  %10256 = vmatprep.subr.mxu0 0.0
  %10257 = vmatpush2.msra.mxu0 0.0
  %10258 = vmatprep.subr.mxu0 0.0
  %10259 = vmatpush2.msra.mxu0 0.0
  %10260 = vmatprep.subr.mxu0 0.0
  %10261 = vmatpush2.msra.mxu0 0.0
  %10262 = vmatprep.subr.mxu0 0.0
  %10263 = vmatpush2.msra.mxu0 0.0
  %10264 = vmatprep.subr.mxu0 0.0
  %10265 = vmatpush2.msra.mxu0 0.0
  %10266 = vmatprep.subr.mxu0 0.0
  %10267 = vmatpush2.msra.mxu0 0.0
  %10268 = vmatprep.subr.mxu0 0.0
  %10269 = vmatpush2.msra.mxu0 0.0
  %10270 = vmatprep.subr.mxu0 0.0
  %10271 = vmatpush2.msra.mxu0 0.0
  %10272 = vmatprep.subr.mxu0 0.0
  %10273 = vmatpush2.msra.mxu0 0.0
  %10274 = vmatprep.mubr.f32.mxu0 0.0
  %10275 = vmatmul.mubr.f32.gmra.mxu0 %v10208
  %v10276 = vpop.f32.mrf.mxu0
  %v10277 = vadd.f32 0.0, %v10276
  %v10278 = vpop.f32.mrf.mxu0
  %v10279 = vadd.f32 0.0, %v10278
  %10280 = vdwg.mxu0
  %v10281 = vadd.f32 %v10113, %v10277
  %v10282 = vadd.f32 %v10114, %v10279
  %s10283 = scalar_lea.vmem %s15, 30
  %v10284 = vld [vmem:[%s10283] sm:$0x3]
  %v10286 = vsel %vm7769, %v10284, 0
  %10288 = vmatprep.subr.mxu0 0.0
  %10289 = vmatpush1.msra.mxu0 0.0
  %10290 = vmatprep.subr.mxu0 0.0
  %10291 = vmatpush1.msra.mxu0 0.0
  %10292 = vmatprep.subr.mxu0 0.0
  %10293 = vmatpush1.msra.mxu0 0.0
  %10294 = vmatprep.subr.mxu0 0.0
  %10295 = vmatpush1.msra.mxu0 0.0
  %10296 = vmatprep.subr.mxu0 0.0
  %10297 = vmatpush1.msra.mxu0 0.0
  %10298 = vmatprep.subr.mxu0 0.0
  %10299 = vmatpush1.msra.mxu0 0.0
  %10300 = vmatprep.subr.mxu0 0.0
  %10301 = vmatpush1.msra.mxu0 0.0
  %10302 = vmatprep.subr.mxu0 0.0
  %10303 = vmatpush1.msra.mxu0 0.0
  %10304 = vmatprep.subr.mxu0 0.0
  %10305 = vmatpush1.msra.mxu0 0.0
  %10306 = vmatprep.subr.mxu0 0.0
  %10307 = vmatpush1.msra.mxu0 0.0
  %10308 = vmatprep.subr.mxu0 0.0
  %10309 = vmatpush1.msra.mxu0 0.0
  %10310 = vmatprep.subr.mxu0 0.0
  %10311 = vmatpush1.msra.mxu0 %v7767
  %10312 = vmatprep.subr.mxu0 0.0
  %10313 = vmatpush1.msra.mxu0 %v7766
  %10314 = vmatprep.subr.mxu0 0.0
  %10315 = vmatpush1.msra.mxu0 %v7765
  %10316 = vmatprep.subr.mxu0 0.0
  %10317 = vmatpush1.msra.mxu0 %v7764
  %10318 = vmatprep.subr.mxu0 0.0
  %10319 = vmatpush1.msra.mxu0 %v7763
  %10320 = vmatprep.subr.mxu0 0.0
  %10321 = vmatpush2.msra.mxu0 0.0
  %10322 = vmatprep.subr.mxu0 0.0
  %10323 = vmatpush2.msra.mxu0 0.0
  %10324 = vmatprep.subr.mxu0 0.0
  %10325 = vmatpush2.msra.mxu0 0.0
  %10326 = vmatprep.subr.mxu0 0.0
  %10327 = vmatpush2.msra.mxu0 0.0
  %10328 = vmatprep.subr.mxu0 0.0
  %10329 = vmatpush2.msra.mxu0 0.0
  %10330 = vmatprep.subr.mxu0 0.0
  %10331 = vmatpush2.msra.mxu0 0.0
  %10332 = vmatprep.subr.mxu0 0.0
  %10333 = vmatpush2.msra.mxu0 0.0
  %10334 = vmatprep.subr.mxu0 0.0
  %10335 = vmatpush2.msra.mxu0 0.0
  %10336 = vmatprep.subr.mxu0 0.0
  %10337 = vmatpush2.msra.mxu0 0.0
  %10338 = vmatprep.subr.mxu0 0.0
  %10339 = vmatpush2.msra.mxu0 0.0
  %10340 = vmatprep.subr.mxu0 0.0
  %10341 = vmatpush2.msra.mxu0 0.0
  %10342 = vmatprep.subr.mxu0 0.0
  %10343 = vmatpush2.msra.mxu0 0.0
  %10344 = vmatprep.subr.mxu0 0.0
  %10345 = vmatpush2.msra.mxu0 0.0
  %10346 = vmatprep.subr.mxu0 0.0
  %10347 = vmatpush2.msra.mxu0 0.0
  %10348 = vmatprep.subr.mxu0 0.0
  %10349 = vmatpush2.msra.mxu0 0.0
  %10350 = vmatprep.subr.mxu0 0.0
  %10351 = vmatpush2.msra.mxu0 0.0
  %10352 = vmatprep.mubr.f32.mxu0 0.0
  %10353 = vmatmul.mubr.f32.gmra.mxu0 %v10286
  %v10354 = vpop.f32.mrf.mxu0
  %v10355 = vadd.f32 0.0, %v10354
  %v10356 = vpop.f32.mrf.mxu0
  %10357 = vdwg.mxu0
  %s10358 = scalar_lea.vmem %s16, 1920
  %v10359 = vld [vmem:[%s10358] sm:$0xff]
  %v10360 = vld [vmem:[%s10358 + $0x8] sm:$0xff]
  %v10361 = vld [vmem:[%s10358 + $0x10] sm:$0xff]
  %v10362 = vld [vmem:[%s10358 + $0x18] sm:$0xff]
  %v10363 = vld [vmem:[%s10358 + $0x20] sm:$0xff]
  %v10364 = vld [vmem:[%s10358 + $0x28] sm:$0xff]
  %v10365 = vld [vmem:[%s10358 + $0x30] sm:$0xff]
  %v10366 = vld [vmem:[%s10358 + $0x38] sm:$0xff]
  %v10367 = vld [vmem:[%s10358 + $0x40] sm:$0xff]
  %v10368 = vld [vmem:[%s10358 + $0x48] sm:$0xff]
  %v10369 = vld [vmem:[%s10358 + $0x50] sm:$0xff]
  %v10370 = vld [vmem:[%s10358 + $0x58] sm:$0xff]
  %v10371 = vld [vmem:[%s10358 + $0x60] sm:$0xff]
  %v10372 = vld [vmem:[%s10358 + $0x68] sm:$0xff]
  %v10373 = vld [vmem:[%s10358 + $0x70] sm:$0xff]
  %v10374 = vld [vmem:[%s10358 + $0x78] sm:$0xff]
  %v10376 = vsel %vm7682, %v10355, 0
  %10378 = vmatprep.subr.mxu0 0.0
  %10379 = vmatpush1.msra.mxu0 0.0
  %10380 = vmatprep.subr.mxu0 0.0
  %10381 = vmatpush1.msra.mxu0 0.0
  %10382 = vmatprep.subr.mxu0 0.0
  %10383 = vmatpush1.msra.mxu0 0.0
  %10384 = vmatprep.subr.mxu0 0.0
  %10385 = vmatpush1.msra.mxu0 0.0
  %10386 = vmatprep.subr.mxu0 0.0
  %10387 = vmatpush1.msra.mxu0 0.0
  %10388 = vmatprep.subr.mxu0 0.0
  %10389 = vmatpush1.msra.mxu0 0.0
  %10390 = vmatprep.subr.mxu0 0.0
  %10391 = vmatpush1.msra.mxu0 0.0
  %10392 = vmatprep.subr.mxu0 0.0
  %10393 = vmatpush1.msra.mxu0 0.0
  %10394 = vmatprep.subr.mxu0 %v10374
  %10395 = vmatpush1.msra.mxu0 %v10373
  %10396 = vmatprep.subr.mxu0 %v10372
  %10397 = vmatpush1.msra.mxu0 %v10371
  %10398 = vmatprep.subr.mxu0 %v10370
  %10399 = vmatpush1.msra.mxu0 %v10369
  %10400 = vmatprep.subr.mxu0 %v10368
  %10401 = vmatpush1.msra.mxu0 %v10367
  %10402 = vmatprep.subr.mxu0 %v10366
  %10403 = vmatpush1.msra.mxu0 %v10365
  %10404 = vmatprep.subr.mxu0 %v10364
  %10405 = vmatpush1.msra.mxu0 %v10363
  %10406 = vmatprep.subr.mxu0 %v10362
  %10407 = vmatpush1.msra.mxu0 %v10361
  %10408 = vmatprep.subr.mxu0 %v10360
  %10409 = vmatpush1.msra.mxu0 %v10359
  %10410 = vmatprep.subr.mxu0 0.0
  %10411 = vmatpush2.msra.mxu0 0.0
  %10412 = vmatprep.subr.mxu0 0.0
  %10413 = vmatpush2.msra.mxu0 0.0
  %10414 = vmatprep.subr.mxu0 0.0
  %10415 = vmatpush2.msra.mxu0 0.0
  %10416 = vmatprep.subr.mxu0 0.0
  %10417 = vmatpush2.msra.mxu0 0.0
  %10418 = vmatprep.subr.mxu0 0.0
  %10419 = vmatpush2.msra.mxu0 0.0
  %10420 = vmatprep.subr.mxu0 0.0
  %10421 = vmatpush2.msra.mxu0 0.0
  %10422 = vmatprep.subr.mxu0 0.0
  %10423 = vmatpush2.msra.mxu0 0.0
  %10424 = vmatprep.subr.mxu0 0.0
  %10425 = vmatpush2.msra.mxu0 0.0
  %10426 = vmatprep.subr.mxu0 0.0
  %10427 = vmatpush2.msra.mxu0 0.0
  %10428 = vmatprep.subr.mxu0 0.0
  %10429 = vmatpush2.msra.mxu0 0.0
  %10430 = vmatprep.subr.mxu0 0.0
  %10431 = vmatpush2.msra.mxu0 0.0
  %10432 = vmatprep.subr.mxu0 0.0
  %10433 = vmatpush2.msra.mxu0 0.0
  %10434 = vmatprep.subr.mxu0 0.0
  %10435 = vmatpush2.msra.mxu0 0.0
  %10436 = vmatprep.subr.mxu0 0.0
  %10437 = vmatpush2.msra.mxu0 0.0
  %10438 = vmatprep.subr.mxu0 0.0
  %10439 = vmatpush2.msra.mxu0 0.0
  %10440 = vmatprep.subr.mxu0 0.0
  %10441 = vmatpush2.msra.mxu0 0.0
  %10442 = vmatprep.mubr.f32.mxu0 0.0
  %10443 = vmatmul.mubr.f32.gmra.mxu0 %v10376
  %v10444 = vpop.f32.mrf.mxu0
  %v10445 = vadd.f32 0.0, %v10444
  %v10446 = vpop.f32.mrf.mxu0
  %v10447 = vadd.f32 0.0, %v10446
  %10448 = vdwg.mxu0
  %v10449 = vadd.f32 %v10281, %v10445
  %v10450 = vadd.f32 %v10282, %v10447
  %s10451 = scalar_lea.vmem %s15, 32
  %v10452 = vld [vmem:[%s10451] sm:$0x3]
  %v10454 = vsel %vm7769, %v10452, 0
  %10456 = vmatprep.subr.mxu0 0.0
  %10457 = vmatpush1.msra.mxu0 0.0
  %10458 = vmatprep.subr.mxu0 0.0
  %10459 = vmatpush1.msra.mxu0 0.0
  %10460 = vmatprep.subr.mxu0 0.0
  %10461 = vmatpush1.msra.mxu0 0.0
  %10462 = vmatprep.subr.mxu0 0.0
  %10463 = vmatpush1.msra.mxu0 0.0
  %10464 = vmatprep.subr.mxu0 0.0
  %10465 = vmatpush1.msra.mxu0 0.0
  %10466 = vmatprep.subr.mxu0 0.0
  %10467 = vmatpush1.msra.mxu0 0.0
  %10468 = vmatprep.subr.mxu0 0.0
  %10469 = vmatpush1.msra.mxu0 0.0
  %10470 = vmatprep.subr.mxu0 0.0
  %10471 = vmatpush1.msra.mxu0 0.0
  %10472 = vmatprep.subr.mxu0 0.0
  %10473 = vmatpush1.msra.mxu0 0.0
  %10474 = vmatprep.subr.mxu0 0.0
  %10475 = vmatpush1.msra.mxu0 0.0
  %10476 = vmatprep.subr.mxu0 0.0
  %10477 = vmatpush1.msra.mxu0 0.0
  %10478 = vmatprep.subr.mxu0 0.0
  %10479 = vmatpush1.msra.mxu0 %v7767
  %10480 = vmatprep.subr.mxu0 0.0
  %10481 = vmatpush1.msra.mxu0 %v7766
  %10482 = vmatprep.subr.mxu0 0.0
  %10483 = vmatpush1.msra.mxu0 %v7765
  %10484 = vmatprep.subr.mxu0 0.0
  %10485 = vmatpush1.msra.mxu0 %v7764
  %10486 = vmatprep.subr.mxu0 0.0
  %10487 = vmatpush1.msra.mxu0 %v7763
  %10488 = vmatprep.subr.mxu0 0.0
  %10489 = vmatpush2.msra.mxu0 0.0
  %10490 = vmatprep.subr.mxu0 0.0
  %10491 = vmatpush2.msra.mxu0 0.0
  %10492 = vmatprep.subr.mxu0 0.0
  %10493 = vmatpush2.msra.mxu0 0.0
  %10494 = vmatprep.subr.mxu0 0.0
  %10495 = vmatpush2.msra.mxu0 0.0
  %10496 = vmatprep.subr.mxu0 0.0
  %10497 = vmatpush2.msra.mxu0 0.0
  %10498 = vmatprep.subr.mxu0 0.0
  %10499 = vmatpush2.msra.mxu0 0.0
  %10500 = vmatprep.subr.mxu0 0.0
  %10501 = vmatpush2.msra.mxu0 0.0
  %10502 = vmatprep.subr.mxu0 0.0
  %10503 = vmatpush2.msra.mxu0 0.0
  %10504 = vmatprep.subr.mxu0 0.0
  %10505 = vmatpush2.msra.mxu0 0.0
  %10506 = vmatprep.subr.mxu0 0.0
  %10507 = vmatpush2.msra.mxu0 0.0
  %10508 = vmatprep.subr.mxu0 0.0
  %10509 = vmatpush2.msra.mxu0 0.0
  %10510 = vmatprep.subr.mxu0 0.0
  %10511 = vmatpush2.msra.mxu0 0.0
  %10512 = vmatprep.subr.mxu0 0.0
  %10513 = vmatpush2.msra.mxu0 0.0
  %10514 = vmatprep.subr.mxu0 0.0
  %10515 = vmatpush2.msra.mxu0 0.0
  %10516 = vmatprep.subr.mxu0 0.0
  %10517 = vmatpush2.msra.mxu0 0.0
  %10518 = vmatprep.subr.mxu0 0.0
  %10519 = vmatpush2.msra.mxu0 0.0
  %10520 = vmatprep.mubr.f32.mxu0 0.0
  %10521 = vmatmul.mubr.f32.gmra.mxu0 %v10454
  %v10522 = vpop.f32.mrf.mxu0
  %v10523 = vadd.f32 0.0, %v10522
  %v10524 = vpop.f32.mrf.mxu0
  %10525 = vdwg.mxu0
  %s10526 = scalar_lea.vmem %s16, 2048
  %v10527 = vld [vmem:[%s10526] sm:$0xff]
  %v10528 = vld [vmem:[%s10526 + $0x8] sm:$0xff]
  %v10529 = vld [vmem:[%s10526 + $0x10] sm:$0xff]
  %v10530 = vld [vmem:[%s10526 + $0x18] sm:$0xff]
  %v10531 = vld [vmem:[%s10526 + $0x20] sm:$0xff]
  %v10532 = vld [vmem:[%s10526 + $0x28] sm:$0xff]
  %v10533 = vld [vmem:[%s10526 + $0x30] sm:$0xff]
  %v10534 = vld [vmem:[%s10526 + $0x38] sm:$0xff]
  %v10535 = vld [vmem:[%s10526 + $0x40] sm:$0xff]
  %v10536 = vld [vmem:[%s10526 + $0x48] sm:$0xff]
  %v10537 = vld [vmem:[%s10526 + $0x50] sm:$0xff]
  %v10538 = vld [vmem:[%s10526 + $0x58] sm:$0xff]
  %v10539 = vld [vmem:[%s10526 + $0x60] sm:$0xff]
  %v10540 = vld [vmem:[%s10526 + $0x68] sm:$0xff]
  %v10541 = vld [vmem:[%s10526 + $0x70] sm:$0xff]
  %v10542 = vld [vmem:[%s10526 + $0x78] sm:$0xff]
  %v10544 = vsel %vm7682, %v10523, 0
  %10546 = vmatprep.subr.mxu0 0.0
  %10547 = vmatpush1.msra.mxu0 0.0
  %10548 = vmatprep.subr.mxu0 0.0
  %10549 = vmatpush1.msra.mxu0 0.0
  %10550 = vmatprep.subr.mxu0 0.0
  %10551 = vmatpush1.msra.mxu0 0.0
  %10552 = vmatprep.subr.mxu0 0.0
  %10553 = vmatpush1.msra.mxu0 0.0
  %10554 = vmatprep.subr.mxu0 0.0
  %10555 = vmatpush1.msra.mxu0 0.0
  %10556 = vmatprep.subr.mxu0 0.0
  %10557 = vmatpush1.msra.mxu0 0.0
  %10558 = vmatprep.subr.mxu0 0.0
  %10559 = vmatpush1.msra.mxu0 0.0
  %10560 = vmatprep.subr.mxu0 0.0
  %10561 = vmatpush1.msra.mxu0 0.0
  %10562 = vmatprep.subr.mxu0 %v10542
  %10563 = vmatpush1.msra.mxu0 %v10541
  %10564 = vmatprep.subr.mxu0 %v10540
  %10565 = vmatpush1.msra.mxu0 %v10539
  %10566 = vmatprep.subr.mxu0 %v10538
  %10567 = vmatpush1.msra.mxu0 %v10537
  %10568 = vmatprep.subr.mxu0 %v10536
  %10569 = vmatpush1.msra.mxu0 %v10535
  %10570 = vmatprep.subr.mxu0 %v10534
  %10571 = vmatpush1.msra.mxu0 %v10533
  %10572 = vmatprep.subr.mxu0 %v10532
  %10573 = vmatpush1.msra.mxu0 %v10531
  %10574 = vmatprep.subr.mxu0 %v10530
  %10575 = vmatpush1.msra.mxu0 %v10529
  %10576 = vmatprep.subr.mxu0 %v10528
  %10577 = vmatpush1.msra.mxu0 %v10527
  %10578 = vmatprep.subr.mxu0 0.0
  %10579 = vmatpush2.msra.mxu0 0.0
  %10580 = vmatprep.subr.mxu0 0.0
  %10581 = vmatpush2.msra.mxu0 0.0
  %10582 = vmatprep.subr.mxu0 0.0
  %10583 = vmatpush2.msra.mxu0 0.0
  %10584 = vmatprep.subr.mxu0 0.0
  %10585 = vmatpush2.msra.mxu0 0.0
  %10586 = vmatprep.subr.mxu0 0.0
  %10587 = vmatpush2.msra.mxu0 0.0
  %10588 = vmatprep.subr.mxu0 0.0
  %10589 = vmatpush2.msra.mxu0 0.0
  %10590 = vmatprep.subr.mxu0 0.0
  %10591 = vmatpush2.msra.mxu0 0.0
  %10592 = vmatprep.subr.mxu0 0.0
  %10593 = vmatpush2.msra.mxu0 0.0
  %10594 = vmatprep.subr.mxu0 0.0
  %10595 = vmatpush2.msra.mxu0 0.0
  %10596 = vmatprep.subr.mxu0 0.0
  %10597 = vmatpush2.msra.mxu0 0.0
  %10598 = vmatprep.subr.mxu0 0.0
  %10599 = vmatpush2.msra.mxu0 0.0
  %10600 = vmatprep.subr.mxu0 0.0
  %10601 = vmatpush2.msra.mxu0 0.0
  %10602 = vmatprep.subr.mxu0 0.0
  %10603 = vmatpush2.msra.mxu0 0.0
  %10604 = vmatprep.subr.mxu0 0.0
  %10605 = vmatpush2.msra.mxu0 0.0
  %10606 = vmatprep.subr.mxu0 0.0
  %10607 = vmatpush2.msra.mxu0 0.0
  %10608 = vmatprep.subr.mxu0 0.0
  %10609 = vmatpush2.msra.mxu0 0.0
  %10610 = vmatprep.mubr.f32.mxu0 0.0
  %10611 = vmatmul.mubr.f32.gmra.mxu0 %v10544
  %v10612 = vpop.f32.mrf.mxu0
  %v10613 = vadd.f32 0.0, %v10612
  %v10614 = vpop.f32.mrf.mxu0
  %v10615 = vadd.f32 0.0, %v10614
  %10616 = vdwg.mxu0
  %v10617 = vadd.f32 %v10449, %v10613
  %v10618 = vadd.f32 %v10450, %v10615
  %s10619 = scalar_lea.vmem %s15, 34
  %v10620 = vld [vmem:[%s10619] sm:$0x3]
  %v10622 = vsel %vm7769, %v10620, 0
  %10624 = vmatprep.subr.mxu0 0.0
  %10625 = vmatpush1.msra.mxu0 0.0
  %10626 = vmatprep.subr.mxu0 0.0
  %10627 = vmatpush1.msra.mxu0 0.0
  %10628 = vmatprep.subr.mxu0 0.0
  %10629 = vmatpush1.msra.mxu0 0.0
  %10630 = vmatprep.subr.mxu0 0.0
  %10631 = vmatpush1.msra.mxu0 0.0
  %10632 = vmatprep.subr.mxu0 0.0
  %10633 = vmatpush1.msra.mxu0 0.0
  %10634 = vmatprep.subr.mxu0 0.0
  %10635 = vmatpush1.msra.mxu0 0.0
  %10636 = vmatprep.subr.mxu0 0.0
  %10637 = vmatpush1.msra.mxu0 0.0
  %10638 = vmatprep.subr.mxu0 0.0
  %10639 = vmatpush1.msra.mxu0 0.0
  %10640 = vmatprep.subr.mxu0 0.0
  %10641 = vmatpush1.msra.mxu0 0.0
  %10642 = vmatprep.subr.mxu0 0.0
  %10643 = vmatpush1.msra.mxu0 0.0
  %10644 = vmatprep.subr.mxu0 0.0
  %10645 = vmatpush1.msra.mxu0 0.0
  %10646 = vmatprep.subr.mxu0 0.0
  %10647 = vmatpush1.msra.mxu0 %v7767
  %10648 = vmatprep.subr.mxu0 0.0
  %10649 = vmatpush1.msra.mxu0 %v7766
  %10650 = vmatprep.subr.mxu0 0.0
  %10651 = vmatpush1.msra.mxu0 %v7765
  %10652 = vmatprep.subr.mxu0 0.0
  %10653 = vmatpush1.msra.mxu0 %v7764
  %10654 = vmatprep.subr.mxu0 0.0
  %10655 = vmatpush1.msra.mxu0 %v7763
  %10656 = vmatprep.subr.mxu0 0.0
  %10657 = vmatpush2.msra.mxu0 0.0
  %10658 = vmatprep.subr.mxu0 0.0
  %10659 = vmatpush2.msra.mxu0 0.0
  %10660 = vmatprep.subr.mxu0 0.0
  %10661 = vmatpush2.msra.mxu0 0.0
  %10662 = vmatprep.subr.mxu0 0.0
  %10663 = vmatpush2.msra.mxu0 0.0
  %10664 = vmatprep.subr.mxu0 0.0
  %10665 = vmatpush2.msra.mxu0 0.0
  %10666 = vmatprep.subr.mxu0 0.0
  %10667 = vmatpush2.msra.mxu0 0.0
  %10668 = vmatprep.subr.mxu0 0.0
  %10669 = vmatpush2.msra.mxu0 0.0
  %10670 = vmatprep.subr.mxu0 0.0
  %10671 = vmatpush2.msra.mxu0 0.0
  %10672 = vmatprep.subr.mxu0 0.0
  %10673 = vmatpush2.msra.mxu0 0.0
  %10674 = vmatprep.subr.mxu0 0.0
  %10675 = vmatpush2.msra.mxu0 0.0
  %10676 = vmatprep.subr.mxu0 0.0
  %10677 = vmatpush2.msra.mxu0 0.0
  %10678 = vmatprep.subr.mxu0 0.0
  %10679 = vmatpush2.msra.mxu0 0.0
  %10680 = vmatprep.subr.mxu0 0.0
  %10681 = vmatpush2.msra.mxu0 0.0
  %10682 = vmatprep.subr.mxu0 0.0
  %10683 = vmatpush2.msra.mxu0 0.0
  %10684 = vmatprep.subr.mxu0 0.0
  %10685 = vmatpush2.msra.mxu0 0.0
  %10686 = vmatprep.subr.mxu0 0.0
  %10687 = vmatpush2.msra.mxu0 0.0
  %10688 = vmatprep.mubr.f32.mxu0 0.0
  %10689 = vmatmul.mubr.f32.gmra.mxu0 %v10622
  %v10690 = vpop.f32.mrf.mxu0
  %v10691 = vadd.f32 0.0, %v10690
  %v10692 = vpop.f32.mrf.mxu0
  %10693 = vdwg.mxu0
  %s10694 = scalar_lea.vmem %s16, 2176
  %v10695 = vld [vmem:[%s10694] sm:$0xff]
  %v10696 = vld [vmem:[%s10694 + $0x8] sm:$0xff]
  %v10697 = vld [vmem:[%s10694 + $0x10] sm:$0xff]
  %v10698 = vld [vmem:[%s10694 + $0x18] sm:$0xff]
  %v10699 = vld [vmem:[%s10694 + $0x20] sm:$0xff]
  %v10700 = vld [vmem:[%s10694 + $0x28] sm:$0xff]
  %v10701 = vld [vmem:[%s10694 + $0x30] sm:$0xff]
  %v10702 = vld [vmem:[%s10694 + $0x38] sm:$0xff]
  %v10703 = vld [vmem:[%s10694 + $0x40] sm:$0xff]
  %v10704 = vld [vmem:[%s10694 + $0x48] sm:$0xff]
  %v10705 = vld [vmem:[%s10694 + $0x50] sm:$0xff]
  %v10706 = vld [vmem:[%s10694 + $0x58] sm:$0xff]
  %v10707 = vld [vmem:[%s10694 + $0x60] sm:$0xff]
  %v10708 = vld [vmem:[%s10694 + $0x68] sm:$0xff]
  %v10709 = vld [vmem:[%s10694 + $0x70] sm:$0xff]
  %v10710 = vld [vmem:[%s10694 + $0x78] sm:$0xff]
  %v10712 = vsel %vm7682, %v10691, 0
  %10714 = vmatprep.subr.mxu0 0.0
  %10715 = vmatpush1.msra.mxu0 0.0
  %10716 = vmatprep.subr.mxu0 0.0
  %10717 = vmatpush1.msra.mxu0 0.0
  %10718 = vmatprep.subr.mxu0 0.0
  %10719 = vmatpush1.msra.mxu0 0.0
  %10720 = vmatprep.subr.mxu0 0.0
  %10721 = vmatpush1.msra.mxu0 0.0
  %10722 = vmatprep.subr.mxu0 0.0
  %10723 = vmatpush1.msra.mxu0 0.0
  %10724 = vmatprep.subr.mxu0 0.0
  %10725 = vmatpush1.msra.mxu0 0.0
  %10726 = vmatprep.subr.mxu0 0.0
  %10727 = vmatpush1.msra.mxu0 0.0
  %10728 = vmatprep.subr.mxu0 0.0
  %10729 = vmatpush1.msra.mxu0 0.0
  %10730 = vmatprep.subr.mxu0 %v10710
  %10731 = vmatpush1.msra.mxu0 %v10709
  %10732 = vmatprep.subr.mxu0 %v10708
  %10733 = vmatpush1.msra.mxu0 %v10707
  %10734 = vmatprep.subr.mxu0 %v10706
  %10735 = vmatpush1.msra.mxu0 %v10705
  %10736 = vmatprep.subr.mxu0 %v10704
  %10737 = vmatpush1.msra.mxu0 %v10703
  %10738 = vmatprep.subr.mxu0 %v10702
  %10739 = vmatpush1.msra.mxu0 %v10701
  %10740 = vmatprep.subr.mxu0 %v10700
  %10741 = vmatpush1.msra.mxu0 %v10699
  %10742 = vmatprep.subr.mxu0 %v10698
  %10743 = vmatpush1.msra.mxu0 %v10697
  %10744 = vmatprep.subr.mxu0 %v10696
  %10745 = vmatpush1.msra.mxu0 %v10695
  %10746 = vmatprep.subr.mxu0 0.0
  %10747 = vmatpush2.msra.mxu0 0.0
  %10748 = vmatprep.subr.mxu0 0.0
  %10749 = vmatpush2.msra.mxu0 0.0
  %10750 = vmatprep.subr.mxu0 0.0
  %10751 = vmatpush2.msra.mxu0 0.0
  %10752 = vmatprep.subr.mxu0 0.0
  %10753 = vmatpush2.msra.mxu0 0.0
  %10754 = vmatprep.subr.mxu0 0.0
  %10755 = vmatpush2.msra.mxu0 0.0
  %10756 = vmatprep.subr.mxu0 0.0
  %10757 = vmatpush2.msra.mxu0 0.0
  %10758 = vmatprep.subr.mxu0 0.0
  %10759 = vmatpush2.msra.mxu0 0.0
  %10760 = vmatprep.subr.mxu0 0.0
  %10761 = vmatpush2.msra.mxu0 0.0
  %10762 = vmatprep.subr.mxu0 0.0
  %10763 = vmatpush2.msra.mxu0 0.0
  %10764 = vmatprep.subr.mxu0 0.0
  %10765 = vmatpush2.msra.mxu0 0.0
  %10766 = vmatprep.subr.mxu0 0.0
  %10767 = vmatpush2.msra.mxu0 0.0
  %10768 = vmatprep.subr.mxu0 0.0
  %10769 = vmatpush2.msra.mxu0 0.0
  %10770 = vmatprep.subr.mxu0 0.0
  %10771 = vmatpush2.msra.mxu0 0.0
  %10772 = vmatprep.subr.mxu0 0.0
  %10773 = vmatpush2.msra.mxu0 0.0
  %10774 = vmatprep.subr.mxu0 0.0
  %10775 = vmatpush2.msra.mxu0 0.0
  %10776 = vmatprep.subr.mxu0 0.0
  %10777 = vmatpush2.msra.mxu0 0.0
  %10778 = vmatprep.mubr.f32.mxu0 0.0
  %10779 = vmatmul.mubr.f32.gmra.mxu0 %v10712
  %v10780 = vpop.f32.mrf.mxu0
  %v10781 = vadd.f32 0.0, %v10780
  %v10782 = vpop.f32.mrf.mxu0
  %v10783 = vadd.f32 0.0, %v10782
  %10784 = vdwg.mxu0
  %v10785 = vadd.f32 %v10617, %v10781
  %v10786 = vadd.f32 %v10618, %v10783
  %s10787 = scalar_lea.vmem %s15, 36
  %v10788 = vld [vmem:[%s10787] sm:$0x3]
  %v10790 = vsel %vm7769, %v10788, 0
  %10792 = vmatprep.subr.mxu0 0.0
  %10793 = vmatpush1.msra.mxu0 0.0
  %10794 = vmatprep.subr.mxu0 0.0
  %10795 = vmatpush1.msra.mxu0 0.0
  %10796 = vmatprep.subr.mxu0 0.0
  %10797 = vmatpush1.msra.mxu0 0.0
  %10798 = vmatprep.subr.mxu0 0.0
  %10799 = vmatpush1.msra.mxu0 0.0
  %10800 = vmatprep.subr.mxu0 0.0
  %10801 = vmatpush1.msra.mxu0 0.0
  %10802 = vmatprep.subr.mxu0 0.0
  %10803 = vmatpush1.msra.mxu0 0.0
  %10804 = vmatprep.subr.mxu0 0.0
  %10805 = vmatpush1.msra.mxu0 0.0
  %10806 = vmatprep.subr.mxu0 0.0
  %10807 = vmatpush1.msra.mxu0 0.0
  %10808 = vmatprep.subr.mxu0 0.0
  %10809 = vmatpush1.msra.mxu0 0.0
  %10810 = vmatprep.subr.mxu0 0.0
  %10811 = vmatpush1.msra.mxu0 0.0
  %10812 = vmatprep.subr.mxu0 0.0
  %10813 = vmatpush1.msra.mxu0 0.0
  %10814 = vmatprep.subr.mxu0 0.0
  %10815 = vmatpush1.msra.mxu0 %v7767
  %10816 = vmatprep.subr.mxu0 0.0
  %10817 = vmatpush1.msra.mxu0 %v7766
  %10818 = vmatprep.subr.mxu0 0.0
  %10819 = vmatpush1.msra.mxu0 %v7765
  %10820 = vmatprep.subr.mxu0 0.0
  %10821 = vmatpush1.msra.mxu0 %v7764
  %10822 = vmatprep.subr.mxu0 0.0
  %10823 = vmatpush1.msra.mxu0 %v7763
  %10824 = vmatprep.subr.mxu0 0.0
  %10825 = vmatpush2.msra.mxu0 0.0
  %10826 = vmatprep.subr.mxu0 0.0
  %10827 = vmatpush2.msra.mxu0 0.0
  %10828 = vmatprep.subr.mxu0 0.0
  %10829 = vmatpush2.msra.mxu0 0.0
  %10830 = vmatprep.subr.mxu0 0.0
  %10831 = vmatpush2.msra.mxu0 0.0
  %10832 = vmatprep.subr.mxu0 0.0
  %10833 = vmatpush2.msra.mxu0 0.0
  %10834 = vmatprep.subr.mxu0 0.0
  %10835 = vmatpush2.msra.mxu0 0.0
  %10836 = vmatprep.subr.mxu0 0.0
  %10837 = vmatpush2.msra.mxu0 0.0
  %10838 = vmatprep.subr.mxu0 0.0
  %10839 = vmatpush2.msra.mxu0 0.0
  %10840 = vmatprep.subr.mxu0 0.0
  %10841 = vmatpush2.msra.mxu0 0.0
  %10842 = vmatprep.subr.mxu0 0.0
  %10843 = vmatpush2.msra.mxu0 0.0
  %10844 = vmatprep.subr.mxu0 0.0
  %10845 = vmatpush2.msra.mxu0 0.0
  %10846 = vmatprep.subr.mxu0 0.0
  %10847 = vmatpush2.msra.mxu0 0.0
  %10848 = vmatprep.subr.mxu0 0.0
  %10849 = vmatpush2.msra.mxu0 0.0
  %10850 = vmatprep.subr.mxu0 0.0
  %10851 = vmatpush2.msra.mxu0 0.0
  %10852 = vmatprep.subr.mxu0 0.0
  %10853 = vmatpush2.msra.mxu0 0.0
  %10854 = vmatprep.subr.mxu0 0.0
  %10855 = vmatpush2.msra.mxu0 0.0
  %10856 = vmatprep.mubr.f32.mxu0 0.0
  %10857 = vmatmul.mubr.f32.gmra.mxu0 %v10790
  %v10858 = vpop.f32.mrf.mxu0
  %v10859 = vadd.f32 0.0, %v10858
  %v10860 = vpop.f32.mrf.mxu0
  %10861 = vdwg.mxu0
  %s10862 = scalar_lea.vmem %s16, 2304
  %v10863 = vld [vmem:[%s10862] sm:$0xff]
  %v10864 = vld [vmem:[%s10862 + $0x8] sm:$0xff]
  %v10865 = vld [vmem:[%s10862 + $0x10] sm:$0xff]
  %v10866 = vld [vmem:[%s10862 + $0x18] sm:$0xff]
  %v10867 = vld [vmem:[%s10862 + $0x20] sm:$0xff]
  %v10868 = vld [vmem:[%s10862 + $0x28] sm:$0xff]
  %v10869 = vld [vmem:[%s10862 + $0x30] sm:$0xff]
  %v10870 = vld [vmem:[%s10862 + $0x38] sm:$0xff]
  %v10871 = vld [vmem:[%s10862 + $0x40] sm:$0xff]
  %v10872 = vld [vmem:[%s10862 + $0x48] sm:$0xff]
  %v10873 = vld [vmem:[%s10862 + $0x50] sm:$0xff]
  %v10874 = vld [vmem:[%s10862 + $0x58] sm:$0xff]
  %v10875 = vld [vmem:[%s10862 + $0x60] sm:$0xff]
  %v10876 = vld [vmem:[%s10862 + $0x68] sm:$0xff]
  %v10877 = vld [vmem:[%s10862 + $0x70] sm:$0xff]
  %v10878 = vld [vmem:[%s10862 + $0x78] sm:$0xff]
  %v10880 = vsel %vm7682, %v10859, 0
  %10882 = vmatprep.subr.mxu0 0.0
  %10883 = vmatpush1.msra.mxu0 0.0
  %10884 = vmatprep.subr.mxu0 0.0
  %10885 = vmatpush1.msra.mxu0 0.0
  %10886 = vmatprep.subr.mxu0 0.0
  %10887 = vmatpush1.msra.mxu0 0.0
  %10888 = vmatprep.subr.mxu0 0.0
  %10889 = vmatpush1.msra.mxu0 0.0
  %10890 = vmatprep.subr.mxu0 0.0
  %10891 = vmatpush1.msra.mxu0 0.0
  %10892 = vmatprep.subr.mxu0 0.0
  %10893 = vmatpush1.msra.mxu0 0.0
  %10894 = vmatprep.subr.mxu0 0.0
  %10895 = vmatpush1.msra.mxu0 0.0
  %10896 = vmatprep.subr.mxu0 0.0
  %10897 = vmatpush1.msra.mxu0 0.0
  %10898 = vmatprep.subr.mxu0 %v10878
  %10899 = vmatpush1.msra.mxu0 %v10877
  %10900 = vmatprep.subr.mxu0 %v10876
  %10901 = vmatpush1.msra.mxu0 %v10875
  %10902 = vmatprep.subr.mxu0 %v10874
  %10903 = vmatpush1.msra.mxu0 %v10873
  %10904 = vmatprep.subr.mxu0 %v10872
  %10905 = vmatpush1.msra.mxu0 %v10871
  %10906 = vmatprep.subr.mxu0 %v10870
  %10907 = vmatpush1.msra.mxu0 %v10869
  %10908 = vmatprep.subr.mxu0 %v10868
  %10909 = vmatpush1.msra.mxu0 %v10867
  %10910 = vmatprep.subr.mxu0 %v10866
  %10911 = vmatpush1.msra.mxu0 %v10865
  %10912 = vmatprep.subr.mxu0 %v10864
  %10913 = vmatpush1.msra.mxu0 %v10863
  %10914 = vmatprep.subr.mxu0 0.0
  %10915 = vmatpush2.msra.mxu0 0.0
  %10916 = vmatprep.subr.mxu0 0.0
  %10917 = vmatpush2.msra.mxu0 0.0
  %10918 = vmatprep.subr.mxu0 0.0
  %10919 = vmatpush2.msra.mxu0 0.0
  %10920 = vmatprep.subr.mxu0 0.0
  %10921 = vmatpush2.msra.mxu0 0.0
  %10922 = vmatprep.subr.mxu0 0.0
  %10923 = vmatpush2.msra.mxu0 0.0
  %10924 = vmatprep.subr.mxu0 0.0
  %10925 = vmatpush2.msra.mxu0 0.0
  %10926 = vmatprep.subr.mxu0 0.0
  %10927 = vmatpush2.msra.mxu0 0.0
  %10928 = vmatprep.subr.mxu0 0.0
  %10929 = vmatpush2.msra.mxu0 0.0
  %10930 = vmatprep.subr.mxu0 0.0
  %10931 = vmatpush2.msra.mxu0 0.0
  %10932 = vmatprep.subr.mxu0 0.0
  %10933 = vmatpush2.msra.mxu0 0.0
  %10934 = vmatprep.subr.mxu0 0.0
  %10935 = vmatpush2.msra.mxu0 0.0
  %10936 = vmatprep.subr.mxu0 0.0
  %10937 = vmatpush2.msra.mxu0 0.0
  %10938 = vmatprep.subr.mxu0 0.0
  %10939 = vmatpush2.msra.mxu0 0.0
  %10940 = vmatprep.subr.mxu0 0.0
  %10941 = vmatpush2.msra.mxu0 0.0
  %10942 = vmatprep.subr.mxu0 0.0
  %10943 = vmatpush2.msra.mxu0 0.0
  %10944 = vmatprep.subr.mxu0 0.0
  %10945 = vmatpush2.msra.mxu0 0.0
  %10946 = vmatprep.mubr.f32.mxu0 0.0
  %10947 = vmatmul.mubr.f32.gmra.mxu0 %v10880
  %v10948 = vpop.f32.mrf.mxu0
  %v10949 = vadd.f32 0.0, %v10948
  %v10950 = vpop.f32.mrf.mxu0
  %v10951 = vadd.f32 0.0, %v10950
  %10952 = vdwg.mxu0
  %v10953 = vadd.f32 %v10785, %v10949
  %v10954 = vadd.f32 %v10786, %v10951
  %s10955 = scalar_lea.vmem %s15, 38
  %v10956 = vld [vmem:[%s10955] sm:$0x3]
  %v10958 = vsel %vm7769, %v10956, 0
  %10960 = vmatprep.subr.mxu0 0.0
  %10961 = vmatpush1.msra.mxu0 0.0
  %10962 = vmatprep.subr.mxu0 0.0
  %10963 = vmatpush1.msra.mxu0 0.0
  %10964 = vmatprep.subr.mxu0 0.0
  %10965 = vmatpush1.msra.mxu0 0.0
  %10966 = vmatprep.subr.mxu0 0.0
  %10967 = vmatpush1.msra.mxu0 0.0
  %10968 = vmatprep.subr.mxu0 0.0
  %10969 = vmatpush1.msra.mxu0 0.0
  %10970 = vmatprep.subr.mxu0 0.0
  %10971 = vmatpush1.msra.mxu0 0.0
  %10972 = vmatprep.subr.mxu0 0.0
  %10973 = vmatpush1.msra.mxu0 0.0
  %10974 = vmatprep.subr.mxu0 0.0
  %10975 = vmatpush1.msra.mxu0 0.0
  %10976 = vmatprep.subr.mxu0 0.0
  %10977 = vmatpush1.msra.mxu0 0.0
  %10978 = vmatprep.subr.mxu0 0.0
  %10979 = vmatpush1.msra.mxu0 0.0
  %10980 = vmatprep.subr.mxu0 0.0
  %10981 = vmatpush1.msra.mxu0 0.0
  %10982 = vmatprep.subr.mxu0 0.0
  %10983 = vmatpush1.msra.mxu0 %v7767
  %10984 = vmatprep.subr.mxu0 0.0
  %10985 = vmatpush1.msra.mxu0 %v7766
  %10986 = vmatprep.subr.mxu0 0.0
  %10987 = vmatpush1.msra.mxu0 %v7765
  %10988 = vmatprep.subr.mxu0 0.0
  %10989 = vmatpush1.msra.mxu0 %v7764
  %10990 = vmatprep.subr.mxu0 0.0
  %10991 = vmatpush1.msra.mxu0 %v7763
  %10992 = vmatprep.subr.mxu0 0.0
  %10993 = vmatpush2.msra.mxu0 0.0
  %10994 = vmatprep.subr.mxu0 0.0
  %10995 = vmatpush2.msra.mxu0 0.0
  %10996 = vmatprep.subr.mxu0 0.0
  %10997 = vmatpush2.msra.mxu0 0.0
  %10998 = vmatprep.subr.mxu0 0.0
  %10999 = vmatpush2.msra.mxu0 0.0
  %11000 = vmatprep.subr.mxu0 0.0
  %11001 = vmatpush2.msra.mxu0 0.0
  %11002 = vmatprep.subr.mxu0 0.0
  %11003 = vmatpush2.msra.mxu0 0.0
  %11004 = vmatprep.subr.mxu0 0.0
  %11005 = vmatpush2.msra.mxu0 0.0
  %11006 = vmatprep.subr.mxu0 0.0
  %11007 = vmatpush2.msra.mxu0 0.0
  %11008 = vmatprep.subr.mxu0 0.0
  %11009 = vmatpush2.msra.mxu0 0.0
  %11010 = vmatprep.subr.mxu0 0.0
  %11011 = vmatpush2.msra.mxu0 0.0
  %11012 = vmatprep.subr.mxu0 0.0
  %11013 = vmatpush2.msra.mxu0 0.0
  %11014 = vmatprep.subr.mxu0 0.0
  %11015 = vmatpush2.msra.mxu0 0.0
  %11016 = vmatprep.subr.mxu0 0.0
  %11017 = vmatpush2.msra.mxu0 0.0
  %11018 = vmatprep.subr.mxu0 0.0
  %11019 = vmatpush2.msra.mxu0 0.0
  %11020 = vmatprep.subr.mxu0 0.0
  %11021 = vmatpush2.msra.mxu0 0.0
  %11022 = vmatprep.subr.mxu0 0.0
  %11023 = vmatpush2.msra.mxu0 0.0
  %11024 = vmatprep.mubr.f32.mxu0 0.0
  %11025 = vmatmul.mubr.f32.gmra.mxu0 %v10958
  %v11026 = vpop.f32.mrf.mxu0
  %v11027 = vadd.f32 0.0, %v11026
  %v11028 = vpop.f32.mrf.mxu0
  %11029 = vdwg.mxu0
  %s11030 = scalar_lea.vmem %s16, 2432
  %v11031 = vld [vmem:[%s11030] sm:$0xff]
  %v11032 = vld [vmem:[%s11030 + $0x8] sm:$0xff]
  %v11033 = vld [vmem:[%s11030 + $0x10] sm:$0xff]
  %v11034 = vld [vmem:[%s11030 + $0x18] sm:$0xff]
  %v11035 = vld [vmem:[%s11030 + $0x20] sm:$0xff]
  %v11036 = vld [vmem:[%s11030 + $0x28] sm:$0xff]
  %v11037 = vld [vmem:[%s11030 + $0x30] sm:$0xff]
  %v11038 = vld [vmem:[%s11030 + $0x38] sm:$0xff]
  %v11039 = vld [vmem:[%s11030 + $0x40] sm:$0xff]
  %v11040 = vld [vmem:[%s11030 + $0x48] sm:$0xff]
  %v11041 = vld [vmem:[%s11030 + $0x50] sm:$0xff]
  %v11042 = vld [vmem:[%s11030 + $0x58] sm:$0xff]
  %v11043 = vld [vmem:[%s11030 + $0x60] sm:$0xff]
  %v11044 = vld [vmem:[%s11030 + $0x68] sm:$0xff]
  %v11045 = vld [vmem:[%s11030 + $0x70] sm:$0xff]
  %v11046 = vld [vmem:[%s11030 + $0x78] sm:$0xff]
  %v11048 = vsel %vm7682, %v11027, 0
  %11050 = vmatprep.subr.mxu0 0.0
  %11051 = vmatpush1.msra.mxu0 0.0
  %11052 = vmatprep.subr.mxu0 0.0
  %11053 = vmatpush1.msra.mxu0 0.0
  %11054 = vmatprep.subr.mxu0 0.0
  %11055 = vmatpush1.msra.mxu0 0.0
  %11056 = vmatprep.subr.mxu0 0.0
  %11057 = vmatpush1.msra.mxu0 0.0
  %11058 = vmatprep.subr.mxu0 0.0
  %11059 = vmatpush1.msra.mxu0 0.0
  %11060 = vmatprep.subr.mxu0 0.0
  %11061 = vmatpush1.msra.mxu0 0.0
  %11062 = vmatprep.subr.mxu0 0.0
  %11063 = vmatpush1.msra.mxu0 0.0
  %11064 = vmatprep.subr.mxu0 0.0
  %11065 = vmatpush1.msra.mxu0 0.0
  %11066 = vmatprep.subr.mxu0 %v11046
  %11067 = vmatpush1.msra.mxu0 %v11045
  %11068 = vmatprep.subr.mxu0 %v11044
  %11069 = vmatpush1.msra.mxu0 %v11043
  %11070 = vmatprep.subr.mxu0 %v11042
  %11071 = vmatpush1.msra.mxu0 %v11041
  %11072 = vmatprep.subr.mxu0 %v11040
  %11073 = vmatpush1.msra.mxu0 %v11039
  %11074 = vmatprep.subr.mxu0 %v11038
  %11075 = vmatpush1.msra.mxu0 %v11037
  %11076 = vmatprep.subr.mxu0 %v11036
  %11077 = vmatpush1.msra.mxu0 %v11035
  %11078 = vmatprep.subr.mxu0 %v11034
  %11079 = vmatpush1.msra.mxu0 %v11033
  %11080 = vmatprep.subr.mxu0 %v11032
  %11081 = vmatpush1.msra.mxu0 %v11031
  %11082 = vmatprep.subr.mxu0 0.0
  %11083 = vmatpush2.msra.mxu0 0.0
  %11084 = vmatprep.subr.mxu0 0.0
  %11085 = vmatpush2.msra.mxu0 0.0
  %11086 = vmatprep.subr.mxu0 0.0
  %11087 = vmatpush2.msra.mxu0 0.0
  %11088 = vmatprep.subr.mxu0 0.0
  %11089 = vmatpush2.msra.mxu0 0.0
  %11090 = vmatprep.subr.mxu0 0.0
  %11091 = vmatpush2.msra.mxu0 0.0
  %11092 = vmatprep.subr.mxu0 0.0
  %11093 = vmatpush2.msra.mxu0 0.0
  %11094 = vmatprep.subr.mxu0 0.0
  %11095 = vmatpush2.msra.mxu0 0.0
  %11096 = vmatprep.subr.mxu0 0.0
  %11097 = vmatpush2.msra.mxu0 0.0
  %11098 = vmatprep.subr.mxu0 0.0
  %11099 = vmatpush2.msra.mxu0 0.0
  %11100 = vmatprep.subr.mxu0 0.0
  %11101 = vmatpush2.msra.mxu0 0.0
  %11102 = vmatprep.subr.mxu0 0.0
  %11103 = vmatpush2.msra.mxu0 0.0
  %11104 = vmatprep.subr.mxu0 0.0
  %11105 = vmatpush2.msra.mxu0 0.0
  %11106 = vmatprep.subr.mxu0 0.0
  %11107 = vmatpush2.msra.mxu0 0.0
  %11108 = vmatprep.subr.mxu0 0.0
  %11109 = vmatpush2.msra.mxu0 0.0
  %11110 = vmatprep.subr.mxu0 0.0
  %11111 = vmatpush2.msra.mxu0 0.0
  %11112 = vmatprep.subr.mxu0 0.0
  %11113 = vmatpush2.msra.mxu0 0.0
  %11114 = vmatprep.mubr.f32.mxu0 0.0
  %11115 = vmatmul.mubr.f32.gmra.mxu0 %v11048
  %v11116 = vpop.f32.mrf.mxu0
  %v11117 = vadd.f32 0.0, %v11116
  %v11118 = vpop.f32.mrf.mxu0
  %v11119 = vadd.f32 0.0, %v11118
  %11120 = vdwg.mxu0
  %v11121 = vadd.f32 %v10953, %v11117
  %v11122 = vadd.f32 %v10954, %v11119
  %v11123 = vld [vmem:[%s17] sm:$0x3]
  %v11125 = vlaneseq
  %v11126 = vshrl.u32 %v11125, 7
  %v11127 = vsub.s32 0, %v11126
  %v11128 = vrot.slane %v11123, %v11127
  %v11129 = vlaneseq
  %v11130 = vshrl.u32 %v11129, 7
  %v11131 = vsub.s32 1, %v11130
  %v11132 = vrot.slane %v11123, %v11131
  %v11135 = vadd.f32 %v11121, %v11128
  %v11136 = vadd.f32 %v11122, %v11132
  %v11137 = vsub.f32 %v5519, %v11135
  %v11138 = vsub.f32 %v5520, %v11136
  %v11139 = vmul.f32 %v11137, %v11137
  %v11140 = vmul.f32 %v11138, %v11138
  %v11141 = vld [vmem:[%s18] sm:$0x3]
  %v11143 = vlaneseq
  %v11144 = vshrl.u32 %v11143, 7
  %v11145 = vsub.s32 0, %v11144
  %v11146 = vrot.slane %v11141, %v11145
  %v11147 = vlaneseq
  %v11148 = vshrl.u32 %v11147, 7
  %v11149 = vsub.s32 1, %v11148
  %v11150 = vrot.slane %v11141, %v11149
  %v11153 = vmul.f32 %v11139, %v11146
  %v11154 = vmul.f32 %v11140, %v11150
  %v11155 = vsel %vm678, %v11153, 0.0
  %v11156 = vsel %vm678, %v11154, 0.0
  %v11157 = vadd.f32 %v11155, %v11156
  %11158 = vadd.xlane.f32.xlu0 %v11157
  %v11159 = vpop.xlane.xlu0 %11158
  %v11160 = vld [vmem:[#allocation2] sm:$0x1]
  %v11162 = vlaneseq
  %v11163 = vshrl.u32 %v11162, 7
  %v11164 = vsub.s32 0, %v11163
  %v11165 = vrot.slane %v11160, %v11164
  %v11167 = vadd.f32 %v11159, %v11165
  %v11168 = vsub.f32 0.0, %v11167
  %v11169 = vmul.f32 %v11168, 1.442695
  %v11170 = vpow.pop %v11169
  %v11171 = vadd.f32 %v11170, 1.0
  %v11172 = vrcp.pop %v11171
  %v11173 = vmul.f32 1.0, %v11172
  %vm11174 = vcmask 1024
  %11175 = vst.msk [vmem:[%s20] sm:$0x3] %vm11174, %v11173
  // Predicated region
  $region82: #{sync_discriminator_forward.1} parent=0 // pred_check
    _
  $region83: #{sync_discriminator_forward.1} parent=0 // pred_check_branch
    %11177 = sbr.rel (0) target = $region85
  $region84: #{sync_discriminator_forward.1} parent=0 // pred_region
    _
  $region85: #{sync_discriminator_forward.1} parent=0 // pred_fallthru
    _
  // Predicated region
  $region86: #{sync_discriminator_forward.1} parent=0 // pred_check
    _
  $region87: #{sync_discriminator_forward.1} parent=0 // pred_check_branch
    %11179 = sbr.rel (0) target = $region89
  $region88: #{sync_discriminator_forward.1} parent=0 // pred_region
    _
  $region89: #{sync_discriminator_forward.1} parent=0 // pred_fallthru
    _

</llo_original>
